<compile_context>
chip_gen: v6e
topology: v6e:2x2x1
jax: 0.10.0
libtpu: 0.0.40
codegen_flags: <defaults>
</compile_context>

<pallas_src>
import jax
import jax.numpy as jnp
from jax.experimental import pallas as pl
from jax.experimental.pallas import tpu as pltpu

EMB = 256     # embedding width of processA/B/G outputs
HID1 = 1024   # per-head first-layer width (fused head layer is 2*HID1 wide)


def _round_up(x, m):
    return ((x + m - 1) // m) * m


# ---------------------------------------------------------------------------
# Capability probe: single-buffered (grid-invariant) inputs via pl.Buffered(1)
# ---------------------------------------------------------------------------

def _probe_single_buffer_mode():
    """Return pl.Buffered(1) if it lowers on this jax/libtpu, else None.

    Single-buffering the constant-index weight blocks saves ~5.7 MB of VMEM
    (they are fetched once and never change across batch tiles).  Fall back to
    the default double-buffering if the pipeline_mode is not supported --
    correctness is identical either way.
    """
    try:
        mode = pl.Buffered(1)

        def k(x_ref, o_ref):
            o_ref[...] = x_ref[...] + 1.0

        fn = pl.pallas_call(
            k,
            out_shape=jax.ShapeDtypeStruct((8, 128), jnp.float32),
            grid=(2,),
            in_specs=[pl.BlockSpec((8, 128), lambda i: (0, 0), pipeline_mode=mode)],
            out_specs=pl.BlockSpec((8, 128), lambda i: (0, 0)),
        )
        jax.jit(fn).lower(jnp.zeros((8, 128), jnp.float32)).compile()
        return mode
    except Exception:
        return None


_WEIGHT_PIPE_MODE = _probe_single_buffer_mode()


# ---------------------------------------------------------------------------
# Fused Pallas kernel
# ---------------------------------------------------------------------------

def _fused_kernel(
    # batch-tiled activations (bf16)
    dA_ref, dB_ref, g_ref,
    # processA / processB / processG  (weights bf16, biases f32)
    wa1_ref, ba1_ref, wa2_ref, ba2_ref,
    wb1_ref, bb1_ref, wb2_ref, bb2_ref,
    wg1_ref, bg1_ref, wg2_ref, bg2_ref,
    # heads: first layers of merged1+merged2 fused along N (cols [0:1024]=merged1,
    # [1024:2048]=merged2), pre-split by input source (split-K replaces torch.cat)
    hwA_ref, hwB_ref, hwG_ref, hb1_ref,
    # per-head second layers and 256->1 projections (w3 stored transposed, f32)
    m1w2_ref, m1b2_ref, m2w2_ref, m2b2_ref,
    m1w3_ref, m1b3_ref, m2w3_ref, m2b3_ref,
    # outputs
    xA_ref, xB_ref, xG_ref, heads_ref,
):
    f32 = jnp.float32
    bf16 = jnp.bfloat16

    def mm(x_bf16, w_ref):
        # bf16 x bf16 matmul on the MXU, f32 accumulation.
        return jnp.dot(x_bf16, w_ref[...], preferred_element_type=f32)

    def mlp2(x_bf16, w1_ref, b1_ref, w2_ref, b2_ref):
        # Linear -> ReLU -> (Dropout = identity) -> Linear -> ReLU
        h = jnp.maximum(mm(x_bf16, w1_ref) + b1_ref[...], 0.0)
        return jnp.maximum(mm(h.astype(bf16), w2_ref) + b2_ref[...], 0.0)

    xA = mlp2(dA_ref[...], wa1_ref, ba1_ref, wa2_ref, ba2_ref)
    xB = mlp2(dB_ref[...], wb1_ref, bb1_ref, wb2_ref, bb2_ref)
    xG = mlp2(g_ref[...], wg1_ref, bg1_ref, wg2_ref, bg2_ref)

    xA_ref[...] = xA.astype(xA_ref.dtype)
    xB_ref[...] = xB.astype(xB_ref.dtype)
    xG_ref[...] = xG.astype(xG_ref.dtype)

    # Cast once; the same bf16 copy feeds both heads (no redundant repacking).
    xA_bf = xA.astype(bf16)
    xB_bf = xB.astype(bf16)
    xG_bf = xG.astype(bf16)

    # Both heads' first layers in one accumulation chain:
    #   cat([xA,xB,xG]) @ W1_m1  and  cat([xB,xA,xG]) @ W1_m2
    # == xA @ hwA + xB @ hwB + xG @ hwG   with hw* pre-concatenated along N.
    h12 = mm(xA_bf, hwA_ref) + mm(xB_bf, hwB_ref) + mm(xG_bf, hwG_ref)
    h12 = jnp.maximum(h12 + hb1_ref[...], 0.0).astype(bf16)
    h1 = h12[:, :HID1]      # merged1 hidden (lane-aligned split, no copy)
    h2 = h12[:, HID1:]      # merged2 hidden

    z1 = jnp.maximum(mm(h1, m1w2_ref) + m1b2_ref[...], 0.0)
    z2 = jnp.maximum(mm(h2, m2w2_ref) + m2b2_ref[...], 0.0)

    # 256 -> 1 projections as VPU/XLU lane reductions (keeps the MXU pipe free),
    # followed by Hardtanh(-1, 1).
    out1 = jnp.clip(jnp.sum(z1 * m1w3_ref[...], axis=-1, keepdims=True) + m1b3_ref[...],
                    -1.0, 1.0)
    out2 = jnp.clip(jnp.sum(z2 * m2w3_ref[...], axis=-1, keepdims=True) + m2b3_ref[...],
                    -1.0, 1.0)
    m = 0.5 * (out1 + out2)   # == torch.mean(torch.stack([out1, out2], 0), 0)

    # Pack [out1 | out2 | m] into one (tb, 3) slab: single store.
    col = jax.lax.broadcasted_iota(jnp.int32, heads_ref.shape, 1)
    heads_ref[...] = jnp.where(col == 0, out1, jnp.where(col == 1, out2, m)
                               ).astype(heads_ref.dtype)


# ---------------------------------------------------------------------------
# Wrapper
# ---------------------------------------------------------------------------

def _pick_tiling(B):
    """Pick (tile_b, padded_B).

    Keeps the matmul M dimension large, guarantees >= 2 grid steps once B > 256
    (so the two v7x TensorCores both get tiles via the "parallel" batch axis),
    and pads the batch instead of collapsing to tiny tiles on awkward sizes.
    """
    if B <= 256:
        tb = _round_up(max(B, 8), 8)           # one full-batch tile
        return tb, tb
    for tb in (512, 256, 128):                 # >= 2 steps, <= 12.5% padded rows
        Bp = _round_up(B, tb)
        if Bp // tb >= 2 and (Bp - B) * 8 <= B:
            return tb, Bp
    tb = min(512, _round_up(pl.cdiv(B, 2), 8))  # two (or more) balanced tiles
    return tb, _round_up(B, tb)


def _vmem_limit_bytes(tb, in_dims, weights):
    """Derive the scoped-VMEM request from the actual buffer sizes."""
    w = sum(a.size * a.dtype.itemsize for a in weights)          # resident weights
    io = 2 * tb * (2 * sum(in_dims) + 3 * EMB * 4 + 3 * 4)        # 2x-buffered act tiles
    scratch = 4 * tb * (2 * HID1) * 4                             # in-kernel temporaries
    limit = 2 * w + io + scratch + (8 << 20)   # count weights 2x: safe even if double-buffered
    return int(max(24 << 20, min(limit, 48 << 20)))


def aug_ssp_pallas(weights, drugA, drugB, gene):
    B = drugA.shape[0]
    tb, Bp = _pick_tiling(B)
    grid = (Bp // tb,)

    def pad_cast(x):
        x = x.astype(jnp.bfloat16)                  # MXU-native inputs: half the DMA bytes
        if Bp != B:
            x = jnp.pad(x, ((0, Bp - B), (0, 0)))   # padded rows are sliced off below
        return x

    dA, dB, g = pad_cast(drugA), pad_cast(drugB), pad_cast(gene)

    def xspec(d):
        # batch-tiled activation / output block
        return pl.BlockSpec((tb, d), lambda i: (i, 0))

    def wspec(a):
        # constant block index -> weights stay resident in VMEM across batch tiles;
        # single-buffer them when the pipeline_mode is supported.
        if _WEIGHT_PIPE_MODE is not None:
            return pl.BlockSpec(a.shape, lambda i: (0, 0), pipeline_mode=_WEIGHT_PIPE_MODE)
        return pl.BlockSpec(a.shape, lambda i: (0, 0))

    in_specs = ([xspec(dA.shape[1]), xspec(dB.shape[1]), xspec(g.shape[1])]
                + [wspec(a) for a in weights])

    out_shape = (
        jax.ShapeDtypeStruct((Bp, EMB), jnp.float32),   # xA
        jax.ShapeDtypeStruct((Bp, EMB), jnp.float32),   # xB
        jax.ShapeDtypeStruct((Bp, EMB), jnp.float32),   # xG
        jax.ShapeDtypeStruct((Bp, 3), jnp.float32),     # packed [out1 | out2 | m]
    )
    out_specs = (xspec(EMB), xspec(EMB), xspec(EMB), xspec(3))

    xA, xB, xG, heads = pl.pallas_call(
        _fused_kernel,
        out_shape=out_shape,
        grid_spec=pltpu.PrefetchScalarGridSpec(
            num_scalar_prefetch=0,
            grid=grid,
            in_specs=in_specs,
            out_specs=out_specs,
        ),
        compiler_params=pltpu.CompilerParams(
            dimension_semantics=("parallel",),   # batch tiles shared by the 2 TCs on v7x
            vmem_limit_bytes=_vmem_limit_bytes(
                tb, (dA.shape[1], dB.shape[1], g.shape[1]), weights),
        ),
    )(dA, dB, g, *weights)

    out1 = heads[:B, 0:1]
    out2 = heads[:B, 1:2]
    m = heads[:B, 2:3]
    return m, out1, out2, xA[:B], xB[:B], xG[:B]


aug_ssp_forward = jax.jit(aug_ssp_pallas)


# ---------------------------------------------------------------------------
# Parameter setup (deterministic, synthetic) + bf16 / fused-head preparation
# ---------------------------------------------------------------------------

def _linear_params(key, in_dim, out_dim):
    kw, kb = jax.random.split(key)
    bound = 1.0 / jnp.sqrt(in_dim)
    w = jax.random.uniform(kw, (in_dim, out_dim), jnp.float32, -bound, bound)
    b = jax.random.uniform(kb, (1, out_dim), jnp.float32, -bound, bound)
    return w, b


def init_params(key, drug_dim, gene_dim):
    keys = jax.random.split(key, 12)
    params = {}
    params["processA"] = (*_linear_params(keys[0], drug_dim, 1024),
                          *_linear_params(keys[1], 1024, 256))
    params["processB"] = (*_linear_params(keys[2], drug_dim, 1024),
                          *_linear_params(keys[3], 1024, 256))
    params["processG"] = (*_linear_params(keys[4], gene_dim, 512),
                          *_linear_params(keys[5], 512, 256))
    params["merged1"] = (*_linear_params(keys[6], 256 * 3, 1024),
                         *_linear_params(keys[7], 1024, 256),
                         *_linear_params(keys[8], 256, 1))
    params["merged2"] = (*_linear_params(keys[9], 256 * 3, 1024),
                         *_linear_params(keys[10], 1024, 256),
                         *_linear_params(keys[11], 256, 1))
    return params


def prepare_params(params):
    """One-time prep: cast weights to bf16, fuse both heads' first layers along N
    (split by input source so the torch.cat becomes split-K matmuls), transpose the
    256->1 projection weights to (1, 256) f32 for the lane reduction.  Biases f32."""
    bf = lambda a: a.astype(jnp.bfloat16)

    wa1, ba1, wa2, ba2 = params["processA"]
    wb1, bb1, wb2, bb2 = params["processB"]
    wg1, bg1, wg2, bg2 = params["processG"]
    m1w1, m1b1, m1w2, m1b2, m1w3, m1b3 = params["merged1"]
    m2w1, m2b1, m2w2, m2b2, m2w3, m2b3 = params["merged2"]

    # Fused head layer-1: cols [0:1024] = merged1 (x1 = cat(xA, xB, xG)),
    #                     cols [1024:2048] = merged2 (x2 = cat(xB, xA, xG)).
    hwA = jnp.concatenate([m1w1[0:256],   m2w1[256:512]], axis=1)   # multiplies xA
    hwB = jnp.concatenate([m1w1[256:512], m2w1[0:256]],   axis=1)   # multiplies xB
    hwG = jnp.concatenate([m1w1[512:768], m2w1[512:768]], axis=1)   # multiplies xG
    hb1 = jnp.concatenate([m1b1, m2b1], axis=1)

    return (bf(wa1), ba1, bf(wa2), ba2,
            bf(wb1), bb1, bf(wb2), bb2,
            bf(wg1), bg1, bf(wg2), bg2,
            bf(hwA), bf(hwB), bf(hwG), hb1,
            bf(m1w2), m1b2, bf(m2w2), m2b2,
            m1w3.T, m1b3, m2w3.T, m2b3)


# ---------------------------------------------------------------------------
# Pure-JAX reference (mirrors the bf16 weight / activation quantization)
# ---------------------------------------------------------------------------

def _ref_forward(weights, drugA, drugB, gene):
    (wa1, ba1, wa2, ba2, wb1, bb1, wb2, bb2, wg1, bg1, wg2, bg2,
     hwA, hwB, hwG, hb1, m1w2, m1b2, m2w2, m2b2, m1w3, m1b3, m2w3, m2b3) = weights
    f32, bf16 = jnp.float32, jnp.bfloat16

    def mm(x, w):
        return jnp.dot(x.astype(bf16), w, preferred_element_type=f32)

    def mlp2(x, w1, b1, w2, b2):
        h = jnp.maximum(mm(x, w1) + b1, 0.0)
        return jnp.maximum(mm(h, w2) + b2, 0.0)

    xA = mlp2(drugA, wa1, ba1, wa2, ba2)
    xB = mlp2(drugB, wb1, bb1, wb2, bb2)
    xG = mlp2(gene.astype(f32), wg1, bg1, wg2, bg2)

    h12 = jnp.maximum(mm(xA, hwA) + mm(xB, hwB) + mm(xG, hwG) + hb1, 0.0)
    h1, h2 = h12[:, :HID1], h12[:, HID1:]
    z1 = jnp.maximum(mm(h1, m1w2) + m1b2, 0.0)
    z2 = jnp.maximum(mm(h2, m2w2) + m2b2, 0.0)
    out1 = jnp.clip(jnp.sum(z1 * m1w3, axis=-1, keepdims=True) + m1b3, -1.0, 1.0)
    out2 = jnp.clip(jnp.sum(z2 * m2w3, axis=-1, keepdims=True) + m2b3, -1.0, 1.0)
    m = 0.5 * (out1 + out2)
    return m, out1, out2, xA, xB, xG


# ---------------------------------------------------------------------------
# Demo / correctness check
# ---------------------------------------------------------------------------

if __name__ == "__main__":
    B, drug_dim, gene_dim = 8, 32, 64

    key = jax.random.PRNGKey(0)
    kp, ka, kb, kg = jax.random.split(key, 4)
    params = init_params(kp, drug_dim, gene_dim)
    weights = prepare_params(params)

    drugA = jax.random.normal(ka, (B, drug_dim), jnp.float32)
    drugB = jax.random.normal(kb, (B, drug_dim), jnp.float32)
    gene = jax.random.normal(kg, (B, gene_dim), jnp.float32)

    outs = jax.block_until_ready(aug_ssp_forward(weights, drugA, drugB, gene))
    refs = _ref_forward(weights, drugA, drugB, gene)

    names = ("m", "out1", "out2", "xA", "xB", "xG")
    for n, o, r in zip(names, outs, refs):
        assert o.shape == r.shape, (n, o.shape, r.shape)
        assert jnp.allclose(o, r, atol=1e-2, rtol=1e-2), n

    print("KERNEL_OK")
</pallas_src>

<mosaic_0001>
module attributes {stable_mosaic.version = 11 : i64} {
  func.func @_fused_kernel(%arg0: i32, %arg1: memref<8x32xbf16, #tpu.memory_space<vmem>>, %arg2: memref<8x32xbf16, #tpu.memory_space<vmem>>, %arg3: memref<8x64xbf16, #tpu.memory_space<vmem>>, %arg4: memref<32x1024xbf16, #tpu.memory_space<vmem>>, %arg5: memref<1x1024xf32, #tpu.memory_space<vmem>>, %arg6: memref<1024x256xbf16, #tpu.memory_space<vmem>>, %arg7: memref<1x256xf32, #tpu.memory_space<vmem>>, %arg8: memref<32x1024xbf16, #tpu.memory_space<vmem>>, %arg9: memref<1x1024xf32, #tpu.memory_space<vmem>>, %arg10: memref<1024x256xbf16, #tpu.memory_space<vmem>>, %arg11: memref<1x256xf32, #tpu.memory_space<vmem>>, %arg12: memref<64x512xbf16, #tpu.memory_space<vmem>>, %arg13: memref<1x512xf32, #tpu.memory_space<vmem>>, %arg14: memref<512x256xbf16, #tpu.memory_space<vmem>>, %arg15: memref<1x256xf32, #tpu.memory_space<vmem>>, %arg16: memref<256x2048xbf16, #tpu.memory_space<vmem>>, %arg17: memref<256x2048xbf16, #tpu.memory_space<vmem>>, %arg18: memref<256x2048xbf16, #tpu.memory_space<vmem>>, %arg19: memref<1x2048xf32, #tpu.memory_space<vmem>>, %arg20: memref<1024x256xbf16, #tpu.memory_space<vmem>>, %arg21: memref<1x256xf32, #tpu.memory_space<vmem>>, %arg22: memref<1024x256xbf16, #tpu.memory_space<vmem>>, %arg23: memref<1x256xf32, #tpu.memory_space<vmem>>, %arg24: memref<1x256xf32, #tpu.memory_space<vmem>>, %arg25: memref<1x1xf32, #tpu.memory_space<vmem>>, %arg26: memref<1x256xf32, #tpu.memory_space<vmem>>, %arg27: memref<1x1xf32, #tpu.memory_space<vmem>>, %arg28: memref<8x256xf32, #tpu.memory_space<vmem>>, %arg29: memref<8x256xf32, #tpu.memory_space<vmem>>, %arg30: memref<8x256xf32, #tpu.memory_space<vmem>>, %arg31: memref<8x3xf32, #tpu.memory_space<vmem>>) attributes {dimension_semantics = [#tpu.dimension_semantics<parallel>], iteration_bounds = array<i64: 1>, scalar_prefetch = 0 : i64, scratch_operands = 0 : i64, tpu.core_type = #tpu.core_type<tc>, window_params = [{transform_indices = @transform_0, window_bounds = array<i64: 8, 32>}, {transform_indices = @transform_1, window_bounds = array<i64: 8, 32>}, {transform_indices = @transform_2, window_bounds = array<i64: 8, 64>}, {pipeline_mode = #tpu.pipeline_mode<synchronous>, transform_indices = @transform_3, window_bounds = array<i64: 32, 1024>}, {pipeline_mode = #tpu.pipeline_mode<synchronous>, transform_indices = @transform_4, window_bounds = array<i64: 1, 1024>}, {pipeline_mode = #tpu.pipeline_mode<synchronous>, transform_indices = @transform_5, window_bounds = array<i64: 1024, 256>}, {pipeline_mode = #tpu.pipeline_mode<synchronous>, transform_indices = @transform_6, window_bounds = array<i64: 1, 256>}, {pipeline_mode = #tpu.pipeline_mode<synchronous>, transform_indices = @transform_7, window_bounds = array<i64: 32, 1024>}, {pipeline_mode = #tpu.pipeline_mode<synchronous>, transform_indices = @transform_8, window_bounds = array<i64: 1, 1024>}, {pipeline_mode = #tpu.pipeline_mode<synchronous>, transform_indices = @transform_9, window_bounds = array<i64: 1024, 256>}, {pipeline_mode = #tpu.pipeline_mode<synchronous>, transform_indices = @transform_10, window_bounds = array<i64: 1, 256>}, {pipeline_mode = #tpu.pipeline_mode<synchronous>, transform_indices = @transform_11, window_bounds = array<i64: 64, 512>}, {pipeline_mode = #tpu.pipeline_mode<synchronous>, transform_indices = @transform_12, window_bounds = array<i64: 1, 512>}, {pipeline_mode = #tpu.pipeline_mode<synchronous>, transform_indices = @transform_13, window_bounds = array<i64: 512, 256>}, {pipeline_mode = #tpu.pipeline_mode<synchronous>, transform_indices = @transform_14, window_bounds = array<i64: 1, 256>}, {pipeline_mode = #tpu.pipeline_mode<synchronous>, transform_indices = @transform_15, window_bounds = array<i64: 256, 2048>}, {pipeline_mode = #tpu.pipeline_mode<synchronous>, transform_indices = @transform_16, window_bounds = array<i64: 256, 2048>}, {pipeline_mode = #tpu.pipeline_mode<synchronous>, transform_indices = @transform_17, window_bounds = array<i64: 256, 2048>}, {pipeline_mode = #tpu.pipeline_mode<synchronous>, transform_indices = @transform_18, window_bounds = array<i64: 1, 2048>}, {pipeline_mode = #tpu.pipeline_mode<synchronous>, transform_indices = @transform_19, window_bounds = array<i64: 1024, 256>}, {pipeline_mode = #tpu.pipeline_mode<synchronous>, transform_indices = @transform_20, window_bounds = array<i64: 1, 256>}, {pipeline_mode = #tpu.pipeline_mode<synchronous>, transform_indices = @transform_21, window_bounds = array<i64: 1024, 256>}, {pipeline_mode = #tpu.pipeline_mode<synchronous>, transform_indices = @transform_22, window_bounds = array<i64: 1, 256>}, {pipeline_mode = #tpu.pipeline_mode<synchronous>, transform_indices = @transform_23, window_bounds = array<i64: 1, 256>}, {pipeline_mode = #tpu.pipeline_mode<synchronous>, transform_indices = @transform_24, window_bounds = array<i64: 1, 1>}, {pipeline_mode = #tpu.pipeline_mode<synchronous>, transform_indices = @transform_25, window_bounds = array<i64: 1, 256>}, {pipeline_mode = #tpu.pipeline_mode<synchronous>, transform_indices = @transform_26, window_bounds = array<i64: 1, 1>}, {transform_indices = @transform_27, window_bounds = array<i64: 8, 256>}, {transform_indices = @transform_28, window_bounds = array<i64: 8, 256>}, {transform_indices = @transform_29, window_bounds = array<i64: 8, 256>}, {transform_indices = @transform_30, window_bounds = array<i64: 8, 3>}]} {
    %c0 = arith.constant 0 : index
    %c0_0 = arith.constant 0 : index
    %0 = vector.load %arg1[%c0, %c0_0] : memref<8x32xbf16, #tpu.memory_space<vmem>>, vector<8x32xbf16>
    %c0_1 = arith.constant 0 : index
    %c0_2 = arith.constant 0 : index
    %1 = vector.load %arg4[%c0_1, %c0_2] : memref<32x1024xbf16, #tpu.memory_space<vmem>>, vector<32x1024xbf16>
    %cst = arith.constant dense<0.000000e+00> : vector<8x1024xf32>
    %2 = tpu.matmul %0, %1, %cst {dimension_numbers = #tpu.dot_dimension_numbers<[1], [0], [0], [1], [0, 0, 1, 1], [], []>} : vector<8x32xbf16>, vector<32x1024xbf16>, vector<8x1024xf32> -> vector<8x1024xf32>
    %c0_3 = arith.constant 0 : index
    %c0_4 = arith.constant 0 : index
    %3 = vector.load %arg5[%c0_3, %c0_4] : memref<1x1024xf32, #tpu.memory_space<vmem>>, vector<1x1024xf32>
    %4 = vector.broadcast %3 : vector<1x1024xf32> to vector<8x1024xf32>
    %5 = arith.addf %2, %4 : vector<8x1024xf32>
    %cst_5 = arith.constant 0.000000e+00 : f32
    %6 = vector.broadcast %cst_5 : f32 to vector<8x1024xf32>
    %7 = arith.maximumf %5, %6 : vector<8x1024xf32>
    %8 = arith.truncf %7 : vector<8x1024xf32> to vector<8x1024xbf16>
    %c0_6 = arith.constant 0 : index
    %c0_7 = arith.constant 0 : index
    %9 = vector.load %arg6[%c0_6, %c0_7] : memref<1024x256xbf16, #tpu.memory_space<vmem>>, vector<1024x256xbf16>
    %cst_8 = arith.constant dense<0.000000e+00> : vector<8x256xf32>
    %10 = tpu.matmul %8, %9, %cst_8 {dimension_numbers = #tpu.dot_dimension_numbers<[1], [0], [0], [1], [0, 0, 1, 1], [], []>} : vector<8x1024xbf16>, vector<1024x256xbf16>, vector<8x256xf32> -> vector<8x256xf32>
    %c0_9 = arith.constant 0 : index
    %c0_10 = arith.constant 0 : index
    %11 = vector.load %arg7[%c0_9, %c0_10] : memref<1x256xf32, #tpu.memory_space<vmem>>, vector<1x256xf32>
    %12 = vector.broadcast %11 : vector<1x256xf32> to vector<8x256xf32>
    %13 = arith.addf %10, %12 : vector<8x256xf32>
    %cst_11 = arith.constant 0.000000e+00 : f32
    %14 = vector.broadcast %cst_11 : f32 to vector<8x256xf32>
    %15 = arith.maximumf %13, %14 : vector<8x256xf32>
    %c0_12 = arith.constant 0 : index
    %c0_13 = arith.constant 0 : index
    %16 = vector.load %arg2[%c0_12, %c0_13] : memref<8x32xbf16, #tpu.memory_space<vmem>>, vector<8x32xbf16>
    %c0_14 = arith.constant 0 : index
    %c0_15 = arith.constant 0 : index
    %17 = vector.load %arg8[%c0_14, %c0_15] : memref<32x1024xbf16, #tpu.memory_space<vmem>>, vector<32x1024xbf16>
    %cst_16 = arith.constant dense<0.000000e+00> : vector<8x1024xf32>
    %18 = tpu.matmul %16, %17, %cst_16 {dimension_numbers = #tpu.dot_dimension_numbers<[1], [0], [0], [1], [0, 0, 1, 1], [], []>} : vector<8x32xbf16>, vector<32x1024xbf16>, vector<8x1024xf32> -> vector<8x1024xf32>
    %c0_17 = arith.constant 0 : index
    %c0_18 = arith.constant 0 : index
    %19 = vector.load %arg9[%c0_17, %c0_18] : memref<1x1024xf32, #tpu.memory_space<vmem>>, vector<1x1024xf32>
    %20 = vector.broadcast %19 : vector<1x1024xf32> to vector<8x1024xf32>
    %21 = arith.addf %18, %20 : vector<8x1024xf32>
    %cst_19 = arith.constant 0.000000e+00 : f32
    %22 = vector.broadcast %cst_19 : f32 to vector<8x1024xf32>
    %23 = arith.maximumf %21, %22 : vector<8x1024xf32>
    %24 = arith.truncf %23 : vector<8x1024xf32> to vector<8x1024xbf16>
    %c0_20 = arith.constant 0 : index
    %c0_21 = arith.constant 0 : index
    %25 = vector.load %arg10[%c0_20, %c0_21] : memref<1024x256xbf16, #tpu.memory_space<vmem>>, vector<1024x256xbf16>
    %cst_22 = arith.constant dense<0.000000e+00> : vector<8x256xf32>
    %26 = tpu.matmul %24, %25, %cst_22 {dimension_numbers = #tpu.dot_dimension_numbers<[1], [0], [0], [1], [0, 0, 1, 1], [], []>} : vector<8x1024xbf16>, vector<1024x256xbf16>, vector<8x256xf32> -> vector<8x256xf32>
    %c0_23 = arith.constant 0 : index
    %c0_24 = arith.constant 0 : index
    %27 = vector.load %arg11[%c0_23, %c0_24] : memref<1x256xf32, #tpu.memory_space<vmem>>, vector<1x256xf32>
    %28 = vector.broadcast %27 : vector<1x256xf32> to vector<8x256xf32>
    %29 = arith.addf %26, %28 : vector<8x256xf32>
    %cst_25 = arith.constant 0.000000e+00 : f32
    %30 = vector.broadcast %cst_25 : f32 to vector<8x256xf32>
    %31 = arith.maximumf %29, %30 : vector<8x256xf32>
    %c0_26 = arith.constant 0 : index
    %c0_27 = arith.constant 0 : index
    %32 = vector.load %arg3[%c0_26, %c0_27] : memref<8x64xbf16, #tpu.memory_space<vmem>>, vector<8x64xbf16>
    %c0_28 = arith.constant 0 : index
    %c0_29 = arith.constant 0 : index
    %33 = vector.load %arg12[%c0_28, %c0_29] : memref<64x512xbf16, #tpu.memory_space<vmem>>, vector<64x512xbf16>
    %cst_30 = arith.constant dense<0.000000e+00> : vector<8x512xf32>
    %34 = tpu.matmul %32, %33, %cst_30 {dimension_numbers = #tpu.dot_dimension_numbers<[1], [0], [0], [1], [0, 0, 1, 1], [], []>} : vector<8x64xbf16>, vector<64x512xbf16>, vector<8x512xf32> -> vector<8x512xf32>
    %c0_31 = arith.constant 0 : index
    %c0_32 = arith.constant 0 : index
    %35 = vector.load %arg13[%c0_31, %c0_32] : memref<1x512xf32, #tpu.memory_space<vmem>>, vector<1x512xf32>
    %36 = vector.broadcast %35 : vector<1x512xf32> to vector<8x512xf32>
    %37 = arith.addf %34, %36 : vector<8x512xf32>
    %cst_33 = arith.constant 0.000000e+00 : f32
    %38 = vector.broadcast %cst_33 : f32 to vector<8x512xf32>
    %39 = arith.maximumf %37, %38 : vector<8x512xf32>
    %40 = arith.truncf %39 : vector<8x512xf32> to vector<8x512xbf16>
    %c0_34 = arith.constant 0 : index
    %c0_35 = arith.constant 0 : index
    %41 = vector.load %arg14[%c0_34, %c0_35] : memref<512x256xbf16, #tpu.memory_space<vmem>>, vector<512x256xbf16>
    %cst_36 = arith.constant dense<0.000000e+00> : vector<8x256xf32>
    %42 = tpu.matmul %40, %41, %cst_36 {dimension_numbers = #tpu.dot_dimension_numbers<[1], [0], [0], [1], [0, 0, 1, 1], [], []>} : vector<8x512xbf16>, vector<512x256xbf16>, vector<8x256xf32> -> vector<8x256xf32>
    %c0_37 = arith.constant 0 : index
    %c0_38 = arith.constant 0 : index
    %43 = vector.load %arg15[%c0_37, %c0_38] : memref<1x256xf32, #tpu.memory_space<vmem>>, vector<1x256xf32>
    %44 = vector.broadcast %43 : vector<1x256xf32> to vector<8x256xf32>
    %45 = arith.addf %42, %44 : vector<8x256xf32>
    %cst_39 = arith.constant 0.000000e+00 : f32
    %46 = vector.broadcast %cst_39 : f32 to vector<8x256xf32>
    %47 = arith.maximumf %45, %46 : vector<8x256xf32>
    %c0_40 = arith.constant 0 : index
    %c0_41 = arith.constant 0 : index
    %48 = vector.load %arg28[%c0_40, %c0_41] : memref<8x256xf32, #tpu.memory_space<vmem>>, vector<8x256xf32>
    tpu.vector_store %arg28[%c0_40, %c0_41], %15 {strides = array<i32>} : memref<8x256xf32, #tpu.memory_space<vmem>>, vector<8x256xf32>,
    %c0_42 = arith.constant 0 : index
    %c0_43 = arith.constant 0 : index
    %49 = vector.load %arg29[%c0_42, %c0_43] : memref<8x256xf32, #tpu.memory_space<vmem>>, vector<8x256xf32>
    tpu.vector_store %arg29[%c0_42, %c0_43], %31 {strides = array<i32>} : memref<8x256xf32, #tpu.memory_space<vmem>>, vector<8x256xf32>,
    %c0_44 = arith.constant 0 : index
    %c0_45 = arith.constant 0 : index
    %50 = vector.load %arg30[%c0_44, %c0_45] : memref<8x256xf32, #tpu.memory_space<vmem>>, vector<8x256xf32>
    tpu.vector_store %arg30[%c0_44, %c0_45], %47 {strides = array<i32>} : memref<8x256xf32, #tpu.memory_space<vmem>>, vector<8x256xf32>,
    %51 = arith.truncf %15 : vector<8x256xf32> to vector<8x256xbf16>
    %52 = arith.truncf %31 : vector<8x256xf32> to vector<8x256xbf16>
    %53 = arith.truncf %47 : vector<8x256xf32> to vector<8x256xbf16>
    %c0_46 = arith.constant 0 : index
    %c0_47 = arith.constant 0 : index
    %54 = vector.load %arg16[%c0_46, %c0_47] : memref<256x2048xbf16, #tpu.memory_space<vmem>>, vector<256x2048xbf16>
    %cst_48 = arith.constant dense<0.000000e+00> : vector<8x2048xf32>
    %55 = tpu.matmul %51, %54, %cst_48 {dimension_numbers = #tpu.dot_dimension_numbers<[1], [0], [0], [1], [0, 0, 1, 1], [], []>} : vector<8x256xbf16>, vector<256x2048xbf16>, vector<8x2048xf32> -> vector<8x2048xf32>
    %c0_49 = arith.constant 0 : index
    %c0_50 = arith.constant 0 : index
    %56 = vector.load %arg17[%c0_49, %c0_50] : memref<256x2048xbf16, #tpu.memory_space<vmem>>, vector<256x2048xbf16>
    %cst_51 = arith.constant dense<0.000000e+00> : vector<8x2048xf32>
    %57 = tpu.matmul %52, %56, %cst_51 {dimension_numbers = #tpu.dot_dimension_numbers<[1], [0], [0], [1], [0, 0, 1, 1], [], []>} : vector<8x256xbf16>, vector<256x2048xbf16>, vector<8x2048xf32> -> vector<8x2048xf32>
    %58 = arith.addf %55, %57 : vector<8x2048xf32>
    %c0_52 = arith.constant 0 : index
    %c0_53 = arith.constant 0 : index
    %59 = vector.load %arg18[%c0_52, %c0_53] : memref<256x2048xbf16, #tpu.memory_space<vmem>>, vector<256x2048xbf16>
    %cst_54 = arith.constant dense<0.000000e+00> : vector<8x2048xf32>
    %60 = tpu.matmul %53, %59, %cst_54 {dimension_numbers = #tpu.dot_dimension_numbers<[1], [0], [0], [1], [0, 0, 1, 1], [], []>} : vector<8x256xbf16>, vector<256x2048xbf16>, vector<8x2048xf32> -> vector<8x2048xf32>
    %61 = arith.addf %58, %60 : vector<8x2048xf32>
    %c0_55 = arith.constant 0 : index
    %c0_56 = arith.constant 0 : index
    %62 = vector.load %arg19[%c0_55, %c0_56] : memref<1x2048xf32, #tpu.memory_space<vmem>>, vector<1x2048xf32>
    %63 = vector.broadcast %62 : vector<1x2048xf32> to vector<8x2048xf32>
    %64 = arith.addf %61, %63 : vector<8x2048xf32>
    %cst_57 = arith.constant 0.000000e+00 : f32
    %65 = vector.broadcast %cst_57 : f32 to vector<8x2048xf32>
    %66 = arith.maximumf %64, %65 : vector<8x2048xf32>
    %67 = arith.truncf %66 : vector<8x2048xf32> to vector<8x2048xbf16>
    %68 = vector.extract_strided_slice %67 {offsets = [0, 0], sizes = [8, 1024], strides = [1, 1]} : vector<8x2048xbf16> to vector<8x1024xbf16>
    %69 = vector.extract_strided_slice %67 {offsets = [0, 1024], sizes = [8, 1024], strides = [1, 1]} : vector<8x2048xbf16> to vector<8x1024xbf16>
    %c0_58 = arith.constant 0 : index
    %c0_59 = arith.constant 0 : index
    %70 = vector.load %arg20[%c0_58, %c0_59] : memref<1024x256xbf16, #tpu.memory_space<vmem>>, vector<1024x256xbf16>
    %cst_60 = arith.constant dense<0.000000e+00> : vector<8x256xf32>
    %71 = tpu.matmul %68, %70, %cst_60 {dimension_numbers = #tpu.dot_dimension_numbers<[1], [0], [0], [1], [0, 0, 1, 1], [], []>} : vector<8x1024xbf16>, vector<1024x256xbf16>, vector<8x256xf32> -> vector<8x256xf32>
    %c0_61 = arith.constant 0 : index
    %c0_62 = arith.constant 0 : index
    %72 = vector.load %arg21[%c0_61, %c0_62] : memref<1x256xf32, #tpu.memory_space<vmem>>, vector<1x256xf32>
    %73 = vector.broadcast %72 : vector<1x256xf32> to vector<8x256xf32>
    %74 = arith.addf %71, %73 : vector<8x256xf32>
    %cst_63 = arith.constant 0.000000e+00 : f32
    %75 = vector.broadcast %cst_63 : f32 to vector<8x256xf32>
    %76 = arith.maximumf %74, %75 : vector<8x256xf32>
    %c0_64 = arith.constant 0 : index
    %c0_65 = arith.constant 0 : index
    %77 = vector.load %arg22[%c0_64, %c0_65] : memref<1024x256xbf16, #tpu.memory_space<vmem>>, vector<1024x256xbf16>
    %cst_66 = arith.constant dense<0.000000e+00> : vector<8x256xf32>
    %78 = tpu.matmul %69, %77, %cst_66 {dimension_numbers = #tpu.dot_dimension_numbers<[1], [0], [0], [1], [0, 0, 1, 1], [], []>} : vector<8x1024xbf16>, vector<1024x256xbf16>, vector<8x256xf32> -> vector<8x256xf32>
    %c0_67 = arith.constant 0 : index
    %c0_68 = arith.constant 0 : index
    %79 = vector.load %arg23[%c0_67, %c0_68] : memref<1x256xf32, #tpu.memory_space<vmem>>, vector<1x256xf32>
    %80 = vector.broadcast %79 : vector<1x256xf32> to vector<8x256xf32>
    %81 = arith.addf %78, %80 : vector<8x256xf32>
    %cst_69 = arith.constant 0.000000e+00 : f32
    %82 = vector.broadcast %cst_69 : f32 to vector<8x256xf32>
    %83 = arith.maximumf %81, %82 : vector<8x256xf32>
    %c0_70 = arith.constant 0 : index
    %c0_71 = arith.constant 0 : index
    %84 = vector.load %arg24[%c0_70, %c0_71] : memref<1x256xf32, #tpu.memory_space<vmem>>, vector<1x256xf32>
    %85 = vector.broadcast %84 : vector<1x256xf32> to vector<8x256xf32>
    %86 = arith.mulf %76, %85 : vector<8x256xf32>
    %cst_72 = arith.constant dense<0.000000e+00> : vector<8xf32>
    %87 = vector.multi_reduction <add>, %86, %cst_72 [1] : vector<8x256xf32> to vector<8xf32>
    %88 = vector.shape_cast %87 : vector<8xf32> to vector<8x1xf32>
    %c0_73 = arith.constant 0 : index
    %c0_74 = arith.constant 0 : index
    %89 = vector.load %arg25[%c0_73, %c0_74] : memref<1x1xf32, #tpu.memory_space<vmem>>, vector<1x1xf32>
    %90 = vector.broadcast %89 : vector<1x1xf32> to vector<8x1xf32>
    %91 = arith.addf %88, %90 : vector<8x1xf32>
    %cst_75 = arith.constant -1.000000e+00 : f32
    %cst_76 = arith.constant 1.000000e+00 : f32
    %92 = vector.broadcast %cst_75 : f32 to vector<8x1xf32>
    %93 = arith.maximumf %92, %91 : vector<8x1xf32>
    %94 = vector.broadcast %cst_76 : f32 to vector<8x1xf32>
    %95 = arith.minimumf %94, %93 : vector<8x1xf32>
    %c0_77 = arith.constant 0 : index
    %c0_78 = arith.constant 0 : index
    %96 = vector.load %arg26[%c0_77, %c0_78] : memref<1x256xf32, #tpu.memory_space<vmem>>, vector<1x256xf32>
    %97 = vector.broadcast %96 : vector<1x256xf32> to vector<8x256xf32>
    %98 = arith.mulf %83, %97 : vector<8x256xf32>
    %cst_79 = arith.constant dense<0.000000e+00> : vector<8xf32>
    %99 = vector.multi_reduction <add>, %98, %cst_79 [1] : vector<8x256xf32> to vector<8xf32>
    %100 = vector.shape_cast %99 : vector<8xf32> to vector<8x1xf32>
    %c0_80 = arith.constant 0 : index
    %c0_81 = arith.constant 0 : index
    %101 = vector.load %arg27[%c0_80, %c0_81] : memref<1x1xf32, #tpu.memory_space<vmem>>, vector<1x1xf32>
    %102 = vector.broadcast %101 : vector<1x1xf32> to vector<8x1xf32>
    %103 = arith.addf %100, %102 : vector<8x1xf32>
    %cst_82 = arith.constant -1.000000e+00 : f32
    %cst_83 = arith.constant 1.000000e+00 : f32
    %104 = vector.broadcast %cst_82 : f32 to vector<8x1xf32>
    %105 = arith.maximumf %104, %103 : vector<8x1xf32>
    %106 = vector.broadcast %cst_83 : f32 to vector<8x1xf32>
    %107 = arith.minimumf %106, %105 : vector<8x1xf32>
    %108 = arith.addf %95, %107 : vector<8x1xf32>
    %cst_84 = arith.constant 5.000000e-01 : f32
    %109 = vector.broadcast %cst_84 : f32 to vector<8x1xf32>
    %110 = arith.mulf %109, %108 : vector<8x1xf32>
    %111 = tpu.iota {dimensions = array<i32: 1>} : vector<8x3xi32>
    %c0_i32 = arith.constant 0 : i32
    %112 = vector.broadcast %c0_i32 : i32 to vector<8x3xi32>
    %113 = arith.cmpi eq, %111, %112 : vector<8x3xi32>
    %c1_i32 = arith.constant 1 : i32
    %114 = vector.broadcast %c1_i32 : i32 to vector<8x3xi32>
    %115 = arith.cmpi eq, %111, %114 : vector<8x3xi32>
    %116 = vector.shape_cast %107 : vector<8x1xf32> to vector<8x1xf32>
    %117 = vector.broadcast %116 : vector<8x1xf32> to vector<8x3xf32>
    %118 = vector.shape_cast %110 : vector<8x1xf32> to vector<8x1xf32>
    %119 = vector.broadcast %118 : vector<8x1xf32> to vector<8x3xf32>
    %120 = arith.select %115, %117, %119 : vector<8x3xi1>, vector<8x3xf32>
    %121 = vector.shape_cast %95 : vector<8x1xf32> to vector<8x1xf32>
    %122 = vector.broadcast %121 : vector<8x1xf32> to vector<8x3xf32>
    %123 = arith.select %113, %122, %120 : vector<8x3xi1>, vector<8x3xf32>
    %c0_85 = arith.constant 0 : index
    %c0_86 = arith.constant 0 : index
    %124 = vector.load %arg31[%c0_85, %c0_86] : memref<8x3xf32, #tpu.memory_space<vmem>>, vector<8x3xf32>
    tpu.vector_store %arg31[%c0_85, %c0_86], %123 {strides = array<i32>} : memref<8x3xf32, #tpu.memory_space<vmem>>, vector<8x3xf32>,
    return
  }
  func.func @transform_0(%arg0: i32) -> (i32, i32) {
    %c0_i32 = arith.constant 0 : i32
    %c0_i32_0 = arith.constant 0 : i32
    return %arg0, %c0_i32 : i32, i32
  }
  func.func @transform_1(%arg0: i32) -> (i32, i32) {
    %c0_i32 = arith.constant 0 : i32
    %c0_i32_0 = arith.constant 0 : i32
    return %arg0, %c0_i32 : i32, i32
  }
  func.func @transform_2(%arg0: i32) -> (i32, i32) {
    %c0_i32 = arith.constant 0 : i32
    %c0_i32_0 = arith.constant 0 : i32
    return %arg0, %c0_i32 : i32, i32
  }
  func.func @transform_3(%arg0: i32) -> (i32, i32) {
    %c0_i32 = arith.constant 0 : i32
    %c0_i32_0 = arith.constant 0 : i32
    %c0_i32_1 = arith.constant 0 : i32
    return %c0_i32, %c0_i32_0 : i32, i32
  }
  func.func @transform_4(%arg0: i32) -> (i32, i32) {
    %c0_i32 = arith.constant 0 : i32
    %c0_i32_0 = arith.constant 0 : i32
    %c0_i32_1 = arith.constant 0 : i32
    return %c0_i32, %c0_i32_0 : i32, i32
  }
  func.func @transform_5(%arg0: i32) -> (i32, i32) {
    %c0_i32 = arith.constant 0 : i32
    %c0_i32_0 = arith.constant 0 : i32
    %c0_i32_1 = arith.constant 0 : i32
    return %c0_i32, %c0_i32_0 : i32, i32
  }
  func.func @transform_6(%arg0: i32) -> (i32, i32) {
    %c0_i32 = arith.constant 0 : i32
    %c0_i32_0 = arith.constant 0 : i32
    %c0_i32_1 = arith.constant 0 : i32
    return %c0_i32, %c0_i32_0 : i32, i32
  }
  func.func @transform_7(%arg0: i32) -> (i32, i32) {
    %c0_i32 = arith.constant 0 : i32
    %c0_i32_0 = arith.constant 0 : i32
    %c0_i32_1 = arith.constant 0 : i32
    return %c0_i32, %c0_i32_0 : i32, i32
  }
  func.func @transform_8(%arg0: i32) -> (i32, i32) {
    %c0_i32 = arith.constant 0 : i32
    %c0_i32_0 = arith.constant 0 : i32
    %c0_i32_1 = arith.constant 0 : i32
    return %c0_i32, %c0_i32_0 : i32, i32
  }
  func.func @transform_9(%arg0: i32) -> (i32, i32) {
    %c0_i32 = arith.constant 0 : i32
    %c0_i32_0 = arith.constant 0 : i32
    %c0_i32_1 = arith.constant 0 : i32
    return %c0_i32, %c0_i32_0 : i32, i32
  }
  func.func @transform_10(%arg0: i32) -> (i32, i32) {
    %c0_i32 = arith.constant 0 : i32
    %c0_i32_0 = arith.constant 0 : i32
    %c0_i32_1 = arith.constant 0 : i32
    return %c0_i32, %c0_i32_0 : i32, i32
  }
  func.func @transform_11(%arg0: i32) -> (i32, i32) {
    %c0_i32 = arith.constant 0 : i32
    %c0_i32_0 = arith.constant 0 : i32
    %c0_i32_1 = arith.constant 0 : i32
    return %c0_i32, %c0_i32_0 : i32, i32
  }
  func.func @transform_12(%arg0: i32) -> (i32, i32) {
    %c0_i32 = arith.constant 0 : i32
    %c0_i32_0 = arith.constant 0 : i32
    %c0_i32_1 = arith.constant 0 : i32
    return %c0_i32, %c0_i32_0 : i32, i32
  }
  func.func @transform_13(%arg0: i32) -> (i32, i32) {
    %c0_i32 = arith.constant 0 : i32
    %c0_i32_0 = arith.constant 0 : i32
    %c0_i32_1 = arith.constant 0 : i32
    return %c0_i32, %c0_i32_0 : i32, i32
  }
  func.func @transform_14(%arg0: i32) -> (i32, i32) {
    %c0_i32 = arith.constant 0 : i32
    %c0_i32_0 = arith.constant 0 : i32
    %c0_i32_1 = arith.constant 0 : i32
    return %c0_i32, %c0_i32_0 : i32, i32
  }
  func.func @transform_15(%arg0: i32) -> (i32, i32) {
    %c0_i32 = arith.constant 0 : i32
    %c0_i32_0 = arith.constant 0 : i32
    %c0_i32_1 = arith.constant 0 : i32
    return %c0_i32, %c0_i32_0 : i32, i32
  }
  func.func @transform_16(%arg0: i32) -> (i32, i32) {
    %c0_i32 = arith.constant 0 : i32
    %c0_i32_0 = arith.constant 0 : i32
    %c0_i32_1 = arith.constant 0 : i32
    return %c0_i32, %c0_i32_0 : i32, i32
  }
  func.func @transform_17(%arg0: i32) -> (i32, i32) {
    %c0_i32 = arith.constant 0 : i32
    %c0_i32_0 = arith.constant 0 : i32
    %c0_i32_1 = arith.constant 0 : i32
    return %c0_i32, %c0_i32_0 : i32, i32
  }
  func.func @transform_18(%arg0: i32) -> (i32, i32) {
    %c0_i32 = arith.constant 0 : i32
    %c0_i32_0 = arith.constant 0 : i32
    %c0_i32_1 = arith.constant 0 : i32
    return %c0_i32, %c0_i32_0 : i32, i32
  }
  func.func @transform_19(%arg0: i32) -> (i32, i32) {
    %c0_i32 = arith.constant 0 : i32
    %c0_i32_0 = arith.constant 0 : i32
    %c0_i32_1 = arith.constant 0 : i32
    return %c0_i32, %c0_i32_0 : i32, i32
  }
  func.func @transform_20(%arg0: i32) -> (i32, i32) {
    %c0_i32 = arith.constant 0 : i32
    %c0_i32_0 = arith.constant 0 : i32
    %c0_i32_1 = arith.constant 0 : i32
    return %c0_i32, %c0_i32_0 : i32, i32
  }
  func.func @transform_21(%arg0: i32) -> (i32, i32) {
    %c0_i32 = arith.constant 0 : i32
    %c0_i32_0 = arith.constant 0 : i32
    %c0_i32_1 = arith.constant 0 : i32
    return %c0_i32, %c0_i32_0 : i32, i32
  }
  func.func @transform_22(%arg0: i32) -> (i32, i32) {
    %c0_i32 = arith.constant 0 : i32
    %c0_i32_0 = arith.constant 0 : i32
    %c0_i32_1 = arith.constant 0 : i32
    return %c0_i32, %c0_i32_0 : i32, i32
  }
  func.func @transform_23(%arg0: i32) -> (i32, i32) {
    %c0_i32 = arith.constant 0 : i32
    %c0_i32_0 = arith.constant 0 : i32
    %c0_i32_1 = arith.constant 0 : i32
    return %c0_i32, %c0_i32_0 : i32, i32
  }
  func.func @transform_24(%arg0: i32) -> (i32, i32) {
    %c0_i32 = arith.constant 0 : i32
    %c0_i32_0 = arith.constant 0 : i32
    %c0_i32_1 = arith.constant 0 : i32
    return %c0_i32, %c0_i32_0 : i32, i32
  }
  func.func @transform_25(%arg0: i32) -> (i32, i32) {
    %c0_i32 = arith.constant 0 : i32
    %c0_i32_0 = arith.constant 0 : i32
    %c0_i32_1 = arith.constant 0 : i32
    return %c0_i32, %c0_i32_0 : i32, i32
  }
  func.func @transform_26(%arg0: i32) -> (i32, i32) {
    %c0_i32 = arith.constant 0 : i32
    %c0_i32_0 = arith.constant 0 : i32
    %c0_i32_1 = arith.constant 0 : i32
    return %c0_i32, %c0_i32_0 : i32, i32
  }
  func.func @transform_27(%arg0: i32) -> (i32, i32) {
    %c0_i32 = arith.constant 0 : i32
    %c0_i32_0 = arith.constant 0 : i32
    return %arg0, %c0_i32 : i32, i32
  }
  func.func @transform_28(%arg0: i32) -> (i32, i32) {
    %c0_i32 = arith.constant 0 : i32
    %c0_i32_0 = arith.constant 0 : i32
    return %arg0, %c0_i32 : i32, i32
  }
  func.func @transform_29(%arg0: i32) -> (i32, i32) {
    %c0_i32 = arith.constant 0 : i32
    %c0_i32_0 = arith.constant 0 : i32
    return %arg0, %c0_i32 : i32, i32
  }
  func.func @transform_30(%arg0: i32) -> (i32, i32) {
    %c0_i32 = arith.constant 0 : i32
    %c0_i32_0 = arith.constant 0 : i32
    return %arg0, %c0_i32 : i32, i32
  }
}

</mosaic_0001>

<llo_original>
// kernel: aug_ssp_pallas.1
$region0: #{aug_ssp_pallas.1}
  #allocation0 [shape = 'u32[]', space=smem, size = 0x4, offset = 0x4, fixed_abs, tag = 'smem constant byte address 0x4 - core index']
  #allocation1 [shape = 'u32[144,128]{1,0:T(1,128)}', space=vmem, size = 0x12000, scoped, tag = 'internal scratch']
  #allocation2 [shape = 'f32[1,1]{1,0:T(1,128)S(1)}', space=vmem, size = 0x200, scoped, tag = 'scoped memory for aug_ssp_pallas.1']
  #allocation3 [shape = 'f32[1,1]{1,0:T(1,128)S(1)}', space=vmem, size = 0x200, scoped, tag = 'scoped memory for aug_ssp_pallas.1']
  %s0 = inlined_call_operand.smem [shape: u32[31], index: -1, kind: input, shape index: {}]
  %s1 = sld [smem:[%s0]]
  %s2 = scalar_lea.smem %s0, 1
  %s3 = sld [smem:[%s2]]
  %s4 = scalar_lea.smem %s0, 2
  %s5 = sld [smem:[%s4]]
  %s6 = scalar_lea.smem %s0, 3
  %s7 = sld [smem:[%s6]]
  %s8 = scalar_lea.smem %s0, 4
  %s9 = sld [smem:[%s8]]
  %s10 = scalar_lea.smem %s0, 5
  %s11 = sld [smem:[%s10]]
  %s12 = scalar_lea.smem %s0, 6
  %s13 = sld [smem:[%s12]]
  %s14 = scalar_lea.smem %s0, 7
  %s15 = sld [smem:[%s14]]
  %s16 = scalar_lea.smem %s0, 8
  %s17 = sld [smem:[%s16]]
  %s18 = scalar_lea.smem %s0, 9
  %s19 = sld [smem:[%s18]]
  %s20 = scalar_lea.smem %s0, 10
  %s21 = sld [smem:[%s20]]
  %s22 = scalar_lea.smem %s0, 11
  %s23 = sld [smem:[%s22]]
  %s24 = scalar_lea.smem %s0, 12
  %s25 = sld [smem:[%s24]]
  %s26 = scalar_lea.smem %s0, 13
  %s27 = sld [smem:[%s26]]
  %s28 = scalar_lea.smem %s0, 14
  %s29 = sld [smem:[%s28]]
  %s30 = scalar_lea.smem %s0, 15
  %s31 = sld [smem:[%s30]]
  %s32 = scalar_lea.smem %s0, 16
  %s33 = sld [smem:[%s32]]
  %s34 = scalar_lea.smem %s0, 17
  %s35 = sld [smem:[%s34]]
  %s36 = scalar_lea.smem %s0, 18
  %s37 = sld [smem:[%s36]]
  %s38 = scalar_lea.smem %s0, 19
  %s39 = sld [smem:[%s38]]
  %s40 = scalar_lea.smem %s0, 20
  %s41 = sld [smem:[%s40]]
  %s42 = scalar_lea.smem %s0, 21
  %s43 = sld [smem:[%s42]]
  %s44 = scalar_lea.smem %s0, 22
  %s45 = sld [smem:[%s44]]
  %s46 = scalar_lea.smem %s0, 23
  %s47 = sld [smem:[%s46]]
  %s48 = scalar_lea.smem %s0, 24
  %s49 = sld [smem:[%s48]]
  %s50 = scalar_lea.smem %s0, 25
  %s51 = sld [smem:[%s50]]
  %s52 = scalar_lea.smem %s0, 26
  %s53 = sld [smem:[%s52]]
  %s54 = scalar_lea.smem %s0, 27
  %s55 = sld [smem:[%s54]]
  %s56 = scalar_lea.smem %s0, 28
  %s57 = sld [smem:[%s56]]
  %s58 = scalar_lea.smem %s0, 29
  %s59 = sld [smem:[%s58]]
  %s60 = scalar_lea.smem %s0, 30
  %s61 = sld [smem:[%s60]]
  %62 = xla_tuple %s55, %s57, %s59, %s61
  %s63 = sld [smem:[#allocation0]]
  $region198: #{aug_ssp_pallas.1} parent=0
    _
  %s65 = ssub.s32 1, %s63
  %s66 = scalar_select 0, %s65, %s63
  %v67 = vstv %s49
  %68 = vst [vmem:[#allocation2] sm:$0x1] %v67
  %v69 = vstv %s53
  %70 = vst [vmem:[#allocation3] sm:$0x1] %v69
  $region1: #{aug_ssp_pallas.1} parent=0
    #allocation4 [shape = 'u8[65536]{0}', space=vmem, size = 0x10000, scoped, tag = 'input window, operand 3, single buffered']
    #allocation5 [shape = 's32[1]{0}', space=sflag, size = 0x4, scoped, tag = 'scoped memory for aug_ssp_pallas.1']
    #allocation6 [shape = 's32[1]{0}', space=sflag, size = 0x4, scoped, tag = 'scoped memory for aug_ssp_pallas.1']
    #allocation7 [shape = 'u8[524288]{0}', space=vmem, size = 0x80000, scoped, tag = 'input window, operand 5, single buffered']
    #allocation8 [shape = 's32[1]{0}', space=sflag, size = 0x4, scoped, tag = 'scoped memory for aug_ssp_pallas.1']
    #allocation9 [shape = 'u8[1024]{0}', space=vmem, size = 0x400, scoped, tag = 'input window, operand 6, single buffered']
    #allocation10 [shape = 'u8[65536]{0}', space=vmem, size = 0x10000, scoped, tag = 'input window, operand 7, single buffered']
    #allocation11 [shape = 's32[1]{0}', space=sflag, size = 0x4, scoped, tag = 'scoped memory for aug_ssp_pallas.1']
    #allocation12 [shape = 'u8[524288]{0}', space=vmem, size = 0x80000, scoped, tag = 'input window, operand 9, single buffered']
    #allocation13 [shape = 'u8[1024]{0}', space=vmem, size = 0x400, scoped, tag = 'input window, operand 10, single buffered']
    #allocation14 [shape = 's32[1]{0}', space=sflag, size = 0x4, scoped, tag = 'scoped memory for aug_ssp_pallas.1']
    #allocation15 [shape = 'u8[65536]{0}', space=vmem, size = 0x10000, scoped, tag = 'input window, operand 11, single buffered']
    #allocation16 [shape = 'u8[2048]{0}', space=vmem, size = 0x800, scoped, tag = 'input window, operand 12, single buffered']
    #allocation17 [shape = 's32[1]{0}', space=sflag, size = 0x4, scoped, tag = 'scoped memory for aug_ssp_pallas.1']
    #allocation18 [shape = 'u8[262144]{0}', space=vmem, size = 0x40000, scoped, tag = 'input window, operand 13, single buffered']
    #allocation19 [shape = 'u8[1048576]{0}', space=vmem, size = 0x100000, scoped, tag = 'input window, operand 15, single buffered']
    #allocation20 [shape = 's32[1]{0}', space=sflag, size = 0x4, scoped, tag = 'scoped memory for aug_ssp_pallas.1']
    #allocation21 [shape = 'u8[1048576]{0}', space=vmem, size = 0x100000, scoped, tag = 'input window, operand 16, single buffered']
    #allocation22 [shape = 'u8[1048576]{0}', space=vmem, size = 0x100000, scoped, tag = 'input window, operand 17, single buffered']
    #allocation23 [shape = 's32[1]{0}', space=sflag, size = 0x4, scoped, tag = 'scoped memory for aug_ssp_pallas.1']
    #allocation24 [shape = 'u8[524288]{0}', space=vmem, size = 0x80000, scoped, tag = 'input window, operand 19, single buffered']
    #allocation25 [shape = 'u8[524288]{0}', space=vmem, size = 0x80000, scoped, tag = 'input window, operand 21, single buffered']
    #allocation26 [shape = 's32[1]{0}', space=sflag, size = 0x4, scoped, tag = 'scoped memory for aug_ssp_pallas.1']
    #allocation27 [shape = 'u8[8192]{0}', space=vmem, size = 0x2000, scoped, tag = 'output window, operand 0, single buffered']
    #allocation28 [shape = 'u8[8192]{0}', space=vmem, size = 0x2000, scoped, tag = 'output window, operand 1, single buffered']
    #allocation29 [shape = 's32[1]{0}', space=sflag, size = 0x4, scoped, tag = 'scoped memory for aug_ssp_pallas.1']
    #allocation30 [shape = 'u8[8192]{0}', space=vmem, size = 0x2000, scoped, tag = 'output window, operand 2, single buffered']
    %71 = vsyncpa [#allocation5], 0
    %72 = vsyncpa [#allocation8], 0
    %73 = vsyncpa [#allocation11], 0
    %74 = vsyncpa [#allocation14], 0
    %75 = vsyncpa [#allocation17], 0
    %76 = vsyncpa [#allocation20], 0
    %77 = vsyncpa [#allocation23], 0
    %78 = vsyncpa [#allocation26], 0
    %79 = vsyncpa [#allocation6], 0
    %80 = vsyncpa [#allocation29], 0
    // Predicated region
    $region2: #{aug_ssp_pallas.1} parent=1 // pred_check
      _
    $region3: #{aug_ssp_pallas.1} parent=1 // pred_check_branch
      %82 = sbr.rel (0) target = $region5
    $region4: #{aug_ssp_pallas.1} parent=1 // pred_region
      _
    $region5: #{aug_ssp_pallas.1} parent=1 // pred_fallthru
      _
    // Predicated region
    $region6: #{aug_ssp_pallas.1} parent=1 // pred_check
      _
    $region7: #{aug_ssp_pallas.1} parent=1 // pred_check_branch
      %84 = sbr.rel (0) target = $region9
    $region8: #{aug_ssp_pallas.1} parent=1 // pred_region
      _
    $region9: #{aug_ssp_pallas.1} parent=1 // pred_fallthru
      _
    // Predicated region
    $region10: #{aug_ssp_pallas.1} parent=1 // pred_check
      _
    $region11: #{aug_ssp_pallas.1} parent=1 // pred_check_branch
      %86 = sbr.rel (0) target = $region13
    $region12: #{aug_ssp_pallas.1} parent=1 // pred_region
      _
    $region13: #{aug_ssp_pallas.1} parent=1 // pred_fallthru
      _
    // Predicated region
    $region14: #{aug_ssp_pallas.1} parent=1 // pred_check
      _
    $region15: #{aug_ssp_pallas.1} parent=1 // pred_check_branch
      %88 = sbr.rel (0) target = $region17
    $region16: #{aug_ssp_pallas.1} parent=1 // pred_region
      %s90 = ssub.s32 2048, 2048
      %91 = vsyncadd [#allocation5], %s90
      %s92 = sshll.u32 [#allocation4], 4
      %s93 = int_to_ptr.vmem [resolvable:$true] %s92
      %98 = dma.hbm_to_vmem [thread:$0]  %s7, 2048, %s93, [#allocation5], 512, 512, 32
    $region17: #{aug_ssp_pallas.1} parent=1 // pred_fallthru
      _
    // Predicated region
    $region18: #{aug_ssp_pallas.1} parent=1 // pred_check
      _
    $region19: #{aug_ssp_pallas.1} parent=1 // pred_check_branch
      %100 = sbr.rel (0) target = $region21
    $region20: #{aug_ssp_pallas.1} parent=1 // pred_region
      _
    $region21: #{aug_ssp_pallas.1} parent=1 // pred_fallthru
      _
    // Predicated region
    $region22: #{aug_ssp_pallas.1} parent=1 // pred_check
      _
    $region23: #{aug_ssp_pallas.1} parent=1 // pred_check_branch
      %102 = sbr.rel (0) target = $region25
    $region24: #{aug_ssp_pallas.1} parent=1 // pred_region
      %s104 = ssub.s32 16384, 16384
      %105 = vsyncadd [#allocation8], %s104
      %s106 = sshll.u32 [#allocation7], 4
      %s107 = int_to_ptr.vmem [resolvable:$true] %s106
      %112 = dma.hbm_to_vmem [thread:$0]  %s11, 16384, %s107, [#allocation8], 128, 128, 8
    $region25: #{aug_ssp_pallas.1} parent=1 // pred_fallthru
      _
    // Predicated region
    $region26: #{aug_ssp_pallas.1} parent=1 // pred_check
      _
    $region27: #{aug_ssp_pallas.1} parent=1 // pred_check_branch
      %114 = sbr.rel (0) target = $region29
    $region28: #{aug_ssp_pallas.1} parent=1 // pred_region
      %s116 = ssub.s32 32, 32
      %117 = vsyncadd [#allocation8], %s116
      %s119 = sshll.u32 [#allocation9], 4
      %s120 = int_to_ptr.vmem [resolvable:$true] %s119
      %122 = dma.hbm_to_vmem [thread:$0]  %s13, 32, %s120, [#allocation8]
    $region29: #{aug_ssp_pallas.1} parent=1 // pred_fallthru
      _
    // Predicated region
    $region30: #{aug_ssp_pallas.1} parent=1 // pred_check
      _
    $region31: #{aug_ssp_pallas.1} parent=1 // pred_check_branch
      %124 = sbr.rel (0) target = $region33
    $region32: #{aug_ssp_pallas.1} parent=1 // pred_region
      %s126 = ssub.s32 2048, 2048
      %127 = vsyncadd [#allocation11], %s126
      %s128 = sshll.u32 [#allocation10], 4
      %s129 = int_to_ptr.vmem [resolvable:$true] %s128
      %134 = dma.hbm_to_vmem [thread:$0]  %s15, 2048, %s129, [#allocation11], 512, 512, 32
    $region33: #{aug_ssp_pallas.1} parent=1 // pred_fallthru
      _
    // Predicated region
    $region34: #{aug_ssp_pallas.1} parent=1 // pred_check
      _
    $region35: #{aug_ssp_pallas.1} parent=1 // pred_check_branch
      %136 = sbr.rel (0) target = $region37
    $region36: #{aug_ssp_pallas.1} parent=1 // pred_region
      _
    $region37: #{aug_ssp_pallas.1} parent=1 // pred_fallthru
      _
    // Predicated region
    $region38: #{aug_ssp_pallas.1} parent=1 // pred_check
      _
    $region39: #{aug_ssp_pallas.1} parent=1 // pred_check_branch
      %138 = sbr.rel (0) target = $region41
    $region40: #{aug_ssp_pallas.1} parent=1 // pred_region
      %s140 = ssub.s32 16384, 16384
      %141 = vsyncadd [#allocation11], %s140
      %s142 = sshll.u32 [#allocation12], 4
      %s143 = int_to_ptr.vmem [resolvable:$true] %s142
      %148 = dma.hbm_to_vmem [thread:$0]  %s19, 16384, %s143, [#allocation11], 128, 128, 8
    $region41: #{aug_ssp_pallas.1} parent=1 // pred_fallthru
      _
    // Predicated region
    $region42: #{aug_ssp_pallas.1} parent=1 // pred_check
      _
    $region43: #{aug_ssp_pallas.1} parent=1 // pred_check_branch
      %150 = sbr.rel (0) target = $region45
    $region44: #{aug_ssp_pallas.1} parent=1 // pred_region
      %s152 = ssub.s32 32, 32
      %153 = vsyncadd [#allocation14], %s152
      %s155 = sshll.u32 [#allocation13], 4
      %s156 = int_to_ptr.vmem [resolvable:$true] %s155
      %158 = dma.hbm_to_vmem [thread:$0]  %s21, 32, %s156, [#allocation14]
    $region45: #{aug_ssp_pallas.1} parent=1 // pred_fallthru
      _
    // Predicated region
    $region46: #{aug_ssp_pallas.1} parent=1 // pred_check
      _
    $region47: #{aug_ssp_pallas.1} parent=1 // pred_check_branch
      %160 = sbr.rel (0) target = $region49
    $region48: #{aug_ssp_pallas.1} parent=1 // pred_region
      %s162 = ssub.s32 2048, 2048
      %163 = vsyncadd [#allocation14], %s162
      %s164 = sshll.u32 [#allocation15], 4
      %s165 = int_to_ptr.vmem [resolvable:$true] %s164
      %170 = dma.hbm_to_vmem [thread:$0]  %s23, 2048, %s165, [#allocation14], 256, 256, 16
    $region49: #{aug_ssp_pallas.1} parent=1 // pred_fallthru
      _
    // Predicated region
    $region50: #{aug_ssp_pallas.1} parent=1 // pred_check
      _
    $region51: #{aug_ssp_pallas.1} parent=1 // pred_check_branch
      %172 = sbr.rel (0) target = $region53
    $region52: #{aug_ssp_pallas.1} parent=1 // pred_region
      %s174 = ssub.s32 64, 64
      %175 = vsyncadd [#allocation17], %s174
      %s177 = sshll.u32 [#allocation16], 4
      %s178 = int_to_ptr.vmem [resolvable:$true] %s177
      %180 = dma.hbm_to_vmem [thread:$0]  %s25, 64, %s178, [#allocation17]
    $region53: #{aug_ssp_pallas.1} parent=1 // pred_fallthru
      _
    // Predicated region
    $region54: #{aug_ssp_pallas.1} parent=1 // pred_check
      _
    $region55: #{aug_ssp_pallas.1} parent=1 // pred_check_branch
      %182 = sbr.rel (0) target = $region57
    $region56: #{aug_ssp_pallas.1} parent=1 // pred_region
      %s184 = ssub.s32 8192, 8192
      %185 = vsyncadd [#allocation17], %s184
      %s186 = sshll.u32 [#allocation18], 4
      %s187 = int_to_ptr.vmem [resolvable:$true] %s186
      %192 = dma.hbm_to_vmem [thread:$0]  %s27, 8192, %s187, [#allocation17], 128, 128, 8
    $region57: #{aug_ssp_pallas.1} parent=1 // pred_fallthru
      _
    // Predicated region
    $region58: #{aug_ssp_pallas.1} parent=1 // pred_check
      _
    $region59: #{aug_ssp_pallas.1} parent=1 // pred_check_branch
      %194 = sbr.rel (0) target = $region61
    $region60: #{aug_ssp_pallas.1} parent=1 // pred_region
      _
    $region61: #{aug_ssp_pallas.1} parent=1 // pred_fallthru
      _
    // Predicated region
    $region62: #{aug_ssp_pallas.1} parent=1 // pred_check
      _
    $region63: #{aug_ssp_pallas.1} parent=1 // pred_check_branch
      %196 = sbr.rel (0) target = $region65
    $region64: #{aug_ssp_pallas.1} parent=1 // pred_region
      %s198 = ssub.s32 32768, 32768
      %199 = vsyncadd [#allocation20], %s198
      %s200 = sshll.u32 [#allocation19], 4
      %s201 = int_to_ptr.vmem [resolvable:$true] %s200
      %206 = dma.hbm_to_vmem [thread:$0]  %s31, 32768, %s201, [#allocation20], 1024, 1024, 64
    $region65: #{aug_ssp_pallas.1} parent=1 // pred_fallthru
      _
    // Predicated region
    $region66: #{aug_ssp_pallas.1} parent=1 // pred_check
      _
    $region67: #{aug_ssp_pallas.1} parent=1 // pred_check_branch
      %208 = sbr.rel (0) target = $region69
    $region68: #{aug_ssp_pallas.1} parent=1 // pred_region
      %s210 = ssub.s32 32768, 32768
      %211 = vsyncadd [#allocation20], %s210
      %s212 = sshll.u32 [#allocation21], 4
      %s213 = int_to_ptr.vmem [resolvable:$true] %s212
      %218 = dma.hbm_to_vmem [thread:$0]  %s33, 32768, %s213, [#allocation20], 1024, 1024, 64
    $region69: #{aug_ssp_pallas.1} parent=1 // pred_fallthru
      _
    // Predicated region
    $region70: #{aug_ssp_pallas.1} parent=1 // pred_check
      _
    $region71: #{aug_ssp_pallas.1} parent=1 // pred_check_branch
      %220 = sbr.rel (0) target = $region73
    $region72: #{aug_ssp_pallas.1} parent=1 // pred_region
      %s222 = ssub.s32 32768, 32768
      %223 = vsyncadd [#allocation23], %s222
      %s224 = sshll.u32 [#allocation22], 4
      %s225 = int_to_ptr.vmem [resolvable:$true] %s224
      %230 = dma.hbm_to_vmem [thread:$0]  %s35, 32768, %s225, [#allocation23], 1024, 1024, 64
    $region73: #{aug_ssp_pallas.1} parent=1 // pred_fallthru
      _
    // Predicated region
    $region74: #{aug_ssp_pallas.1} parent=1 // pred_check
      _
    $region75: #{aug_ssp_pallas.1} parent=1 // pred_check_branch
      %232 = sbr.rel (0) target = $region77
    $region76: #{aug_ssp_pallas.1} parent=1 // pred_region
      _
    $region77: #{aug_ssp_pallas.1} parent=1 // pred_fallthru
      _
    // Predicated region
    $region78: #{aug_ssp_pallas.1} parent=1 // pred_check
      _
    $region79: #{aug_ssp_pallas.1} parent=1 // pred_check_branch
      %234 = sbr.rel (0) target = $region81
    $region80: #{aug_ssp_pallas.1} parent=1 // pred_region
      %s236 = ssub.s32 16384, 16384
      %237 = vsyncadd [#allocation23], %s236
      %s238 = sshll.u32 [#allocation24], 4
      %s239 = int_to_ptr.vmem [resolvable:$true] %s238
      %244 = dma.hbm_to_vmem [thread:$0]  %s39, 16384, %s239, [#allocation23], 128, 128, 8
    $region81: #{aug_ssp_pallas.1} parent=1 // pred_fallthru
      _
    // Predicated region
    $region82: #{aug_ssp_pallas.1} parent=1 // pred_check
      _
    $region83: #{aug_ssp_pallas.1} parent=1 // pred_check_branch
      %246 = sbr.rel (0) target = $region85
    $region84: #{aug_ssp_pallas.1} parent=1 // pred_region
      _
    $region85: #{aug_ssp_pallas.1} parent=1 // pred_fallthru
      _
    // Predicated region
    $region86: #{aug_ssp_pallas.1} parent=1 // pred_check
      _
    $region87: #{aug_ssp_pallas.1} parent=1 // pred_check_branch
      %248 = sbr.rel (0) target = $region89
    $region88: #{aug_ssp_pallas.1} parent=1 // pred_region
      %s250 = ssub.s32 16384, 16384
      %251 = vsyncadd [#allocation26], %s250
      %s252 = sshll.u32 [#allocation25], 4
      %s253 = int_to_ptr.vmem [resolvable:$true] %s252
      %258 = dma.hbm_to_vmem [thread:$0]  %s43, 16384, %s253, [#allocation26], 128, 128, 8
    $region89: #{aug_ssp_pallas.1} parent=1 // pred_fallthru
      _
    // Predicated region
    $region90: #{aug_ssp_pallas.1} parent=1 // pred_check
      _
    $region91: #{aug_ssp_pallas.1} parent=1 // pred_check_branch
      %260 = sbr.rel (0) target = $region93
    $region92: #{aug_ssp_pallas.1} parent=1 // pred_region
      _
    $region93: #{aug_ssp_pallas.1} parent=1 // pred_fallthru
      _
    // Predicated region
    $region94: #{aug_ssp_pallas.1} parent=1 // pred_check
      _
    $region95: #{aug_ssp_pallas.1} parent=1 // pred_check_branch
      %262 = sbr.rel (0) target = $region97
    $region96: #{aug_ssp_pallas.1} parent=1 // pred_region
      _
    $region97: #{aug_ssp_pallas.1} parent=1 // pred_fallthru
      _
    // Predicated region
    $region98: #{aug_ssp_pallas.1} parent=1 // pred_check
      _
    $region99: #{aug_ssp_pallas.1} parent=1 // pred_check_branch
      %264 = sbr.rel (0) target = $region101
    $region100: #{aug_ssp_pallas.1} parent=1 // pred_region
      _
    $region101: #{aug_ssp_pallas.1} parent=1 // pred_fallthru
      _
    // Predicated region
    $region102: #{aug_ssp_pallas.1} parent=1 // pred_check
      _
    $region103: #{aug_ssp_pallas.1} parent=1 // pred_check_branch
      %266 = sbr.rel (0) target = $region105
    $region104: #{aug_ssp_pallas.1} parent=1 // pred_region
      _
    $region105: #{aug_ssp_pallas.1} parent=1 // pred_fallthru
      _
    // Predicated region
    $region106: #{aug_ssp_pallas.1} parent=1 // pred_check
      _
    $region107: #{aug_ssp_pallas.1} parent=1 // pred_check_branch
      %268 = sbr.rel (0) target = $region109
    $region108: #{aug_ssp_pallas.1} parent=1 // pred_region
      _
    $region109: #{aug_ssp_pallas.1} parent=1 // pred_fallthru
      _
    // Predicated region
    $region110: #{aug_ssp_pallas.1} parent=1 // pred_check
      _
    $region111: #{aug_ssp_pallas.1} parent=1 // pred_check_branch
      %270 = sbr.rel (0) target = $region113
    $region112: #{aug_ssp_pallas.1} parent=1 // pred_region
      %271 = dma.done [#allocation5], 2048
    $region113: #{aug_ssp_pallas.1} parent=1 // pred_fallthru
      _
    // Predicated region
    $region114: #{aug_ssp_pallas.1} parent=1 // pred_check
      _
    $region115: #{aug_ssp_pallas.1} parent=1 // pred_check_branch
      %273 = sbr.rel (0) target = $region117
    $region116: #{aug_ssp_pallas.1} parent=1 // pred_region
      %274 = dma.done [#allocation8], 16384
    $region117: #{aug_ssp_pallas.1} parent=1 // pred_fallthru
      _
    // Predicated region
    $region118: #{aug_ssp_pallas.1} parent=1 // pred_check
      _
    $region119: #{aug_ssp_pallas.1} parent=1 // pred_check_branch
      %276 = sbr.rel (0) target = $region121
    $region120: #{aug_ssp_pallas.1} parent=1 // pred_region
      %277 = dma.done [#allocation8], 32
    $region121: #{aug_ssp_pallas.1} parent=1 // pred_fallthru
      _
    // Predicated region
    $region122: #{aug_ssp_pallas.1} parent=1 // pred_check
      _
    $region123: #{aug_ssp_pallas.1} parent=1 // pred_check_branch
      %279 = sbr.rel (0) target = $region125
    $region124: #{aug_ssp_pallas.1} parent=1 // pred_region
      %280 = dma.done [#allocation11], 2048
    $region125: #{aug_ssp_pallas.1} parent=1 // pred_fallthru
      _
    // Predicated region
    $region126: #{aug_ssp_pallas.1} parent=1 // pred_check
      _
    $region127: #{aug_ssp_pallas.1} parent=1 // pred_check_branch
      %282 = sbr.rel (0) target = $region129
    $region128: #{aug_ssp_pallas.1} parent=1 // pred_region
      %283 = dma.done [#allocation11], 16384
    $region129: #{aug_ssp_pallas.1} parent=1 // pred_fallthru
      _
    // Predicated region
    $region130: #{aug_ssp_pallas.1} parent=1 // pred_check
      _
    $region131: #{aug_ssp_pallas.1} parent=1 // pred_check_branch
      %285 = sbr.rel (0) target = $region133
    $region132: #{aug_ssp_pallas.1} parent=1 // pred_region
      %286 = dma.done [#allocation14], 32
    $region133: #{aug_ssp_pallas.1} parent=1 // pred_fallthru
      _
    // Predicated region
    $region134: #{aug_ssp_pallas.1} parent=1 // pred_check
      _
    $region135: #{aug_ssp_pallas.1} parent=1 // pred_check_branch
      %288 = sbr.rel (0) target = $region137
    $region136: #{aug_ssp_pallas.1} parent=1 // pred_region
      %289 = dma.done [#allocation14], 2048
    $region137: #{aug_ssp_pallas.1} parent=1 // pred_fallthru
      _
    // Predicated region
    $region138: #{aug_ssp_pallas.1} parent=1 // pred_check
      _
    $region139: #{aug_ssp_pallas.1} parent=1 // pred_check_branch
      %291 = sbr.rel (0) target = $region141
    $region140: #{aug_ssp_pallas.1} parent=1 // pred_region
      %292 = dma.done [#allocation17], 64
    $region141: #{aug_ssp_pallas.1} parent=1 // pred_fallthru
      _
    // Predicated region
    $region142: #{aug_ssp_pallas.1} parent=1 // pred_check
      _
    $region143: #{aug_ssp_pallas.1} parent=1 // pred_check_branch
      %294 = sbr.rel (0) target = $region145
    $region144: #{aug_ssp_pallas.1} parent=1 // pred_region
      %295 = dma.done [#allocation17], 8192
    $region145: #{aug_ssp_pallas.1} parent=1 // pred_fallthru
      _
    // Predicated region
    $region146: #{aug_ssp_pallas.1} parent=1 // pred_check
      _
    $region147: #{aug_ssp_pallas.1} parent=1 // pred_check_branch
      %297 = sbr.rel (0) target = $region149
    $region148: #{aug_ssp_pallas.1} parent=1 // pred_region
      %298 = dma.done [#allocation20], 32768
    $region149: #{aug_ssp_pallas.1} parent=1 // pred_fallthru
      _
    // Predicated region
    $region150: #{aug_ssp_pallas.1} parent=1 // pred_check
      _
    $region151: #{aug_ssp_pallas.1} parent=1 // pred_check_branch
      %300 = sbr.rel (0) target = $region153
    $region152: #{aug_ssp_pallas.1} parent=1 // pred_region
      %301 = dma.done [#allocation20], 32768
    $region153: #{aug_ssp_pallas.1} parent=1 // pred_fallthru
      _
    // Predicated region
    $region154: #{aug_ssp_pallas.1} parent=1 // pred_check
      _
    $region155: #{aug_ssp_pallas.1} parent=1 // pred_check_branch
      %303 = sbr.rel (0) target = $region157
    $region156: #{aug_ssp_pallas.1} parent=1 // pred_region
      %304 = dma.done [#allocation23], 32768
    $region157: #{aug_ssp_pallas.1} parent=1 // pred_fallthru
      _
    // Predicated region
    $region158: #{aug_ssp_pallas.1} parent=1 // pred_check
      _
    $region159: #{aug_ssp_pallas.1} parent=1 // pred_check_branch
      %306 = sbr.rel (0) target = $region161
    $region160: #{aug_ssp_pallas.1} parent=1 // pred_region
      %307 = dma.done [#allocation23], 16384
    $region161: #{aug_ssp_pallas.1} parent=1 // pred_fallthru
      _
    // Predicated region
    $region162: #{aug_ssp_pallas.1} parent=1 // pred_check
      _
    $region163: #{aug_ssp_pallas.1} parent=1 // pred_check_branch
      %309 = sbr.rel (0) target = $region165
    $region164: #{aug_ssp_pallas.1} parent=1 // pred_region
      %310 = dma.done [#allocation26], 16384
    $region165: #{aug_ssp_pallas.1} parent=1 // pred_fallthru
      _
    %v312 = vld [vmem:[%s1] sm:$0xf]
    %v313 = vld [vmem:[#allocation4] sm:$0xff]
    %v314 = vld [vmem:[#allocation4 + $0x8] sm:$0xff]
    %v315 = vld [vmem:[#allocation4 + $0x10] sm:$0xff]
    %v316 = vld [vmem:[#allocation4 + $0x18] sm:$0xff]
    %v317 = vld [vmem:[#allocation4 + $0x20] sm:$0xff]
    %v318 = vld [vmem:[#allocation4 + $0x28] sm:$0xff]
    %v319 = vld [vmem:[#allocation4 + $0x30] sm:$0xff]
    %v320 = vld [vmem:[#allocation4 + $0x38] sm:$0xff]
    %v321 = vld [vmem:[#allocation4 + $0x40] sm:$0xff]
    %v322 = vld [vmem:[#allocation4 + $0x48] sm:$0xff]
    %v323 = vld [vmem:[#allocation4 + $0x50] sm:$0xff]
    %v324 = vld [vmem:[#allocation4 + $0x58] sm:$0xff]
    %v325 = vld [vmem:[#allocation4 + $0x60] sm:$0xff]
    %v326 = vld [vmem:[#allocation4 + $0x68] sm:$0xff]
    %v327 = vld [vmem:[#allocation4 + $0x70] sm:$0xff]
    %v328 = vld [vmem:[#allocation4 + $0x78] sm:$0xff]
    %v329 = vld [vmem:[%s9] sm:$0xff]
    %v331 = vlaneseq
    %v332 = vshrl.u32 %v331, 7
    %v333 = vsub.s32 0, %v332
    %v334 = vrot.slane %v329, %v333
    %v335 = vlaneseq
    %v336 = vshrl.u32 %v335, 7
    %v337 = vsub.s32 1, %v336
    %v338 = vrot.slane %v329, %v337
    %v339 = vlaneseq
    %v340 = vshrl.u32 %v339, 7
    %v341 = vsub.s32 2, %v340
    %v342 = vrot.slane %v329, %v341
    %v343 = vlaneseq
    %v344 = vshrl.u32 %v343, 7
    %v345 = vsub.s32 3, %v344
    %v346 = vrot.slane %v329, %v345
    %v347 = vlaneseq
    %v348 = vshrl.u32 %v347, 7
    %v349 = vsub.s32 4, %v348
    %v350 = vrot.slane %v329, %v349
    %v351 = vlaneseq
    %v352 = vshrl.u32 %v351, 7
    %v353 = vsub.s32 5, %v352
    %v354 = vrot.slane %v329, %v353
    %v355 = vlaneseq
    %v356 = vshrl.u32 %v355, 7
    %v357 = vsub.s32 6, %v356
    %v358 = vrot.slane %v329, %v357
    %v359 = vlaneseq
    %v360 = vshrl.u32 %v359, 7
    %v361 = vsub.s32 7, %v360
    %v362 = vrot.slane %v329, %v361
    %v387 = vunpack.c.l.b16 %v313
    %v388 = vunpack.c.h.b16 %v313
    %v389 = vunpack.c.l.b16 %v314
    %v390 = vunpack.c.h.b16 %v314
    %v391 = vunpack.c.l.b16 %v315
    %v392 = vunpack.c.h.b16 %v315
    %v393 = vunpack.c.l.b16 %v316
    %v394 = vunpack.c.h.b16 %v316
    %v395 = vunpack.c.l.b16 %v317
    %v396 = vunpack.c.h.b16 %v317
    %v397 = vunpack.c.l.b16 %v318
    %v398 = vunpack.c.h.b16 %v318
    %v399 = vunpack.c.l.b16 %v319
    %v400 = vunpack.c.h.b16 %v319
    %v401 = vunpack.c.l.b16 %v320
    %v402 = vunpack.c.h.b16 %v320
    %v403 = vunpack.c.l.b16 %v321
    %v404 = vunpack.c.h.b16 %v321
    %v405 = vunpack.c.l.b16 %v322
    %v406 = vunpack.c.h.b16 %v322
    %v407 = vunpack.c.l.b16 %v323
    %v408 = vunpack.c.h.b16 %v323
    %v409 = vunpack.c.l.b16 %v324
    %v410 = vunpack.c.h.b16 %v324
    %v411 = vunpack.c.l.b16 %v325
    %v412 = vunpack.c.h.b16 %v325
    %v413 = vunpack.c.l.b16 %v326
    %v414 = vunpack.c.h.b16 %v326
    %v415 = vunpack.c.l.b16 %v327
    %v416 = vunpack.c.h.b16 %v327
    %v417 = vunpack.c.l.b16 %v328
    %v418 = vunpack.c.h.b16 %v328
    %v419 = vpack.c.b16 %v395, %v387
    %v420 = vpack.c.b16 %v396, %v388
    %v421 = vpack.c.b16 %v397, %v389
    %v422 = vpack.c.b16 %v398, %v390
    %v423 = vpack.c.b16 %v399, %v391
    %v424 = vpack.c.b16 %v400, %v392
    %v425 = vpack.c.b16 %v401, %v393
    %v426 = vpack.c.b16 %v402, %v394
    %v427 = vpack.c.b16 %v411, %v403
    %v428 = vpack.c.b16 %v412, %v404
    %v429 = vpack.c.b16 %v413, %v405
    %v430 = vpack.c.b16 %v414, %v406
    %v431 = vpack.c.b16 %v415, %v407
    %v432 = vpack.c.b16 %v416, %v408
    %v433 = vpack.c.b16 %v417, %v409
    %v434 = vpack.c.b16 %v418, %v410
    %vm451 = vcmask 261120
    %v453 = vsel %vm451, %v312, 0
    %455 = vmatprep.subr.bf16.mxu0 0
    %456 = vmatpush1.bf16.msra.mxu0 0
    %457 = vmatprep.subr.bf16.mxu0 0
    %458 = vmatpush1.bf16.msra.mxu0 0
    %459 = vmatprep.subr.bf16.mxu0 0
    %460 = vmatpush1.bf16.msra.mxu0 0
    %461 = vmatprep.subr.bf16.mxu0 0
    %462 = vmatpush1.bf16.msra.mxu0 0
    %463 = vmatprep.subr.bf16.mxu0 0
    %464 = vmatpush1.bf16.msra.mxu0 0
    %465 = vmatprep.subr.bf16.mxu0 0
    %466 = vmatpush1.bf16.msra.mxu0 0
    %467 = vmatprep.subr.bf16.mxu0 %v428
    %468 = vmatpush1.bf16.msra.mxu0 %v427
    %469 = vmatprep.subr.bf16.mxu0 %v420
    %470 = vmatpush1.bf16.msra.mxu0 %v419
    %471 = vmatprep.subr.bf16.mxu0 0
    %472 = vmatpush2.bf16.msra.mxu0 0
    %473 = vmatprep.subr.bf16.mxu0 0
    %474 = vmatpush2.bf16.msra.mxu0 0
    %475 = vmatprep.subr.bf16.mxu0 0
    %476 = vmatpush2.bf16.msra.mxu0 0
    %477 = vmatprep.subr.bf16.mxu0 0
    %478 = vmatpush2.bf16.msra.mxu0 0
    %479 = vmatprep.subr.bf16.mxu0 0
    %480 = vmatpush2.bf16.msra.mxu0 0
    %481 = vmatprep.subr.bf16.mxu0 0
    %482 = vmatpush2.bf16.msra.mxu0 0
    %483 = vmatprep.subr.bf16.mxu0 0
    %484 = vmatpush2.bf16.msra.mxu0 0
    %485 = vmatprep.subr.bf16.mxu0 0
    %486 = vmatpush2.bf16.msra.mxu0 0
    %487 = vmatprep.mubr.bf16.mxu0 0
    %488 = vmatmul.mubr.bf16.gmra.mxu0 %v453
    %v489 = vpop.f32.mrf.mxu0
    %v490 = vadd.f32 %v334, %v489
    %v491 = vpop.f32.mrf.mxu0
    %v492 = vadd.f32 %v338, %v491
    %v493 = vpop.f32.mrf.mxu0
    %v494 = vpop.f32.mrf.mxu0
    %495 = vdwg.mxu0
    %496 = vmatprep.subr.bf16.mxu0 0
    %497 = vmatpush1.bf16.msra.mxu0 0
    %498 = vmatprep.subr.bf16.mxu0 0
    %499 = vmatpush1.bf16.msra.mxu0 0
    %500 = vmatprep.subr.bf16.mxu0 0
    %501 = vmatpush1.bf16.msra.mxu0 0
    %502 = vmatprep.subr.bf16.mxu0 0
    %503 = vmatpush1.bf16.msra.mxu0 0
    %504 = vmatprep.subr.bf16.mxu0 0
    %505 = vmatpush1.bf16.msra.mxu0 0
    %506 = vmatprep.subr.bf16.mxu0 0
    %507 = vmatpush1.bf16.msra.mxu0 0
    %508 = vmatprep.subr.bf16.mxu0 %v430
    %509 = vmatpush1.bf16.msra.mxu0 %v429
    %510 = vmatprep.subr.bf16.mxu0 %v422
    %511 = vmatpush1.bf16.msra.mxu0 %v421
    %512 = vmatprep.subr.bf16.mxu0 0
    %513 = vmatpush2.bf16.msra.mxu0 0
    %514 = vmatprep.subr.bf16.mxu0 0
    %515 = vmatpush2.bf16.msra.mxu0 0
    %516 = vmatprep.subr.bf16.mxu0 0
    %517 = vmatpush2.bf16.msra.mxu0 0
    %518 = vmatprep.subr.bf16.mxu0 0
    %519 = vmatpush2.bf16.msra.mxu0 0
    %520 = vmatprep.subr.bf16.mxu0 0
    %521 = vmatpush2.bf16.msra.mxu0 0
    %522 = vmatprep.subr.bf16.mxu0 0
    %523 = vmatpush2.bf16.msra.mxu0 0
    %524 = vmatprep.subr.bf16.mxu0 0
    %525 = vmatpush2.bf16.msra.mxu0 0
    %526 = vmatprep.subr.bf16.mxu0 0
    %527 = vmatpush2.bf16.msra.mxu0 0
    %528 = vmatprep.mubr.bf16.mxu0 0
    %529 = vmatmul.mubr.bf16.gmra.mxu0 %v453
    %v530 = vpop.f32.mrf.mxu0
    %v531 = vadd.f32 %v342, %v530
    %v532 = vpop.f32.mrf.mxu0
    %v533 = vadd.f32 %v346, %v532
    %v534 = vpop.f32.mrf.mxu0
    %v535 = vpop.f32.mrf.mxu0
    %536 = vdwg.mxu0
    %537 = vmatprep.subr.bf16.mxu0 0
    %538 = vmatpush1.bf16.msra.mxu0 0
    %539 = vmatprep.subr.bf16.mxu0 0
    %540 = vmatpush1.bf16.msra.mxu0 0
    %541 = vmatprep.subr.bf16.mxu0 0
    %542 = vmatpush1.bf16.msra.mxu0 0
    %543 = vmatprep.subr.bf16.mxu0 0
    %544 = vmatpush1.bf16.msra.mxu0 0
    %545 = vmatprep.subr.bf16.mxu0 0
    %546 = vmatpush1.bf16.msra.mxu0 0
    %547 = vmatprep.subr.bf16.mxu0 0
    %548 = vmatpush1.bf16.msra.mxu0 0
    %549 = vmatprep.subr.bf16.mxu0 %v432
    %550 = vmatpush1.bf16.msra.mxu0 %v431
    %551 = vmatprep.subr.bf16.mxu0 %v424
    %552 = vmatpush1.bf16.msra.mxu0 %v423
    %553 = vmatprep.subr.bf16.mxu0 0
    %554 = vmatpush2.bf16.msra.mxu0 0
    %555 = vmatprep.subr.bf16.mxu0 0
    %556 = vmatpush2.bf16.msra.mxu0 0
    %557 = vmatprep.subr.bf16.mxu0 0
    %558 = vmatpush2.bf16.msra.mxu0 0
    %559 = vmatprep.subr.bf16.mxu0 0
    %560 = vmatpush2.bf16.msra.mxu0 0
    %561 = vmatprep.subr.bf16.mxu0 0
    %562 = vmatpush2.bf16.msra.mxu0 0
    %563 = vmatprep.subr.bf16.mxu0 0
    %564 = vmatpush2.bf16.msra.mxu0 0
    %565 = vmatprep.subr.bf16.mxu0 0
    %566 = vmatpush2.bf16.msra.mxu0 0
    %567 = vmatprep.subr.bf16.mxu0 0
    %568 = vmatpush2.bf16.msra.mxu0 0
    %569 = vmatprep.mubr.bf16.mxu0 0
    %570 = vmatmul.mubr.bf16.gmra.mxu0 %v453
    %v571 = vpop.f32.mrf.mxu0
    %v572 = vadd.f32 %v350, %v571
    %v573 = vpop.f32.mrf.mxu0
    %v574 = vadd.f32 %v354, %v573
    %v575 = vpop.f32.mrf.mxu0
    %v576 = vpop.f32.mrf.mxu0
    %577 = vdwg.mxu0
    %578 = vmatprep.subr.bf16.mxu0 0
    %579 = vmatpush1.bf16.msra.mxu0 0
    %580 = vmatprep.subr.bf16.mxu0 0
    %581 = vmatpush1.bf16.msra.mxu0 0
    %582 = vmatprep.subr.bf16.mxu0 0
    %583 = vmatpush1.bf16.msra.mxu0 0
    %584 = vmatprep.subr.bf16.mxu0 0
    %585 = vmatpush1.bf16.msra.mxu0 0
    %586 = vmatprep.subr.bf16.mxu0 0
    %587 = vmatpush1.bf16.msra.mxu0 0
    %588 = vmatprep.subr.bf16.mxu0 0
    %589 = vmatpush1.bf16.msra.mxu0 0
    %590 = vmatprep.subr.bf16.mxu0 %v434
    %591 = vmatpush1.bf16.msra.mxu0 %v433
    %592 = vmatprep.subr.bf16.mxu0 %v426
    %593 = vmatpush1.bf16.msra.mxu0 %v425
    %594 = vmatprep.subr.bf16.mxu0 0
    %595 = vmatpush2.bf16.msra.mxu0 0
    %596 = vmatprep.subr.bf16.mxu0 0
    %597 = vmatpush2.bf16.msra.mxu0 0
    %598 = vmatprep.subr.bf16.mxu0 0
    %599 = vmatpush2.bf16.msra.mxu0 0
    %600 = vmatprep.subr.bf16.mxu0 0
    %601 = vmatpush2.bf16.msra.mxu0 0
    %602 = vmatprep.subr.bf16.mxu0 0
    %603 = vmatpush2.bf16.msra.mxu0 0
    %604 = vmatprep.subr.bf16.mxu0 0
    %605 = vmatpush2.bf16.msra.mxu0 0
    %606 = vmatprep.subr.bf16.mxu0 0
    %607 = vmatpush2.bf16.msra.mxu0 0
    %608 = vmatprep.subr.bf16.mxu0 0
    %609 = vmatpush2.bf16.msra.mxu0 0
    %610 = vmatprep.mubr.bf16.mxu0 0
    %611 = vmatmul.mubr.bf16.gmra.mxu0 %v453
    %v612 = vpop.f32.mrf.mxu0
    %v613 = vadd.f32 %v358, %v612
    %v614 = vpop.f32.mrf.mxu0
    %v615 = vadd.f32 %v362, %v614
    %v616 = vpop.f32.mrf.mxu0
    %v617 = vpop.f32.mrf.mxu0
    %618 = vdwg.mxu0
    %v619 = vmax.f32 %v490, 0.0
    %v620 = vmax.f32 %v492, 0.0
    %v621 = vmax.f32 %v531, 0.0
    %v622 = vmax.f32 %v533, 0.0
    %v623 = vmax.f32 %v572, 0.0
    %v624 = vmax.f32 %v574, 0.0
    %v625 = vmax.f32 %v613, 0.0
    %v626 = vmax.f32 %v615, 0.0
    %v627 = vpack.c.bf16 %v619, %v619
    %v628 = vpack.c.bf16 %v620, %v620
    %v629 = vpack.c.bf16 %v621, %v621
    %v630 = vpack.c.bf16 %v622, %v622
    %v631 = vpack.c.bf16 %v623, %v623
    %v632 = vpack.c.bf16 %v624, %v624
    %v633 = vpack.c.bf16 %v625, %v625
    %v634 = vpack.c.bf16 %v626, %v626
    %v635 = vld [vmem:[#allocation7] sm:$0xff]
    %v636 = vld [vmem:[#allocation7 + $0x8] sm:$0xff]
    %v637 = vld [vmem:[#allocation7 + $0x10] sm:$0xff]
    %v638 = vld [vmem:[#allocation7 + $0x18] sm:$0xff]
    %v639 = vld [vmem:[#allocation7 + $0x20] sm:$0xff]
    %v640 = vld [vmem:[#allocation7 + $0x28] sm:$0xff]
    %v641 = vld [vmem:[#allocation7 + $0x30] sm:$0xff]
    %v642 = vld [vmem:[#allocation7 + $0x38] sm:$0xff]
    %v643 = vld [vmem:[#allocation7 + $0x40] sm:$0xff]
    %v644 = vld [vmem:[#allocation7 + $0x48] sm:$0xff]
    %v645 = vld [vmem:[#allocation7 + $0x50] sm:$0xff]
    %v646 = vld [vmem:[#allocation7 + $0x58] sm:$0xff]
    %v647 = vld [vmem:[#allocation7 + $0x60] sm:$0xff]
    %v648 = vld [vmem:[#allocation7 + $0x68] sm:$0xff]
    %v649 = vld [vmem:[#allocation7 + $0x70] sm:$0xff]
    %v650 = vld [vmem:[#allocation7 + $0x78] sm:$0xff]
    %v651 = vld [vmem:[#allocation7 + $0x80] sm:$0xff]
    %v652 = vld [vmem:[#allocation7 + $0x88] sm:$0xff]
    %v653 = vld [vmem:[#allocation7 + $0x90] sm:$0xff]
    %v654 = vld [vmem:[#allocation7 + $0x98] sm:$0xff]
    %v655 = vld [vmem:[#allocation7 + $0xa0] sm:$0xff]
    %v656 = vld [vmem:[#allocation7 + $0xa8] sm:$0xff]
    %v657 = vld [vmem:[#allocation7 + $0xb0] sm:$0xff]
    %v658 = vld [vmem:[#allocation7 + $0xb8] sm:$0xff]
    %v659 = vld [vmem:[#allocation7 + $0xc0] sm:$0xff]
    %v660 = vld [vmem:[#allocation7 + $0xc8] sm:$0xff]
    %v661 = vld [vmem:[#allocation7 + $0xd0] sm:$0xff]
    %v662 = vld [vmem:[#allocation7 + $0xd8] sm:$0xff]
    %v663 = vld [vmem:[#allocation7 + $0xe0] sm:$0xff]
    %v664 = vld [vmem:[#allocation7 + $0xe8] sm:$0xff]
    %v665 = vld [vmem:[#allocation7 + $0xf0] sm:$0xff]
    %v666 = vld [vmem:[#allocation7 + $0xf8] sm:$0xff]
    %v667 = vld [vmem:[#allocation7 + $0x100] sm:$0xff]
    %v668 = vld [vmem:[#allocation7 + $0x108] sm:$0xff]
    %v669 = vld [vmem:[#allocation7 + $0x110] sm:$0xff]
    %v670 = vld [vmem:[#allocation7 + $0x118] sm:$0xff]
    %v671 = vld [vmem:[#allocation7 + $0x120] sm:$0xff]
    %v672 = vld [vmem:[#allocation7 + $0x128] sm:$0xff]
    %v673 = vld [vmem:[#allocation7 + $0x130] sm:$0xff]
    %v674 = vld [vmem:[#allocation7 + $0x138] sm:$0xff]
    %v675 = vld [vmem:[#allocation7 + $0x140] sm:$0xff]
    %v676 = vld [vmem:[#allocation7 + $0x148] sm:$0xff]
    %v677 = vld [vmem:[#allocation7 + $0x150] sm:$0xff]
    %v678 = vld [vmem:[#allocation7 + $0x158] sm:$0xff]
    %v679 = vld [vmem:[#allocation7 + $0x160] sm:$0xff]
    %v680 = vld [vmem:[#allocation7 + $0x168] sm:$0xff]
    %v681 = vld [vmem:[#allocation7 + $0x170] sm:$0xff]
    %v682 = vld [vmem:[#allocation7 + $0x178] sm:$0xff]
    %v683 = vld [vmem:[#allocation7 + $0x180] sm:$0xff]
    %v684 = vld [vmem:[#allocation7 + $0x188] sm:$0xff]
    %v685 = vld [vmem:[#allocation7 + $0x190] sm:$0xff]
    %v686 = vld [vmem:[#allocation7 + $0x198] sm:$0xff]
    %v687 = vld [vmem:[#allocation7 + $0x1a0] sm:$0xff]
    %v688 = vld [vmem:[#allocation7 + $0x1a8] sm:$0xff]
    %v689 = vld [vmem:[#allocation7 + $0x1b0] sm:$0xff]
    %v690 = vld [vmem:[#allocation7 + $0x1b8] sm:$0xff]
    %v691 = vld [vmem:[#allocation7 + $0x1c0] sm:$0xff]
    %v692 = vld [vmem:[#allocation7 + $0x1c8] sm:$0xff]
    %v693 = vld [vmem:[#allocation7 + $0x1d0] sm:$0xff]
    %v694 = vld [vmem:[#allocation7 + $0x1d8] sm:$0xff]
    %v695 = vld [vmem:[#allocation7 + $0x1e0] sm:$0xff]
    %v696 = vld [vmem:[#allocation7 + $0x1e8] sm:$0xff]
    %v697 = vld [vmem:[#allocation7 + $0x1f0] sm:$0xff]
    %v698 = vld [vmem:[#allocation7 + $0x1f8] sm:$0xff]
    %v699 = vld [vmem:[#allocation7 + $0x200] sm:$0xff]
    %v700 = vld [vmem:[#allocation7 + $0x208] sm:$0xff]
    %v701 = vld [vmem:[#allocation7 + $0x210] sm:$0xff]
    %v702 = vld [vmem:[#allocation7 + $0x218] sm:$0xff]
    %v703 = vld [vmem:[#allocation7 + $0x220] sm:$0xff]
    %v704 = vld [vmem:[#allocation7 + $0x228] sm:$0xff]
    %v705 = vld [vmem:[#allocation7 + $0x230] sm:$0xff]
    %v706 = vld [vmem:[#allocation7 + $0x238] sm:$0xff]
    %v707 = vld [vmem:[#allocation7 + $0x240] sm:$0xff]
    %v708 = vld [vmem:[#allocation7 + $0x248] sm:$0xff]
    %v709 = vld [vmem:[#allocation7 + $0x250] sm:$0xff]
    %v710 = vld [vmem:[#allocation7 + $0x258] sm:$0xff]
    %v711 = vld [vmem:[#allocation7 + $0x260] sm:$0xff]
    %v712 = vld [vmem:[#allocation7 + $0x268] sm:$0xff]
    %v713 = vld [vmem:[#allocation7 + $0x270] sm:$0xff]
    %v714 = vld [vmem:[#allocation7 + $0x278] sm:$0xff]
    %v715 = vld [vmem:[#allocation7 + $0x280] sm:$0xff]
    %v716 = vld [vmem:[#allocation7 + $0x288] sm:$0xff]
    %v717 = vld [vmem:[#allocation7 + $0x290] sm:$0xff]
    %v718 = vld [vmem:[#allocation7 + $0x298] sm:$0xff]
    %v719 = vld [vmem:[#allocation7 + $0x2a0] sm:$0xff]
    %v720 = vld [vmem:[#allocation7 + $0x2a8] sm:$0xff]
    %v721 = vld [vmem:[#allocation7 + $0x2b0] sm:$0xff]
    %v722 = vld [vmem:[#allocation7 + $0x2b8] sm:$0xff]
    %v723 = vld [vmem:[#allocation7 + $0x2c0] sm:$0xff]
    %v724 = vld [vmem:[#allocation7 + $0x2c8] sm:$0xff]
    %v725 = vld [vmem:[#allocation7 + $0x2d0] sm:$0xff]
    %v726 = vld [vmem:[#allocation7 + $0x2d8] sm:$0xff]
    %v727 = vld [vmem:[#allocation7 + $0x2e0] sm:$0xff]
    %v728 = vld [vmem:[#allocation7 + $0x2e8] sm:$0xff]
    %v729 = vld [vmem:[#allocation7 + $0x2f0] sm:$0xff]
    %v730 = vld [vmem:[#allocation7 + $0x2f8] sm:$0xff]
    %v731 = vld [vmem:[#allocation7 + $0x300] sm:$0xff]
    %v732 = vld [vmem:[#allocation7 + $0x308] sm:$0xff]
    %v733 = vld [vmem:[#allocation7 + $0x310] sm:$0xff]
    %v734 = vld [vmem:[#allocation7 + $0x318] sm:$0xff]
    %v735 = vld [vmem:[#allocation7 + $0x320] sm:$0xff]
    %v736 = vld [vmem:[#allocation7 + $0x328] sm:$0xff]
    %v737 = vld [vmem:[#allocation7 + $0x330] sm:$0xff]
    %v738 = vld [vmem:[#allocation7 + $0x338] sm:$0xff]
    %v739 = vld [vmem:[#allocation7 + $0x340] sm:$0xff]
    %v740 = vld [vmem:[#allocation7 + $0x348] sm:$0xff]
    %v741 = vld [vmem:[#allocation7 + $0x350] sm:$0xff]
    %v742 = vld [vmem:[#allocation7 + $0x358] sm:$0xff]
    %v743 = vld [vmem:[#allocation7 + $0x360] sm:$0xff]
    %v744 = vld [vmem:[#allocation7 + $0x368] sm:$0xff]
    %v745 = vld [vmem:[#allocation7 + $0x370] sm:$0xff]
    %v746 = vld [vmem:[#allocation7 + $0x378] sm:$0xff]
    %v747 = vld [vmem:[#allocation7 + $0x380] sm:$0xff]
    %v748 = vld [vmem:[#allocation7 + $0x388] sm:$0xff]
    %v749 = vld [vmem:[#allocation7 + $0x390] sm:$0xff]
    %v750 = vld [vmem:[#allocation7 + $0x398] sm:$0xff]
    %v751 = vld [vmem:[#allocation7 + $0x3a0] sm:$0xff]
    %v752 = vld [vmem:[#allocation7 + $0x3a8] sm:$0xff]
    %v753 = vld [vmem:[#allocation7 + $0x3b0] sm:$0xff]
    %v754 = vld [vmem:[#allocation7 + $0x3b8] sm:$0xff]
    %v755 = vld [vmem:[#allocation7 + $0x3c0] sm:$0xff]
    %v756 = vld [vmem:[#allocation7 + $0x3c8] sm:$0xff]
    %v757 = vld [vmem:[#allocation7 + $0x3d0] sm:$0xff]
    %v758 = vld [vmem:[#allocation7 + $0x3d8] sm:$0xff]
    %v759 = vld [vmem:[#allocation7 + $0x3e0] sm:$0xff]
    %v760 = vld [vmem:[#allocation7 + $0x3e8] sm:$0xff]
    %v761 = vld [vmem:[#allocation7 + $0x3f0] sm:$0xff]
    %v762 = vld [vmem:[#allocation7 + $0x3f8] sm:$0xff]
    %v763 = vld [vmem:[#allocation9] sm:$0x3]
    %v765 = vlaneseq
    %v766 = vshrl.u32 %v765, 7
    %v767 = vsub.s32 0, %v766
    %v768 = vrot.slane %v763, %v767
    %v769 = vlaneseq
    %v770 = vshrl.u32 %v769, 7
    %v771 = vsub.s32 1, %v770
    %v772 = vrot.slane %v763, %v771
    %v903 = vunpack.c.l.b16 %v635
    %v904 = vunpack.c.h.b16 %v635
    %v905 = vunpack.c.l.b16 %v636
    %v906 = vunpack.c.h.b16 %v636
    %v907 = vunpack.c.l.b16 %v637
    %v908 = vunpack.c.h.b16 %v637
    %v909 = vunpack.c.l.b16 %v638
    %v910 = vunpack.c.h.b16 %v638
    %v911 = vunpack.c.l.b16 %v639
    %v912 = vunpack.c.h.b16 %v639
    %v913 = vunpack.c.l.b16 %v640
    %v914 = vunpack.c.h.b16 %v640
    %v915 = vunpack.c.l.b16 %v641
    %v916 = vunpack.c.h.b16 %v641
    %v917 = vunpack.c.l.b16 %v642
    %v918 = vunpack.c.h.b16 %v642
    %v919 = vunpack.c.l.b16 %v643
    %v920 = vunpack.c.h.b16 %v643
    %v921 = vunpack.c.l.b16 %v644
    %v922 = vunpack.c.h.b16 %v644
    %v923 = vunpack.c.l.b16 %v645
    %v924 = vunpack.c.h.b16 %v645
    %v925 = vunpack.c.l.b16 %v646
    %v926 = vunpack.c.h.b16 %v646
    %v927 = vunpack.c.l.b16 %v647
    %v928 = vunpack.c.h.b16 %v647
    %v929 = vunpack.c.l.b16 %v648
    %v930 = vunpack.c.h.b16 %v648
    %v931 = vunpack.c.l.b16 %v649
    %v932 = vunpack.c.h.b16 %v649
    %v933 = vunpack.c.l.b16 %v650
    %v934 = vunpack.c.h.b16 %v650
    %v935 = vunpack.c.l.b16 %v651
    %v936 = vunpack.c.h.b16 %v651
    %v937 = vunpack.c.l.b16 %v652
    %v938 = vunpack.c.h.b16 %v652
    %v939 = vunpack.c.l.b16 %v653
    %v940 = vunpack.c.h.b16 %v653
    %v941 = vunpack.c.l.b16 %v654
    %v942 = vunpack.c.h.b16 %v654
    %v943 = vunpack.c.l.b16 %v655
    %v944 = vunpack.c.h.b16 %v655
    %v945 = vunpack.c.l.b16 %v656
    %v946 = vunpack.c.h.b16 %v656
    %v947 = vunpack.c.l.b16 %v657
    %v948 = vunpack.c.h.b16 %v657
    %v949 = vunpack.c.l.b16 %v658
    %v950 = vunpack.c.h.b16 %v658
    %v951 = vunpack.c.l.b16 %v659
    %v952 = vunpack.c.h.b16 %v659
    %v953 = vunpack.c.l.b16 %v660
    %v954 = vunpack.c.h.b16 %v660
    %v955 = vunpack.c.l.b16 %v661
    %v956 = vunpack.c.h.b16 %v661
    %v957 = vunpack.c.l.b16 %v662
    %v958 = vunpack.c.h.b16 %v662
    %v959 = vunpack.c.l.b16 %v663
    %v960 = vunpack.c.h.b16 %v663
    %v961 = vunpack.c.l.b16 %v664
    %v962 = vunpack.c.h.b16 %v664
    %v963 = vunpack.c.l.b16 %v665
    %v964 = vunpack.c.h.b16 %v665
    %v965 = vunpack.c.l.b16 %v666
    %v966 = vunpack.c.h.b16 %v666
    %v967 = vunpack.c.l.b16 %v667
    %v968 = vunpack.c.h.b16 %v667
    %v969 = vunpack.c.l.b16 %v668
    %v970 = vunpack.c.h.b16 %v668
    %v971 = vunpack.c.l.b16 %v669
    %v972 = vunpack.c.h.b16 %v669
    %v973 = vunpack.c.l.b16 %v670
    %v974 = vunpack.c.h.b16 %v670
    %v975 = vunpack.c.l.b16 %v671
    %v976 = vunpack.c.h.b16 %v671
    %v977 = vunpack.c.l.b16 %v672
    %v978 = vunpack.c.h.b16 %v672
    %v979 = vunpack.c.l.b16 %v673
    %v980 = vunpack.c.h.b16 %v673
    %v981 = vunpack.c.l.b16 %v674
    %v982 = vunpack.c.h.b16 %v674
    %v983 = vunpack.c.l.b16 %v675
    %v984 = vunpack.c.h.b16 %v675
    %v985 = vunpack.c.l.b16 %v676
    %v986 = vunpack.c.h.b16 %v676
    %v987 = vunpack.c.l.b16 %v677
    %v988 = vunpack.c.h.b16 %v677
    %v989 = vunpack.c.l.b16 %v678
    %v990 = vunpack.c.h.b16 %v678
    %v991 = vunpack.c.l.b16 %v679
    %v992 = vunpack.c.h.b16 %v679
    %v993 = vunpack.c.l.b16 %v680
    %v994 = vunpack.c.h.b16 %v680
    %v995 = vunpack.c.l.b16 %v681
    %v996 = vunpack.c.h.b16 %v681
    %v997 = vunpack.c.l.b16 %v682
    %v998 = vunpack.c.h.b16 %v682
    %v999 = vunpack.c.l.b16 %v683
    %v1000 = vunpack.c.h.b16 %v683
    %v1001 = vunpack.c.l.b16 %v684
    %v1002 = vunpack.c.h.b16 %v684
    %v1003 = vunpack.c.l.b16 %v685
    %v1004 = vunpack.c.h.b16 %v685
    %v1005 = vunpack.c.l.b16 %v686
    %v1006 = vunpack.c.h.b16 %v686
    %v1007 = vunpack.c.l.b16 %v687
    %v1008 = vunpack.c.h.b16 %v687
    %v1009 = vunpack.c.l.b16 %v688
    %v1010 = vunpack.c.h.b16 %v688
    %v1011 = vunpack.c.l.b16 %v689
    %v1012 = vunpack.c.h.b16 %v689
    %v1013 = vunpack.c.l.b16 %v690
    %v1014 = vunpack.c.h.b16 %v690
    %v1015 = vunpack.c.l.b16 %v691
    %v1016 = vunpack.c.h.b16 %v691
    %v1017 = vunpack.c.l.b16 %v692
    %v1018 = vunpack.c.h.b16 %v692
    %v1019 = vunpack.c.l.b16 %v693
    %v1020 = vunpack.c.h.b16 %v693
    %v1021 = vunpack.c.l.b16 %v694
    %v1022 = vunpack.c.h.b16 %v694
    %v1023 = vunpack.c.l.b16 %v695
    %v1024 = vunpack.c.h.b16 %v695
    %v1025 = vunpack.c.l.b16 %v696
    %v1026 = vunpack.c.h.b16 %v696
    %v1027 = vunpack.c.l.b16 %v697
    %v1028 = vunpack.c.h.b16 %v697
    %v1029 = vunpack.c.l.b16 %v698
    %v1030 = vunpack.c.h.b16 %v698
    %v1031 = vunpack.c.l.b16 %v699
    %v1032 = vunpack.c.h.b16 %v699
    %v1033 = vunpack.c.l.b16 %v700
    %v1034 = vunpack.c.h.b16 %v700
    %v1035 = vunpack.c.l.b16 %v701
    %v1036 = vunpack.c.h.b16 %v701
    %v1037 = vunpack.c.l.b16 %v702
    %v1038 = vunpack.c.h.b16 %v702
    %v1039 = vunpack.c.l.b16 %v703
    %v1040 = vunpack.c.h.b16 %v703
    %v1041 = vunpack.c.l.b16 %v704
    %v1042 = vunpack.c.h.b16 %v704
    %v1043 = vunpack.c.l.b16 %v705
    %v1044 = vunpack.c.h.b16 %v705
    %v1045 = vunpack.c.l.b16 %v706
    %v1046 = vunpack.c.h.b16 %v706
    %v1047 = vunpack.c.l.b16 %v707
    %v1048 = vunpack.c.h.b16 %v707
    %v1049 = vunpack.c.l.b16 %v708
    %v1050 = vunpack.c.h.b16 %v708
    %v1051 = vunpack.c.l.b16 %v709
    %v1052 = vunpack.c.h.b16 %v709
    %v1053 = vunpack.c.l.b16 %v710
    %v1054 = vunpack.c.h.b16 %v710
    %v1055 = vunpack.c.l.b16 %v711
    %v1056 = vunpack.c.h.b16 %v711
    %v1057 = vunpack.c.l.b16 %v712
    %v1058 = vunpack.c.h.b16 %v712
    %v1059 = vunpack.c.l.b16 %v713
    %v1060 = vunpack.c.h.b16 %v713
    %v1061 = vunpack.c.l.b16 %v714
    %v1062 = vunpack.c.h.b16 %v714
    %v1063 = vunpack.c.l.b16 %v715
    %v1064 = vunpack.c.h.b16 %v715
    %v1065 = vunpack.c.l.b16 %v716
    %v1066 = vunpack.c.h.b16 %v716
    %v1067 = vunpack.c.l.b16 %v717
    %v1068 = vunpack.c.h.b16 %v717
    %v1069 = vunpack.c.l.b16 %v718
    %v1070 = vunpack.c.h.b16 %v718
    %v1071 = vunpack.c.l.b16 %v719
    %v1072 = vunpack.c.h.b16 %v719
    %v1073 = vunpack.c.l.b16 %v720
    %v1074 = vunpack.c.h.b16 %v720
    %v1075 = vunpack.c.l.b16 %v721
    %v1076 = vunpack.c.h.b16 %v721
    %v1077 = vunpack.c.l.b16 %v722
    %v1078 = vunpack.c.h.b16 %v722
    %v1079 = vunpack.c.l.b16 %v723
    %v1080 = vunpack.c.h.b16 %v723
    %v1081 = vunpack.c.l.b16 %v724
    %v1082 = vunpack.c.h.b16 %v724
    %v1083 = vunpack.c.l.b16 %v725
    %v1084 = vunpack.c.h.b16 %v725
    %v1085 = vunpack.c.l.b16 %v726
    %v1086 = vunpack.c.h.b16 %v726
    %v1087 = vunpack.c.l.b16 %v727
    %v1088 = vunpack.c.h.b16 %v727
    %v1089 = vunpack.c.l.b16 %v728
    %v1090 = vunpack.c.h.b16 %v728
    %v1091 = vunpack.c.l.b16 %v729
    %v1092 = vunpack.c.h.b16 %v729
    %v1093 = vunpack.c.l.b16 %v730
    %v1094 = vunpack.c.h.b16 %v730
    %v1095 = vunpack.c.l.b16 %v731
    %v1096 = vunpack.c.h.b16 %v731
    %v1097 = vunpack.c.l.b16 %v732
    %v1098 = vunpack.c.h.b16 %v732
    %v1099 = vunpack.c.l.b16 %v733
    %v1100 = vunpack.c.h.b16 %v733
    %v1101 = vunpack.c.l.b16 %v734
    %v1102 = vunpack.c.h.b16 %v734
    %v1103 = vunpack.c.l.b16 %v735
    %v1104 = vunpack.c.h.b16 %v735
    %v1105 = vunpack.c.l.b16 %v736
    %v1106 = vunpack.c.h.b16 %v736
    %v1107 = vunpack.c.l.b16 %v737
    %v1108 = vunpack.c.h.b16 %v737
    %v1109 = vunpack.c.l.b16 %v738
    %v1110 = vunpack.c.h.b16 %v738
    %v1111 = vunpack.c.l.b16 %v739
    %v1112 = vunpack.c.h.b16 %v739
    %v1113 = vunpack.c.l.b16 %v740
    %v1114 = vunpack.c.h.b16 %v740
    %v1115 = vunpack.c.l.b16 %v741
    %v1116 = vunpack.c.h.b16 %v741
    %v1117 = vunpack.c.l.b16 %v742
    %v1118 = vunpack.c.h.b16 %v742
    %v1119 = vunpack.c.l.b16 %v743
    %v1120 = vunpack.c.h.b16 %v743
    %v1121 = vunpack.c.l.b16 %v744
    %v1122 = vunpack.c.h.b16 %v744
    %v1123 = vunpack.c.l.b16 %v745
    %v1124 = vunpack.c.h.b16 %v745
    %v1125 = vunpack.c.l.b16 %v746
    %v1126 = vunpack.c.h.b16 %v746
    %v1127 = vunpack.c.l.b16 %v747
    %v1128 = vunpack.c.h.b16 %v747
    %v1129 = vunpack.c.l.b16 %v748
    %v1130 = vunpack.c.h.b16 %v748
    %v1131 = vunpack.c.l.b16 %v749
    %v1132 = vunpack.c.h.b16 %v749
    %v1133 = vunpack.c.l.b16 %v750
    %v1134 = vunpack.c.h.b16 %v750
    %v1135 = vunpack.c.l.b16 %v751
    %v1136 = vunpack.c.h.b16 %v751
    %v1137 = vunpack.c.l.b16 %v752
    %v1138 = vunpack.c.h.b16 %v752
    %v1139 = vunpack.c.l.b16 %v753
    %v1140 = vunpack.c.h.b16 %v753
    %v1141 = vunpack.c.l.b16 %v754
    %v1142 = vunpack.c.h.b16 %v754
    %v1143 = vunpack.c.l.b16 %v755
    %v1144 = vunpack.c.h.b16 %v755
    %v1145 = vunpack.c.l.b16 %v756
    %v1146 = vunpack.c.h.b16 %v756
    %v1147 = vunpack.c.l.b16 %v757
    %v1148 = vunpack.c.h.b16 %v757
    %v1149 = vunpack.c.l.b16 %v758
    %v1150 = vunpack.c.h.b16 %v758
    %v1151 = vunpack.c.l.b16 %v759
    %v1152 = vunpack.c.h.b16 %v759
    %v1153 = vunpack.c.l.b16 %v760
    %v1154 = vunpack.c.h.b16 %v760
    %v1155 = vunpack.c.l.b16 %v761
    %v1156 = vunpack.c.h.b16 %v761
    %v1157 = vunpack.c.l.b16 %v762
    %v1158 = vunpack.c.h.b16 %v762
    %v1159 = vpack.c.b16 %v905, %v903
    %v1160 = vpack.c.b16 %v906, %v904
    %v1161 = vpack.c.b16 %v909, %v907
    %v1162 = vpack.c.b16 %v910, %v908
    %v1163 = vpack.c.b16 %v913, %v911
    %v1164 = vpack.c.b16 %v914, %v912
    %v1165 = vpack.c.b16 %v917, %v915
    %v1166 = vpack.c.b16 %v918, %v916
    %v1167 = vpack.c.b16 %v921, %v919
    %v1168 = vpack.c.b16 %v922, %v920
    %v1169 = vpack.c.b16 %v925, %v923
    %v1170 = vpack.c.b16 %v926, %v924
    %v1171 = vpack.c.b16 %v929, %v927
    %v1172 = vpack.c.b16 %v930, %v928
    %v1173 = vpack.c.b16 %v933, %v931
    %v1174 = vpack.c.b16 %v934, %v932
    %v1175 = vpack.c.b16 %v937, %v935
    %v1176 = vpack.c.b16 %v938, %v936
    %v1177 = vpack.c.b16 %v941, %v939
    %v1178 = vpack.c.b16 %v942, %v940
    %v1179 = vpack.c.b16 %v945, %v943
    %v1180 = vpack.c.b16 %v946, %v944
    %v1181 = vpack.c.b16 %v949, %v947
    %v1182 = vpack.c.b16 %v950, %v948
    %v1183 = vpack.c.b16 %v953, %v951
    %v1184 = vpack.c.b16 %v954, %v952
    %v1185 = vpack.c.b16 %v957, %v955
    %v1186 = vpack.c.b16 %v958, %v956
    %v1187 = vpack.c.b16 %v961, %v959
    %v1188 = vpack.c.b16 %v962, %v960
    %v1189 = vpack.c.b16 %v965, %v963
    %v1190 = vpack.c.b16 %v966, %v964
    %v1191 = vpack.c.b16 %v969, %v967
    %v1192 = vpack.c.b16 %v970, %v968
    %v1193 = vpack.c.b16 %v973, %v971
    %v1194 = vpack.c.b16 %v974, %v972
    %v1195 = vpack.c.b16 %v977, %v975
    %v1196 = vpack.c.b16 %v978, %v976
    %v1197 = vpack.c.b16 %v981, %v979
    %v1198 = vpack.c.b16 %v982, %v980
    %v1199 = vpack.c.b16 %v985, %v983
    %v1200 = vpack.c.b16 %v986, %v984
    %v1201 = vpack.c.b16 %v989, %v987
    %v1202 = vpack.c.b16 %v990, %v988
    %v1203 = vpack.c.b16 %v993, %v991
    %v1204 = vpack.c.b16 %v994, %v992
    %v1205 = vpack.c.b16 %v997, %v995
    %v1206 = vpack.c.b16 %v998, %v996
    %v1207 = vpack.c.b16 %v1001, %v999
    %v1208 = vpack.c.b16 %v1002, %v1000
    %v1209 = vpack.c.b16 %v1005, %v1003
    %v1210 = vpack.c.b16 %v1006, %v1004
    %v1211 = vpack.c.b16 %v1009, %v1007
    %v1212 = vpack.c.b16 %v1010, %v1008
    %v1213 = vpack.c.b16 %v1013, %v1011
    %v1214 = vpack.c.b16 %v1014, %v1012
    %v1215 = vpack.c.b16 %v1017, %v1015
    %v1216 = vpack.c.b16 %v1018, %v1016
    %v1217 = vpack.c.b16 %v1021, %v1019
    %v1218 = vpack.c.b16 %v1022, %v1020
    %v1219 = vpack.c.b16 %v1025, %v1023
    %v1220 = vpack.c.b16 %v1026, %v1024
    %v1221 = vpack.c.b16 %v1029, %v1027
    %v1222 = vpack.c.b16 %v1030, %v1028
    %v1223 = vpack.c.b16 %v1033, %v1031
    %v1224 = vpack.c.b16 %v1034, %v1032
    %v1225 = vpack.c.b16 %v1037, %v1035
    %v1226 = vpack.c.b16 %v1038, %v1036
    %v1227 = vpack.c.b16 %v1041, %v1039
    %v1228 = vpack.c.b16 %v1042, %v1040
    %v1229 = vpack.c.b16 %v1045, %v1043
    %v1230 = vpack.c.b16 %v1046, %v1044
    %v1231 = vpack.c.b16 %v1049, %v1047
    %v1232 = vpack.c.b16 %v1050, %v1048
    %v1233 = vpack.c.b16 %v1053, %v1051
    %v1234 = vpack.c.b16 %v1054, %v1052
    %v1235 = vpack.c.b16 %v1057, %v1055
    %v1236 = vpack.c.b16 %v1058, %v1056
    %v1237 = vpack.c.b16 %v1061, %v1059
    %v1238 = vpack.c.b16 %v1062, %v1060
    %v1239 = vpack.c.b16 %v1065, %v1063
    %v1240 = vpack.c.b16 %v1066, %v1064
    %v1241 = vpack.c.b16 %v1069, %v1067
    %v1242 = vpack.c.b16 %v1070, %v1068
    %v1243 = vpack.c.b16 %v1073, %v1071
    %v1244 = vpack.c.b16 %v1074, %v1072
    %v1245 = vpack.c.b16 %v1077, %v1075
    %v1246 = vpack.c.b16 %v1078, %v1076
    %v1247 = vpack.c.b16 %v1081, %v1079
    %v1248 = vpack.c.b16 %v1082, %v1080
    %v1249 = vpack.c.b16 %v1085, %v1083
    %v1250 = vpack.c.b16 %v1086, %v1084
    %v1251 = vpack.c.b16 %v1089, %v1087
    %v1252 = vpack.c.b16 %v1090, %v1088
    %v1253 = vpack.c.b16 %v1093, %v1091
    %v1254 = vpack.c.b16 %v1094, %v1092
    %v1255 = vpack.c.b16 %v1097, %v1095
    %v1256 = vpack.c.b16 %v1098, %v1096
    %v1257 = vpack.c.b16 %v1101, %v1099
    %v1258 = vpack.c.b16 %v1102, %v1100
    %v1259 = vpack.c.b16 %v1105, %v1103
    %v1260 = vpack.c.b16 %v1106, %v1104
    %v1261 = vpack.c.b16 %v1109, %v1107
    %v1262 = vpack.c.b16 %v1110, %v1108
    %v1263 = vpack.c.b16 %v1113, %v1111
    %v1264 = vpack.c.b16 %v1114, %v1112
    %v1265 = vpack.c.b16 %v1117, %v1115
    %v1266 = vpack.c.b16 %v1118, %v1116
    %v1267 = vpack.c.b16 %v1121, %v1119
    %v1268 = vpack.c.b16 %v1122, %v1120
    %v1269 = vpack.c.b16 %v1125, %v1123
    %v1270 = vpack.c.b16 %v1126, %v1124
    %v1271 = vpack.c.b16 %v1129, %v1127
    %v1272 = vpack.c.b16 %v1130, %v1128
    %v1273 = vpack.c.b16 %v1133, %v1131
    %v1274 = vpack.c.b16 %v1134, %v1132
    %v1275 = vpack.c.b16 %v1137, %v1135
    %v1276 = vpack.c.b16 %v1138, %v1136
    %v1277 = vpack.c.b16 %v1141, %v1139
    %v1278 = vpack.c.b16 %v1142, %v1140
    %v1279 = vpack.c.b16 %v1145, %v1143
    %v1280 = vpack.c.b16 %v1146, %v1144
    %v1281 = vpack.c.b16 %v1149, %v1147
    %v1282 = vpack.c.b16 %v1150, %v1148
    %v1283 = vpack.c.b16 %v1153, %v1151
    %v1284 = vpack.c.b16 %v1154, %v1152
    %v1285 = vpack.c.b16 %v1157, %v1155
    %v1286 = vpack.c.b16 %v1158, %v1156
    %1415 = vmatprep.subr.bf16.mxu0 %v1174
    %1416 = vmatpush1.bf16.msra.mxu0 %v1173
    %1417 = vmatprep.subr.bf16.mxu0 %v1172
    %1418 = vmatpush1.bf16.msra.mxu0 %v1171
    %1419 = vmatprep.subr.bf16.mxu0 %v1170
    %1420 = vmatpush1.bf16.msra.mxu0 %v1169
    %1421 = vmatprep.subr.bf16.mxu0 %v1168
    %1422 = vmatpush1.bf16.msra.mxu0 %v1167
    %1423 = vmatprep.subr.bf16.mxu0 %v1166
    %1424 = vmatpush1.bf16.msra.mxu0 %v1165
    %1425 = vmatprep.subr.bf16.mxu0 %v1164
    %1426 = vmatpush1.bf16.msra.mxu0 %v1163
    %1427 = vmatprep.subr.bf16.mxu0 %v1162
    %1428 = vmatpush1.bf16.msra.mxu0 %v1161
    %1429 = vmatprep.subr.bf16.mxu0 %v1160
    %1430 = vmatpush1.bf16.msra.mxu0 %v1159
    %1431 = vmatprep.subr.bf16.mxu0 %v1190
    %1432 = vmatpush2.bf16.msra.mxu0 %v1189
    %1433 = vmatprep.subr.bf16.mxu0 %v1188
    %1434 = vmatpush2.bf16.msra.mxu0 %v1187
    %1435 = vmatprep.subr.bf16.mxu0 %v1186
    %1436 = vmatpush2.bf16.msra.mxu0 %v1185
    %1437 = vmatprep.subr.bf16.mxu0 %v1184
    %1438 = vmatpush2.bf16.msra.mxu0 %v1183
    %1439 = vmatprep.subr.bf16.mxu0 %v1182
    %1440 = vmatpush2.bf16.msra.mxu0 %v1181
    %1441 = vmatprep.subr.bf16.mxu0 %v1180
    %1442 = vmatpush2.bf16.msra.mxu0 %v1179
    %1443 = vmatprep.subr.bf16.mxu0 %v1178
    %1444 = vmatpush2.bf16.msra.mxu0 %v1177
    %1445 = vmatprep.subr.bf16.mxu0 %v1176
    %1446 = vmatpush2.bf16.msra.mxu0 %v1175
    %1447 = vmatprep.mubr.bf16.mxu0 %v628
    %1448 = vmatmul.mubr.bf16.gmra.mxu0 %v627
    %v1449 = vpop.f32.mrf.mxu0
    %v1450 = vadd.f32 %v768, %v1449
    %v1451 = vpop.f32.mrf.mxu0
    %v1452 = vadd.f32 %v772, %v1451
    %v1453 = vpop.f32.mrf.mxu0
    %v1454 = vpop.f32.mrf.mxu0
    %1455 = vdwg.mxu0
    %1456 = vmatprep.subr.bf16.mxu0 %v1206
    %1457 = vmatpush1.bf16.msra.mxu0 %v1205
    %1458 = vmatprep.subr.bf16.mxu0 %v1204
    %1459 = vmatpush1.bf16.msra.mxu0 %v1203
    %1460 = vmatprep.subr.bf16.mxu0 %v1202
    %1461 = vmatpush1.bf16.msra.mxu0 %v1201
    %1462 = vmatprep.subr.bf16.mxu0 %v1200
    %1463 = vmatpush1.bf16.msra.mxu0 %v1199
    %1464 = vmatprep.subr.bf16.mxu0 %v1198
    %1465 = vmatpush1.bf16.msra.mxu0 %v1197
    %1466 = vmatprep.subr.bf16.mxu0 %v1196
    %1467 = vmatpush1.bf16.msra.mxu0 %v1195
    %1468 = vmatprep.subr.bf16.mxu0 %v1194
    %1469 = vmatpush1.bf16.msra.mxu0 %v1193
    %1470 = vmatprep.subr.bf16.mxu0 %v1192
    %1471 = vmatpush1.bf16.msra.mxu0 %v1191
    %1472 = vmatprep.subr.bf16.mxu0 %v1222
    %1473 = vmatpush2.bf16.msra.mxu0 %v1221
    %1474 = vmatprep.subr.bf16.mxu0 %v1220
    %1475 = vmatpush2.bf16.msra.mxu0 %v1219
    %1476 = vmatprep.subr.bf16.mxu0 %v1218
    %1477 = vmatpush2.bf16.msra.mxu0 %v1217
    %1478 = vmatprep.subr.bf16.mxu0 %v1216
    %1479 = vmatpush2.bf16.msra.mxu0 %v1215
    %1480 = vmatprep.subr.bf16.mxu0 %v1214
    %1481 = vmatpush2.bf16.msra.mxu0 %v1213
    %1482 = vmatprep.subr.bf16.mxu0 %v1212
    %1483 = vmatpush2.bf16.msra.mxu0 %v1211
    %1484 = vmatprep.subr.bf16.mxu0 %v1210
    %1485 = vmatpush2.bf16.msra.mxu0 %v1209
    %1486 = vmatprep.subr.bf16.mxu0 %v1208
    %1487 = vmatpush2.bf16.msra.mxu0 %v1207
    %1488 = vmatprep.mubr.bf16.mxu0 %v630
    %1489 = vmatmul.mubr.bf16.gmra.mxu0 %v629
    %v1490 = vpop.f32.mrf.mxu0
    %v1491 = vadd.f32 %v1450, %v1490
    %v1492 = vpop.f32.mrf.mxu0
    %v1493 = vadd.f32 %v1452, %v1492
    %v1494 = vpop.f32.mrf.mxu0
    %v1495 = vpop.f32.mrf.mxu0
    %1496 = vdwg.mxu0
    %1497 = vmatprep.subr.bf16.mxu0 %v1238
    %1498 = vmatpush1.bf16.msra.mxu0 %v1237
    %1499 = vmatprep.subr.bf16.mxu0 %v1236
    %1500 = vmatpush1.bf16.msra.mxu0 %v1235
    %1501 = vmatprep.subr.bf16.mxu0 %v1234
    %1502 = vmatpush1.bf16.msra.mxu0 %v1233
    %1503 = vmatprep.subr.bf16.mxu0 %v1232
    %1504 = vmatpush1.bf16.msra.mxu0 %v1231
    %1505 = vmatprep.subr.bf16.mxu0 %v1230
    %1506 = vmatpush1.bf16.msra.mxu0 %v1229
    %1507 = vmatprep.subr.bf16.mxu0 %v1228
    %1508 = vmatpush1.bf16.msra.mxu0 %v1227
    %1509 = vmatprep.subr.bf16.mxu0 %v1226
    %1510 = vmatpush1.bf16.msra.mxu0 %v1225
    %1511 = vmatprep.subr.bf16.mxu0 %v1224
    %1512 = vmatpush1.bf16.msra.mxu0 %v1223
    %1513 = vmatprep.subr.bf16.mxu0 %v1254
    %1514 = vmatpush2.bf16.msra.mxu0 %v1253
    %1515 = vmatprep.subr.bf16.mxu0 %v1252
    %1516 = vmatpush2.bf16.msra.mxu0 %v1251
    %1517 = vmatprep.subr.bf16.mxu0 %v1250
    %1518 = vmatpush2.bf16.msra.mxu0 %v1249
    %1519 = vmatprep.subr.bf16.mxu0 %v1248
    %1520 = vmatpush2.bf16.msra.mxu0 %v1247
    %1521 = vmatprep.subr.bf16.mxu0 %v1246
    %1522 = vmatpush2.bf16.msra.mxu0 %v1245
    %1523 = vmatprep.subr.bf16.mxu0 %v1244
    %1524 = vmatpush2.bf16.msra.mxu0 %v1243
    %1525 = vmatprep.subr.bf16.mxu0 %v1242
    %1526 = vmatpush2.bf16.msra.mxu0 %v1241
    %1527 = vmatprep.subr.bf16.mxu0 %v1240
    %1528 = vmatpush2.bf16.msra.mxu0 %v1239
    %1529 = vmatprep.mubr.bf16.mxu0 %v632
    %1530 = vmatmul.mubr.bf16.gmra.mxu0 %v631
    %v1531 = vpop.f32.mrf.mxu0
    %v1532 = vadd.f32 %v1491, %v1531
    %v1533 = vpop.f32.mrf.mxu0
    %v1534 = vadd.f32 %v1493, %v1533
    %v1535 = vpop.f32.mrf.mxu0
    %v1536 = vpop.f32.mrf.mxu0
    %1537 = vdwg.mxu0
    %1538 = vmatprep.subr.bf16.mxu0 %v1270
    %1539 = vmatpush1.bf16.msra.mxu0 %v1269
    %1540 = vmatprep.subr.bf16.mxu0 %v1268
    %1541 = vmatpush1.bf16.msra.mxu0 %v1267
    %1542 = vmatprep.subr.bf16.mxu0 %v1266
    %1543 = vmatpush1.bf16.msra.mxu0 %v1265
    %1544 = vmatprep.subr.bf16.mxu0 %v1264
    %1545 = vmatpush1.bf16.msra.mxu0 %v1263
    %1546 = vmatprep.subr.bf16.mxu0 %v1262
    %1547 = vmatpush1.bf16.msra.mxu0 %v1261
    %1548 = vmatprep.subr.bf16.mxu0 %v1260
    %1549 = vmatpush1.bf16.msra.mxu0 %v1259
    %1550 = vmatprep.subr.bf16.mxu0 %v1258
    %1551 = vmatpush1.bf16.msra.mxu0 %v1257
    %1552 = vmatprep.subr.bf16.mxu0 %v1256
    %1553 = vmatpush1.bf16.msra.mxu0 %v1255
    %1554 = vmatprep.subr.bf16.mxu0 %v1286
    %1555 = vmatpush2.bf16.msra.mxu0 %v1285
    %1556 = vmatprep.subr.bf16.mxu0 %v1284
    %1557 = vmatpush2.bf16.msra.mxu0 %v1283
    %1558 = vmatprep.subr.bf16.mxu0 %v1282
    %1559 = vmatpush2.bf16.msra.mxu0 %v1281
    %1560 = vmatprep.subr.bf16.mxu0 %v1280
    %1561 = vmatpush2.bf16.msra.mxu0 %v1279
    %1562 = vmatprep.subr.bf16.mxu0 %v1278
    %1563 = vmatpush2.bf16.msra.mxu0 %v1277
    %1564 = vmatprep.subr.bf16.mxu0 %v1276
    %1565 = vmatpush2.bf16.msra.mxu0 %v1275
    %1566 = vmatprep.subr.bf16.mxu0 %v1274
    %1567 = vmatpush2.bf16.msra.mxu0 %v1273
    %1568 = vmatprep.subr.bf16.mxu0 %v1272
    %1569 = vmatpush2.bf16.msra.mxu0 %v1271
    %1570 = vmatprep.mubr.bf16.mxu0 %v634
    %1571 = vmatmul.mubr.bf16.gmra.mxu0 %v633
    %v1572 = vpop.f32.mrf.mxu0
    %v1573 = vadd.f32 %v1532, %v1572
    %v1574 = vpop.f32.mrf.mxu0
    %v1575 = vadd.f32 %v1534, %v1574
    %v1576 = vpop.f32.mrf.mxu0
    %v1577 = vpop.f32.mrf.mxu0
    %1578 = vdwg.mxu0
    %v1579 = vmax.f32 %v1573, 0.0
    %v1580 = vmax.f32 %v1575, 0.0
    %v1581 = vld [vmem:[%s3] sm:$0xf]
    %v1582 = vld [vmem:[#allocation10] sm:$0xff]
    %v1583 = vld [vmem:[#allocation10 + $0x8] sm:$0xff]
    %v1584 = vld [vmem:[#allocation10 + $0x10] sm:$0xff]
    %v1585 = vld [vmem:[#allocation10 + $0x18] sm:$0xff]
    %v1586 = vld [vmem:[#allocation10 + $0x20] sm:$0xff]
    %v1587 = vld [vmem:[#allocation10 + $0x28] sm:$0xff]
    %v1588 = vld [vmem:[#allocation10 + $0x30] sm:$0xff]
    %v1589 = vld [vmem:[#allocation10 + $0x38] sm:$0xff]
    %v1590 = vld [vmem:[#allocation10 + $0x40] sm:$0xff]
    %v1591 = vld [vmem:[#allocation10 + $0x48] sm:$0xff]
    %v1592 = vld [vmem:[#allocation10 + $0x50] sm:$0xff]
    %v1593 = vld [vmem:[#allocation10 + $0x58] sm:$0xff]
    %v1594 = vld [vmem:[#allocation10 + $0x60] sm:$0xff]
    %v1595 = vld [vmem:[#allocation10 + $0x68] sm:$0xff]
    %v1596 = vld [vmem:[#allocation10 + $0x70] sm:$0xff]
    %v1597 = vld [vmem:[#allocation10 + $0x78] sm:$0xff]
    %v1598 = vld [vmem:[%s17] sm:$0xff]
    %v1600 = vlaneseq
    %v1601 = vshrl.u32 %v1600, 7
    %v1602 = vsub.s32 0, %v1601
    %v1603 = vrot.slane %v1598, %v1602
    %v1604 = vlaneseq
    %v1605 = vshrl.u32 %v1604, 7
    %v1606 = vsub.s32 1, %v1605
    %v1607 = vrot.slane %v1598, %v1606
    %v1608 = vlaneseq
    %v1609 = vshrl.u32 %v1608, 7
    %v1610 = vsub.s32 2, %v1609
    %v1611 = vrot.slane %v1598, %v1610
    %v1612 = vlaneseq
    %v1613 = vshrl.u32 %v1612, 7
    %v1614 = vsub.s32 3, %v1613
    %v1615 = vrot.slane %v1598, %v1614
    %v1616 = vlaneseq
    %v1617 = vshrl.u32 %v1616, 7
    %v1618 = vsub.s32 4, %v1617
    %v1619 = vrot.slane %v1598, %v1618
    %v1620 = vlaneseq
    %v1621 = vshrl.u32 %v1620, 7
    %v1622 = vsub.s32 5, %v1621
    %v1623 = vrot.slane %v1598, %v1622
    %v1624 = vlaneseq
    %v1625 = vshrl.u32 %v1624, 7
    %v1626 = vsub.s32 6, %v1625
    %v1627 = vrot.slane %v1598, %v1626
    %v1628 = vlaneseq
    %v1629 = vshrl.u32 %v1628, 7
    %v1630 = vsub.s32 7, %v1629
    %v1631 = vrot.slane %v1598, %v1630
    %v1656 = vunpack.c.l.b16 %v1582
    %v1657 = vunpack.c.h.b16 %v1582
    %v1658 = vunpack.c.l.b16 %v1583
    %v1659 = vunpack.c.h.b16 %v1583
    %v1660 = vunpack.c.l.b16 %v1584
    %v1661 = vunpack.c.h.b16 %v1584
    %v1662 = vunpack.c.l.b16 %v1585
    %v1663 = vunpack.c.h.b16 %v1585
    %v1664 = vunpack.c.l.b16 %v1586
    %v1665 = vunpack.c.h.b16 %v1586
    %v1666 = vunpack.c.l.b16 %v1587
    %v1667 = vunpack.c.h.b16 %v1587
    %v1668 = vunpack.c.l.b16 %v1588
    %v1669 = vunpack.c.h.b16 %v1588
    %v1670 = vunpack.c.l.b16 %v1589
    %v1671 = vunpack.c.h.b16 %v1589
    %v1672 = vunpack.c.l.b16 %v1590
    %v1673 = vunpack.c.h.b16 %v1590
    %v1674 = vunpack.c.l.b16 %v1591
    %v1675 = vunpack.c.h.b16 %v1591
    %v1676 = vunpack.c.l.b16 %v1592
    %v1677 = vunpack.c.h.b16 %v1592
    %v1678 = vunpack.c.l.b16 %v1593
    %v1679 = vunpack.c.h.b16 %v1593
    %v1680 = vunpack.c.l.b16 %v1594
    %v1681 = vunpack.c.h.b16 %v1594
    %v1682 = vunpack.c.l.b16 %v1595
    %v1683 = vunpack.c.h.b16 %v1595
    %v1684 = vunpack.c.l.b16 %v1596
    %v1685 = vunpack.c.h.b16 %v1596
    %v1686 = vunpack.c.l.b16 %v1597
    %v1687 = vunpack.c.h.b16 %v1597
    %v1688 = vpack.c.b16 %v1664, %v1656
    %v1689 = vpack.c.b16 %v1665, %v1657
    %v1690 = vpack.c.b16 %v1666, %v1658
    %v1691 = vpack.c.b16 %v1667, %v1659
    %v1692 = vpack.c.b16 %v1668, %v1660
    %v1693 = vpack.c.b16 %v1669, %v1661
    %v1694 = vpack.c.b16 %v1670, %v1662
    %v1695 = vpack.c.b16 %v1671, %v1663
    %v1696 = vpack.c.b16 %v1680, %v1672
    %v1697 = vpack.c.b16 %v1681, %v1673
    %v1698 = vpack.c.b16 %v1682, %v1674
    %v1699 = vpack.c.b16 %v1683, %v1675
    %v1700 = vpack.c.b16 %v1684, %v1676
    %v1701 = vpack.c.b16 %v1685, %v1677
    %v1702 = vpack.c.b16 %v1686, %v1678
    %v1703 = vpack.c.b16 %v1687, %v1679
    %v1721 = vsel %vm451, %v1581, 0
    %1723 = vmatprep.subr.bf16.mxu0 0
    %1724 = vmatpush1.bf16.msra.mxu0 0
    %1725 = vmatprep.subr.bf16.mxu0 0
    %1726 = vmatpush1.bf16.msra.mxu0 0
    %1727 = vmatprep.subr.bf16.mxu0 0
    %1728 = vmatpush1.bf16.msra.mxu0 0
    %1729 = vmatprep.subr.bf16.mxu0 0
    %1730 = vmatpush1.bf16.msra.mxu0 0
    %1731 = vmatprep.subr.bf16.mxu0 0
    %1732 = vmatpush1.bf16.msra.mxu0 0
    %1733 = vmatprep.subr.bf16.mxu0 0
    %1734 = vmatpush1.bf16.msra.mxu0 0
    %1735 = vmatprep.subr.bf16.mxu0 %v1697
    %1736 = vmatpush1.bf16.msra.mxu0 %v1696
    %1737 = vmatprep.subr.bf16.mxu0 %v1689
    %1738 = vmatpush1.bf16.msra.mxu0 %v1688
    %1739 = vmatprep.subr.bf16.mxu0 0
    %1740 = vmatpush2.bf16.msra.mxu0 0
    %1741 = vmatprep.subr.bf16.mxu0 0
    %1742 = vmatpush2.bf16.msra.mxu0 0
    %1743 = vmatprep.subr.bf16.mxu0 0
    %1744 = vmatpush2.bf16.msra.mxu0 0
    %1745 = vmatprep.subr.bf16.mxu0 0
    %1746 = vmatpush2.bf16.msra.mxu0 0
    %1747 = vmatprep.subr.bf16.mxu0 0
    %1748 = vmatpush2.bf16.msra.mxu0 0
    %1749 = vmatprep.subr.bf16.mxu0 0
    %1750 = vmatpush2.bf16.msra.mxu0 0
    %1751 = vmatprep.subr.bf16.mxu0 0
    %1752 = vmatpush2.bf16.msra.mxu0 0
    %1753 = vmatprep.subr.bf16.mxu0 0
    %1754 = vmatpush2.bf16.msra.mxu0 0
    %1755 = vmatprep.mubr.bf16.mxu0 0
    %1756 = vmatmul.mubr.bf16.gmra.mxu0 %v1721
    %v1757 = vpop.f32.mrf.mxu0
    %v1758 = vadd.f32 %v1603, %v1757
    %v1759 = vpop.f32.mrf.mxu0
    %v1760 = vadd.f32 %v1607, %v1759
    %v1761 = vpop.f32.mrf.mxu0
    %v1762 = vpop.f32.mrf.mxu0
    %1763 = vdwg.mxu0
    %1764 = vmatprep.subr.bf16.mxu0 0
    %1765 = vmatpush1.bf16.msra.mxu0 0
    %1766 = vmatprep.subr.bf16.mxu0 0
    %1767 = vmatpush1.bf16.msra.mxu0 0
    %1768 = vmatprep.subr.bf16.mxu0 0
    %1769 = vmatpush1.bf16.msra.mxu0 0
    %1770 = vmatprep.subr.bf16.mxu0 0
    %1771 = vmatpush1.bf16.msra.mxu0 0
    %1772 = vmatprep.subr.bf16.mxu0 0
    %1773 = vmatpush1.bf16.msra.mxu0 0
    %1774 = vmatprep.subr.bf16.mxu0 0
    %1775 = vmatpush1.bf16.msra.mxu0 0
    %1776 = vmatprep.subr.bf16.mxu0 %v1699
    %1777 = vmatpush1.bf16.msra.mxu0 %v1698
    %1778 = vmatprep.subr.bf16.mxu0 %v1691
    %1779 = vmatpush1.bf16.msra.mxu0 %v1690
    %1780 = vmatprep.subr.bf16.mxu0 0
    %1781 = vmatpush2.bf16.msra.mxu0 0
    %1782 = vmatprep.subr.bf16.mxu0 0
    %1783 = vmatpush2.bf16.msra.mxu0 0
    %1784 = vmatprep.subr.bf16.mxu0 0
    %1785 = vmatpush2.bf16.msra.mxu0 0
    %1786 = vmatprep.subr.bf16.mxu0 0
    %1787 = vmatpush2.bf16.msra.mxu0 0
    %1788 = vmatprep.subr.bf16.mxu0 0
    %1789 = vmatpush2.bf16.msra.mxu0 0
    %1790 = vmatprep.subr.bf16.mxu0 0
    %1791 = vmatpush2.bf16.msra.mxu0 0
    %1792 = vmatprep.subr.bf16.mxu0 0
    %1793 = vmatpush2.bf16.msra.mxu0 0
    %1794 = vmatprep.subr.bf16.mxu0 0
    %1795 = vmatpush2.bf16.msra.mxu0 0
    %1796 = vmatprep.mubr.bf16.mxu0 0
    %1797 = vmatmul.mubr.bf16.gmra.mxu0 %v1721
    %v1798 = vpop.f32.mrf.mxu0
    %v1799 = vadd.f32 %v1611, %v1798
    %v1800 = vpop.f32.mrf.mxu0
    %v1801 = vadd.f32 %v1615, %v1800
    %v1802 = vpop.f32.mrf.mxu0
    %v1803 = vpop.f32.mrf.mxu0
    %1804 = vdwg.mxu0
    %1805 = vmatprep.subr.bf16.mxu0 0
    %1806 = vmatpush1.bf16.msra.mxu0 0
    %1807 = vmatprep.subr.bf16.mxu0 0
    %1808 = vmatpush1.bf16.msra.mxu0 0
    %1809 = vmatprep.subr.bf16.mxu0 0
    %1810 = vmatpush1.bf16.msra.mxu0 0
    %1811 = vmatprep.subr.bf16.mxu0 0
    %1812 = vmatpush1.bf16.msra.mxu0 0
    %1813 = vmatprep.subr.bf16.mxu0 0
    %1814 = vmatpush1.bf16.msra.mxu0 0
    %1815 = vmatprep.subr.bf16.mxu0 0
    %1816 = vmatpush1.bf16.msra.mxu0 0
    %1817 = vmatprep.subr.bf16.mxu0 %v1701
    %1818 = vmatpush1.bf16.msra.mxu0 %v1700
    %1819 = vmatprep.subr.bf16.mxu0 %v1693
    %1820 = vmatpush1.bf16.msra.mxu0 %v1692
    %1821 = vmatprep.subr.bf16.mxu0 0
    %1822 = vmatpush2.bf16.msra.mxu0 0
    %1823 = vmatprep.subr.bf16.mxu0 0
    %1824 = vmatpush2.bf16.msra.mxu0 0
    %1825 = vmatprep.subr.bf16.mxu0 0
    %1826 = vmatpush2.bf16.msra.mxu0 0
    %1827 = vmatprep.subr.bf16.mxu0 0
    %1828 = vmatpush2.bf16.msra.mxu0 0
    %1829 = vmatprep.subr.bf16.mxu0 0
    %1830 = vmatpush2.bf16.msra.mxu0 0
    %1831 = vmatprep.subr.bf16.mxu0 0
    %1832 = vmatpush2.bf16.msra.mxu0 0
    %1833 = vmatprep.subr.bf16.mxu0 0
    %1834 = vmatpush2.bf16.msra.mxu0 0
    %1835 = vmatprep.subr.bf16.mxu0 0
    %1836 = vmatpush2.bf16.msra.mxu0 0
    %1837 = vmatprep.mubr.bf16.mxu0 0
    %1838 = vmatmul.mubr.bf16.gmra.mxu0 %v1721
    %v1839 = vpop.f32.mrf.mxu0
    %v1840 = vadd.f32 %v1619, %v1839
    %v1841 = vpop.f32.mrf.mxu0
    %v1842 = vadd.f32 %v1623, %v1841
    %v1843 = vpop.f32.mrf.mxu0
    %v1844 = vpop.f32.mrf.mxu0
    %1845 = vdwg.mxu0
    %1846 = vmatprep.subr.bf16.mxu0 0
    %1847 = vmatpush1.bf16.msra.mxu0 0
    %1848 = vmatprep.subr.bf16.mxu0 0
    %1849 = vmatpush1.bf16.msra.mxu0 0
    %1850 = vmatprep.subr.bf16.mxu0 0
    %1851 = vmatpush1.bf16.msra.mxu0 0
    %1852 = vmatprep.subr.bf16.mxu0 0
    %1853 = vmatpush1.bf16.msra.mxu0 0
    %1854 = vmatprep.subr.bf16.mxu0 0
    %1855 = vmatpush1.bf16.msra.mxu0 0
    %1856 = vmatprep.subr.bf16.mxu0 0
    %1857 = vmatpush1.bf16.msra.mxu0 0
    %1858 = vmatprep.subr.bf16.mxu0 %v1703
    %1859 = vmatpush1.bf16.msra.mxu0 %v1702
    %1860 = vmatprep.subr.bf16.mxu0 %v1695
    %1861 = vmatpush1.bf16.msra.mxu0 %v1694
    %1862 = vmatprep.subr.bf16.mxu0 0
    %1863 = vmatpush2.bf16.msra.mxu0 0
    %1864 = vmatprep.subr.bf16.mxu0 0
    %1865 = vmatpush2.bf16.msra.mxu0 0
    %1866 = vmatprep.subr.bf16.mxu0 0
    %1867 = vmatpush2.bf16.msra.mxu0 0
    %1868 = vmatprep.subr.bf16.mxu0 0
    %1869 = vmatpush2.bf16.msra.mxu0 0
    %1870 = vmatprep.subr.bf16.mxu0 0
    %1871 = vmatpush2.bf16.msra.mxu0 0
    %1872 = vmatprep.subr.bf16.mxu0 0
    %1873 = vmatpush2.bf16.msra.mxu0 0
    %1874 = vmatprep.subr.bf16.mxu0 0
    %1875 = vmatpush2.bf16.msra.mxu0 0
    %1876 = vmatprep.subr.bf16.mxu0 0
    %1877 = vmatpush2.bf16.msra.mxu0 0
    %1878 = vmatprep.mubr.bf16.mxu0 0
    %1879 = vmatmul.mubr.bf16.gmra.mxu0 %v1721
    %v1880 = vpop.f32.mrf.mxu0
    %v1881 = vadd.f32 %v1627, %v1880
    %v1882 = vpop.f32.mrf.mxu0
    %v1883 = vadd.f32 %v1631, %v1882
    %v1884 = vpop.f32.mrf.mxu0
    %v1885 = vpop.f32.mrf.mxu0
    %1886 = vdwg.mxu0
    %v1887 = vmax.f32 %v1758, 0.0
    %v1888 = vmax.f32 %v1760, 0.0
    %v1889 = vmax.f32 %v1799, 0.0
    %v1890 = vmax.f32 %v1801, 0.0
    %v1891 = vmax.f32 %v1840, 0.0
    %v1892 = vmax.f32 %v1842, 0.0
    %v1893 = vmax.f32 %v1881, 0.0
    %v1894 = vmax.f32 %v1883, 0.0
    %v1895 = vpack.c.bf16 %v1887, %v1887
    %v1896 = vpack.c.bf16 %v1888, %v1888
    %v1897 = vpack.c.bf16 %v1889, %v1889
    %v1898 = vpack.c.bf16 %v1890, %v1890
    %v1899 = vpack.c.bf16 %v1891, %v1891
    %v1900 = vpack.c.bf16 %v1892, %v1892
    %v1901 = vpack.c.bf16 %v1893, %v1893
    %v1902 = vpack.c.bf16 %v1894, %v1894
    %v1903 = vld [vmem:[#allocation12] sm:$0xff]
    %v1904 = vld [vmem:[#allocation12 + $0x8] sm:$0xff]
    %v1905 = vld [vmem:[#allocation12 + $0x10] sm:$0xff]
    %v1906 = vld [vmem:[#allocation12 + $0x18] sm:$0xff]
    %v1907 = vld [vmem:[#allocation12 + $0x20] sm:$0xff]
    %v1908 = vld [vmem:[#allocation12 + $0x28] sm:$0xff]
    %v1909 = vld [vmem:[#allocation12 + $0x30] sm:$0xff]
    %v1910 = vld [vmem:[#allocation12 + $0x38] sm:$0xff]
    %v1911 = vld [vmem:[#allocation12 + $0x40] sm:$0xff]
    %v1912 = vld [vmem:[#allocation12 + $0x48] sm:$0xff]
    %v1913 = vld [vmem:[#allocation12 + $0x50] sm:$0xff]
    %v1914 = vld [vmem:[#allocation12 + $0x58] sm:$0xff]
    %v1915 = vld [vmem:[#allocation12 + $0x60] sm:$0xff]
    %v1916 = vld [vmem:[#allocation12 + $0x68] sm:$0xff]
    %v1917 = vld [vmem:[#allocation12 + $0x70] sm:$0xff]
    %v1918 = vld [vmem:[#allocation12 + $0x78] sm:$0xff]
    %v1919 = vld [vmem:[#allocation12 + $0x80] sm:$0xff]
    %v1920 = vld [vmem:[#allocation12 + $0x88] sm:$0xff]
    %v1921 = vld [vmem:[#allocation12 + $0x90] sm:$0xff]
    %v1922 = vld [vmem:[#allocation12 + $0x98] sm:$0xff]
    %v1923 = vld [vmem:[#allocation12 + $0xa0] sm:$0xff]
    %v1924 = vld [vmem:[#allocation12 + $0xa8] sm:$0xff]
    %v1925 = vld [vmem:[#allocation12 + $0xb0] sm:$0xff]
    %v1926 = vld [vmem:[#allocation12 + $0xb8] sm:$0xff]
    %v1927 = vld [vmem:[#allocation12 + $0xc0] sm:$0xff]
    %v1928 = vld [vmem:[#allocation12 + $0xc8] sm:$0xff]
    %v1929 = vld [vmem:[#allocation12 + $0xd0] sm:$0xff]
    %v1930 = vld [vmem:[#allocation12 + $0xd8] sm:$0xff]
    %v1931 = vld [vmem:[#allocation12 + $0xe0] sm:$0xff]
    %v1932 = vld [vmem:[#allocation12 + $0xe8] sm:$0xff]
    %v1933 = vld [vmem:[#allocation12 + $0xf0] sm:$0xff]
    %v1934 = vld [vmem:[#allocation12 + $0xf8] sm:$0xff]
    %v1935 = vld [vmem:[#allocation12 + $0x100] sm:$0xff]
    %v1936 = vld [vmem:[#allocation12 + $0x108] sm:$0xff]
    %v1937 = vld [vmem:[#allocation12 + $0x110] sm:$0xff]
    %v1938 = vld [vmem:[#allocation12 + $0x118] sm:$0xff]
    %v1939 = vld [vmem:[#allocation12 + $0x120] sm:$0xff]
    %v1940 = vld [vmem:[#allocation12 + $0x128] sm:$0xff]
    %v1941 = vld [vmem:[#allocation12 + $0x130] sm:$0xff]
    %v1942 = vld [vmem:[#allocation12 + $0x138] sm:$0xff]
    %v1943 = vld [vmem:[#allocation12 + $0x140] sm:$0xff]
    %v1944 = vld [vmem:[#allocation12 + $0x148] sm:$0xff]
    %v1945 = vld [vmem:[#allocation12 + $0x150] sm:$0xff]
    %v1946 = vld [vmem:[#allocation12 + $0x158] sm:$0xff]
    %v1947 = vld [vmem:[#allocation12 + $0x160] sm:$0xff]
    %v1948 = vld [vmem:[#allocation12 + $0x168] sm:$0xff]
    %v1949 = vld [vmem:[#allocation12 + $0x170] sm:$0xff]
    %v1950 = vld [vmem:[#allocation12 + $0x178] sm:$0xff]
    %v1951 = vld [vmem:[#allocation12 + $0x180] sm:$0xff]
    %v1952 = vld [vmem:[#allocation12 + $0x188] sm:$0xff]
    %v1953 = vld [vmem:[#allocation12 + $0x190] sm:$0xff]
    %v1954 = vld [vmem:[#allocation12 + $0x198] sm:$0xff]
    %v1955 = vld [vmem:[#allocation12 + $0x1a0] sm:$0xff]
    %v1956 = vld [vmem:[#allocation12 + $0x1a8] sm:$0xff]
    %v1957 = vld [vmem:[#allocation12 + $0x1b0] sm:$0xff]
    %v1958 = vld [vmem:[#allocation12 + $0x1b8] sm:$0xff]
    %v1959 = vld [vmem:[#allocation12 + $0x1c0] sm:$0xff]
    %v1960 = vld [vmem:[#allocation12 + $0x1c8] sm:$0xff]
    %v1961 = vld [vmem:[#allocation12 + $0x1d0] sm:$0xff]
    %v1962 = vld [vmem:[#allocation12 + $0x1d8] sm:$0xff]
    %v1963 = vld [vmem:[#allocation12 + $0x1e0] sm:$0xff]
    %v1964 = vld [vmem:[#allocation12 + $0x1e8] sm:$0xff]
    %v1965 = vld [vmem:[#allocation12 + $0x1f0] sm:$0xff]
    %v1966 = vld [vmem:[#allocation12 + $0x1f8] sm:$0xff]
    %v1967 = vld [vmem:[#allocation12 + $0x200] sm:$0xff]
    %v1968 = vld [vmem:[#allocation12 + $0x208] sm:$0xff]
    %v1969 = vld [vmem:[#allocation12 + $0x210] sm:$0xff]
    %v1970 = vld [vmem:[#allocation12 + $0x218] sm:$0xff]
    %v1971 = vld [vmem:[#allocation12 + $0x220] sm:$0xff]
    %v1972 = vld [vmem:[#allocation12 + $0x228] sm:$0xff]
    %v1973 = vld [vmem:[#allocation12 + $0x230] sm:$0xff]
    %v1974 = vld [vmem:[#allocation12 + $0x238] sm:$0xff]
    %v1975 = vld [vmem:[#allocation12 + $0x240] sm:$0xff]
    %v1976 = vld [vmem:[#allocation12 + $0x248] sm:$0xff]
    %v1977 = vld [vmem:[#allocation12 + $0x250] sm:$0xff]
    %v1978 = vld [vmem:[#allocation12 + $0x258] sm:$0xff]
    %v1979 = vld [vmem:[#allocation12 + $0x260] sm:$0xff]
    %v1980 = vld [vmem:[#allocation12 + $0x268] sm:$0xff]
    %v1981 = vld [vmem:[#allocation12 + $0x270] sm:$0xff]
    %v1982 = vld [vmem:[#allocation12 + $0x278] sm:$0xff]
    %v1983 = vld [vmem:[#allocation12 + $0x280] sm:$0xff]
    %v1984 = vld [vmem:[#allocation12 + $0x288] sm:$0xff]
    %v1985 = vld [vmem:[#allocation12 + $0x290] sm:$0xff]
    %v1986 = vld [vmem:[#allocation12 + $0x298] sm:$0xff]
    %v1987 = vld [vmem:[#allocation12 + $0x2a0] sm:$0xff]
    %v1988 = vld [vmem:[#allocation12 + $0x2a8] sm:$0xff]
    %v1989 = vld [vmem:[#allocation12 + $0x2b0] sm:$0xff]
    %v1990 = vld [vmem:[#allocation12 + $0x2b8] sm:$0xff]
    %v1991 = vld [vmem:[#allocation12 + $0x2c0] sm:$0xff]
    %v1992 = vld [vmem:[#allocation12 + $0x2c8] sm:$0xff]
    %v1993 = vld [vmem:[#allocation12 + $0x2d0] sm:$0xff]
    %v1994 = vld [vmem:[#allocation12 + $0x2d8] sm:$0xff]
    %v1995 = vld [vmem:[#allocation12 + $0x2e0] sm:$0xff]
    %v1996 = vld [vmem:[#allocation12 + $0x2e8] sm:$0xff]
    %v1997 = vld [vmem:[#allocation12 + $0x2f0] sm:$0xff]
    %v1998 = vld [vmem:[#allocation12 + $0x2f8] sm:$0xff]
    %v1999 = vld [vmem:[#allocation12 + $0x300] sm:$0xff]
    %v2000 = vld [vmem:[#allocation12 + $0x308] sm:$0xff]
    %v2001 = vld [vmem:[#allocation12 + $0x310] sm:$0xff]
    %v2002 = vld [vmem:[#allocation12 + $0x318] sm:$0xff]
    %v2003 = vld [vmem:[#allocation12 + $0x320] sm:$0xff]
    %v2004 = vld [vmem:[#allocation12 + $0x328] sm:$0xff]
    %v2005 = vld [vmem:[#allocation12 + $0x330] sm:$0xff]
    %v2006 = vld [vmem:[#allocation12 + $0x338] sm:$0xff]
    %v2007 = vld [vmem:[#allocation12 + $0x340] sm:$0xff]
    %v2008 = vld [vmem:[#allocation12 + $0x348] sm:$0xff]
    %v2009 = vld [vmem:[#allocation12 + $0x350] sm:$0xff]
    %v2010 = vld [vmem:[#allocation12 + $0x358] sm:$0xff]
    %v2011 = vld [vmem:[#allocation12 + $0x360] sm:$0xff]
    %v2012 = vld [vmem:[#allocation12 + $0x368] sm:$0xff]
    %v2013 = vld [vmem:[#allocation12 + $0x370] sm:$0xff]
    %v2014 = vld [vmem:[#allocation12 + $0x378] sm:$0xff]
    %v2015 = vld [vmem:[#allocation12 + $0x380] sm:$0xff]
    %v2016 = vld [vmem:[#allocation12 + $0x388] sm:$0xff]
    %v2017 = vld [vmem:[#allocation12 + $0x390] sm:$0xff]
    %v2018 = vld [vmem:[#allocation12 + $0x398] sm:$0xff]
    %v2019 = vld [vmem:[#allocation12 + $0x3a0] sm:$0xff]
    %v2020 = vld [vmem:[#allocation12 + $0x3a8] sm:$0xff]
    %v2021 = vld [vmem:[#allocation12 + $0x3b0] sm:$0xff]
    %v2022 = vld [vmem:[#allocation12 + $0x3b8] sm:$0xff]
    %v2023 = vld [vmem:[#allocation12 + $0x3c0] sm:$0xff]
    %v2024 = vld [vmem:[#allocation12 + $0x3c8] sm:$0xff]
    %v2025 = vld [vmem:[#allocation12 + $0x3d0] sm:$0xff]
    %v2026 = vld [vmem:[#allocation12 + $0x3d8] sm:$0xff]
    %v2027 = vld [vmem:[#allocation12 + $0x3e0] sm:$0xff]
    %v2028 = vld [vmem:[#allocation12 + $0x3e8] sm:$0xff]
    %v2029 = vld [vmem:[#allocation12 + $0x3f0] sm:$0xff]
    %v2030 = vld [vmem:[#allocation12 + $0x3f8] sm:$0xff]
    %v2031 = vld [vmem:[#allocation13] sm:$0x3]
    %v2033 = vlaneseq
    %v2034 = vshrl.u32 %v2033, 7
    %v2035 = vsub.s32 0, %v2034
    %v2036 = vrot.slane %v2031, %v2035
    %v2037 = vlaneseq
    %v2038 = vshrl.u32 %v2037, 7
    %v2039 = vsub.s32 1, %v2038
    %v2040 = vrot.slane %v2031, %v2039
    %v2171 = vunpack.c.l.b16 %v1903
    %v2172 = vunpack.c.h.b16 %v1903
    %v2173 = vunpack.c.l.b16 %v1904
    %v2174 = vunpack.c.h.b16 %v1904
    %v2175 = vunpack.c.l.b16 %v1905
    %v2176 = vunpack.c.h.b16 %v1905
    %v2177 = vunpack.c.l.b16 %v1906
    %v2178 = vunpack.c.h.b16 %v1906
    %v2179 = vunpack.c.l.b16 %v1907
    %v2180 = vunpack.c.h.b16 %v1907
    %v2181 = vunpack.c.l.b16 %v1908
    %v2182 = vunpack.c.h.b16 %v1908
    %v2183 = vunpack.c.l.b16 %v1909
    %v2184 = vunpack.c.h.b16 %v1909
    %v2185 = vunpack.c.l.b16 %v1910
    %v2186 = vunpack.c.h.b16 %v1910
    %v2187 = vunpack.c.l.b16 %v1911
    %v2188 = vunpack.c.h.b16 %v1911
    %v2189 = vunpack.c.l.b16 %v1912
    %v2190 = vunpack.c.h.b16 %v1912
    %v2191 = vunpack.c.l.b16 %v1913
    %v2192 = vunpack.c.h.b16 %v1913
    %v2193 = vunpack.c.l.b16 %v1914
    %v2194 = vunpack.c.h.b16 %v1914
    %v2195 = vunpack.c.l.b16 %v1915
    %v2196 = vunpack.c.h.b16 %v1915
    %v2197 = vunpack.c.l.b16 %v1916
    %v2198 = vunpack.c.h.b16 %v1916
    %v2199 = vunpack.c.l.b16 %v1917
    %v2200 = vunpack.c.h.b16 %v1917
    %v2201 = vunpack.c.l.b16 %v1918
    %v2202 = vunpack.c.h.b16 %v1918
    %v2203 = vunpack.c.l.b16 %v1919
    %v2204 = vunpack.c.h.b16 %v1919
    %v2205 = vunpack.c.l.b16 %v1920
    %v2206 = vunpack.c.h.b16 %v1920
    %v2207 = vunpack.c.l.b16 %v1921
    %v2208 = vunpack.c.h.b16 %v1921
    %v2209 = vunpack.c.l.b16 %v1922
    %v2210 = vunpack.c.h.b16 %v1922
    %v2211 = vunpack.c.l.b16 %v1923
    %v2212 = vunpack.c.h.b16 %v1923
    %v2213 = vunpack.c.l.b16 %v1924
    %v2214 = vunpack.c.h.b16 %v1924
    %v2215 = vunpack.c.l.b16 %v1925
    %v2216 = vunpack.c.h.b16 %v1925
    %v2217 = vunpack.c.l.b16 %v1926
    %v2218 = vunpack.c.h.b16 %v1926
    %v2219 = vunpack.c.l.b16 %v1927
    %v2220 = vunpack.c.h.b16 %v1927
    %v2221 = vunpack.c.l.b16 %v1928
    %v2222 = vunpack.c.h.b16 %v1928
    %v2223 = vunpack.c.l.b16 %v1929
    %v2224 = vunpack.c.h.b16 %v1929
    %v2225 = vunpack.c.l.b16 %v1930
    %v2226 = vunpack.c.h.b16 %v1930
    %v2227 = vunpack.c.l.b16 %v1931
    %v2228 = vunpack.c.h.b16 %v1931
    %v2229 = vunpack.c.l.b16 %v1932
    %v2230 = vunpack.c.h.b16 %v1932
    %v2231 = vunpack.c.l.b16 %v1933
    %v2232 = vunpack.c.h.b16 %v1933
    %v2233 = vunpack.c.l.b16 %v1934
    %v2234 = vunpack.c.h.b16 %v1934
    %v2235 = vunpack.c.l.b16 %v1935
    %v2236 = vunpack.c.h.b16 %v1935
    %v2237 = vunpack.c.l.b16 %v1936
    %v2238 = vunpack.c.h.b16 %v1936
    %v2239 = vunpack.c.l.b16 %v1937
    %v2240 = vunpack.c.h.b16 %v1937
    %v2241 = vunpack.c.l.b16 %v1938
    %v2242 = vunpack.c.h.b16 %v1938
    %v2243 = vunpack.c.l.b16 %v1939
    %v2244 = vunpack.c.h.b16 %v1939
    %v2245 = vunpack.c.l.b16 %v1940
    %v2246 = vunpack.c.h.b16 %v1940
    %v2247 = vunpack.c.l.b16 %v1941
    %v2248 = vunpack.c.h.b16 %v1941
    %v2249 = vunpack.c.l.b16 %v1942
    %v2250 = vunpack.c.h.b16 %v1942
    %v2251 = vunpack.c.l.b16 %v1943
    %v2252 = vunpack.c.h.b16 %v1943
    %v2253 = vunpack.c.l.b16 %v1944
    %v2254 = vunpack.c.h.b16 %v1944
    %v2255 = vunpack.c.l.b16 %v1945
    %v2256 = vunpack.c.h.b16 %v1945
    %v2257 = vunpack.c.l.b16 %v1946
    %v2258 = vunpack.c.h.b16 %v1946
    %v2259 = vunpack.c.l.b16 %v1947
    %v2260 = vunpack.c.h.b16 %v1947
    %v2261 = vunpack.c.l.b16 %v1948
    %v2262 = vunpack.c.h.b16 %v1948
    %v2263 = vunpack.c.l.b16 %v1949
    %v2264 = vunpack.c.h.b16 %v1949
    %v2265 = vunpack.c.l.b16 %v1950
    %v2266 = vunpack.c.h.b16 %v1950
    %v2267 = vunpack.c.l.b16 %v1951
    %v2268 = vunpack.c.h.b16 %v1951
    %v2269 = vunpack.c.l.b16 %v1952
    %v2270 = vunpack.c.h.b16 %v1952
    %v2271 = vunpack.c.l.b16 %v1953
    %v2272 = vunpack.c.h.b16 %v1953
    %v2273 = vunpack.c.l.b16 %v1954
    %v2274 = vunpack.c.h.b16 %v1954
    %v2275 = vunpack.c.l.b16 %v1955
    %v2276 = vunpack.c.h.b16 %v1955
    %v2277 = vunpack.c.l.b16 %v1956
    %v2278 = vunpack.c.h.b16 %v1956
    %v2279 = vunpack.c.l.b16 %v1957
    %v2280 = vunpack.c.h.b16 %v1957
    %v2281 = vunpack.c.l.b16 %v1958
    %v2282 = vunpack.c.h.b16 %v1958
    %v2283 = vunpack.c.l.b16 %v1959
    %v2284 = vunpack.c.h.b16 %v1959
    %v2285 = vunpack.c.l.b16 %v1960
    %v2286 = vunpack.c.h.b16 %v1960
    %v2287 = vunpack.c.l.b16 %v1961
    %v2288 = vunpack.c.h.b16 %v1961
    %v2289 = vunpack.c.l.b16 %v1962
    %v2290 = vunpack.c.h.b16 %v1962
    %v2291 = vunpack.c.l.b16 %v1963
    %v2292 = vunpack.c.h.b16 %v1963
    %v2293 = vunpack.c.l.b16 %v1964
    %v2294 = vunpack.c.h.b16 %v1964
    %v2295 = vunpack.c.l.b16 %v1965
    %v2296 = vunpack.c.h.b16 %v1965
    %v2297 = vunpack.c.l.b16 %v1966
    %v2298 = vunpack.c.h.b16 %v1966
    %v2299 = vunpack.c.l.b16 %v1967
    %v2300 = vunpack.c.h.b16 %v1967
    %v2301 = vunpack.c.l.b16 %v1968
    %v2302 = vunpack.c.h.b16 %v1968
    %v2303 = vunpack.c.l.b16 %v1969
    %v2304 = vunpack.c.h.b16 %v1969
    %v2305 = vunpack.c.l.b16 %v1970
    %v2306 = vunpack.c.h.b16 %v1970
    %v2307 = vunpack.c.l.b16 %v1971
    %v2308 = vunpack.c.h.b16 %v1971
    %v2309 = vunpack.c.l.b16 %v1972
    %v2310 = vunpack.c.h.b16 %v1972
    %v2311 = vunpack.c.l.b16 %v1973
    %v2312 = vunpack.c.h.b16 %v1973
    %v2313 = vunpack.c.l.b16 %v1974
    %v2314 = vunpack.c.h.b16 %v1974
    %v2315 = vunpack.c.l.b16 %v1975
    %v2316 = vunpack.c.h.b16 %v1975
    %v2317 = vunpack.c.l.b16 %v1976
    %v2318 = vunpack.c.h.b16 %v1976
    %v2319 = vunpack.c.l.b16 %v1977
    %v2320 = vunpack.c.h.b16 %v1977
    %v2321 = vunpack.c.l.b16 %v1978
    %v2322 = vunpack.c.h.b16 %v1978
    %v2323 = vunpack.c.l.b16 %v1979
    %v2324 = vunpack.c.h.b16 %v1979
    %v2325 = vunpack.c.l.b16 %v1980
    %v2326 = vunpack.c.h.b16 %v1980
    %v2327 = vunpack.c.l.b16 %v1981
    %v2328 = vunpack.c.h.b16 %v1981
    %v2329 = vunpack.c.l.b16 %v1982
    %v2330 = vunpack.c.h.b16 %v1982
    %v2331 = vunpack.c.l.b16 %v1983
    %v2332 = vunpack.c.h.b16 %v1983
    %v2333 = vunpack.c.l.b16 %v1984
    %v2334 = vunpack.c.h.b16 %v1984
    %v2335 = vunpack.c.l.b16 %v1985
    %v2336 = vunpack.c.h.b16 %v1985
    %v2337 = vunpack.c.l.b16 %v1986
    %v2338 = vunpack.c.h.b16 %v1986
    %v2339 = vunpack.c.l.b16 %v1987
    %v2340 = vunpack.c.h.b16 %v1987
    %v2341 = vunpack.c.l.b16 %v1988
    %v2342 = vunpack.c.h.b16 %v1988
    %v2343 = vunpack.c.l.b16 %v1989
    %v2344 = vunpack.c.h.b16 %v1989
    %v2345 = vunpack.c.l.b16 %v1990
    %v2346 = vunpack.c.h.b16 %v1990
    %v2347 = vunpack.c.l.b16 %v1991
    %v2348 = vunpack.c.h.b16 %v1991
    %v2349 = vunpack.c.l.b16 %v1992
    %v2350 = vunpack.c.h.b16 %v1992
    %v2351 = vunpack.c.l.b16 %v1993
    %v2352 = vunpack.c.h.b16 %v1993
    %v2353 = vunpack.c.l.b16 %v1994
    %v2354 = vunpack.c.h.b16 %v1994
    %v2355 = vunpack.c.l.b16 %v1995
    %v2356 = vunpack.c.h.b16 %v1995
    %v2357 = vunpack.c.l.b16 %v1996
    %v2358 = vunpack.c.h.b16 %v1996
    %v2359 = vunpack.c.l.b16 %v1997
    %v2360 = vunpack.c.h.b16 %v1997
    %v2361 = vunpack.c.l.b16 %v1998
    %v2362 = vunpack.c.h.b16 %v1998
    %v2363 = vunpack.c.l.b16 %v1999
    %v2364 = vunpack.c.h.b16 %v1999
    %v2365 = vunpack.c.l.b16 %v2000
    %v2366 = vunpack.c.h.b16 %v2000
    %v2367 = vunpack.c.l.b16 %v2001
    %v2368 = vunpack.c.h.b16 %v2001
    %v2369 = vunpack.c.l.b16 %v2002
    %v2370 = vunpack.c.h.b16 %v2002
    %v2371 = vunpack.c.l.b16 %v2003
    %v2372 = vunpack.c.h.b16 %v2003
    %v2373 = vunpack.c.l.b16 %v2004
    %v2374 = vunpack.c.h.b16 %v2004
    %v2375 = vunpack.c.l.b16 %v2005
    %v2376 = vunpack.c.h.b16 %v2005
    %v2377 = vunpack.c.l.b16 %v2006
    %v2378 = vunpack.c.h.b16 %v2006
    %v2379 = vunpack.c.l.b16 %v2007
    %v2380 = vunpack.c.h.b16 %v2007
    %v2381 = vunpack.c.l.b16 %v2008
    %v2382 = vunpack.c.h.b16 %v2008
    %v2383 = vunpack.c.l.b16 %v2009
    %v2384 = vunpack.c.h.b16 %v2009
    %v2385 = vunpack.c.l.b16 %v2010
    %v2386 = vunpack.c.h.b16 %v2010
    %v2387 = vunpack.c.l.b16 %v2011
    %v2388 = vunpack.c.h.b16 %v2011
    %v2389 = vunpack.c.l.b16 %v2012
    %v2390 = vunpack.c.h.b16 %v2012
    %v2391 = vunpack.c.l.b16 %v2013
    %v2392 = vunpack.c.h.b16 %v2013
    %v2393 = vunpack.c.l.b16 %v2014
    %v2394 = vunpack.c.h.b16 %v2014
    %v2395 = vunpack.c.l.b16 %v2015
    %v2396 = vunpack.c.h.b16 %v2015
    %v2397 = vunpack.c.l.b16 %v2016
    %v2398 = vunpack.c.h.b16 %v2016
    %v2399 = vunpack.c.l.b16 %v2017
    %v2400 = vunpack.c.h.b16 %v2017
    %v2401 = vunpack.c.l.b16 %v2018
    %v2402 = vunpack.c.h.b16 %v2018
    %v2403 = vunpack.c.l.b16 %v2019
    %v2404 = vunpack.c.h.b16 %v2019
    %v2405 = vunpack.c.l.b16 %v2020
    %v2406 = vunpack.c.h.b16 %v2020
    %v2407 = vunpack.c.l.b16 %v2021
    %v2408 = vunpack.c.h.b16 %v2021
    %v2409 = vunpack.c.l.b16 %v2022
    %v2410 = vunpack.c.h.b16 %v2022
    %v2411 = vunpack.c.l.b16 %v2023
    %v2412 = vunpack.c.h.b16 %v2023
    %v2413 = vunpack.c.l.b16 %v2024
    %v2414 = vunpack.c.h.b16 %v2024
    %v2415 = vunpack.c.l.b16 %v2025
    %v2416 = vunpack.c.h.b16 %v2025
    %v2417 = vunpack.c.l.b16 %v2026
    %v2418 = vunpack.c.h.b16 %v2026
    %v2419 = vunpack.c.l.b16 %v2027
    %v2420 = vunpack.c.h.b16 %v2027
    %v2421 = vunpack.c.l.b16 %v2028
    %v2422 = vunpack.c.h.b16 %v2028
    %v2423 = vunpack.c.l.b16 %v2029
    %v2424 = vunpack.c.h.b16 %v2029
    %v2425 = vunpack.c.l.b16 %v2030
    %v2426 = vunpack.c.h.b16 %v2030
    %v2427 = vpack.c.b16 %v2173, %v2171
    %v2428 = vpack.c.b16 %v2174, %v2172
    %v2429 = vpack.c.b16 %v2177, %v2175
    %v2430 = vpack.c.b16 %v2178, %v2176
    %v2431 = vpack.c.b16 %v2181, %v2179
    %v2432 = vpack.c.b16 %v2182, %v2180
    %v2433 = vpack.c.b16 %v2185, %v2183
    %v2434 = vpack.c.b16 %v2186, %v2184
    %v2435 = vpack.c.b16 %v2189, %v2187
    %v2436 = vpack.c.b16 %v2190, %v2188
    %v2437 = vpack.c.b16 %v2193, %v2191
    %v2438 = vpack.c.b16 %v2194, %v2192
    %v2439 = vpack.c.b16 %v2197, %v2195
    %v2440 = vpack.c.b16 %v2198, %v2196
    %v2441 = vpack.c.b16 %v2201, %v2199
    %v2442 = vpack.c.b16 %v2202, %v2200
    %v2443 = vpack.c.b16 %v2205, %v2203
    %v2444 = vpack.c.b16 %v2206, %v2204
    %v2445 = vpack.c.b16 %v2209, %v2207
    %v2446 = vpack.c.b16 %v2210, %v2208
    %v2447 = vpack.c.b16 %v2213, %v2211
    %v2448 = vpack.c.b16 %v2214, %v2212
    %v2449 = vpack.c.b16 %v2217, %v2215
    %v2450 = vpack.c.b16 %v2218, %v2216
    %v2451 = vpack.c.b16 %v2221, %v2219
    %v2452 = vpack.c.b16 %v2222, %v2220
    %v2453 = vpack.c.b16 %v2225, %v2223
    %v2454 = vpack.c.b16 %v2226, %v2224
    %v2455 = vpack.c.b16 %v2229, %v2227
    %v2456 = vpack.c.b16 %v2230, %v2228
    %v2457 = vpack.c.b16 %v2233, %v2231
    %v2458 = vpack.c.b16 %v2234, %v2232
    %v2459 = vpack.c.b16 %v2237, %v2235
    %v2460 = vpack.c.b16 %v2238, %v2236
    %v2461 = vpack.c.b16 %v2241, %v2239
    %v2462 = vpack.c.b16 %v2242, %v2240
    %v2463 = vpack.c.b16 %v2245, %v2243
    %v2464 = vpack.c.b16 %v2246, %v2244
    %v2465 = vpack.c.b16 %v2249, %v2247
    %v2466 = vpack.c.b16 %v2250, %v2248
    %v2467 = vpack.c.b16 %v2253, %v2251
    %v2468 = vpack.c.b16 %v2254, %v2252
    %v2469 = vpack.c.b16 %v2257, %v2255
    %v2470 = vpack.c.b16 %v2258, %v2256
    %v2471 = vpack.c.b16 %v2261, %v2259
    %v2472 = vpack.c.b16 %v2262, %v2260
    %v2473 = vpack.c.b16 %v2265, %v2263
    %v2474 = vpack.c.b16 %v2266, %v2264
    %v2475 = vpack.c.b16 %v2269, %v2267
    %v2476 = vpack.c.b16 %v2270, %v2268
    %v2477 = vpack.c.b16 %v2273, %v2271
    %v2478 = vpack.c.b16 %v2274, %v2272
    %v2479 = vpack.c.b16 %v2277, %v2275
    %v2480 = vpack.c.b16 %v2278, %v2276
    %v2481 = vpack.c.b16 %v2281, %v2279
    %v2482 = vpack.c.b16 %v2282, %v2280
    %v2483 = vpack.c.b16 %v2285, %v2283
    %v2484 = vpack.c.b16 %v2286, %v2284
    %v2485 = vpack.c.b16 %v2289, %v2287
    %v2486 = vpack.c.b16 %v2290, %v2288
    %v2487 = vpack.c.b16 %v2293, %v2291
    %v2488 = vpack.c.b16 %v2294, %v2292
    %v2489 = vpack.c.b16 %v2297, %v2295
    %v2490 = vpack.c.b16 %v2298, %v2296
    %v2491 = vpack.c.b16 %v2301, %v2299
    %v2492 = vpack.c.b16 %v2302, %v2300
    %v2493 = vpack.c.b16 %v2305, %v2303
    %v2494 = vpack.c.b16 %v2306, %v2304
    %v2495 = vpack.c.b16 %v2309, %v2307
    %v2496 = vpack.c.b16 %v2310, %v2308
    %v2497 = vpack.c.b16 %v2313, %v2311
    %v2498 = vpack.c.b16 %v2314, %v2312
    %v2499 = vpack.c.b16 %v2317, %v2315
    %v2500 = vpack.c.b16 %v2318, %v2316
    %v2501 = vpack.c.b16 %v2321, %v2319
    %v2502 = vpack.c.b16 %v2322, %v2320
    %v2503 = vpack.c.b16 %v2325, %v2323
    %v2504 = vpack.c.b16 %v2326, %v2324
    %v2505 = vpack.c.b16 %v2329, %v2327
    %v2506 = vpack.c.b16 %v2330, %v2328
    %v2507 = vpack.c.b16 %v2333, %v2331
    %v2508 = vpack.c.b16 %v2334, %v2332
    %v2509 = vpack.c.b16 %v2337, %v2335
    %v2510 = vpack.c.b16 %v2338, %v2336
    %v2511 = vpack.c.b16 %v2341, %v2339
    %v2512 = vpack.c.b16 %v2342, %v2340
    %v2513 = vpack.c.b16 %v2345, %v2343
    %v2514 = vpack.c.b16 %v2346, %v2344
    %v2515 = vpack.c.b16 %v2349, %v2347
    %v2516 = vpack.c.b16 %v2350, %v2348
    %v2517 = vpack.c.b16 %v2353, %v2351
    %v2518 = vpack.c.b16 %v2354, %v2352
    %v2519 = vpack.c.b16 %v2357, %v2355
    %v2520 = vpack.c.b16 %v2358, %v2356
    %v2521 = vpack.c.b16 %v2361, %v2359
    %v2522 = vpack.c.b16 %v2362, %v2360
    %v2523 = vpack.c.b16 %v2365, %v2363
    %v2524 = vpack.c.b16 %v2366, %v2364
    %v2525 = vpack.c.b16 %v2369, %v2367
    %v2526 = vpack.c.b16 %v2370, %v2368
    %v2527 = vpack.c.b16 %v2373, %v2371
    %v2528 = vpack.c.b16 %v2374, %v2372
    %v2529 = vpack.c.b16 %v2377, %v2375
    %v2530 = vpack.c.b16 %v2378, %v2376
    %v2531 = vpack.c.b16 %v2381, %v2379
    %v2532 = vpack.c.b16 %v2382, %v2380
    %v2533 = vpack.c.b16 %v2385, %v2383
    %v2534 = vpack.c.b16 %v2386, %v2384
    %v2535 = vpack.c.b16 %v2389, %v2387
    %v2536 = vpack.c.b16 %v2390, %v2388
    %v2537 = vpack.c.b16 %v2393, %v2391
    %v2538 = vpack.c.b16 %v2394, %v2392
    %v2539 = vpack.c.b16 %v2397, %v2395
    %v2540 = vpack.c.b16 %v2398, %v2396
    %v2541 = vpack.c.b16 %v2401, %v2399
    %v2542 = vpack.c.b16 %v2402, %v2400
    %v2543 = vpack.c.b16 %v2405, %v2403
    %v2544 = vpack.c.b16 %v2406, %v2404
    %v2545 = vpack.c.b16 %v2409, %v2407
    %v2546 = vpack.c.b16 %v2410, %v2408
    %v2547 = vpack.c.b16 %v2413, %v2411
    %v2548 = vpack.c.b16 %v2414, %v2412
    %v2549 = vpack.c.b16 %v2417, %v2415
    %v2550 = vpack.c.b16 %v2418, %v2416
    %v2551 = vpack.c.b16 %v2421, %v2419
    %v2552 = vpack.c.b16 %v2422, %v2420
    %v2553 = vpack.c.b16 %v2425, %v2423
    %v2554 = vpack.c.b16 %v2426, %v2424
    %2683 = vmatprep.subr.bf16.mxu0 %v2442
    %2684 = vmatpush1.bf16.msra.mxu0 %v2441
    %2685 = vmatprep.subr.bf16.mxu0 %v2440
    %2686 = vmatpush1.bf16.msra.mxu0 %v2439
    %2687 = vmatprep.subr.bf16.mxu0 %v2438
    %2688 = vmatpush1.bf16.msra.mxu0 %v2437
    %2689 = vmatprep.subr.bf16.mxu0 %v2436
    %2690 = vmatpush1.bf16.msra.mxu0 %v2435
    %2691 = vmatprep.subr.bf16.mxu0 %v2434
    %2692 = vmatpush1.bf16.msra.mxu0 %v2433
    %2693 = vmatprep.subr.bf16.mxu0 %v2432
    %2694 = vmatpush1.bf16.msra.mxu0 %v2431
    %2695 = vmatprep.subr.bf16.mxu0 %v2430
    %2696 = vmatpush1.bf16.msra.mxu0 %v2429
    %2697 = vmatprep.subr.bf16.mxu0 %v2428
    %2698 = vmatpush1.bf16.msra.mxu0 %v2427
    %2699 = vmatprep.subr.bf16.mxu0 %v2458
    %2700 = vmatpush2.bf16.msra.mxu0 %v2457
    %2701 = vmatprep.subr.bf16.mxu0 %v2456
    %2702 = vmatpush2.bf16.msra.mxu0 %v2455
    %2703 = vmatprep.subr.bf16.mxu0 %v2454
    %2704 = vmatpush2.bf16.msra.mxu0 %v2453
    %2705 = vmatprep.subr.bf16.mxu0 %v2452
    %2706 = vmatpush2.bf16.msra.mxu0 %v2451
    %2707 = vmatprep.subr.bf16.mxu0 %v2450
    %2708 = vmatpush2.bf16.msra.mxu0 %v2449
    %2709 = vmatprep.subr.bf16.mxu0 %v2448
    %2710 = vmatpush2.bf16.msra.mxu0 %v2447
    %2711 = vmatprep.subr.bf16.mxu0 %v2446
    %2712 = vmatpush2.bf16.msra.mxu0 %v2445
    %2713 = vmatprep.subr.bf16.mxu0 %v2444
    %2714 = vmatpush2.bf16.msra.mxu0 %v2443
    %2715 = vmatprep.mubr.bf16.mxu0 %v1896
    %2716 = vmatmul.mubr.bf16.gmra.mxu0 %v1895
    %v2717 = vpop.f32.mrf.mxu0
    %v2718 = vadd.f32 %v2036, %v2717
    %v2719 = vpop.f32.mrf.mxu0
    %v2720 = vadd.f32 %v2040, %v2719
    %v2721 = vpop.f32.mrf.mxu0
    %v2722 = vpop.f32.mrf.mxu0
    %2723 = vdwg.mxu0
    %2724 = vmatprep.subr.bf16.mxu0 %v2474
    %2725 = vmatpush1.bf16.msra.mxu0 %v2473
    %2726 = vmatprep.subr.bf16.mxu0 %v2472
    %2727 = vmatpush1.bf16.msra.mxu0 %v2471
    %2728 = vmatprep.subr.bf16.mxu0 %v2470
    %2729 = vmatpush1.bf16.msra.mxu0 %v2469
    %2730 = vmatprep.subr.bf16.mxu0 %v2468
    %2731 = vmatpush1.bf16.msra.mxu0 %v2467
    %2732 = vmatprep.subr.bf16.mxu0 %v2466
    %2733 = vmatpush1.bf16.msra.mxu0 %v2465
    %2734 = vmatprep.subr.bf16.mxu0 %v2464
    %2735 = vmatpush1.bf16.msra.mxu0 %v2463
    %2736 = vmatprep.subr.bf16.mxu0 %v2462
    %2737 = vmatpush1.bf16.msra.mxu0 %v2461
    %2738 = vmatprep.subr.bf16.mxu0 %v2460
    %2739 = vmatpush1.bf16.msra.mxu0 %v2459
    %2740 = vmatprep.subr.bf16.mxu0 %v2490
    %2741 = vmatpush2.bf16.msra.mxu0 %v2489
    %2742 = vmatprep.subr.bf16.mxu0 %v2488
    %2743 = vmatpush2.bf16.msra.mxu0 %v2487
    %2744 = vmatprep.subr.bf16.mxu0 %v2486
    %2745 = vmatpush2.bf16.msra.mxu0 %v2485
    %2746 = vmatprep.subr.bf16.mxu0 %v2484
    %2747 = vmatpush2.bf16.msra.mxu0 %v2483
    %2748 = vmatprep.subr.bf16.mxu0 %v2482
    %2749 = vmatpush2.bf16.msra.mxu0 %v2481
    %2750 = vmatprep.subr.bf16.mxu0 %v2480
    %2751 = vmatpush2.bf16.msra.mxu0 %v2479
    %2752 = vmatprep.subr.bf16.mxu0 %v2478
    %2753 = vmatpush2.bf16.msra.mxu0 %v2477
    %2754 = vmatprep.subr.bf16.mxu0 %v2476
    %2755 = vmatpush2.bf16.msra.mxu0 %v2475
    %2756 = vmatprep.mubr.bf16.mxu0 %v1898
    %2757 = vmatmul.mubr.bf16.gmra.mxu0 %v1897
    %v2758 = vpop.f32.mrf.mxu0
    %v2759 = vadd.f32 %v2718, %v2758
    %v2760 = vpop.f32.mrf.mxu0
    %v2761 = vadd.f32 %v2720, %v2760
    %v2762 = vpop.f32.mrf.mxu0
    %v2763 = vpop.f32.mrf.mxu0
    %2764 = vdwg.mxu0
    %2765 = vmatprep.subr.bf16.mxu0 %v2506
    %2766 = vmatpush1.bf16.msra.mxu0 %v2505
    %2767 = vmatprep.subr.bf16.mxu0 %v2504
    %2768 = vmatpush1.bf16.msra.mxu0 %v2503
    %2769 = vmatprep.subr.bf16.mxu0 %v2502
    %2770 = vmatpush1.bf16.msra.mxu0 %v2501
    %2771 = vmatprep.subr.bf16.mxu0 %v2500
    %2772 = vmatpush1.bf16.msra.mxu0 %v2499
    %2773 = vmatprep.subr.bf16.mxu0 %v2498
    %2774 = vmatpush1.bf16.msra.mxu0 %v2497
    %2775 = vmatprep.subr.bf16.mxu0 %v2496
    %2776 = vmatpush1.bf16.msra.mxu0 %v2495
    %2777 = vmatprep.subr.bf16.mxu0 %v2494
    %2778 = vmatpush1.bf16.msra.mxu0 %v2493
    %2779 = vmatprep.subr.bf16.mxu0 %v2492
    %2780 = vmatpush1.bf16.msra.mxu0 %v2491
    %2781 = vmatprep.subr.bf16.mxu0 %v2522
    %2782 = vmatpush2.bf16.msra.mxu0 %v2521
    %2783 = vmatprep.subr.bf16.mxu0 %v2520
    %2784 = vmatpush2.bf16.msra.mxu0 %v2519
    %2785 = vmatprep.subr.bf16.mxu0 %v2518
    %2786 = vmatpush2.bf16.msra.mxu0 %v2517
    %2787 = vmatprep.subr.bf16.mxu0 %v2516
    %2788 = vmatpush2.bf16.msra.mxu0 %v2515
    %2789 = vmatprep.subr.bf16.mxu0 %v2514
    %2790 = vmatpush2.bf16.msra.mxu0 %v2513
    %2791 = vmatprep.subr.bf16.mxu0 %v2512
    %2792 = vmatpush2.bf16.msra.mxu0 %v2511
    %2793 = vmatprep.subr.bf16.mxu0 %v2510
    %2794 = vmatpush2.bf16.msra.mxu0 %v2509
    %2795 = vmatprep.subr.bf16.mxu0 %v2508
    %2796 = vmatpush2.bf16.msra.mxu0 %v2507
    %2797 = vmatprep.mubr.bf16.mxu0 %v1900
    %2798 = vmatmul.mubr.bf16.gmra.mxu0 %v1899
    %v2799 = vpop.f32.mrf.mxu0
    %v2800 = vadd.f32 %v2759, %v2799
    %v2801 = vpop.f32.mrf.mxu0
    %v2802 = vadd.f32 %v2761, %v2801
    %v2803 = vpop.f32.mrf.mxu0
    %v2804 = vpop.f32.mrf.mxu0
    %2805 = vdwg.mxu0
    %2806 = vmatprep.subr.bf16.mxu0 %v2538
    %2807 = vmatpush1.bf16.msra.mxu0 %v2537
    %2808 = vmatprep.subr.bf16.mxu0 %v2536
    %2809 = vmatpush1.bf16.msra.mxu0 %v2535
    %2810 = vmatprep.subr.bf16.mxu0 %v2534
    %2811 = vmatpush1.bf16.msra.mxu0 %v2533
    %2812 = vmatprep.subr.bf16.mxu0 %v2532
    %2813 = vmatpush1.bf16.msra.mxu0 %v2531
    %2814 = vmatprep.subr.bf16.mxu0 %v2530
    %2815 = vmatpush1.bf16.msra.mxu0 %v2529
    %2816 = vmatprep.subr.bf16.mxu0 %v2528
    %2817 = vmatpush1.bf16.msra.mxu0 %v2527
    %2818 = vmatprep.subr.bf16.mxu0 %v2526
    %2819 = vmatpush1.bf16.msra.mxu0 %v2525
    %2820 = vmatprep.subr.bf16.mxu0 %v2524
    %2821 = vmatpush1.bf16.msra.mxu0 %v2523
    %2822 = vmatprep.subr.bf16.mxu0 %v2554
    %2823 = vmatpush2.bf16.msra.mxu0 %v2553
    %2824 = vmatprep.subr.bf16.mxu0 %v2552
    %2825 = vmatpush2.bf16.msra.mxu0 %v2551
    %2826 = vmatprep.subr.bf16.mxu0 %v2550
    %2827 = vmatpush2.bf16.msra.mxu0 %v2549
    %2828 = vmatprep.subr.bf16.mxu0 %v2548
    %2829 = vmatpush2.bf16.msra.mxu0 %v2547
    %2830 = vmatprep.subr.bf16.mxu0 %v2546
    %2831 = vmatpush2.bf16.msra.mxu0 %v2545
    %2832 = vmatprep.subr.bf16.mxu0 %v2544
    %2833 = vmatpush2.bf16.msra.mxu0 %v2543
    %2834 = vmatprep.subr.bf16.mxu0 %v2542
    %2835 = vmatpush2.bf16.msra.mxu0 %v2541
    %2836 = vmatprep.subr.bf16.mxu0 %v2540
    %2837 = vmatpush2.bf16.msra.mxu0 %v2539
    %2838 = vmatprep.mubr.bf16.mxu0 %v1902
    %2839 = vmatmul.mubr.bf16.gmra.mxu0 %v1901
    %v2840 = vpop.f32.mrf.mxu0
    %v2841 = vadd.f32 %v2800, %v2840
    %v2842 = vpop.f32.mrf.mxu0
    %v2843 = vadd.f32 %v2802, %v2842
    %v2844 = vpop.f32.mrf.mxu0
    %v2845 = vpop.f32.mrf.mxu0
    %2846 = vdwg.mxu0
    %v2847 = vmax.f32 %v2841, 0.0
    %v2848 = vmax.f32 %v2843, 0.0
    %v2849 = vld [vmem:[%s5] sm:$0xf]
    %v2850 = vld [vmem:[#allocation15] sm:$0xff]
    %v2851 = vld [vmem:[#allocation15 + $0x8] sm:$0xff]
    %v2852 = vld [vmem:[#allocation15 + $0x10] sm:$0xff]
    %v2853 = vld [vmem:[#allocation15 + $0x18] sm:$0xff]
    %v2854 = vld [vmem:[#allocation15 + $0x20] sm:$0xff]
    %v2855 = vld [vmem:[#allocation15 + $0x28] sm:$0xff]
    %v2856 = vld [vmem:[#allocation15 + $0x30] sm:$0xff]
    %v2857 = vld [vmem:[#allocation15 + $0x38] sm:$0xff]
    %v2858 = vld [vmem:[#allocation15 + $0x40] sm:$0xff]
    %v2859 = vld [vmem:[#allocation15 + $0x48] sm:$0xff]
    %v2860 = vld [vmem:[#allocation15 + $0x50] sm:$0xff]
    %v2861 = vld [vmem:[#allocation15 + $0x58] sm:$0xff]
    %v2862 = vld [vmem:[#allocation15 + $0x60] sm:$0xff]
    %v2863 = vld [vmem:[#allocation15 + $0x68] sm:$0xff]
    %v2864 = vld [vmem:[#allocation15 + $0x70] sm:$0xff]
    %v2865 = vld [vmem:[#allocation15 + $0x78] sm:$0xff]
    %v2866 = vld [vmem:[#allocation16] sm:$0xf]
    %v2868 = vlaneseq
    %v2869 = vshrl.u32 %v2868, 7
    %v2870 = vsub.s32 0, %v2869
    %v2871 = vrot.slane %v2866, %v2870
    %v2872 = vlaneseq
    %v2873 = vshrl.u32 %v2872, 7
    %v2874 = vsub.s32 1, %v2873
    %v2875 = vrot.slane %v2866, %v2874
    %v2876 = vlaneseq
    %v2877 = vshrl.u32 %v2876, 7
    %v2878 = vsub.s32 2, %v2877
    %v2879 = vrot.slane %v2866, %v2878
    %v2880 = vlaneseq
    %v2881 = vshrl.u32 %v2880, 7
    %v2882 = vsub.s32 3, %v2881
    %v2883 = vrot.slane %v2866, %v2882
    %v2904 = vunpack.c.l.b16 %v2850
    %v2905 = vunpack.c.h.b16 %v2850
    %v2906 = vunpack.c.l.b16 %v2851
    %v2907 = vunpack.c.h.b16 %v2851
    %v2908 = vunpack.c.l.b16 %v2852
    %v2909 = vunpack.c.h.b16 %v2852
    %v2910 = vunpack.c.l.b16 %v2853
    %v2911 = vunpack.c.h.b16 %v2853
    %v2912 = vunpack.c.l.b16 %v2854
    %v2913 = vunpack.c.h.b16 %v2854
    %v2914 = vunpack.c.l.b16 %v2855
    %v2915 = vunpack.c.h.b16 %v2855
    %v2916 = vunpack.c.l.b16 %v2856
    %v2917 = vunpack.c.h.b16 %v2856
    %v2918 = vunpack.c.l.b16 %v2857
    %v2919 = vunpack.c.h.b16 %v2857
    %v2920 = vunpack.c.l.b16 %v2858
    %v2921 = vunpack.c.h.b16 %v2858
    %v2922 = vunpack.c.l.b16 %v2859
    %v2923 = vunpack.c.h.b16 %v2859
    %v2924 = vunpack.c.l.b16 %v2860
    %v2925 = vunpack.c.h.b16 %v2860
    %v2926 = vunpack.c.l.b16 %v2861
    %v2927 = vunpack.c.h.b16 %v2861
    %v2928 = vunpack.c.l.b16 %v2862
    %v2929 = vunpack.c.h.b16 %v2862
    %v2930 = vunpack.c.l.b16 %v2863
    %v2931 = vunpack.c.h.b16 %v2863
    %v2932 = vunpack.c.l.b16 %v2864
    %v2933 = vunpack.c.h.b16 %v2864
    %v2934 = vunpack.c.l.b16 %v2865
    %v2935 = vunpack.c.h.b16 %v2865
    %v2936 = vpack.c.b16 %v2908, %v2904
    %v2937 = vpack.c.b16 %v2909, %v2905
    %v2938 = vpack.c.b16 %v2910, %v2906
    %v2939 = vpack.c.b16 %v2911, %v2907
    %v2940 = vpack.c.b16 %v2916, %v2912
    %v2941 = vpack.c.b16 %v2917, %v2913
    %v2942 = vpack.c.b16 %v2918, %v2914
    %v2943 = vpack.c.b16 %v2919, %v2915
    %v2944 = vpack.c.b16 %v2924, %v2920
    %v2945 = vpack.c.b16 %v2925, %v2921
    %v2946 = vpack.c.b16 %v2926, %v2922
    %v2947 = vpack.c.b16 %v2927, %v2923
    %v2948 = vpack.c.b16 %v2932, %v2928
    %v2949 = vpack.c.b16 %v2933, %v2929
    %v2950 = vpack.c.b16 %v2934, %v2930
    %v2951 = vpack.c.b16 %v2935, %v2931
    %vm2968 = vcmask 523264
    %v2970 = vsel %vm2968, %v2849, 0
    %2972 = vmatprep.subr.bf16.mxu0 0
    %2973 = vmatpush1.bf16.msra.mxu0 0
    %2974 = vmatprep.subr.bf16.mxu0 0
    %2975 = vmatpush1.bf16.msra.mxu0 0
    %2976 = vmatprep.subr.bf16.mxu0 0
    %2977 = vmatpush1.bf16.msra.mxu0 0
    %2978 = vmatprep.subr.bf16.mxu0 0
    %2979 = vmatpush1.bf16.msra.mxu0 0
    %2980 = vmatprep.subr.bf16.mxu0 %v2949
    %2981 = vmatpush1.bf16.msra.mxu0 %v2948
    %2982 = vmatprep.subr.bf16.mxu0 %v2945
    %2983 = vmatpush1.bf16.msra.mxu0 %v2944
    %2984 = vmatprep.subr.bf16.mxu0 %v2941
    %2985 = vmatpush1.bf16.msra.mxu0 %v2940
    %2986 = vmatprep.subr.bf16.mxu0 %v2937
    %2987 = vmatpush1.bf16.msra.mxu0 %v2936
    %2988 = vmatprep.subr.bf16.mxu0 0
    %2989 = vmatpush2.bf16.msra.mxu0 0
    %2990 = vmatprep.subr.bf16.mxu0 0
    %2991 = vmatpush2.bf16.msra.mxu0 0
    %2992 = vmatprep.subr.bf16.mxu0 0
    %2993 = vmatpush2.bf16.msra.mxu0 0
    %2994 = vmatprep.subr.bf16.mxu0 0
    %2995 = vmatpush2.bf16.msra.mxu0 0
    %2996 = vmatprep.subr.bf16.mxu0 0
    %2997 = vmatpush2.bf16.msra.mxu0 0
    %2998 = vmatprep.subr.bf16.mxu0 0
    %2999 = vmatpush2.bf16.msra.mxu0 0
    %3000 = vmatprep.subr.bf16.mxu0 0
    %3001 = vmatpush2.bf16.msra.mxu0 0
    %3002 = vmatprep.subr.bf16.mxu0 0
    %3003 = vmatpush2.bf16.msra.mxu0 0
    %3004 = vmatprep.mubr.bf16.mxu0 0
    %3005 = vmatmul.mubr.bf16.gmra.mxu0 %v2970
    %v3006 = vpop.f32.mrf.mxu0
    %v3007 = vadd.f32 %v2871, %v3006
    %v3008 = vpop.f32.mrf.mxu0
    %v3009 = vadd.f32 %v2875, %v3008
    %v3010 = vpop.f32.mrf.mxu0
    %v3011 = vpop.f32.mrf.mxu0
    %3012 = vdwg.mxu0
    %3013 = vmatprep.subr.bf16.mxu0 0
    %3014 = vmatpush1.bf16.msra.mxu0 0
    %3015 = vmatprep.subr.bf16.mxu0 0
    %3016 = vmatpush1.bf16.msra.mxu0 0
    %3017 = vmatprep.subr.bf16.mxu0 0
    %3018 = vmatpush1.bf16.msra.mxu0 0
    %3019 = vmatprep.subr.bf16.mxu0 0
    %3020 = vmatpush1.bf16.msra.mxu0 0
    %3021 = vmatprep.subr.bf16.mxu0 %v2951
    %3022 = vmatpush1.bf16.msra.mxu0 %v2950
    %3023 = vmatprep.subr.bf16.mxu0 %v2947
    %3024 = vmatpush1.bf16.msra.mxu0 %v2946
    %3025 = vmatprep.subr.bf16.mxu0 %v2943
    %3026 = vmatpush1.bf16.msra.mxu0 %v2942
    %3027 = vmatprep.subr.bf16.mxu0 %v2939
    %3028 = vmatpush1.bf16.msra.mxu0 %v2938
    %3029 = vmatprep.subr.bf16.mxu0 0
    %3030 = vmatpush2.bf16.msra.mxu0 0
    %3031 = vmatprep.subr.bf16.mxu0 0
    %3032 = vmatpush2.bf16.msra.mxu0 0
    %3033 = vmatprep.subr.bf16.mxu0 0
    %3034 = vmatpush2.bf16.msra.mxu0 0
    %3035 = vmatprep.subr.bf16.mxu0 0
    %3036 = vmatpush2.bf16.msra.mxu0 0
    %3037 = vmatprep.subr.bf16.mxu0 0
    %3038 = vmatpush2.bf16.msra.mxu0 0
    %3039 = vmatprep.subr.bf16.mxu0 0
    %3040 = vmatpush2.bf16.msra.mxu0 0
    %3041 = vmatprep.subr.bf16.mxu0 0
    %3042 = vmatpush2.bf16.msra.mxu0 0
    %3043 = vmatprep.subr.bf16.mxu0 0
    %3044 = vmatpush2.bf16.msra.mxu0 0
    %3045 = vmatprep.mubr.bf16.mxu0 0
    %3046 = vmatmul.mubr.bf16.gmra.mxu0 %v2970
    %v3047 = vpop.f32.mrf.mxu0
    %v3048 = vadd.f32 %v2879, %v3047
    %v3049 = vpop.f32.mrf.mxu0
    %v3050 = vadd.f32 %v2883, %v3049
    %v3051 = vpop.f32.mrf.mxu0
    %v3052 = vpop.f32.mrf.mxu0
    %3053 = vdwg.mxu0
    %v3054 = vmax.f32 %v3007, 0.0
    %v3055 = vmax.f32 %v3009, 0.0
    %v3056 = vmax.f32 %v3048, 0.0
    %v3057 = vmax.f32 %v3050, 0.0
    %v3058 = vpack.c.bf16 %v3054, %v3054
    %v3059 = vpack.c.bf16 %v3055, %v3055
    %v3060 = vpack.c.bf16 %v3056, %v3056
    %v3061 = vpack.c.bf16 %v3057, %v3057
    %v3062 = vld [vmem:[#allocation18] sm:$0xff]
    %v3063 = vld [vmem:[#allocation18 + $0x8] sm:$0xff]
    %v3064 = vld [vmem:[#allocation18 + $0x10] sm:$0xff]
    %v3065 = vld [vmem:[#allocation18 + $0x18] sm:$0xff]
    %v3066 = vld [vmem:[#allocation18 + $0x20] sm:$0xff]
    %v3067 = vld [vmem:[#allocation18 + $0x28] sm:$0xff]
    %v3068 = vld [vmem:[#allocation18 + $0x30] sm:$0xff]
    %v3069 = vld [vmem:[#allocation18 + $0x38] sm:$0xff]
    %v3070 = vld [vmem:[#allocation18 + $0x40] sm:$0xff]
    %v3071 = vld [vmem:[#allocation18 + $0x48] sm:$0xff]
    %v3072 = vld [vmem:[#allocation18 + $0x50] sm:$0xff]
    %v3073 = vld [vmem:[#allocation18 + $0x58] sm:$0xff]
    %v3074 = vld [vmem:[#allocation18 + $0x60] sm:$0xff]
    %v3075 = vld [vmem:[#allocation18 + $0x68] sm:$0xff]
    %v3076 = vld [vmem:[#allocation18 + $0x70] sm:$0xff]
    %v3077 = vld [vmem:[#allocation18 + $0x78] sm:$0xff]
    %v3078 = vld [vmem:[#allocation18 + $0x80] sm:$0xff]
    %v3079 = vld [vmem:[#allocation18 + $0x88] sm:$0xff]
    %v3080 = vld [vmem:[#allocation18 + $0x90] sm:$0xff]
    %v3081 = vld [vmem:[#allocation18 + $0x98] sm:$0xff]
    %v3082 = vld [vmem:[#allocation18 + $0xa0] sm:$0xff]
    %v3083 = vld [vmem:[#allocation18 + $0xa8] sm:$0xff]
    %v3084 = vld [vmem:[#allocation18 + $0xb0] sm:$0xff]
    %v3085 = vld [vmem:[#allocation18 + $0xb8] sm:$0xff]
    %v3086 = vld [vmem:[#allocation18 + $0xc0] sm:$0xff]
    %v3087 = vld [vmem:[#allocation18 + $0xc8] sm:$0xff]
    %v3088 = vld [vmem:[#allocation18 + $0xd0] sm:$0xff]
    %v3089 = vld [vmem:[#allocation18 + $0xd8] sm:$0xff]
    %v3090 = vld [vmem:[#allocation18 + $0xe0] sm:$0xff]
    %v3091 = vld [vmem:[#allocation18 + $0xe8] sm:$0xff]
    %v3092 = vld [vmem:[#allocation18 + $0xf0] sm:$0xff]
    %v3093 = vld [vmem:[#allocation18 + $0xf8] sm:$0xff]
    %v3094 = vld [vmem:[#allocation18 + $0x100] sm:$0xff]
    %v3095 = vld [vmem:[#allocation18 + $0x108] sm:$0xff]
    %v3096 = vld [vmem:[#allocation18 + $0x110] sm:$0xff]
    %v3097 = vld [vmem:[#allocation18 + $0x118] sm:$0xff]
    %v3098 = vld [vmem:[#allocation18 + $0x120] sm:$0xff]
    %v3099 = vld [vmem:[#allocation18 + $0x128] sm:$0xff]
    %v3100 = vld [vmem:[#allocation18 + $0x130] sm:$0xff]
    %v3101 = vld [vmem:[#allocation18 + $0x138] sm:$0xff]
    %v3102 = vld [vmem:[#allocation18 + $0x140] sm:$0xff]
    %v3103 = vld [vmem:[#allocation18 + $0x148] sm:$0xff]
    %v3104 = vld [vmem:[#allocation18 + $0x150] sm:$0xff]
    %v3105 = vld [vmem:[#allocation18 + $0x158] sm:$0xff]
    %v3106 = vld [vmem:[#allocation18 + $0x160] sm:$0xff]
    %v3107 = vld [vmem:[#allocation18 + $0x168] sm:$0xff]
    %v3108 = vld [vmem:[#allocation18 + $0x170] sm:$0xff]
    %v3109 = vld [vmem:[#allocation18 + $0x178] sm:$0xff]
    %v3110 = vld [vmem:[#allocation18 + $0x180] sm:$0xff]
    %v3111 = vld [vmem:[#allocation18 + $0x188] sm:$0xff]
    %v3112 = vld [vmem:[#allocation18 + $0x190] sm:$0xff]
    %v3113 = vld [vmem:[#allocation18 + $0x198] sm:$0xff]
    %v3114 = vld [vmem:[#allocation18 + $0x1a0] sm:$0xff]
    %v3115 = vld [vmem:[#allocation18 + $0x1a8] sm:$0xff]
    %v3116 = vld [vmem:[#allocation18 + $0x1b0] sm:$0xff]
    %v3117 = vld [vmem:[#allocation18 + $0x1b8] sm:$0xff]
    %v3118 = vld [vmem:[#allocation18 + $0x1c0] sm:$0xff]
    %v3119 = vld [vmem:[#allocation18 + $0x1c8] sm:$0xff]
    %v3120 = vld [vmem:[#allocation18 + $0x1d0] sm:$0xff]
    %v3121 = vld [vmem:[#allocation18 + $0x1d8] sm:$0xff]
    %v3122 = vld [vmem:[#allocation18 + $0x1e0] sm:$0xff]
    %v3123 = vld [vmem:[#allocation18 + $0x1e8] sm:$0xff]
    %v3124 = vld [vmem:[#allocation18 + $0x1f0] sm:$0xff]
    %v3125 = vld [vmem:[#allocation18 + $0x1f8] sm:$0xff]
    %v3126 = vld [vmem:[%s29] sm:$0x3]
    %v3128 = vlaneseq
    %v3129 = vshrl.u32 %v3128, 7
    %v3130 = vsub.s32 0, %v3129
    %v3131 = vrot.slane %v3126, %v3130
    %v3132 = vlaneseq
    %v3133 = vshrl.u32 %v3132, 7
    %v3134 = vsub.s32 1, %v3133
    %v3135 = vrot.slane %v3126, %v3134
    %v3202 = vunpack.c.l.b16 %v3062
    %v3203 = vunpack.c.h.b16 %v3062
    %v3204 = vunpack.c.l.b16 %v3063
    %v3205 = vunpack.c.h.b16 %v3063
    %v3206 = vunpack.c.l.b16 %v3064
    %v3207 = vunpack.c.h.b16 %v3064
    %v3208 = vunpack.c.l.b16 %v3065
    %v3209 = vunpack.c.h.b16 %v3065
    %v3210 = vunpack.c.l.b16 %v3066
    %v3211 = vunpack.c.h.b16 %v3066
    %v3212 = vunpack.c.l.b16 %v3067
    %v3213 = vunpack.c.h.b16 %v3067
    %v3214 = vunpack.c.l.b16 %v3068
    %v3215 = vunpack.c.h.b16 %v3068
    %v3216 = vunpack.c.l.b16 %v3069
    %v3217 = vunpack.c.h.b16 %v3069
    %v3218 = vunpack.c.l.b16 %v3070
    %v3219 = vunpack.c.h.b16 %v3070
    %v3220 = vunpack.c.l.b16 %v3071
    %v3221 = vunpack.c.h.b16 %v3071
    %v3222 = vunpack.c.l.b16 %v3072
    %v3223 = vunpack.c.h.b16 %v3072
    %v3224 = vunpack.c.l.b16 %v3073
    %v3225 = vunpack.c.h.b16 %v3073
    %v3226 = vunpack.c.l.b16 %v3074
    %v3227 = vunpack.c.h.b16 %v3074
    %v3228 = vunpack.c.l.b16 %v3075
    %v3229 = vunpack.c.h.b16 %v3075
    %v3230 = vunpack.c.l.b16 %v3076
    %v3231 = vunpack.c.h.b16 %v3076
    %v3232 = vunpack.c.l.b16 %v3077
    %v3233 = vunpack.c.h.b16 %v3077
    %v3234 = vunpack.c.l.b16 %v3078
    %v3235 = vunpack.c.h.b16 %v3078
    %v3236 = vunpack.c.l.b16 %v3079
    %v3237 = vunpack.c.h.b16 %v3079
    %v3238 = vunpack.c.l.b16 %v3080
    %v3239 = vunpack.c.h.b16 %v3080
    %v3240 = vunpack.c.l.b16 %v3081
    %v3241 = vunpack.c.h.b16 %v3081
    %v3242 = vunpack.c.l.b16 %v3082
    %v3243 = vunpack.c.h.b16 %v3082
    %v3244 = vunpack.c.l.b16 %v3083
    %v3245 = vunpack.c.h.b16 %v3083
    %v3246 = vunpack.c.l.b16 %v3084
    %v3247 = vunpack.c.h.b16 %v3084
    %v3248 = vunpack.c.l.b16 %v3085
    %v3249 = vunpack.c.h.b16 %v3085
    %v3250 = vunpack.c.l.b16 %v3086
    %v3251 = vunpack.c.h.b16 %v3086
    %v3252 = vunpack.c.l.b16 %v3087
    %v3253 = vunpack.c.h.b16 %v3087
    %v3254 = vunpack.c.l.b16 %v3088
    %v3255 = vunpack.c.h.b16 %v3088
    %v3256 = vunpack.c.l.b16 %v3089
    %v3257 = vunpack.c.h.b16 %v3089
    %v3258 = vunpack.c.l.b16 %v3090
    %v3259 = vunpack.c.h.b16 %v3090
    %v3260 = vunpack.c.l.b16 %v3091
    %v3261 = vunpack.c.h.b16 %v3091
    %v3262 = vunpack.c.l.b16 %v3092
    %v3263 = vunpack.c.h.b16 %v3092
    %v3264 = vunpack.c.l.b16 %v3093
    %v3265 = vunpack.c.h.b16 %v3093
    %v3266 = vunpack.c.l.b16 %v3094
    %v3267 = vunpack.c.h.b16 %v3094
    %v3268 = vunpack.c.l.b16 %v3095
    %v3269 = vunpack.c.h.b16 %v3095
    %v3270 = vunpack.c.l.b16 %v3096
    %v3271 = vunpack.c.h.b16 %v3096
    %v3272 = vunpack.c.l.b16 %v3097
    %v3273 = vunpack.c.h.b16 %v3097
    %v3274 = vunpack.c.l.b16 %v3098
    %v3275 = vunpack.c.h.b16 %v3098
    %v3276 = vunpack.c.l.b16 %v3099
    %v3277 = vunpack.c.h.b16 %v3099
    %v3278 = vunpack.c.l.b16 %v3100
    %v3279 = vunpack.c.h.b16 %v3100
    %v3280 = vunpack.c.l.b16 %v3101
    %v3281 = vunpack.c.h.b16 %v3101
    %v3282 = vunpack.c.l.b16 %v3102
    %v3283 = vunpack.c.h.b16 %v3102
    %v3284 = vunpack.c.l.b16 %v3103
    %v3285 = vunpack.c.h.b16 %v3103
    %v3286 = vunpack.c.l.b16 %v3104
    %v3287 = vunpack.c.h.b16 %v3104
    %v3288 = vunpack.c.l.b16 %v3105
    %v3289 = vunpack.c.h.b16 %v3105
    %v3290 = vunpack.c.l.b16 %v3106
    %v3291 = vunpack.c.h.b16 %v3106
    %v3292 = vunpack.c.l.b16 %v3107
    %v3293 = vunpack.c.h.b16 %v3107
    %v3294 = vunpack.c.l.b16 %v3108
    %v3295 = vunpack.c.h.b16 %v3108
    %v3296 = vunpack.c.l.b16 %v3109
    %v3297 = vunpack.c.h.b16 %v3109
    %v3298 = vunpack.c.l.b16 %v3110
    %v3299 = vunpack.c.h.b16 %v3110
    %v3300 = vunpack.c.l.b16 %v3111
    %v3301 = vunpack.c.h.b16 %v3111
    %v3302 = vunpack.c.l.b16 %v3112
    %v3303 = vunpack.c.h.b16 %v3112
    %v3304 = vunpack.c.l.b16 %v3113
    %v3305 = vunpack.c.h.b16 %v3113
    %v3306 = vunpack.c.l.b16 %v3114
    %v3307 = vunpack.c.h.b16 %v3114
    %v3308 = vunpack.c.l.b16 %v3115
    %v3309 = vunpack.c.h.b16 %v3115
    %v3310 = vunpack.c.l.b16 %v3116
    %v3311 = vunpack.c.h.b16 %v3116
    %v3312 = vunpack.c.l.b16 %v3117
    %v3313 = vunpack.c.h.b16 %v3117
    %v3314 = vunpack.c.l.b16 %v3118
    %v3315 = vunpack.c.h.b16 %v3118
    %v3316 = vunpack.c.l.b16 %v3119
    %v3317 = vunpack.c.h.b16 %v3119
    %v3318 = vunpack.c.l.b16 %v3120
    %v3319 = vunpack.c.h.b16 %v3120
    %v3320 = vunpack.c.l.b16 %v3121
    %v3321 = vunpack.c.h.b16 %v3121
    %v3322 = vunpack.c.l.b16 %v3122
    %v3323 = vunpack.c.h.b16 %v3122
    %v3324 = vunpack.c.l.b16 %v3123
    %v3325 = vunpack.c.h.b16 %v3123
    %v3326 = vunpack.c.l.b16 %v3124
    %v3327 = vunpack.c.h.b16 %v3124
    %v3328 = vunpack.c.l.b16 %v3125
    %v3329 = vunpack.c.h.b16 %v3125
    %v3330 = vpack.c.b16 %v3204, %v3202
    %v3331 = vpack.c.b16 %v3205, %v3203
    %v3332 = vpack.c.b16 %v3208, %v3206
    %v3333 = vpack.c.b16 %v3209, %v3207
    %v3334 = vpack.c.b16 %v3212, %v3210
    %v3335 = vpack.c.b16 %v3213, %v3211
    %v3336 = vpack.c.b16 %v3216, %v3214
    %v3337 = vpack.c.b16 %v3217, %v3215
    %v3338 = vpack.c.b16 %v3220, %v3218
    %v3339 = vpack.c.b16 %v3221, %v3219
    %v3340 = vpack.c.b16 %v3224, %v3222
    %v3341 = vpack.c.b16 %v3225, %v3223
    %v3342 = vpack.c.b16 %v3228, %v3226
    %v3343 = vpack.c.b16 %v3229, %v3227
    %v3344 = vpack.c.b16 %v3232, %v3230
    %v3345 = vpack.c.b16 %v3233, %v3231
    %v3346 = vpack.c.b16 %v3236, %v3234
    %v3347 = vpack.c.b16 %v3237, %v3235
    %v3348 = vpack.c.b16 %v3240, %v3238
    %v3349 = vpack.c.b16 %v3241, %v3239
    %v3350 = vpack.c.b16 %v3244, %v3242
    %v3351 = vpack.c.b16 %v3245, %v3243
    %v3352 = vpack.c.b16 %v3248, %v3246
    %v3353 = vpack.c.b16 %v3249, %v3247
    %v3354 = vpack.c.b16 %v3252, %v3250
    %v3355 = vpack.c.b16 %v3253, %v3251
    %v3356 = vpack.c.b16 %v3256, %v3254
    %v3357 = vpack.c.b16 %v3257, %v3255
    %v3358 = vpack.c.b16 %v3260, %v3258
    %v3359 = vpack.c.b16 %v3261, %v3259
    %v3360 = vpack.c.b16 %v3264, %v3262
    %v3361 = vpack.c.b16 %v3265, %v3263
    %v3362 = vpack.c.b16 %v3268, %v3266
    %v3363 = vpack.c.b16 %v3269, %v3267
    %v3364 = vpack.c.b16 %v3272, %v3270
    %v3365 = vpack.c.b16 %v3273, %v3271
    %v3366 = vpack.c.b16 %v3276, %v3274
    %v3367 = vpack.c.b16 %v3277, %v3275
    %v3368 = vpack.c.b16 %v3280, %v3278
    %v3369 = vpack.c.b16 %v3281, %v3279
    %v3370 = vpack.c.b16 %v3284, %v3282
    %v3371 = vpack.c.b16 %v3285, %v3283
    %v3372 = vpack.c.b16 %v3288, %v3286
    %v3373 = vpack.c.b16 %v3289, %v3287
    %v3374 = vpack.c.b16 %v3292, %v3290
    %v3375 = vpack.c.b16 %v3293, %v3291
    %v3376 = vpack.c.b16 %v3296, %v3294
    %v3377 = vpack.c.b16 %v3297, %v3295
    %v3378 = vpack.c.b16 %v3300, %v3298
    %v3379 = vpack.c.b16 %v3301, %v3299
    %v3380 = vpack.c.b16 %v3304, %v3302
    %v3381 = vpack.c.b16 %v3305, %v3303
    %v3382 = vpack.c.b16 %v3308, %v3306
    %v3383 = vpack.c.b16 %v3309, %v3307
    %v3384 = vpack.c.b16 %v3312, %v3310
    %v3385 = vpack.c.b16 %v3313, %v3311
    %v3386 = vpack.c.b16 %v3316, %v3314
    %v3387 = vpack.c.b16 %v3317, %v3315
    %v3388 = vpack.c.b16 %v3320, %v3318
    %v3389 = vpack.c.b16 %v3321, %v3319
    %v3390 = vpack.c.b16 %v3324, %v3322
    %v3391 = vpack.c.b16 %v3325, %v3323
    %v3392 = vpack.c.b16 %v3328, %v3326
    %v3393 = vpack.c.b16 %v3329, %v3327
    %3458 = vmatprep.subr.bf16.mxu0 %v3345
    %3459 = vmatpush1.bf16.msra.mxu0 %v3344
    %3460 = vmatprep.subr.bf16.mxu0 %v3343
    %3461 = vmatpush1.bf16.msra.mxu0 %v3342
    %3462 = vmatprep.subr.bf16.mxu0 %v3341
    %3463 = vmatpush1.bf16.msra.mxu0 %v3340
    %3464 = vmatprep.subr.bf16.mxu0 %v3339
    %3465 = vmatpush1.bf16.msra.mxu0 %v3338
    %3466 = vmatprep.subr.bf16.mxu0 %v3337
    %3467 = vmatpush1.bf16.msra.mxu0 %v3336
    %3468 = vmatprep.subr.bf16.mxu0 %v3335
    %3469 = vmatpush1.bf16.msra.mxu0 %v3334
    %3470 = vmatprep.subr.bf16.mxu0 %v3333
    %3471 = vmatpush1.bf16.msra.mxu0 %v3332
    %3472 = vmatprep.subr.bf16.mxu0 %v3331
    %3473 = vmatpush1.bf16.msra.mxu0 %v3330
    %3474 = vmatprep.subr.bf16.mxu0 %v3361
    %3475 = vmatpush2.bf16.msra.mxu0 %v3360
    %3476 = vmatprep.subr.bf16.mxu0 %v3359
    %3477 = vmatpush2.bf16.msra.mxu0 %v3358
    %3478 = vmatprep.subr.bf16.mxu0 %v3357
    %3479 = vmatpush2.bf16.msra.mxu0 %v3356
    %3480 = vmatprep.subr.bf16.mxu0 %v3355
    %3481 = vmatpush2.bf16.msra.mxu0 %v3354
    %3482 = vmatprep.subr.bf16.mxu0 %v3353
    %3483 = vmatpush2.bf16.msra.mxu0 %v3352
    %3484 = vmatprep.subr.bf16.mxu0 %v3351
    %3485 = vmatpush2.bf16.msra.mxu0 %v3350
    %3486 = vmatprep.subr.bf16.mxu0 %v3349
    %3487 = vmatpush2.bf16.msra.mxu0 %v3348
    %3488 = vmatprep.subr.bf16.mxu0 %v3347
    %3489 = vmatpush2.bf16.msra.mxu0 %v3346
    %3490 = vmatprep.mubr.bf16.mxu0 %v3059
    %3491 = vmatmul.mubr.bf16.gmra.mxu0 %v3058
    %v3492 = vpop.f32.mrf.mxu0
    %v3493 = vadd.f32 %v3131, %v3492
    %v3494 = vpop.f32.mrf.mxu0
    %v3495 = vadd.f32 %v3135, %v3494
    %v3496 = vpop.f32.mrf.mxu0
    %v3497 = vpop.f32.mrf.mxu0
    %3498 = vdwg.mxu0
    %3499 = vmatprep.subr.bf16.mxu0 %v3377
    %3500 = vmatpush1.bf16.msra.mxu0 %v3376
    %3501 = vmatprep.subr.bf16.mxu0 %v3375
    %3502 = vmatpush1.bf16.msra.mxu0 %v3374
    %3503 = vmatprep.subr.bf16.mxu0 %v3373
    %3504 = vmatpush1.bf16.msra.mxu0 %v3372
    %3505 = vmatprep.subr.bf16.mxu0 %v3371
    %3506 = vmatpush1.bf16.msra.mxu0 %v3370
    %3507 = vmatprep.subr.bf16.mxu0 %v3369
    %3508 = vmatpush1.bf16.msra.mxu0 %v3368
    %3509 = vmatprep.subr.bf16.mxu0 %v3367
    %3510 = vmatpush1.bf16.msra.mxu0 %v3366
    %3511 = vmatprep.subr.bf16.mxu0 %v3365
    %3512 = vmatpush1.bf16.msra.mxu0 %v3364
    %3513 = vmatprep.subr.bf16.mxu0 %v3363
    %3514 = vmatpush1.bf16.msra.mxu0 %v3362
    %3515 = vmatprep.subr.bf16.mxu0 %v3393
    %3516 = vmatpush2.bf16.msra.mxu0 %v3392
    %3517 = vmatprep.subr.bf16.mxu0 %v3391
    %3518 = vmatpush2.bf16.msra.mxu0 %v3390
    %3519 = vmatprep.subr.bf16.mxu0 %v3389
    %3520 = vmatpush2.bf16.msra.mxu0 %v3388
    %3521 = vmatprep.subr.bf16.mxu0 %v3387
    %3522 = vmatpush2.bf16.msra.mxu0 %v3386
    %3523 = vmatprep.subr.bf16.mxu0 %v3385
    %3524 = vmatpush2.bf16.msra.mxu0 %v3384
    %3525 = vmatprep.subr.bf16.mxu0 %v3383
    %3526 = vmatpush2.bf16.msra.mxu0 %v3382
    %3527 = vmatprep.subr.bf16.mxu0 %v3381
    %3528 = vmatpush2.bf16.msra.mxu0 %v3380
    %3529 = vmatprep.subr.bf16.mxu0 %v3379
    %3530 = vmatpush2.bf16.msra.mxu0 %v3378
    %3531 = vmatprep.mubr.bf16.mxu0 %v3061
    %3532 = vmatmul.mubr.bf16.gmra.mxu0 %v3060
    %v3533 = vpop.f32.mrf.mxu0
    %v3534 = vadd.f32 %v3493, %v3533
    %v3535 = vpop.f32.mrf.mxu0
    %v3536 = vadd.f32 %v3495, %v3535
    %v3537 = vpop.f32.mrf.mxu0
    %v3538 = vpop.f32.mrf.mxu0
    %3539 = vdwg.mxu0
    %v3540 = vmax.f32 %v3534, 0.0
    %v3541 = vmax.f32 %v3536, 0.0
    %3542 = vst [vmem:[#allocation27] sm:$0xff] %v1579
    %3543 = vst [vmem:[#allocation27 + $0x8] sm:$0xff] %v1580
    %3544 = vst [vmem:[#allocation28] sm:$0xff] %v2847
    %3545 = vst [vmem:[#allocation28 + $0x8] sm:$0xff] %v2848
    %3546 = vst [vmem:[#allocation30] sm:$0xff] %v3540
    %3547 = vst [vmem:[#allocation30 + $0x8] sm:$0xff] %v3541
    %v3548 = vpack.c.bf16 %v1579, %v1579
    %v3549 = vpack.c.bf16 %v1580, %v1580
    %v3550 = vpack.c.bf16 %v2847, %v2847
    %v3551 = vpack.c.bf16 %v2848, %v2848
    %v3552 = vpack.c.bf16 %v3540, %v3540
    %v3553 = vpack.c.bf16 %v3541, %v3541
    %v3554 = vld [vmem:[#allocation19] sm:$0xff]
    %v3555 = vld [vmem:[#allocation19 + $0x8] sm:$0xff]
    %v3556 = vld [vmem:[#allocation19 + $0x10] sm:$0xff]
    %v3557 = vld [vmem:[#allocation19 + $0x18] sm:$0xff]
    %v3558 = vld [vmem:[#allocation19 + $0x20] sm:$0xff]
    %v3559 = vld [vmem:[#allocation19 + $0x28] sm:$0xff]
    %v3560 = vld [vmem:[#allocation19 + $0x30] sm:$0xff]
    %v3561 = vld [vmem:[#allocation19 + $0x38] sm:$0xff]
    %v3562 = vld [vmem:[#allocation19 + $0x40] sm:$0xff]
    %v3563 = vld [vmem:[#allocation19 + $0x48] sm:$0xff]
    %v3564 = vld [vmem:[#allocation19 + $0x50] sm:$0xff]
    %v3565 = vld [vmem:[#allocation19 + $0x58] sm:$0xff]
    %v3566 = vld [vmem:[#allocation19 + $0x60] sm:$0xff]
    %v3567 = vld [vmem:[#allocation19 + $0x68] sm:$0xff]
    %v3568 = vld [vmem:[#allocation19 + $0x70] sm:$0xff]
    %v3569 = vld [vmem:[#allocation19 + $0x78] sm:$0xff]
    %v3570 = vld [vmem:[#allocation19 + $0x80] sm:$0xff]
    %v3571 = vld [vmem:[#allocation19 + $0x88] sm:$0xff]
    %v3572 = vld [vmem:[#allocation19 + $0x90] sm:$0xff]
    %v3573 = vld [vmem:[#allocation19 + $0x98] sm:$0xff]
    %v3574 = vld [vmem:[#allocation19 + $0xa0] sm:$0xff]
    %v3575 = vld [vmem:[#allocation19 + $0xa8] sm:$0xff]
    %v3576 = vld [vmem:[#allocation19 + $0xb0] sm:$0xff]
    %v3577 = vld [vmem:[#allocation19 + $0xb8] sm:$0xff]
    %v3578 = vld [vmem:[#allocation19 + $0xc0] sm:$0xff]
    %v3579 = vld [vmem:[#allocation19 + $0xc8] sm:$0xff]
    %v3580 = vld [vmem:[#allocation19 + $0xd0] sm:$0xff]
    %v3581 = vld [vmem:[#allocation19 + $0xd8] sm:$0xff]
    %v3582 = vld [vmem:[#allocation19 + $0xe0] sm:$0xff]
    %v3583 = vld [vmem:[#allocation19 + $0xe8] sm:$0xff]
    %v3584 = vld [vmem:[#allocation19 + $0xf0] sm:$0xff]
    %v3585 = vld [vmem:[#allocation19 + $0xf8] sm:$0xff]
    %v3586 = vld [vmem:[#allocation19 + $0x100] sm:$0xff]
    %v3587 = vld [vmem:[#allocation19 + $0x108] sm:$0xff]
    %v3588 = vld [vmem:[#allocation19 + $0x110] sm:$0xff]
    %v3589 = vld [vmem:[#allocation19 + $0x118] sm:$0xff]
    %v3590 = vld [vmem:[#allocation19 + $0x120] sm:$0xff]
    %v3591 = vld [vmem:[#allocation19 + $0x128] sm:$0xff]
    %v3592 = vld [vmem:[#allocation19 + $0x130] sm:$0xff]
    %v3593 = vld [vmem:[#allocation19 + $0x138] sm:$0xff]
    %v3594 = vld [vmem:[#allocation19 + $0x140] sm:$0xff]
    %v3595 = vld [vmem:[#allocation19 + $0x148] sm:$0xff]
    %v3596 = vld [vmem:[#allocation19 + $0x150] sm:$0xff]
    %v3597 = vld [vmem:[#allocation19 + $0x158] sm:$0xff]
    %v3598 = vld [vmem:[#allocation19 + $0x160] sm:$0xff]
    %v3599 = vld [vmem:[#allocation19 + $0x168] sm:$0xff]
    %v3600 = vld [vmem:[#allocation19 + $0x170] sm:$0xff]
    %v3601 = vld [vmem:[#allocation19 + $0x178] sm:$0xff]
    %v3602 = vld [vmem:[#allocation19 + $0x180] sm:$0xff]
    %v3603 = vld [vmem:[#allocation19 + $0x188] sm:$0xff]
    %v3604 = vld [vmem:[#allocation19 + $0x190] sm:$0xff]
    %v3605 = vld [vmem:[#allocation19 + $0x198] sm:$0xff]
    %v3606 = vld [vmem:[#allocation19 + $0x1a0] sm:$0xff]
    %v3607 = vld [vmem:[#allocation19 + $0x1a8] sm:$0xff]
    %v3608 = vld [vmem:[#allocation19 + $0x1b0] sm:$0xff]
    %v3609 = vld [vmem:[#allocation19 + $0x1b8] sm:$0xff]
    %v3610 = vld [vmem:[#allocation19 + $0x1c0] sm:$0xff]
    %v3611 = vld [vmem:[#allocation19 + $0x1c8] sm:$0xff]
    %v3612 = vld [vmem:[#allocation19 + $0x1d0] sm:$0xff]
    %v3613 = vld [vmem:[#allocation19 + $0x1d8] sm:$0xff]
    %v3614 = vld [vmem:[#allocation19 + $0x1e0] sm:$0xff]
    %v3615 = vld [vmem:[#allocation19 + $0x1e8] sm:$0xff]
    %v3616 = vld [vmem:[#allocation19 + $0x1f0] sm:$0xff]
    %v3617 = vld [vmem:[#allocation19 + $0x1f8] sm:$0xff]
    %v3618 = vld [vmem:[#allocation19 + $0x200] sm:$0xff]
    %v3619 = vld [vmem:[#allocation19 + $0x208] sm:$0xff]
    %v3620 = vld [vmem:[#allocation19 + $0x210] sm:$0xff]
    %v3621 = vld [vmem:[#allocation19 + $0x218] sm:$0xff]
    %v3622 = vld [vmem:[#allocation19 + $0x220] sm:$0xff]
    %v3623 = vld [vmem:[#allocation19 + $0x228] sm:$0xff]
    %v3624 = vld [vmem:[#allocation19 + $0x230] sm:$0xff]
    %v3625 = vld [vmem:[#allocation19 + $0x238] sm:$0xff]
    %v3626 = vld [vmem:[#allocation19 + $0x240] sm:$0xff]
    %v3627 = vld [vmem:[#allocation19 + $0x248] sm:$0xff]
    %v3628 = vld [vmem:[#allocation19 + $0x250] sm:$0xff]
    %v3629 = vld [vmem:[#allocation19 + $0x258] sm:$0xff]
    %v3630 = vld [vmem:[#allocation19 + $0x260] sm:$0xff]
    %v3631 = vld [vmem:[#allocation19 + $0x268] sm:$0xff]
    %v3632 = vld [vmem:[#allocation19 + $0x270] sm:$0xff]
    %v3633 = vld [vmem:[#allocation19 + $0x278] sm:$0xff]
    %v3634 = vld [vmem:[#allocation19 + $0x280] sm:$0xff]
    %v3635 = vld [vmem:[#allocation19 + $0x288] sm:$0xff]
    %v3636 = vld [vmem:[#allocation19 + $0x290] sm:$0xff]
    %v3637 = vld [vmem:[#allocation19 + $0x298] sm:$0xff]
    %v3638 = vld [vmem:[#allocation19 + $0x2a0] sm:$0xff]
    %v3639 = vld [vmem:[#allocation19 + $0x2a8] sm:$0xff]
    %v3640 = vld [vmem:[#allocation19 + $0x2b0] sm:$0xff]
    %v3641 = vld [vmem:[#allocation19 + $0x2b8] sm:$0xff]
    %v3642 = vld [vmem:[#allocation19 + $0x2c0] sm:$0xff]
    %v3643 = vld [vmem:[#allocation19 + $0x2c8] sm:$0xff]
    %v3644 = vld [vmem:[#allocation19 + $0x2d0] sm:$0xff]
    %v3645 = vld [vmem:[#allocation19 + $0x2d8] sm:$0xff]
    %v3646 = vld [vmem:[#allocation19 + $0x2e0] sm:$0xff]
    %v3647 = vld [vmem:[#allocation19 + $0x2e8] sm:$0xff]
    %v3648 = vld [vmem:[#allocation19 + $0x2f0] sm:$0xff]
    %v3649 = vld [vmem:[#allocation19 + $0x2f8] sm:$0xff]
    %v3650 = vld [vmem:[#allocation19 + $0x300] sm:$0xff]
    %v3651 = vld [vmem:[#allocation19 + $0x308] sm:$0xff]
    %v3652 = vld [vmem:[#allocation19 + $0x310] sm:$0xff]
    %v3653 = vld [vmem:[#allocation19 + $0x318] sm:$0xff]
    %v3654 = vld [vmem:[#allocation19 + $0x320] sm:$0xff]
    %v3655 = vld [vmem:[#allocation19 + $0x328] sm:$0xff]
    %v3656 = vld [vmem:[#allocation19 + $0x330] sm:$0xff]
    %v3657 = vld [vmem:[#allocation19 + $0x338] sm:$0xff]
    %v3658 = vld [vmem:[#allocation19 + $0x340] sm:$0xff]
    %v3659 = vld [vmem:[#allocation19 + $0x348] sm:$0xff]
    %v3660 = vld [vmem:[#allocation19 + $0x350] sm:$0xff]
    %v3661 = vld [vmem:[#allocation19 + $0x358] sm:$0xff]
    %v3662 = vld [vmem:[#allocation19 + $0x360] sm:$0xff]
    %v3663 = vld [vmem:[#allocation19 + $0x368] sm:$0xff]
    %v3664 = vld [vmem:[#allocation19 + $0x370] sm:$0xff]
    %v3665 = vld [vmem:[#allocation19 + $0x378] sm:$0xff]
    %v3666 = vld [vmem:[#allocation19 + $0x380] sm:$0xff]
    %v3667 = vld [vmem:[#allocation19 + $0x388] sm:$0xff]
    %v3668 = vld [vmem:[#allocation19 + $0x390] sm:$0xff]
    %v3669 = vld [vmem:[#allocation19 + $0x398] sm:$0xff]
    %v3670 = vld [vmem:[#allocation19 + $0x3a0] sm:$0xff]
    %v3671 = vld [vmem:[#allocation19 + $0x3a8] sm:$0xff]
    %v3672 = vld [vmem:[#allocation19 + $0x3b0] sm:$0xff]
    %v3673 = vld [vmem:[#allocation19 + $0x3b8] sm:$0xff]
    %v3674 = vld [vmem:[#allocation19 + $0x3c0] sm:$0xff]
    %v3675 = vld [vmem:[#allocation19 + $0x3c8] sm:$0xff]
    %v3676 = vld [vmem:[#allocation19 + $0x3d0] sm:$0xff]
    %v3677 = vld [vmem:[#allocation19 + $0x3d8] sm:$0xff]
    %v3678 = vld [vmem:[#allocation19 + $0x3e0] sm:$0xff]
    %v3679 = vld [vmem:[#allocation19 + $0x3e8] sm:$0xff]
    %v3680 = vld [vmem:[#allocation19 + $0x3f0] sm:$0xff]
    %v3681 = vld [vmem:[#allocation19 + $0x3f8] sm:$0xff]
    %v3682 = vld [vmem:[#allocation19 + $0x400] sm:$0xff]
    %v3683 = vld [vmem:[#allocation19 + $0x408] sm:$0xff]
    %v3684 = vld [vmem:[#allocation19 + $0x410] sm:$0xff]
    %v3685 = vld [vmem:[#allocation19 + $0x418] sm:$0xff]
    %v3686 = vld [vmem:[#allocation19 + $0x420] sm:$0xff]
    %v3687 = vld [vmem:[#allocation19 + $0x428] sm:$0xff]
    %v3688 = vld [vmem:[#allocation19 + $0x430] sm:$0xff]
    %v3689 = vld [vmem:[#allocation19 + $0x438] sm:$0xff]
    %v3690 = vld [vmem:[#allocation19 + $0x440] sm:$0xff]
    %v3691 = vld [vmem:[#allocation19 + $0x448] sm:$0xff]
    %v3692 = vld [vmem:[#allocation19 + $0x450] sm:$0xff]
    %v3693 = vld [vmem:[#allocation19 + $0x458] sm:$0xff]
    %v3694 = vld [vmem:[#allocation19 + $0x460] sm:$0xff]
    %v3695 = vld [vmem:[#allocation19 + $0x468] sm:$0xff]
    %v3696 = vld [vmem:[#allocation19 + $0x470] sm:$0xff]
    %v3697 = vld [vmem:[#allocation19 + $0x478] sm:$0xff]
    %v3698 = vld [vmem:[#allocation19 + $0x480] sm:$0xff]
    %v3699 = vld [vmem:[#allocation19 + $0x488] sm:$0xff]
    %v3700 = vld [vmem:[#allocation19 + $0x490] sm:$0xff]
    %v3701 = vld [vmem:[#allocation19 + $0x498] sm:$0xff]
    %v3702 = vld [vmem:[#allocation19 + $0x4a0] sm:$0xff]
    %v3703 = vld [vmem:[#allocation19 + $0x4a8] sm:$0xff]
    %v3704 = vld [vmem:[#allocation19 + $0x4b0] sm:$0xff]
    %v3705 = vld [vmem:[#allocation19 + $0x4b8] sm:$0xff]
    %v3706 = vld [vmem:[#allocation19 + $0x4c0] sm:$0xff]
    %v3707 = vld [vmem:[#allocation19 + $0x4c8] sm:$0xff]
    %v3708 = vld [vmem:[#allocation19 + $0x4d0] sm:$0xff]
    %v3709 = vld [vmem:[#allocation19 + $0x4d8] sm:$0xff]
    %v3710 = vld [vmem:[#allocation19 + $0x4e0] sm:$0xff]
    %v3711 = vld [vmem:[#allocation19 + $0x4e8] sm:$0xff]
    %v3712 = vld [vmem:[#allocation19 + $0x4f0] sm:$0xff]
    %v3713 = vld [vmem:[#allocation19 + $0x4f8] sm:$0xff]
    %v3714 = vld [vmem:[#allocation19 + $0x500] sm:$0xff]
    %v3715 = vld [vmem:[#allocation19 + $0x508] sm:$0xff]
    %v3716 = vld [vmem:[#allocation19 + $0x510] sm:$0xff]
    %v3717 = vld [vmem:[#allocation19 + $0x518] sm:$0xff]
    %v3718 = vld [vmem:[#allocation19 + $0x520] sm:$0xff]
    %v3719 = vld [vmem:[#allocation19 + $0x528] sm:$0xff]
    %v3720 = vld [vmem:[#allocation19 + $0x530] sm:$0xff]
    %v3721 = vld [vmem:[#allocation19 + $0x538] sm:$0xff]
    %v3722 = vld [vmem:[#allocation19 + $0x540] sm:$0xff]
    %v3723 = vld [vmem:[#allocation19 + $0x548] sm:$0xff]
    %v3724 = vld [vmem:[#allocation19 + $0x550] sm:$0xff]
    %v3725 = vld [vmem:[#allocation19 + $0x558] sm:$0xff]
    %v3726 = vld [vmem:[#allocation19 + $0x560] sm:$0xff]
    %v3727 = vld [vmem:[#allocation19 + $0x568] sm:$0xff]
    %v3728 = vld [vmem:[#allocation19 + $0x570] sm:$0xff]
    %v3729 = vld [vmem:[#allocation19 + $0x578] sm:$0xff]
    %v3730 = vld [vmem:[#allocation19 + $0x580] sm:$0xff]
    %v3731 = vld [vmem:[#allocation19 + $0x588] sm:$0xff]
    %v3732 = vld [vmem:[#allocation19 + $0x590] sm:$0xff]
    %v3733 = vld [vmem:[#allocation19 + $0x598] sm:$0xff]
    %v3734 = vld [vmem:[#allocation19 + $0x5a0] sm:$0xff]
    %v3735 = vld [vmem:[#allocation19 + $0x5a8] sm:$0xff]
    %v3736 = vld [vmem:[#allocation19 + $0x5b0] sm:$0xff]
    %v3737 = vld [vmem:[#allocation19 + $0x5b8] sm:$0xff]
    %v3738 = vld [vmem:[#allocation19 + $0x5c0] sm:$0xff]
    %v3739 = vld [vmem:[#allocation19 + $0x5c8] sm:$0xff]
    %v3740 = vld [vmem:[#allocation19 + $0x5d0] sm:$0xff]
    %v3741 = vld [vmem:[#allocation19 + $0x5d8] sm:$0xff]
    %v3742 = vld [vmem:[#allocation19 + $0x5e0] sm:$0xff]
    %v3743 = vld [vmem:[#allocation19 + $0x5e8] sm:$0xff]
    %v3744 = vld [vmem:[#allocation19 + $0x5f0] sm:$0xff]
    %v3745 = vld [vmem:[#allocation19 + $0x5f8] sm:$0xff]
    %v3746 = vld [vmem:[#allocation19 + $0x600] sm:$0xff]
    %v3747 = vld [vmem:[#allocation19 + $0x608] sm:$0xff]
    %v3748 = vld [vmem:[#allocation19 + $0x610] sm:$0xff]
    %v3749 = vld [vmem:[#allocation19 + $0x618] sm:$0xff]
    %v3750 = vld [vmem:[#allocation19 + $0x620] sm:$0xff]
    %v3751 = vld [vmem:[#allocation19 + $0x628] sm:$0xff]
    %v3752 = vld [vmem:[#allocation19 + $0x630] sm:$0xff]
    %v3753 = vld [vmem:[#allocation19 + $0x638] sm:$0xff]
    %v3754 = vld [vmem:[#allocation19 + $0x640] sm:$0xff]
    %v3755 = vld [vmem:[#allocation19 + $0x648] sm:$0xff]
    %v3756 = vld [vmem:[#allocation19 + $0x650] sm:$0xff]
    %v3757 = vld [vmem:[#allocation19 + $0x658] sm:$0xff]
    %v3758 = vld [vmem:[#allocation19 + $0x660] sm:$0xff]
    %v3759 = vld [vmem:[#allocation19 + $0x668] sm:$0xff]
    %v3760 = vld [vmem:[#allocation19 + $0x670] sm:$0xff]
    %v3761 = vld [vmem:[#allocation19 + $0x678] sm:$0xff]
    %v3762 = vld [vmem:[#allocation19 + $0x680] sm:$0xff]
    %v3763 = vld [vmem:[#allocation19 + $0x688] sm:$0xff]
    %v3764 = vld [vmem:[#allocation19 + $0x690] sm:$0xff]
    %v3765 = vld [vmem:[#allocation19 + $0x698] sm:$0xff]
    %v3766 = vld [vmem:[#allocation19 + $0x6a0] sm:$0xff]
    %v3767 = vld [vmem:[#allocation19 + $0x6a8] sm:$0xff]
    %v3768 = vld [vmem:[#allocation19 + $0x6b0] sm:$0xff]
    %v3769 = vld [vmem:[#allocation19 + $0x6b8] sm:$0xff]
    %v3770 = vld [vmem:[#allocation19 + $0x6c0] sm:$0xff]
    %v3771 = vld [vmem:[#allocation19 + $0x6c8] sm:$0xff]
    %v3772 = vld [vmem:[#allocation19 + $0x6d0] sm:$0xff]
    %v3773 = vld [vmem:[#allocation19 + $0x6d8] sm:$0xff]
    %v3774 = vld [vmem:[#allocation19 + $0x6e0] sm:$0xff]
    %v3775 = vld [vmem:[#allocation19 + $0x6e8] sm:$0xff]
    %v3776 = vld [vmem:[#allocation19 + $0x6f0] sm:$0xff]
    %v3777 = vld [vmem:[#allocation19 + $0x6f8] sm:$0xff]
    %v3778 = vld [vmem:[#allocation19 + $0x700] sm:$0xff]
    %v3779 = vld [vmem:[#allocation19 + $0x708] sm:$0xff]
    %v3780 = vld [vmem:[#allocation19 + $0x710] sm:$0xff]
    %v3781 = vld [vmem:[#allocation19 + $0x718] sm:$0xff]
    %v3782 = vld [vmem:[#allocation19 + $0x720] sm:$0xff]
    %v3783 = vld [vmem:[#allocation19 + $0x728] sm:$0xff]
    %v3784 = vld [vmem:[#allocation19 + $0x730] sm:$0xff]
    %v3785 = vld [vmem:[#allocation19 + $0x738] sm:$0xff]
    %v3786 = vld [vmem:[#allocation19 + $0x740] sm:$0xff]
    %v3787 = vld [vmem:[#allocation19 + $0x748] sm:$0xff]
    %v3788 = vld [vmem:[#allocation19 + $0x750] sm:$0xff]
    %v3789 = vld [vmem:[#allocation19 + $0x758] sm:$0xff]
    %v3790 = vld [vmem:[#allocation19 + $0x760] sm:$0xff]
    %v3791 = vld [vmem:[#allocation19 + $0x768] sm:$0xff]
    %v3792 = vld [vmem:[#allocation19 + $0x770] sm:$0xff]
    %v3793 = vld [vmem:[#allocation19 + $0x778] sm:$0xff]
    %v3794 = vld [vmem:[#allocation19 + $0x780] sm:$0xff]
    %v3795 = vld [vmem:[#allocation19 + $0x788] sm:$0xff]
    %v3796 = vld [vmem:[#allocation19 + $0x790] sm:$0xff]
    %v3797 = vld [vmem:[#allocation19 + $0x798] sm:$0xff]
    %v3798 = vld [vmem:[#allocation19 + $0x7a0] sm:$0xff]
    %v3799 = vld [vmem:[#allocation19 + $0x7a8] sm:$0xff]
    %v3800 = vld [vmem:[#allocation19 + $0x7b0] sm:$0xff]
    %v3801 = vld [vmem:[#allocation19 + $0x7b8] sm:$0xff]
    %v3802 = vld [vmem:[#allocation19 + $0x7c0] sm:$0xff]
    %v3803 = vld [vmem:[#allocation19 + $0x7c8] sm:$0xff]
    %v3804 = vld [vmem:[#allocation19 + $0x7d0] sm:$0xff]
    %v3805 = vld [vmem:[#allocation19 + $0x7d8] sm:$0xff]
    %v3806 = vld [vmem:[#allocation19 + $0x7e0] sm:$0xff]
    %v3807 = vld [vmem:[#allocation19 + $0x7e8] sm:$0xff]
    %v3808 = vld [vmem:[#allocation19 + $0x7f0] sm:$0xff]
    %v3809 = vld [vmem:[#allocation19 + $0x7f8] sm:$0xff]
    %v3810 = vld [vmem:[#allocation21] sm:$0xff]
    %v3811 = vld [vmem:[#allocation21 + $0x8] sm:$0xff]
    %v3812 = vld [vmem:[#allocation21 + $0x10] sm:$0xff]
    %v3813 = vld [vmem:[#allocation21 + $0x18] sm:$0xff]
    %v3814 = vld [vmem:[#allocation21 + $0x20] sm:$0xff]
    %v3815 = vld [vmem:[#allocation21 + $0x28] sm:$0xff]
    %v3816 = vld [vmem:[#allocation21 + $0x30] sm:$0xff]
    %v3817 = vld [vmem:[#allocation21 + $0x38] sm:$0xff]
    %v3818 = vld [vmem:[#allocation21 + $0x40] sm:$0xff]
    %v3819 = vld [vmem:[#allocation21 + $0x48] sm:$0xff]
    %v3820 = vld [vmem:[#allocation21 + $0x50] sm:$0xff]
    %v3821 = vld [vmem:[#allocation21 + $0x58] sm:$0xff]
    %v3822 = vld [vmem:[#allocation21 + $0x60] sm:$0xff]
    %v3823 = vld [vmem:[#allocation21 + $0x68] sm:$0xff]
    %v3824 = vld [vmem:[#allocation21 + $0x70] sm:$0xff]
    %v3825 = vld [vmem:[#allocation21 + $0x78] sm:$0xff]
    %v3826 = vld [vmem:[#allocation21 + $0x80] sm:$0xff]
    %v3827 = vld [vmem:[#allocation21 + $0x88] sm:$0xff]
    %v3828 = vld [vmem:[#allocation21 + $0x90] sm:$0xff]
    %v3829 = vld [vmem:[#allocation21 + $0x98] sm:$0xff]
    %v3830 = vld [vmem:[#allocation21 + $0xa0] sm:$0xff]
    %v3831 = vld [vmem:[#allocation21 + $0xa8] sm:$0xff]
    %v3832 = vld [vmem:[#allocation21 + $0xb0] sm:$0xff]
    %v3833 = vld [vmem:[#allocation21 + $0xb8] sm:$0xff]
    %v3834 = vld [vmem:[#allocation21 + $0xc0] sm:$0xff]
    %v3835 = vld [vmem:[#allocation21 + $0xc8] sm:$0xff]
    %v3836 = vld [vmem:[#allocation21 + $0xd0] sm:$0xff]
    %v3837 = vld [vmem:[#allocation21 + $0xd8] sm:$0xff]
    %v3838 = vld [vmem:[#allocation21 + $0xe0] sm:$0xff]
    %v3839 = vld [vmem:[#allocation21 + $0xe8] sm:$0xff]
    %v3840 = vld [vmem:[#allocation21 + $0xf0] sm:$0xff]
    %v3841 = vld [vmem:[#allocation21 + $0xf8] sm:$0xff]
    %v3842 = vld [vmem:[#allocation21 + $0x100] sm:$0xff]
    %v3843 = vld [vmem:[#allocation21 + $0x108] sm:$0xff]
    %v3844 = vld [vmem:[#allocation21 + $0x110] sm:$0xff]
    %v3845 = vld [vmem:[#allocation21 + $0x118] sm:$0xff]
    %v3846 = vld [vmem:[#allocation21 + $0x120] sm:$0xff]
    %v3847 = vld [vmem:[#allocation21 + $0x128] sm:$0xff]
    %v3848 = vld [vmem:[#allocation21 + $0x130] sm:$0xff]
    %v3849 = vld [vmem:[#allocation21 + $0x138] sm:$0xff]
    %v3850 = vld [vmem:[#allocation21 + $0x140] sm:$0xff]
    %v3851 = vld [vmem:[#allocation21 + $0x148] sm:$0xff]
    %v3852 = vld [vmem:[#allocation21 + $0x150] sm:$0xff]
    %v3853 = vld [vmem:[#allocation21 + $0x158] sm:$0xff]
    %v3854 = vld [vmem:[#allocation21 + $0x160] sm:$0xff]
    %v3855 = vld [vmem:[#allocation21 + $0x168] sm:$0xff]
    %v3856 = vld [vmem:[#allocation21 + $0x170] sm:$0xff]
    %v3857 = vld [vmem:[#allocation21 + $0x178] sm:$0xff]
    %v3858 = vld [vmem:[#allocation21 + $0x180] sm:$0xff]
    %v3859 = vld [vmem:[#allocation21 + $0x188] sm:$0xff]
    %v3860 = vld [vmem:[#allocation21 + $0x190] sm:$0xff]
    %v3861 = vld [vmem:[#allocation21 + $0x198] sm:$0xff]
    %v3862 = vld [vmem:[#allocation21 + $0x1a0] sm:$0xff]
    %v3863 = vld [vmem:[#allocation21 + $0x1a8] sm:$0xff]
    %v3864 = vld [vmem:[#allocation21 + $0x1b0] sm:$0xff]
    %v3865 = vld [vmem:[#allocation21 + $0x1b8] sm:$0xff]
    %v3866 = vld [vmem:[#allocation21 + $0x1c0] sm:$0xff]
    %v3867 = vld [vmem:[#allocation21 + $0x1c8] sm:$0xff]
    %v3868 = vld [vmem:[#allocation21 + $0x1d0] sm:$0xff]
    %v3869 = vld [vmem:[#allocation21 + $0x1d8] sm:$0xff]
    %v3870 = vld [vmem:[#allocation21 + $0x1e0] sm:$0xff]
    %v3871 = vld [vmem:[#allocation21 + $0x1e8] sm:$0xff]
    %v3872 = vld [vmem:[#allocation21 + $0x1f0] sm:$0xff]
    %v3873 = vld [vmem:[#allocation21 + $0x1f8] sm:$0xff]
    %v3874 = vld [vmem:[#allocation21 + $0x200] sm:$0xff]
    %v3875 = vld [vmem:[#allocation21 + $0x208] sm:$0xff]
    %v3876 = vld [vmem:[#allocation21 + $0x210] sm:$0xff]
    %v3877 = vld [vmem:[#allocation21 + $0x218] sm:$0xff]
    %v3878 = vld [vmem:[#allocation21 + $0x220] sm:$0xff]
    %v3879 = vld [vmem:[#allocation21 + $0x228] sm:$0xff]
    %v3880 = vld [vmem:[#allocation21 + $0x230] sm:$0xff]
    %v3881 = vld [vmem:[#allocation21 + $0x238] sm:$0xff]
    %v3882 = vld [vmem:[#allocation21 + $0x240] sm:$0xff]
    %v3883 = vld [vmem:[#allocation21 + $0x248] sm:$0xff]
    %v3884 = vld [vmem:[#allocation21 + $0x250] sm:$0xff]
    %v3885 = vld [vmem:[#allocation21 + $0x258] sm:$0xff]
    %v3886 = vld [vmem:[#allocation21 + $0x260] sm:$0xff]
    %v3887 = vld [vmem:[#allocation21 + $0x268] sm:$0xff]
    %v3888 = vld [vmem:[#allocation21 + $0x270] sm:$0xff]
    %v3889 = vld [vmem:[#allocation21 + $0x278] sm:$0xff]
    %v3890 = vld [vmem:[#allocation21 + $0x280] sm:$0xff]
    %v3891 = vld [vmem:[#allocation21 + $0x288] sm:$0xff]
    %v3892 = vld [vmem:[#allocation21 + $0x290] sm:$0xff]
    %v3893 = vld [vmem:[#allocation21 + $0x298] sm:$0xff]
    %v3894 = vld [vmem:[#allocation21 + $0x2a0] sm:$0xff]
    %v3895 = vld [vmem:[#allocation21 + $0x2a8] sm:$0xff]
    %v3896 = vld [vmem:[#allocation21 + $0x2b0] sm:$0xff]
    %v3897 = vld [vmem:[#allocation21 + $0x2b8] sm:$0xff]
    %v3898 = vld [vmem:[#allocation21 + $0x2c0] sm:$0xff]
    %v3899 = vld [vmem:[#allocation21 + $0x2c8] sm:$0xff]
    %v3900 = vld [vmem:[#allocation21 + $0x2d0] sm:$0xff]
    %v3901 = vld [vmem:[#allocation21 + $0x2d8] sm:$0xff]
    %v3902 = vld [vmem:[#allocation21 + $0x2e0] sm:$0xff]
    %v3903 = vld [vmem:[#allocation21 + $0x2e8] sm:$0xff]
    %v3904 = vld [vmem:[#allocation21 + $0x2f0] sm:$0xff]
    %v3905 = vld [vmem:[#allocation21 + $0x2f8] sm:$0xff]
    %v3906 = vld [vmem:[#allocation21 + $0x300] sm:$0xff]
    %v3907 = vld [vmem:[#allocation21 + $0x308] sm:$0xff]
    %v3908 = vld [vmem:[#allocation21 + $0x310] sm:$0xff]
    %v3909 = vld [vmem:[#allocation21 + $0x318] sm:$0xff]
    %v3910 = vld [vmem:[#allocation21 + $0x320] sm:$0xff]
    %v3911 = vld [vmem:[#allocation21 + $0x328] sm:$0xff]
    %v3912 = vld [vmem:[#allocation21 + $0x330] sm:$0xff]
    %v3913 = vld [vmem:[#allocation21 + $0x338] sm:$0xff]
    %v3914 = vld [vmem:[#allocation21 + $0x340] sm:$0xff]
    %v3915 = vld [vmem:[#allocation21 + $0x348] sm:$0xff]
    %v3916 = vld [vmem:[#allocation21 + $0x350] sm:$0xff]
    %v3917 = vld [vmem:[#allocation21 + $0x358] sm:$0xff]
    %v3918 = vld [vmem:[#allocation21 + $0x360] sm:$0xff]
    %v3919 = vld [vmem:[#allocation21 + $0x368] sm:$0xff]
    %v3920 = vld [vmem:[#allocation21 + $0x370] sm:$0xff]
    %v3921 = vld [vmem:[#allocation21 + $0x378] sm:$0xff]
    %v3922 = vld [vmem:[#allocation21 + $0x380] sm:$0xff]
    %v3923 = vld [vmem:[#allocation21 + $0x388] sm:$0xff]
    %v3924 = vld [vmem:[#allocation21 + $0x390] sm:$0xff]
    %v3925 = vld [vmem:[#allocation21 + $0x398] sm:$0xff]
    %v3926 = vld [vmem:[#allocation21 + $0x3a0] sm:$0xff]
    %v3927 = vld [vmem:[#allocation21 + $0x3a8] sm:$0xff]
    %v3928 = vld [vmem:[#allocation21 + $0x3b0] sm:$0xff]
    %v3929 = vld [vmem:[#allocation21 + $0x3b8] sm:$0xff]
    %v3930 = vld [vmem:[#allocation21 + $0x3c0] sm:$0xff]
    %v3931 = vld [vmem:[#allocation21 + $0x3c8] sm:$0xff]
    %v3932 = vld [vmem:[#allocation21 + $0x3d0] sm:$0xff]
    %v3933 = vld [vmem:[#allocation21 + $0x3d8] sm:$0xff]
    %v3934 = vld [vmem:[#allocation21 + $0x3e0] sm:$0xff]
    %v3935 = vld [vmem:[#allocation21 + $0x3e8] sm:$0xff]
    %v3936 = vld [vmem:[#allocation21 + $0x3f0] sm:$0xff]
    %v3937 = vld [vmem:[#allocation21 + $0x3f8] sm:$0xff]
    %v3938 = vld [vmem:[#allocation21 + $0x400] sm:$0xff]
    %v3939 = vld [vmem:[#allocation21 + $0x408] sm:$0xff]
    %v3940 = vld [vmem:[#allocation21 + $0x410] sm:$0xff]
    %v3941 = vld [vmem:[#allocation21 + $0x418] sm:$0xff]
    %v3942 = vld [vmem:[#allocation21 + $0x420] sm:$0xff]
    %v3943 = vld [vmem:[#allocation21 + $0x428] sm:$0xff]
    %v3944 = vld [vmem:[#allocation21 + $0x430] sm:$0xff]
    %v3945 = vld [vmem:[#allocation21 + $0x438] sm:$0xff]
    %v3946 = vld [vmem:[#allocation21 + $0x440] sm:$0xff]
    %v3947 = vld [vmem:[#allocation21 + $0x448] sm:$0xff]
    %v3948 = vld [vmem:[#allocation21 + $0x450] sm:$0xff]
    %v3949 = vld [vmem:[#allocation21 + $0x458] sm:$0xff]
    %v3950 = vld [vmem:[#allocation21 + $0x460] sm:$0xff]
    %v3951 = vld [vmem:[#allocation21 + $0x468] sm:$0xff]
    %v3952 = vld [vmem:[#allocation21 + $0x470] sm:$0xff]
    %v3953 = vld [vmem:[#allocation21 + $0x478] sm:$0xff]
    %v3954 = vld [vmem:[#allocation21 + $0x480] sm:$0xff]
    %v3955 = vld [vmem:[#allocation21 + $0x488] sm:$0xff]
    %v3956 = vld [vmem:[#allocation21 + $0x490] sm:$0xff]
    %v3957 = vld [vmem:[#allocation21 + $0x498] sm:$0xff]
    %v3958 = vld [vmem:[#allocation21 + $0x4a0] sm:$0xff]
    %v3959 = vld [vmem:[#allocation21 + $0x4a8] sm:$0xff]
    %v3960 = vld [vmem:[#allocation21 + $0x4b0] sm:$0xff]
    %v3961 = vld [vmem:[#allocation21 + $0x4b8] sm:$0xff]
    %v3962 = vld [vmem:[#allocation21 + $0x4c0] sm:$0xff]
    %v3963 = vld [vmem:[#allocation21 + $0x4c8] sm:$0xff]
    %v3964 = vld [vmem:[#allocation21 + $0x4d0] sm:$0xff]
    %v3965 = vld [vmem:[#allocation21 + $0x4d8] sm:$0xff]
    %v3966 = vld [vmem:[#allocation21 + $0x4e0] sm:$0xff]
    %v3967 = vld [vmem:[#allocation21 + $0x4e8] sm:$0xff]
    %v3968 = vld [vmem:[#allocation21 + $0x4f0] sm:$0xff]
    %v3969 = vld [vmem:[#allocation21 + $0x4f8] sm:$0xff]
    %v3970 = vld [vmem:[#allocation21 + $0x500] sm:$0xff]
    %v3971 = vld [vmem:[#allocation21 + $0x508] sm:$0xff]
    %v3972 = vld [vmem:[#allocation21 + $0x510] sm:$0xff]
    %v3973 = vld [vmem:[#allocation21 + $0x518] sm:$0xff]
    %v3974 = vld [vmem:[#allocation21 + $0x520] sm:$0xff]
    %v3975 = vld [vmem:[#allocation21 + $0x528] sm:$0xff]
    %v3976 = vld [vmem:[#allocation21 + $0x530] sm:$0xff]
    %v3977 = vld [vmem:[#allocation21 + $0x538] sm:$0xff]
    %v3978 = vld [vmem:[#allocation21 + $0x540] sm:$0xff]
    %v3979 = vld [vmem:[#allocation21 + $0x548] sm:$0xff]
    %v3980 = vld [vmem:[#allocation21 + $0x550] sm:$0xff]
    %v3981 = vld [vmem:[#allocation21 + $0x558] sm:$0xff]
    %v3982 = vld [vmem:[#allocation21 + $0x560] sm:$0xff]
    %v3983 = vld [vmem:[#allocation21 + $0x568] sm:$0xff]
    %v3984 = vld [vmem:[#allocation21 + $0x570] sm:$0xff]
    %v3985 = vld [vmem:[#allocation21 + $0x578] sm:$0xff]
    %v3986 = vld [vmem:[#allocation21 + $0x580] sm:$0xff]
    %v3987 = vld [vmem:[#allocation21 + $0x588] sm:$0xff]
    %v3988 = vld [vmem:[#allocation21 + $0x590] sm:$0xff]
    %v3989 = vld [vmem:[#allocation21 + $0x598] sm:$0xff]
    %v3990 = vld [vmem:[#allocation21 + $0x5a0] sm:$0xff]
    %v3991 = vld [vmem:[#allocation21 + $0x5a8] sm:$0xff]
    %v3992 = vld [vmem:[#allocation21 + $0x5b0] sm:$0xff]
    %v3993 = vld [vmem:[#allocation21 + $0x5b8] sm:$0xff]
    %v3994 = vld [vmem:[#allocation21 + $0x5c0] sm:$0xff]
    %v3995 = vld [vmem:[#allocation21 + $0x5c8] sm:$0xff]
    %v3996 = vld [vmem:[#allocation21 + $0x5d0] sm:$0xff]
    %v3997 = vld [vmem:[#allocation21 + $0x5d8] sm:$0xff]
    %v3998 = vld [vmem:[#allocation21 + $0x5e0] sm:$0xff]
    %v3999 = vld [vmem:[#allocation21 + $0x5e8] sm:$0xff]
    %v4000 = vld [vmem:[#allocation21 + $0x5f0] sm:$0xff]
    %v4001 = vld [vmem:[#allocation21 + $0x5f8] sm:$0xff]
    %v4002 = vld [vmem:[#allocation21 + $0x600] sm:$0xff]
    %v4003 = vld [vmem:[#allocation21 + $0x608] sm:$0xff]
    %v4004 = vld [vmem:[#allocation21 + $0x610] sm:$0xff]
    %v4005 = vld [vmem:[#allocation21 + $0x618] sm:$0xff]
    %v4006 = vld [vmem:[#allocation21 + $0x620] sm:$0xff]
    %v4007 = vld [vmem:[#allocation21 + $0x628] sm:$0xff]
    %v4008 = vld [vmem:[#allocation21 + $0x630] sm:$0xff]
    %v4009 = vld [vmem:[#allocation21 + $0x638] sm:$0xff]
    %v4010 = vld [vmem:[#allocation21 + $0x640] sm:$0xff]
    %v4011 = vld [vmem:[#allocation21 + $0x648] sm:$0xff]
    %v4012 = vld [vmem:[#allocation21 + $0x650] sm:$0xff]
    %v4013 = vld [vmem:[#allocation21 + $0x658] sm:$0xff]
    %v4014 = vld [vmem:[#allocation21 + $0x660] sm:$0xff]
    %v4015 = vld [vmem:[#allocation21 + $0x668] sm:$0xff]
    %v4016 = vld [vmem:[#allocation21 + $0x670] sm:$0xff]
    %v4017 = vld [vmem:[#allocation21 + $0x678] sm:$0xff]
    %v4018 = vld [vmem:[#allocation21 + $0x680] sm:$0xff]
    %v4019 = vld [vmem:[#allocation21 + $0x688] sm:$0xff]
    %v4020 = vld [vmem:[#allocation21 + $0x690] sm:$0xff]
    %v4021 = vld [vmem:[#allocation21 + $0x698] sm:$0xff]
    %v4022 = vld [vmem:[#allocation21 + $0x6a0] sm:$0xff]
    %v4023 = vld [vmem:[#allocation21 + $0x6a8] sm:$0xff]
    %v4024 = vld [vmem:[#allocation21 + $0x6b0] sm:$0xff]
    %v4025 = vld [vmem:[#allocation21 + $0x6b8] sm:$0xff]
    %v4026 = vld [vmem:[#allocation21 + $0x6c0] sm:$0xff]
    %v4027 = vld [vmem:[#allocation21 + $0x6c8] sm:$0xff]
    %v4028 = vld [vmem:[#allocation21 + $0x6d0] sm:$0xff]
    %v4029 = vld [vmem:[#allocation21 + $0x6d8] sm:$0xff]
    %v4030 = vld [vmem:[#allocation21 + $0x6e0] sm:$0xff]
    %v4031 = vld [vmem:[#allocation21 + $0x6e8] sm:$0xff]
    %v4032 = vld [vmem:[#allocation21 + $0x6f0] sm:$0xff]
    %v4033 = vld [vmem:[#allocation21 + $0x6f8] sm:$0xff]
    %v4034 = vld [vmem:[#allocation21 + $0x700] sm:$0xff]
    %v4035 = vld [vmem:[#allocation21 + $0x708] sm:$0xff]
    %v4036 = vld [vmem:[#allocation21 + $0x710] sm:$0xff]
    %v4037 = vld [vmem:[#allocation21 + $0x718] sm:$0xff]
    %v4038 = vld [vmem:[#allocation21 + $0x720] sm:$0xff]
    %v4039 = vld [vmem:[#allocation21 + $0x728] sm:$0xff]
    %v4040 = vld [vmem:[#allocation21 + $0x730] sm:$0xff]
    %v4041 = vld [vmem:[#allocation21 + $0x738] sm:$0xff]
    %v4042 = vld [vmem:[#allocation21 + $0x740] sm:$0xff]
    %v4043 = vld [vmem:[#allocation21 + $0x748] sm:$0xff]
    %v4044 = vld [vmem:[#allocation21 + $0x750] sm:$0xff]
    %v4045 = vld [vmem:[#allocation21 + $0x758] sm:$0xff]
    %v4046 = vld [vmem:[#allocation21 + $0x760] sm:$0xff]
    %v4047 = vld [vmem:[#allocation21 + $0x768] sm:$0xff]
    %v4048 = vld [vmem:[#allocation21 + $0x770] sm:$0xff]
    %v4049 = vld [vmem:[#allocation21 + $0x778] sm:$0xff]
    %v4050 = vld [vmem:[#allocation21 + $0x780] sm:$0xff]
    %v4051 = vld [vmem:[#allocation21 + $0x788] sm:$0xff]
    %v4052 = vld [vmem:[#allocation21 + $0x790] sm:$0xff]
    %v4053 = vld [vmem:[#allocation21 + $0x798] sm:$0xff]
    %v4054 = vld [vmem:[#allocation21 + $0x7a0] sm:$0xff]
    %v4055 = vld [vmem:[#allocation21 + $0x7a8] sm:$0xff]
    %v4056 = vld [vmem:[#allocation21 + $0x7b0] sm:$0xff]
    %v4057 = vld [vmem:[#allocation21 + $0x7b8] sm:$0xff]
    %v4058 = vld [vmem:[#allocation21 + $0x7c0] sm:$0xff]
    %v4059 = vld [vmem:[#allocation21 + $0x7c8] sm:$0xff]
    %v4060 = vld [vmem:[#allocation21 + $0x7d0] sm:$0xff]
    %v4061 = vld [vmem:[#allocation21 + $0x7d8] sm:$0xff]
    %v4062 = vld [vmem:[#allocation21 + $0x7e0] sm:$0xff]
    %v4063 = vld [vmem:[#allocation21 + $0x7e8] sm:$0xff]
    %v4064 = vld [vmem:[#allocation21 + $0x7f0] sm:$0xff]
    %v4065 = vld [vmem:[#allocation21 + $0x7f8] sm:$0xff]
    %v4322 = vunpack.c.l.b16 %v3810
    %v4323 = vunpack.c.h.b16 %v3810
    %v4324 = vunpack.c.l.b16 %v3811
    %v4325 = vunpack.c.h.b16 %v3811
    %v4326 = vunpack.c.l.b16 %v3812
    %v4327 = vunpack.c.h.b16 %v3812
    %v4328 = vunpack.c.l.b16 %v3813
    %v4329 = vunpack.c.h.b16 %v3813
    %v4330 = vunpack.c.l.b16 %v3814
    %v4331 = vunpack.c.h.b16 %v3814
    %v4332 = vunpack.c.l.b16 %v3815
    %v4333 = vunpack.c.h.b16 %v3815
    %v4334 = vunpack.c.l.b16 %v3816
    %v4335 = vunpack.c.h.b16 %v3816
    %v4336 = vunpack.c.l.b16 %v3817
    %v4337 = vunpack.c.h.b16 %v3817
    %v4338 = vunpack.c.l.b16 %v3818
    %v4339 = vunpack.c.h.b16 %v3818
    %v4340 = vunpack.c.l.b16 %v3819
    %v4341 = vunpack.c.h.b16 %v3819
    %v4342 = vunpack.c.l.b16 %v3820
    %v4343 = vunpack.c.h.b16 %v3820
    %v4344 = vunpack.c.l.b16 %v3821
    %v4345 = vunpack.c.h.b16 %v3821
    %v4346 = vunpack.c.l.b16 %v3822
    %v4347 = vunpack.c.h.b16 %v3822
    %v4348 = vunpack.c.l.b16 %v3823
    %v4349 = vunpack.c.h.b16 %v3823
    %v4350 = vunpack.c.l.b16 %v3824
    %v4351 = vunpack.c.h.b16 %v3824
    %v4352 = vunpack.c.l.b16 %v3825
    %v4353 = vunpack.c.h.b16 %v3825
    %v4354 = vunpack.c.l.b16 %v3826
    %v4355 = vunpack.c.h.b16 %v3826
    %v4356 = vunpack.c.l.b16 %v3827
    %v4357 = vunpack.c.h.b16 %v3827
    %v4358 = vunpack.c.l.b16 %v3828
    %v4359 = vunpack.c.h.b16 %v3828
    %v4360 = vunpack.c.l.b16 %v3829
    %v4361 = vunpack.c.h.b16 %v3829
    %v4362 = vunpack.c.l.b16 %v3830
    %v4363 = vunpack.c.h.b16 %v3830
    %v4364 = vunpack.c.l.b16 %v3831
    %v4365 = vunpack.c.h.b16 %v3831
    %v4366 = vunpack.c.l.b16 %v3832
    %v4367 = vunpack.c.h.b16 %v3832
    %v4368 = vunpack.c.l.b16 %v3833
    %v4369 = vunpack.c.h.b16 %v3833
    %v4370 = vunpack.c.l.b16 %v3834
    %v4371 = vunpack.c.h.b16 %v3834
    %v4372 = vunpack.c.l.b16 %v3835
    %v4373 = vunpack.c.h.b16 %v3835
    %v4374 = vunpack.c.l.b16 %v3836
    %v4375 = vunpack.c.h.b16 %v3836
    %v4376 = vunpack.c.l.b16 %v3837
    %v4377 = vunpack.c.h.b16 %v3837
    %v4378 = vunpack.c.l.b16 %v3838
    %v4379 = vunpack.c.h.b16 %v3838
    %v4380 = vunpack.c.l.b16 %v3839
    %v4381 = vunpack.c.h.b16 %v3839
    %v4382 = vunpack.c.l.b16 %v3840
    %v4383 = vunpack.c.h.b16 %v3840
    %v4384 = vunpack.c.l.b16 %v3841
    %v4385 = vunpack.c.h.b16 %v3841
    %v4386 = vunpack.c.l.b16 %v3842
    %v4387 = vunpack.c.h.b16 %v3842
    %v4388 = vunpack.c.l.b16 %v3843
    %v4389 = vunpack.c.h.b16 %v3843
    %v4390 = vunpack.c.l.b16 %v3844
    %v4391 = vunpack.c.h.b16 %v3844
    %v4392 = vunpack.c.l.b16 %v3845
    %v4393 = vunpack.c.h.b16 %v3845
    %v4394 = vunpack.c.l.b16 %v3846
    %v4395 = vunpack.c.h.b16 %v3846
    %v4396 = vunpack.c.l.b16 %v3847
    %v4397 = vunpack.c.h.b16 %v3847
    %v4398 = vunpack.c.l.b16 %v3848
    %v4399 = vunpack.c.h.b16 %v3848
    %v4400 = vunpack.c.l.b16 %v3849
    %v4401 = vunpack.c.h.b16 %v3849
    %v4402 = vunpack.c.l.b16 %v3850
    %v4403 = vunpack.c.h.b16 %v3850
    %v4404 = vunpack.c.l.b16 %v3851
    %v4405 = vunpack.c.h.b16 %v3851
    %v4406 = vunpack.c.l.b16 %v3852
    %v4407 = vunpack.c.h.b16 %v3852
    %v4408 = vunpack.c.l.b16 %v3853
    %v4409 = vunpack.c.h.b16 %v3853
    %v4410 = vunpack.c.l.b16 %v3854
    %v4411 = vunpack.c.h.b16 %v3854
    %v4412 = vunpack.c.l.b16 %v3855
    %v4413 = vunpack.c.h.b16 %v3855
    %v4414 = vunpack.c.l.b16 %v3856
    %v4415 = vunpack.c.h.b16 %v3856
    %v4416 = vunpack.c.l.b16 %v3857
    %v4417 = vunpack.c.h.b16 %v3857
    %v4418 = vunpack.c.l.b16 %v3858
    %v4419 = vunpack.c.h.b16 %v3858
    %v4420 = vunpack.c.l.b16 %v3859
    %v4421 = vunpack.c.h.b16 %v3859
    %v4422 = vunpack.c.l.b16 %v3860
    %v4423 = vunpack.c.h.b16 %v3860
    %v4424 = vunpack.c.l.b16 %v3861
    %v4425 = vunpack.c.h.b16 %v3861
    %v4426 = vunpack.c.l.b16 %v3862
    %v4427 = vunpack.c.h.b16 %v3862
    %v4428 = vunpack.c.l.b16 %v3863
    %v4429 = vunpack.c.h.b16 %v3863
    %v4430 = vunpack.c.l.b16 %v3864
    %v4431 = vunpack.c.h.b16 %v3864
    %v4432 = vunpack.c.l.b16 %v3865
    %v4433 = vunpack.c.h.b16 %v3865
    %v4434 = vunpack.c.l.b16 %v3866
    %v4435 = vunpack.c.h.b16 %v3866
    %v4436 = vunpack.c.l.b16 %v3867
    %v4437 = vunpack.c.h.b16 %v3867
    %v4438 = vunpack.c.l.b16 %v3868
    %v4439 = vunpack.c.h.b16 %v3868
    %v4440 = vunpack.c.l.b16 %v3869
    %v4441 = vunpack.c.h.b16 %v3869
    %v4442 = vunpack.c.l.b16 %v3870
    %v4443 = vunpack.c.h.b16 %v3870
    %v4444 = vunpack.c.l.b16 %v3871
    %v4445 = vunpack.c.h.b16 %v3871
    %v4446 = vunpack.c.l.b16 %v3872
    %v4447 = vunpack.c.h.b16 %v3872
    %v4448 = vunpack.c.l.b16 %v3873
    %v4449 = vunpack.c.h.b16 %v3873
    %v4450 = vunpack.c.l.b16 %v3874
    %v4451 = vunpack.c.h.b16 %v3874
    %v4452 = vunpack.c.l.b16 %v3875
    %v4453 = vunpack.c.h.b16 %v3875
    %v4454 = vunpack.c.l.b16 %v3876
    %v4455 = vunpack.c.h.b16 %v3876
    %v4456 = vunpack.c.l.b16 %v3877
    %v4457 = vunpack.c.h.b16 %v3877
    %v4458 = vunpack.c.l.b16 %v3878
    %v4459 = vunpack.c.h.b16 %v3878
    %v4460 = vunpack.c.l.b16 %v3879
    %v4461 = vunpack.c.h.b16 %v3879
    %v4462 = vunpack.c.l.b16 %v3880
    %v4463 = vunpack.c.h.b16 %v3880
    %v4464 = vunpack.c.l.b16 %v3881
    %v4465 = vunpack.c.h.b16 %v3881
    %v4466 = vunpack.c.l.b16 %v3882
    %v4467 = vunpack.c.h.b16 %v3882
    %v4468 = vunpack.c.l.b16 %v3883
    %v4469 = vunpack.c.h.b16 %v3883
    %v4470 = vunpack.c.l.b16 %v3884
    %v4471 = vunpack.c.h.b16 %v3884
    %v4472 = vunpack.c.l.b16 %v3885
    %v4473 = vunpack.c.h.b16 %v3885
    %v4474 = vunpack.c.l.b16 %v3886
    %v4475 = vunpack.c.h.b16 %v3886
    %v4476 = vunpack.c.l.b16 %v3887
    %v4477 = vunpack.c.h.b16 %v3887
    %v4478 = vunpack.c.l.b16 %v3888
    %v4479 = vunpack.c.h.b16 %v3888
    %v4480 = vunpack.c.l.b16 %v3889
    %v4481 = vunpack.c.h.b16 %v3889
    %v4482 = vunpack.c.l.b16 %v3890
    %v4483 = vunpack.c.h.b16 %v3890
    %v4484 = vunpack.c.l.b16 %v3891
    %v4485 = vunpack.c.h.b16 %v3891
    %v4486 = vunpack.c.l.b16 %v3892
    %v4487 = vunpack.c.h.b16 %v3892
    %v4488 = vunpack.c.l.b16 %v3893
    %v4489 = vunpack.c.h.b16 %v3893
    %v4490 = vunpack.c.l.b16 %v3894
    %v4491 = vunpack.c.h.b16 %v3894
    %v4492 = vunpack.c.l.b16 %v3895
    %v4493 = vunpack.c.h.b16 %v3895
    %v4494 = vunpack.c.l.b16 %v3896
    %v4495 = vunpack.c.h.b16 %v3896
    %v4496 = vunpack.c.l.b16 %v3897
    %v4497 = vunpack.c.h.b16 %v3897
    %v4498 = vunpack.c.l.b16 %v3898
    %v4499 = vunpack.c.h.b16 %v3898
    %v4500 = vunpack.c.l.b16 %v3899
    %v4501 = vunpack.c.h.b16 %v3899
    %v4502 = vunpack.c.l.b16 %v3900
    %v4503 = vunpack.c.h.b16 %v3900
    %v4504 = vunpack.c.l.b16 %v3901
    %v4505 = vunpack.c.h.b16 %v3901
    %v4506 = vunpack.c.l.b16 %v3902
    %v4507 = vunpack.c.h.b16 %v3902
    %v4508 = vunpack.c.l.b16 %v3903
    %v4509 = vunpack.c.h.b16 %v3903
    %v4510 = vunpack.c.l.b16 %v3904
    %v4511 = vunpack.c.h.b16 %v3904
    %v4512 = vunpack.c.l.b16 %v3905
    %v4513 = vunpack.c.h.b16 %v3905
    %v4514 = vunpack.c.l.b16 %v3906
    %v4515 = vunpack.c.h.b16 %v3906
    %v4516 = vunpack.c.l.b16 %v3907
    %v4517 = vunpack.c.h.b16 %v3907
    %v4518 = vunpack.c.l.b16 %v3908
    %v4519 = vunpack.c.h.b16 %v3908
    %v4520 = vunpack.c.l.b16 %v3909
    %v4521 = vunpack.c.h.b16 %v3909
    %v4522 = vunpack.c.l.b16 %v3910
    %v4523 = vunpack.c.h.b16 %v3910
    %v4524 = vunpack.c.l.b16 %v3911
    %v4525 = vunpack.c.h.b16 %v3911
    %v4526 = vunpack.c.l.b16 %v3912
    %v4527 = vunpack.c.h.b16 %v3912
    %v4528 = vunpack.c.l.b16 %v3913
    %v4529 = vunpack.c.h.b16 %v3913
    %v4530 = vunpack.c.l.b16 %v3914
    %v4531 = vunpack.c.h.b16 %v3914
    %v4532 = vunpack.c.l.b16 %v3915
    %v4533 = vunpack.c.h.b16 %v3915
    %v4534 = vunpack.c.l.b16 %v3916
    %v4535 = vunpack.c.h.b16 %v3916
    %v4536 = vunpack.c.l.b16 %v3917
    %v4537 = vunpack.c.h.b16 %v3917
    %v4538 = vunpack.c.l.b16 %v3918
    %v4539 = vunpack.c.h.b16 %v3918
    %v4540 = vunpack.c.l.b16 %v3919
    %v4541 = vunpack.c.h.b16 %v3919
    %v4542 = vunpack.c.l.b16 %v3920
    %v4543 = vunpack.c.h.b16 %v3920
    %v4544 = vunpack.c.l.b16 %v3921
    %v4545 = vunpack.c.h.b16 %v3921
    %v4546 = vunpack.c.l.b16 %v3922
    %v4547 = vunpack.c.h.b16 %v3922
    %v4548 = vunpack.c.l.b16 %v3923
    %v4549 = vunpack.c.h.b16 %v3923
    %v4550 = vunpack.c.l.b16 %v3924
    %v4551 = vunpack.c.h.b16 %v3924
    %v4552 = vunpack.c.l.b16 %v3925
    %v4553 = vunpack.c.h.b16 %v3925
    %v4554 = vunpack.c.l.b16 %v3926
    %v4555 = vunpack.c.h.b16 %v3926
    %v4556 = vunpack.c.l.b16 %v3927
    %v4557 = vunpack.c.h.b16 %v3927
    %v4558 = vunpack.c.l.b16 %v3928
    %v4559 = vunpack.c.h.b16 %v3928
    %v4560 = vunpack.c.l.b16 %v3929
    %v4561 = vunpack.c.h.b16 %v3929
    %v4562 = vunpack.c.l.b16 %v3930
    %v4563 = vunpack.c.h.b16 %v3930
    %v4564 = vunpack.c.l.b16 %v3931
    %v4565 = vunpack.c.h.b16 %v3931
    %v4566 = vunpack.c.l.b16 %v3932
    %v4567 = vunpack.c.h.b16 %v3932
    %v4568 = vunpack.c.l.b16 %v3933
    %v4569 = vunpack.c.h.b16 %v3933
    %v4570 = vunpack.c.l.b16 %v3934
    %v4571 = vunpack.c.h.b16 %v3934
    %v4572 = vunpack.c.l.b16 %v3935
    %v4573 = vunpack.c.h.b16 %v3935
    %v4574 = vunpack.c.l.b16 %v3936
    %v4575 = vunpack.c.h.b16 %v3936
    %v4576 = vunpack.c.l.b16 %v3937
    %v4577 = vunpack.c.h.b16 %v3937
    %v4578 = vunpack.c.l.b16 %v3938
    %v4579 = vunpack.c.h.b16 %v3938
    %v4580 = vunpack.c.l.b16 %v3939
    %v4581 = vunpack.c.h.b16 %v3939
    %v4582 = vunpack.c.l.b16 %v3940
    %v4583 = vunpack.c.h.b16 %v3940
    %v4584 = vunpack.c.l.b16 %v3941
    %v4585 = vunpack.c.h.b16 %v3941
    %v4586 = vunpack.c.l.b16 %v3942
    %v4587 = vunpack.c.h.b16 %v3942
    %v4588 = vunpack.c.l.b16 %v3943
    %v4589 = vunpack.c.h.b16 %v3943
    %v4590 = vunpack.c.l.b16 %v3944
    %v4591 = vunpack.c.h.b16 %v3944
    %v4592 = vunpack.c.l.b16 %v3945
    %v4593 = vunpack.c.h.b16 %v3945
    %v4594 = vunpack.c.l.b16 %v3946
    %v4595 = vunpack.c.h.b16 %v3946
    %v4596 = vunpack.c.l.b16 %v3947
    %v4597 = vunpack.c.h.b16 %v3947
    %v4598 = vunpack.c.l.b16 %v3948
    %v4599 = vunpack.c.h.b16 %v3948
    %v4600 = vunpack.c.l.b16 %v3949
    %v4601 = vunpack.c.h.b16 %v3949
    %v4602 = vunpack.c.l.b16 %v3950
    %v4603 = vunpack.c.h.b16 %v3950
    %v4604 = vunpack.c.l.b16 %v3951
    %v4605 = vunpack.c.h.b16 %v3951
    %v4606 = vunpack.c.l.b16 %v3952
    %v4607 = vunpack.c.h.b16 %v3952
    %v4608 = vunpack.c.l.b16 %v3953
    %v4609 = vunpack.c.h.b16 %v3953
    %v4610 = vunpack.c.l.b16 %v3954
    %v4611 = vunpack.c.h.b16 %v3954
    %v4612 = vunpack.c.l.b16 %v3955
    %v4613 = vunpack.c.h.b16 %v3955
    %v4614 = vunpack.c.l.b16 %v3956
    %v4615 = vunpack.c.h.b16 %v3956
    %v4616 = vunpack.c.l.b16 %v3957
    %v4617 = vunpack.c.h.b16 %v3957
    %v4618 = vunpack.c.l.b16 %v3958
    %v4619 = vunpack.c.h.b16 %v3958
    %v4620 = vunpack.c.l.b16 %v3959
    %v4621 = vunpack.c.h.b16 %v3959
    %v4622 = vunpack.c.l.b16 %v3960
    %v4623 = vunpack.c.h.b16 %v3960
    %v4624 = vunpack.c.l.b16 %v3961
    %v4625 = vunpack.c.h.b16 %v3961
    %v4626 = vunpack.c.l.b16 %v3962
    %v4627 = vunpack.c.h.b16 %v3962
    %v4628 = vunpack.c.l.b16 %v3963
    %v4629 = vunpack.c.h.b16 %v3963
    %v4630 = vunpack.c.l.b16 %v3964
    %v4631 = vunpack.c.h.b16 %v3964
    %v4632 = vunpack.c.l.b16 %v3965
    %v4633 = vunpack.c.h.b16 %v3965
    %v4634 = vunpack.c.l.b16 %v3966
    %v4635 = vunpack.c.h.b16 %v3966
    %v4636 = vunpack.c.l.b16 %v3967
    %v4637 = vunpack.c.h.b16 %v3967
    %v4638 = vunpack.c.l.b16 %v3968
    %v4639 = vunpack.c.h.b16 %v3968
    %v4640 = vunpack.c.l.b16 %v3969
    %v4641 = vunpack.c.h.b16 %v3969
    %v4642 = vunpack.c.l.b16 %v3970
    %v4643 = vunpack.c.h.b16 %v3970
    %v4644 = vunpack.c.l.b16 %v3971
    %v4645 = vunpack.c.h.b16 %v3971
    %v4646 = vunpack.c.l.b16 %v3972
    %v4647 = vunpack.c.h.b16 %v3972
    %v4648 = vunpack.c.l.b16 %v3973
    %v4649 = vunpack.c.h.b16 %v3973
    %v4650 = vunpack.c.l.b16 %v3974
    %v4651 = vunpack.c.h.b16 %v3974
    %v4652 = vunpack.c.l.b16 %v3975
    %v4653 = vunpack.c.h.b16 %v3975
    %v4654 = vunpack.c.l.b16 %v3976
    %v4655 = vunpack.c.h.b16 %v3976
    %v4656 = vunpack.c.l.b16 %v3977
    %v4657 = vunpack.c.h.b16 %v3977
    %v4658 = vunpack.c.l.b16 %v3978
    %v4659 = vunpack.c.h.b16 %v3978
    %v4660 = vunpack.c.l.b16 %v3979
    %v4661 = vunpack.c.h.b16 %v3979
    %v4662 = vunpack.c.l.b16 %v3980
    %v4663 = vunpack.c.h.b16 %v3980
    %v4664 = vunpack.c.l.b16 %v3981
    %v4665 = vunpack.c.h.b16 %v3981
    %v4666 = vunpack.c.l.b16 %v3982
    %v4667 = vunpack.c.h.b16 %v3982
    %v4668 = vunpack.c.l.b16 %v3983
    %v4669 = vunpack.c.h.b16 %v3983
    %v4670 = vunpack.c.l.b16 %v3984
    %v4671 = vunpack.c.h.b16 %v3984
    %v4672 = vunpack.c.l.b16 %v3985
    %v4673 = vunpack.c.h.b16 %v3985
    %v4674 = vunpack.c.l.b16 %v3986
    %v4675 = vunpack.c.h.b16 %v3986
    %v4676 = vunpack.c.l.b16 %v3987
    %v4677 = vunpack.c.h.b16 %v3987
    %v4678 = vunpack.c.l.b16 %v3988
    %v4679 = vunpack.c.h.b16 %v3988
    %v4680 = vunpack.c.l.b16 %v3989
    %v4681 = vunpack.c.h.b16 %v3989
    %v4682 = vunpack.c.l.b16 %v3990
    %v4683 = vunpack.c.h.b16 %v3990
    %v4684 = vunpack.c.l.b16 %v3991
    %v4685 = vunpack.c.h.b16 %v3991
    %v4686 = vunpack.c.l.b16 %v3992
    %v4687 = vunpack.c.h.b16 %v3992
    %v4688 = vunpack.c.l.b16 %v3993
    %v4689 = vunpack.c.h.b16 %v3993
    %v4690 = vunpack.c.l.b16 %v3994
    %v4691 = vunpack.c.h.b16 %v3994
    %v4692 = vunpack.c.l.b16 %v3995
    %v4693 = vunpack.c.h.b16 %v3995
    %v4694 = vunpack.c.l.b16 %v3996
    %v4695 = vunpack.c.h.b16 %v3996
    %v4696 = vunpack.c.l.b16 %v3997
    %v4697 = vunpack.c.h.b16 %v3997
    %v4698 = vunpack.c.l.b16 %v3998
    %v4699 = vunpack.c.h.b16 %v3998
    %v4700 = vunpack.c.l.b16 %v3999
    %v4701 = vunpack.c.h.b16 %v3999
    %v4702 = vunpack.c.l.b16 %v4000
    %v4703 = vunpack.c.h.b16 %v4000
    %v4704 = vunpack.c.l.b16 %v4001
    %v4705 = vunpack.c.h.b16 %v4001
    %v4706 = vunpack.c.l.b16 %v4002
    %v4707 = vunpack.c.h.b16 %v4002
    %v4708 = vunpack.c.l.b16 %v4003
    %v4709 = vunpack.c.h.b16 %v4003
    %v4710 = vunpack.c.l.b16 %v4004
    %v4711 = vunpack.c.h.b16 %v4004
    %v4712 = vunpack.c.l.b16 %v4005
    %v4713 = vunpack.c.h.b16 %v4005
    %v4714 = vunpack.c.l.b16 %v4006
    %v4715 = vunpack.c.h.b16 %v4006
    %v4716 = vunpack.c.l.b16 %v4007
    %v4717 = vunpack.c.h.b16 %v4007
    %v4718 = vunpack.c.l.b16 %v4008
    %v4719 = vunpack.c.h.b16 %v4008
    %v4720 = vunpack.c.l.b16 %v4009
    %v4721 = vunpack.c.h.b16 %v4009
    %v4722 = vunpack.c.l.b16 %v4010
    %v4723 = vunpack.c.h.b16 %v4010
    %v4724 = vunpack.c.l.b16 %v4011
    %v4725 = vunpack.c.h.b16 %v4011
    %v4726 = vunpack.c.l.b16 %v4012
    %v4727 = vunpack.c.h.b16 %v4012
    %v4728 = vunpack.c.l.b16 %v4013
    %v4729 = vunpack.c.h.b16 %v4013
    %v4730 = vunpack.c.l.b16 %v4014
    %v4731 = vunpack.c.h.b16 %v4014
    %v4732 = vunpack.c.l.b16 %v4015
    %v4733 = vunpack.c.h.b16 %v4015
    %v4734 = vunpack.c.l.b16 %v4016
    %v4735 = vunpack.c.h.b16 %v4016
    %v4736 = vunpack.c.l.b16 %v4017
    %v4737 = vunpack.c.h.b16 %v4017
    %v4738 = vunpack.c.l.b16 %v4018
    %v4739 = vunpack.c.h.b16 %v4018
    %v4740 = vunpack.c.l.b16 %v4019
    %v4741 = vunpack.c.h.b16 %v4019
    %v4742 = vunpack.c.l.b16 %v4020
    %v4743 = vunpack.c.h.b16 %v4020
    %v4744 = vunpack.c.l.b16 %v4021
    %v4745 = vunpack.c.h.b16 %v4021
    %v4746 = vunpack.c.l.b16 %v4022
    %v4747 = vunpack.c.h.b16 %v4022
    %v4748 = vunpack.c.l.b16 %v4023
    %v4749 = vunpack.c.h.b16 %v4023
    %v4750 = vunpack.c.l.b16 %v4024
    %v4751 = vunpack.c.h.b16 %v4024
    %v4752 = vunpack.c.l.b16 %v4025
    %v4753 = vunpack.c.h.b16 %v4025
    %v4754 = vunpack.c.l.b16 %v4026
    %v4755 = vunpack.c.h.b16 %v4026
    %v4756 = vunpack.c.l.b16 %v4027
    %v4757 = vunpack.c.h.b16 %v4027
    %v4758 = vunpack.c.l.b16 %v4028
    %v4759 = vunpack.c.h.b16 %v4028
    %v4760 = vunpack.c.l.b16 %v4029
    %v4761 = vunpack.c.h.b16 %v4029
    %v4762 = vunpack.c.l.b16 %v4030
    %v4763 = vunpack.c.h.b16 %v4030
    %v4764 = vunpack.c.l.b16 %v4031
    %v4765 = vunpack.c.h.b16 %v4031
    %v4766 = vunpack.c.l.b16 %v4032
    %v4767 = vunpack.c.h.b16 %v4032
    %v4768 = vunpack.c.l.b16 %v4033
    %v4769 = vunpack.c.h.b16 %v4033
    %v4770 = vunpack.c.l.b16 %v4034
    %v4771 = vunpack.c.h.b16 %v4034
    %v4772 = vunpack.c.l.b16 %v4035
    %v4773 = vunpack.c.h.b16 %v4035
    %v4774 = vunpack.c.l.b16 %v4036
    %v4775 = vunpack.c.h.b16 %v4036
    %v4776 = vunpack.c.l.b16 %v4037
    %v4777 = vunpack.c.h.b16 %v4037
    %v4778 = vunpack.c.l.b16 %v4038
    %v4779 = vunpack.c.h.b16 %v4038
    %v4780 = vunpack.c.l.b16 %v4039
    %v4781 = vunpack.c.h.b16 %v4039
    %v4782 = vunpack.c.l.b16 %v4040
    %v4783 = vunpack.c.h.b16 %v4040
    %v4784 = vunpack.c.l.b16 %v4041
    %v4785 = vunpack.c.h.b16 %v4041
    %v4786 = vunpack.c.l.b16 %v4042
    %v4787 = vunpack.c.h.b16 %v4042
    %v4788 = vunpack.c.l.b16 %v4043
    %v4789 = vunpack.c.h.b16 %v4043
    %v4790 = vunpack.c.l.b16 %v4044
    %v4791 = vunpack.c.h.b16 %v4044
    %v4792 = vunpack.c.l.b16 %v4045
    %v4793 = vunpack.c.h.b16 %v4045
    %v4794 = vunpack.c.l.b16 %v4046
    %v4795 = vunpack.c.h.b16 %v4046
    %v4796 = vunpack.c.l.b16 %v4047
    %v4797 = vunpack.c.h.b16 %v4047
    %v4798 = vunpack.c.l.b16 %v4048
    %v4799 = vunpack.c.h.b16 %v4048
    %v4800 = vunpack.c.l.b16 %v4049
    %v4801 = vunpack.c.h.b16 %v4049
    %v4802 = vunpack.c.l.b16 %v4050
    %v4803 = vunpack.c.h.b16 %v4050
    %v4804 = vunpack.c.l.b16 %v4051
    %v4805 = vunpack.c.h.b16 %v4051
    %v4806 = vunpack.c.l.b16 %v4052
    %v4807 = vunpack.c.h.b16 %v4052
    %v4808 = vunpack.c.l.b16 %v4053
    %v4809 = vunpack.c.h.b16 %v4053
    %v4810 = vunpack.c.l.b16 %v4054
    %v4811 = vunpack.c.h.b16 %v4054
    %v4812 = vunpack.c.l.b16 %v4055
    %v4813 = vunpack.c.h.b16 %v4055
    %v4814 = vunpack.c.l.b16 %v4056
    %v4815 = vunpack.c.h.b16 %v4056
    %v4816 = vunpack.c.l.b16 %v4057
    %v4817 = vunpack.c.h.b16 %v4057
    %v4818 = vunpack.c.l.b16 %v4058
    %v4819 = vunpack.c.h.b16 %v4058
    %v4820 = vunpack.c.l.b16 %v4059
    %v4821 = vunpack.c.h.b16 %v4059
    %v4822 = vunpack.c.l.b16 %v4060
    %v4823 = vunpack.c.h.b16 %v4060
    %v4824 = vunpack.c.l.b16 %v4061
    %v4825 = vunpack.c.h.b16 %v4061
    %v4826 = vunpack.c.l.b16 %v4062
    %v4827 = vunpack.c.h.b16 %v4062
    %v4828 = vunpack.c.l.b16 %v4063
    %v4829 = vunpack.c.h.b16 %v4063
    %v4830 = vunpack.c.l.b16 %v4064
    %v4831 = vunpack.c.h.b16 %v4064
    %v4832 = vunpack.c.l.b16 %v4065
    %v4833 = vunpack.c.h.b16 %v4065
    %v4834 = vpack.c.b16 %v4338, %v4322
    %v4835 = vpack.c.b16 %v4339, %v4323
    %v4836 = vpack.c.b16 %v4340, %v4324
    %v4837 = vpack.c.b16 %v4341, %v4325
    %v4838 = vpack.c.b16 %v4342, %v4326
    %v4839 = vpack.c.b16 %v4343, %v4327
    %v4840 = vpack.c.b16 %v4344, %v4328
    %v4841 = vpack.c.b16 %v4345, %v4329
    %v4842 = vpack.c.b16 %v4346, %v4330
    %v4843 = vpack.c.b16 %v4347, %v4331
    %v4844 = vpack.c.b16 %v4348, %v4332
    %v4845 = vpack.c.b16 %v4349, %v4333
    %v4846 = vpack.c.b16 %v4350, %v4334
    %v4847 = vpack.c.b16 %v4351, %v4335
    %v4848 = vpack.c.b16 %v4352, %v4336
    %v4849 = vpack.c.b16 %v4353, %v4337
    %v4850 = vpack.c.b16 %v4370, %v4354
    %v4851 = vpack.c.b16 %v4371, %v4355
    %v4852 = vpack.c.b16 %v4372, %v4356
    %v4853 = vpack.c.b16 %v4373, %v4357
    %v4854 = vpack.c.b16 %v4374, %v4358
    %v4855 = vpack.c.b16 %v4375, %v4359
    %v4856 = vpack.c.b16 %v4376, %v4360
    %v4857 = vpack.c.b16 %v4377, %v4361
    %v4858 = vpack.c.b16 %v4378, %v4362
    %v4859 = vpack.c.b16 %v4379, %v4363
    %v4860 = vpack.c.b16 %v4380, %v4364
    %v4861 = vpack.c.b16 %v4381, %v4365
    %v4862 = vpack.c.b16 %v4382, %v4366
    %v4863 = vpack.c.b16 %v4383, %v4367
    %v4864 = vpack.c.b16 %v4384, %v4368
    %v4865 = vpack.c.b16 %v4385, %v4369
    %v4866 = vpack.c.b16 %v4402, %v4386
    %v4867 = vpack.c.b16 %v4403, %v4387
    %v4868 = vpack.c.b16 %v4404, %v4388
    %v4869 = vpack.c.b16 %v4405, %v4389
    %v4870 = vpack.c.b16 %v4406, %v4390
    %v4871 = vpack.c.b16 %v4407, %v4391
    %v4872 = vpack.c.b16 %v4408, %v4392
    %v4873 = vpack.c.b16 %v4409, %v4393
    %v4874 = vpack.c.b16 %v4410, %v4394
    %v4875 = vpack.c.b16 %v4411, %v4395
    %v4876 = vpack.c.b16 %v4412, %v4396
    %v4877 = vpack.c.b16 %v4413, %v4397
    %v4878 = vpack.c.b16 %v4414, %v4398
    %v4879 = vpack.c.b16 %v4415, %v4399
    %v4880 = vpack.c.b16 %v4416, %v4400
    %v4881 = vpack.c.b16 %v4417, %v4401
    %v4882 = vpack.c.b16 %v4434, %v4418
    %v4883 = vpack.c.b16 %v4435, %v4419
    %v4884 = vpack.c.b16 %v4436, %v4420
    %v4885 = vpack.c.b16 %v4437, %v4421
    %v4886 = vpack.c.b16 %v4438, %v4422
    %v4887 = vpack.c.b16 %v4439, %v4423
    %v4888 = vpack.c.b16 %v4440, %v4424
    %v4889 = vpack.c.b16 %v4441, %v4425
    %v4890 = vpack.c.b16 %v4442, %v4426
    %v4891 = vpack.c.b16 %v4443, %v4427
    %v4892 = vpack.c.b16 %v4444, %v4428
    %v4893 = vpack.c.b16 %v4445, %v4429
    %v4894 = vpack.c.b16 %v4446, %v4430
    %v4895 = vpack.c.b16 %v4447, %v4431
    %v4896 = vpack.c.b16 %v4448, %v4432
    %v4897 = vpack.c.b16 %v4449, %v4433
    %v4898 = vpack.c.b16 %v4466, %v4450
    %v4899 = vpack.c.b16 %v4467, %v4451
    %v4900 = vpack.c.b16 %v4468, %v4452
    %v4901 = vpack.c.b16 %v4469, %v4453
    %v4902 = vpack.c.b16 %v4470, %v4454
    %v4903 = vpack.c.b16 %v4471, %v4455
    %v4904 = vpack.c.b16 %v4472, %v4456
    %v4905 = vpack.c.b16 %v4473, %v4457
    %v4906 = vpack.c.b16 %v4474, %v4458
    %v4907 = vpack.c.b16 %v4475, %v4459
    %v4908 = vpack.c.b16 %v4476, %v4460
    %v4909 = vpack.c.b16 %v4477, %v4461
    %v4910 = vpack.c.b16 %v4478, %v4462
    %v4911 = vpack.c.b16 %v4479, %v4463
    %v4912 = vpack.c.b16 %v4480, %v4464
    %v4913 = vpack.c.b16 %v4481, %v4465
    %v4914 = vpack.c.b16 %v4498, %v4482
    %v4915 = vpack.c.b16 %v4499, %v4483
    %v4916 = vpack.c.b16 %v4500, %v4484
    %v4917 = vpack.c.b16 %v4501, %v4485
    %v4918 = vpack.c.b16 %v4502, %v4486
    %v4919 = vpack.c.b16 %v4503, %v4487
    %v4920 = vpack.c.b16 %v4504, %v4488
    %v4921 = vpack.c.b16 %v4505, %v4489
    %v4922 = vpack.c.b16 %v4506, %v4490
    %v4923 = vpack.c.b16 %v4507, %v4491
    %v4924 = vpack.c.b16 %v4508, %v4492
    %v4925 = vpack.c.b16 %v4509, %v4493
    %v4926 = vpack.c.b16 %v4510, %v4494
    %v4927 = vpack.c.b16 %v4511, %v4495
    %v4928 = vpack.c.b16 %v4512, %v4496
    %v4929 = vpack.c.b16 %v4513, %v4497
    %v4930 = vpack.c.b16 %v4530, %v4514
    %v4931 = vpack.c.b16 %v4531, %v4515
    %v4932 = vpack.c.b16 %v4532, %v4516
    %v4933 = vpack.c.b16 %v4533, %v4517
    %v4934 = vpack.c.b16 %v4534, %v4518
    %v4935 = vpack.c.b16 %v4535, %v4519
    %v4936 = vpack.c.b16 %v4536, %v4520
    %v4937 = vpack.c.b16 %v4537, %v4521
    %v4938 = vpack.c.b16 %v4538, %v4522
    %v4939 = vpack.c.b16 %v4539, %v4523
    %v4940 = vpack.c.b16 %v4540, %v4524
    %v4941 = vpack.c.b16 %v4541, %v4525
    %v4942 = vpack.c.b16 %v4542, %v4526
    %v4943 = vpack.c.b16 %v4543, %v4527
    %v4944 = vpack.c.b16 %v4544, %v4528
    %v4945 = vpack.c.b16 %v4545, %v4529
    %v4946 = vpack.c.b16 %v4562, %v4546
    %v4947 = vpack.c.b16 %v4563, %v4547
    %v4948 = vpack.c.b16 %v4564, %v4548
    %v4949 = vpack.c.b16 %v4565, %v4549
    %v4950 = vpack.c.b16 %v4566, %v4550
    %v4951 = vpack.c.b16 %v4567, %v4551
    %v4952 = vpack.c.b16 %v4568, %v4552
    %v4953 = vpack.c.b16 %v4569, %v4553
    %v4954 = vpack.c.b16 %v4570, %v4554
    %v4955 = vpack.c.b16 %v4571, %v4555
    %v4956 = vpack.c.b16 %v4572, %v4556
    %v4957 = vpack.c.b16 %v4573, %v4557
    %v4958 = vpack.c.b16 %v4574, %v4558
    %v4959 = vpack.c.b16 %v4575, %v4559
    %v4960 = vpack.c.b16 %v4576, %v4560
    %v4961 = vpack.c.b16 %v4577, %v4561
    %v4962 = vpack.c.b16 %v4594, %v4578
    %v4963 = vpack.c.b16 %v4595, %v4579
    %v4964 = vpack.c.b16 %v4596, %v4580
    %v4965 = vpack.c.b16 %v4597, %v4581
    %v4966 = vpack.c.b16 %v4598, %v4582
    %v4967 = vpack.c.b16 %v4599, %v4583
    %v4968 = vpack.c.b16 %v4600, %v4584
    %v4969 = vpack.c.b16 %v4601, %v4585
    %v4970 = vpack.c.b16 %v4602, %v4586
    %v4971 = vpack.c.b16 %v4603, %v4587
    %v4972 = vpack.c.b16 %v4604, %v4588
    %v4973 = vpack.c.b16 %v4605, %v4589
    %v4974 = vpack.c.b16 %v4606, %v4590
    %v4975 = vpack.c.b16 %v4607, %v4591
    %v4976 = vpack.c.b16 %v4608, %v4592
    %v4977 = vpack.c.b16 %v4609, %v4593
    %v4978 = vpack.c.b16 %v4626, %v4610
    %v4979 = vpack.c.b16 %v4627, %v4611
    %v4980 = vpack.c.b16 %v4628, %v4612
    %v4981 = vpack.c.b16 %v4629, %v4613
    %v4982 = vpack.c.b16 %v4630, %v4614
    %v4983 = vpack.c.b16 %v4631, %v4615
    %v4984 = vpack.c.b16 %v4632, %v4616
    %v4985 = vpack.c.b16 %v4633, %v4617
    %v4986 = vpack.c.b16 %v4634, %v4618
    %v4987 = vpack.c.b16 %v4635, %v4619
    %v4988 = vpack.c.b16 %v4636, %v4620
    %v4989 = vpack.c.b16 %v4637, %v4621
    %v4990 = vpack.c.b16 %v4638, %v4622
    %v4991 = vpack.c.b16 %v4639, %v4623
    %v4992 = vpack.c.b16 %v4640, %v4624
    %v4993 = vpack.c.b16 %v4641, %v4625
    %v4994 = vpack.c.b16 %v4658, %v4642
    %v4995 = vpack.c.b16 %v4659, %v4643
    %v4996 = vpack.c.b16 %v4660, %v4644
    %v4997 = vpack.c.b16 %v4661, %v4645
    %v4998 = vpack.c.b16 %v4662, %v4646
    %v4999 = vpack.c.b16 %v4663, %v4647
    %v5000 = vpack.c.b16 %v4664, %v4648
    %v5001 = vpack.c.b16 %v4665, %v4649
    %v5002 = vpack.c.b16 %v4666, %v4650
    %v5003 = vpack.c.b16 %v4667, %v4651
    %v5004 = vpack.c.b16 %v4668, %v4652
    %v5005 = vpack.c.b16 %v4669, %v4653
    %v5006 = vpack.c.b16 %v4670, %v4654
    %v5007 = vpack.c.b16 %v4671, %v4655
    %v5008 = vpack.c.b16 %v4672, %v4656
    %v5009 = vpack.c.b16 %v4673, %v4657
    %v5010 = vpack.c.b16 %v4690, %v4674
    %v5011 = vpack.c.b16 %v4691, %v4675
    %v5012 = vpack.c.b16 %v4692, %v4676
    %v5013 = vpack.c.b16 %v4693, %v4677
    %v5014 = vpack.c.b16 %v4694, %v4678
    %v5015 = vpack.c.b16 %v4695, %v4679
    %v5016 = vpack.c.b16 %v4696, %v4680
    %v5017 = vpack.c.b16 %v4697, %v4681
    %v5018 = vpack.c.b16 %v4698, %v4682
    %v5019 = vpack.c.b16 %v4699, %v4683
    %v5020 = vpack.c.b16 %v4700, %v4684
    %v5021 = vpack.c.b16 %v4701, %v4685
    %v5022 = vpack.c.b16 %v4702, %v4686
    %v5023 = vpack.c.b16 %v4703, %v4687
    %v5024 = vpack.c.b16 %v4704, %v4688
    %v5025 = vpack.c.b16 %v4705, %v4689
    %v5026 = vpack.c.b16 %v4722, %v4706
    %v5027 = vpack.c.b16 %v4723, %v4707
    %v5028 = vpack.c.b16 %v4724, %v4708
    %v5029 = vpack.c.b16 %v4725, %v4709
    %v5030 = vpack.c.b16 %v4726, %v4710
    %v5031 = vpack.c.b16 %v4727, %v4711
    %v5032 = vpack.c.b16 %v4728, %v4712
    %v5033 = vpack.c.b16 %v4729, %v4713
    %v5034 = vpack.c.b16 %v4730, %v4714
    %v5035 = vpack.c.b16 %v4731, %v4715
    %v5036 = vpack.c.b16 %v4732, %v4716
    %v5037 = vpack.c.b16 %v4733, %v4717
    %v5038 = vpack.c.b16 %v4734, %v4718
    %v5039 = vpack.c.b16 %v4735, %v4719
    %v5040 = vpack.c.b16 %v4736, %v4720
    %v5041 = vpack.c.b16 %v4737, %v4721
    %v5042 = vpack.c.b16 %v4754, %v4738
    %v5043 = vpack.c.b16 %v4755, %v4739
    %v5044 = vpack.c.b16 %v4756, %v4740
    %v5045 = vpack.c.b16 %v4757, %v4741
    %v5046 = vpack.c.b16 %v4758, %v4742
    %v5047 = vpack.c.b16 %v4759, %v4743
    %v5048 = vpack.c.b16 %v4760, %v4744
    %v5049 = vpack.c.b16 %v4761, %v4745
    %v5050 = vpack.c.b16 %v4762, %v4746
    %v5051 = vpack.c.b16 %v4763, %v4747
    %v5052 = vpack.c.b16 %v4764, %v4748
    %v5053 = vpack.c.b16 %v4765, %v4749
    %v5054 = vpack.c.b16 %v4766, %v4750
    %v5055 = vpack.c.b16 %v4767, %v4751
    %v5056 = vpack.c.b16 %v4768, %v4752
    %v5057 = vpack.c.b16 %v4769, %v4753
    %v5058 = vpack.c.b16 %v4786, %v4770
    %v5059 = vpack.c.b16 %v4787, %v4771
    %v5060 = vpack.c.b16 %v4788, %v4772
    %v5061 = vpack.c.b16 %v4789, %v4773
    %v5062 = vpack.c.b16 %v4790, %v4774
    %v5063 = vpack.c.b16 %v4791, %v4775
    %v5064 = vpack.c.b16 %v4792, %v4776
    %v5065 = vpack.c.b16 %v4793, %v4777
    %v5066 = vpack.c.b16 %v4794, %v4778
    %v5067 = vpack.c.b16 %v4795, %v4779
    %v5068 = vpack.c.b16 %v4796, %v4780
    %v5069 = vpack.c.b16 %v4797, %v4781
    %v5070 = vpack.c.b16 %v4798, %v4782
    %v5071 = vpack.c.b16 %v4799, %v4783
    %v5072 = vpack.c.b16 %v4800, %v4784
    %v5073 = vpack.c.b16 %v4801, %v4785
    %v5074 = vpack.c.b16 %v4818, %v4802
    %v5075 = vpack.c.b16 %v4819, %v4803
    %v5076 = vpack.c.b16 %v4820, %v4804
    %v5077 = vpack.c.b16 %v4821, %v4805
    %v5078 = vpack.c.b16 %v4822, %v4806
    %v5079 = vpack.c.b16 %v4823, %v4807
    %v5080 = vpack.c.b16 %v4824, %v4808
    %v5081 = vpack.c.b16 %v4825, %v4809
    %v5082 = vpack.c.b16 %v4826, %v4810
    %v5083 = vpack.c.b16 %v4827, %v4811
    %v5084 = vpack.c.b16 %v4828, %v4812
    %v5085 = vpack.c.b16 %v4829, %v4813
    %v5086 = vpack.c.b16 %v4830, %v4814
    %v5087 = vpack.c.b16 %v4831, %v4815
    %v5088 = vpack.c.b16 %v4832, %v4816
    %v5089 = vpack.c.b16 %v4833, %v4817
    %5346 = vmatprep.subr.bf16.mxu0 %v4947
    %5347 = vmatpush1.bf16.msra.mxu0 %v4946
    %5348 = vmatprep.subr.bf16.mxu0 %v4931
    %5349 = vmatpush1.bf16.msra.mxu0 %v4930
    %5350 = vmatprep.subr.bf16.mxu0 %v4915
    %5351 = vmatpush1.bf16.msra.mxu0 %v4914
    %5352 = vmatprep.subr.bf16.mxu0 %v4899
    %5353 = vmatpush1.bf16.msra.mxu0 %v4898
    %5354 = vmatprep.subr.bf16.mxu0 %v4883
    %5355 = vmatpush1.bf16.msra.mxu0 %v4882
    %5356 = vmatprep.subr.bf16.mxu0 %v4867
    %5357 = vmatpush1.bf16.msra.mxu0 %v4866
    %5358 = vmatprep.subr.bf16.mxu0 %v4851
    %5359 = vmatpush1.bf16.msra.mxu0 %v4850
    %5360 = vmatprep.subr.bf16.mxu0 %v4835
    %5361 = vmatpush1.bf16.msra.mxu0 %v4834
    %5362 = vmatprep.subr.bf16.mxu0 %v5075
    %5363 = vmatpush2.bf16.msra.mxu0 %v5074
    %5364 = vmatprep.subr.bf16.mxu0 %v5059
    %5365 = vmatpush2.bf16.msra.mxu0 %v5058
    %5366 = vmatprep.subr.bf16.mxu0 %v5043
    %5367 = vmatpush2.bf16.msra.mxu0 %v5042
    %5368 = vmatprep.subr.bf16.mxu0 %v5027
    %5369 = vmatpush2.bf16.msra.mxu0 %v5026
    %5370 = vmatprep.subr.bf16.mxu0 %v5011
    %5371 = vmatpush2.bf16.msra.mxu0 %v5010
    %5372 = vmatprep.subr.bf16.mxu0 %v4995
    %5373 = vmatpush2.bf16.msra.mxu0 %v4994
    %5374 = vmatprep.subr.bf16.mxu0 %v4979
    %5375 = vmatpush2.bf16.msra.mxu0 %v4978
    %5376 = vmatprep.subr.bf16.mxu0 %v4963
    %5377 = vmatpush2.bf16.msra.mxu0 %v4962
    %5378 = vmatprep.mubr.bf16.mxu0 %v3551
    %5379 = vmatmul.mubr.bf16.gmra.mxu0 %v3550
    %v5380 = vpop.f32.mrf.mxu0
    %v5381 = vadd.f32 0.0, %v5380
    %v5382 = vpop.f32.mrf.mxu0
    %v5383 = vadd.f32 0.0, %v5382
    %v5384 = vpop.f32.mrf.mxu0
    %v5385 = vpop.f32.mrf.mxu0
    %5386 = vdwg.mxu0
    %5387 = vmatprep.subr.bf16.mxu0 %v4949
    %5388 = vmatpush1.bf16.msra.mxu0 %v4948
    %5389 = vmatprep.subr.bf16.mxu0 %v4933
    %5390 = vmatpush1.bf16.msra.mxu0 %v4932
    %5391 = vmatprep.subr.bf16.mxu0 %v4917
    %5392 = vmatpush1.bf16.msra.mxu0 %v4916
    %5393 = vmatprep.subr.bf16.mxu0 %v4901
    %5394 = vmatpush1.bf16.msra.mxu0 %v4900
    %5395 = vmatprep.subr.bf16.mxu0 %v4885
    %5396 = vmatpush1.bf16.msra.mxu0 %v4884
    %5397 = vmatprep.subr.bf16.mxu0 %v4869
    %5398 = vmatpush1.bf16.msra.mxu0 %v4868
    %5399 = vmatprep.subr.bf16.mxu0 %v4853
    %5400 = vmatpush1.bf16.msra.mxu0 %v4852
    %5401 = vmatprep.subr.bf16.mxu0 %v4837
    %5402 = vmatpush1.bf16.msra.mxu0 %v4836
    %5403 = vmatprep.subr.bf16.mxu0 %v5077
    %5404 = vmatpush2.bf16.msra.mxu0 %v5076
    %5405 = vmatprep.subr.bf16.mxu0 %v5061
    %5406 = vmatpush2.bf16.msra.mxu0 %v5060
    %5407 = vmatprep.subr.bf16.mxu0 %v5045
    %5408 = vmatpush2.bf16.msra.mxu0 %v5044
    %5409 = vmatprep.subr.bf16.mxu0 %v5029
    %5410 = vmatpush2.bf16.msra.mxu0 %v5028
    %5411 = vmatprep.subr.bf16.mxu0 %v5013
    %5412 = vmatpush2.bf16.msra.mxu0 %v5012
    %5413 = vmatprep.subr.bf16.mxu0 %v4997
    %5414 = vmatpush2.bf16.msra.mxu0 %v4996
    %5415 = vmatprep.subr.bf16.mxu0 %v4981
    %5416 = vmatpush2.bf16.msra.mxu0 %v4980
    %5417 = vmatprep.subr.bf16.mxu0 %v4965
    %5418 = vmatpush2.bf16.msra.mxu0 %v4964
    %5419 = vmatprep.mubr.bf16.mxu0 %v3551
    %5420 = vmatmul.mubr.bf16.gmra.mxu0 %v3550
    %v5421 = vpop.f32.mrf.mxu0
    %v5422 = vadd.f32 0.0, %v5421
    %v5423 = vpop.f32.mrf.mxu0
    %v5424 = vadd.f32 0.0, %v5423
    %v5425 = vpop.f32.mrf.mxu0
    %v5426 = vpop.f32.mrf.mxu0
    %5427 = vdwg.mxu0
    %5428 = vmatprep.subr.bf16.mxu0 %v4951
    %5429 = vmatpush1.bf16.msra.mxu0 %v4950
    %5430 = vmatprep.subr.bf16.mxu0 %v4935
    %5431 = vmatpush1.bf16.msra.mxu0 %v4934
    %5432 = vmatprep.subr.bf16.mxu0 %v4919
    %5433 = vmatpush1.bf16.msra.mxu0 %v4918
    %5434 = vmatprep.subr.bf16.mxu0 %v4903
    %5435 = vmatpush1.bf16.msra.mxu0 %v4902
    %5436 = vmatprep.subr.bf16.mxu0 %v4887
    %5437 = vmatpush1.bf16.msra.mxu0 %v4886
    %5438 = vmatprep.subr.bf16.mxu0 %v4871
    %5439 = vmatpush1.bf16.msra.mxu0 %v4870
    %5440 = vmatprep.subr.bf16.mxu0 %v4855
    %5441 = vmatpush1.bf16.msra.mxu0 %v4854
    %5442 = vmatprep.subr.bf16.mxu0 %v4839
    %5443 = vmatpush1.bf16.msra.mxu0 %v4838
    %5444 = vmatprep.subr.bf16.mxu0 %v5079
    %5445 = vmatpush2.bf16.msra.mxu0 %v5078
    %5446 = vmatprep.subr.bf16.mxu0 %v5063
    %5447 = vmatpush2.bf16.msra.mxu0 %v5062
    %5448 = vmatprep.subr.bf16.mxu0 %v5047
    %5449 = vmatpush2.bf16.msra.mxu0 %v5046
    %5450 = vmatprep.subr.bf16.mxu0 %v5031
    %5451 = vmatpush2.bf16.msra.mxu0 %v5030
    %5452 = vmatprep.subr.bf16.mxu0 %v5015
    %5453 = vmatpush2.bf16.msra.mxu0 %v5014
    %5454 = vmatprep.subr.bf16.mxu0 %v4999
    %5455 = vmatpush2.bf16.msra.mxu0 %v4998
    %5456 = vmatprep.subr.bf16.mxu0 %v4983
    %5457 = vmatpush2.bf16.msra.mxu0 %v4982
    %5458 = vmatprep.subr.bf16.mxu0 %v4967
    %5459 = vmatpush2.bf16.msra.mxu0 %v4966
    %5460 = vmatprep.mubr.bf16.mxu0 %v3551
    %5461 = vmatmul.mubr.bf16.gmra.mxu0 %v3550
    %v5462 = vpop.f32.mrf.mxu0
    %v5463 = vadd.f32 0.0, %v5462
    %v5464 = vpop.f32.mrf.mxu0
    %v5465 = vadd.f32 0.0, %v5464
    %v5466 = vpop.f32.mrf.mxu0
    %v5467 = vpop.f32.mrf.mxu0
    %5468 = vdwg.mxu0
    %5469 = vmatprep.subr.bf16.mxu0 %v4953
    %5470 = vmatpush1.bf16.msra.mxu0 %v4952
    %5471 = vmatprep.subr.bf16.mxu0 %v4937
    %5472 = vmatpush1.bf16.msra.mxu0 %v4936
    %5473 = vmatprep.subr.bf16.mxu0 %v4921
    %5474 = vmatpush1.bf16.msra.mxu0 %v4920
    %5475 = vmatprep.subr.bf16.mxu0 %v4905
    %5476 = vmatpush1.bf16.msra.mxu0 %v4904
    %5477 = vmatprep.subr.bf16.mxu0 %v4889
    %5478 = vmatpush1.bf16.msra.mxu0 %v4888
    %5479 = vmatprep.subr.bf16.mxu0 %v4873
    %5480 = vmatpush1.bf16.msra.mxu0 %v4872
    %5481 = vmatprep.subr.bf16.mxu0 %v4857
    %5482 = vmatpush1.bf16.msra.mxu0 %v4856
    %5483 = vmatprep.subr.bf16.mxu0 %v4841
    %5484 = vmatpush1.bf16.msra.mxu0 %v4840
    %5485 = vmatprep.subr.bf16.mxu0 %v5081
    %5486 = vmatpush2.bf16.msra.mxu0 %v5080
    %5487 = vmatprep.subr.bf16.mxu0 %v5065
    %5488 = vmatpush2.bf16.msra.mxu0 %v5064
    %5489 = vmatprep.subr.bf16.mxu0 %v5049
    %5490 = vmatpush2.bf16.msra.mxu0 %v5048
    %5491 = vmatprep.subr.bf16.mxu0 %v5033
    %5492 = vmatpush2.bf16.msra.mxu0 %v5032
    %5493 = vmatprep.subr.bf16.mxu0 %v5017
    %5494 = vmatpush2.bf16.msra.mxu0 %v5016
    %5495 = vmatprep.subr.bf16.mxu0 %v5001
    %5496 = vmatpush2.bf16.msra.mxu0 %v5000
    %5497 = vmatprep.subr.bf16.mxu0 %v4985
    %5498 = vmatpush2.bf16.msra.mxu0 %v4984
    %5499 = vmatprep.subr.bf16.mxu0 %v4969
    %5500 = vmatpush2.bf16.msra.mxu0 %v4968
    %5501 = vmatprep.mubr.bf16.mxu0 %v3551
    %5502 = vmatmul.mubr.bf16.gmra.mxu0 %v3550
    %v5503 = vpop.f32.mrf.mxu0
    %v5504 = vadd.f32 0.0, %v5503
    %v5505 = vpop.f32.mrf.mxu0
    %v5506 = vadd.f32 0.0, %v5505
    %v5507 = vpop.f32.mrf.mxu0
    %v5508 = vpop.f32.mrf.mxu0
    %5509 = vdwg.mxu0
    %5510 = vmatprep.subr.bf16.mxu0 %v4955
    %5511 = vmatpush1.bf16.msra.mxu0 %v4954
    %5512 = vmatprep.subr.bf16.mxu0 %v4939
    %5513 = vmatpush1.bf16.msra.mxu0 %v4938
    %5514 = vmatprep.subr.bf16.mxu0 %v4923
    %5515 = vmatpush1.bf16.msra.mxu0 %v4922
    %5516 = vmatprep.subr.bf16.mxu0 %v4907
    %5517 = vmatpush1.bf16.msra.mxu0 %v4906
    %5518 = vmatprep.subr.bf16.mxu0 %v4891
    %5519 = vmatpush1.bf16.msra.mxu0 %v4890
    %5520 = vmatprep.subr.bf16.mxu0 %v4875
    %5521 = vmatpush1.bf16.msra.mxu0 %v4874
    %5522 = vmatprep.subr.bf16.mxu0 %v4859
    %5523 = vmatpush1.bf16.msra.mxu0 %v4858
    %5524 = vmatprep.subr.bf16.mxu0 %v4843
    %5525 = vmatpush1.bf16.msra.mxu0 %v4842
    %5526 = vmatprep.subr.bf16.mxu0 %v5083
    %5527 = vmatpush2.bf16.msra.mxu0 %v5082
    %5528 = vmatprep.subr.bf16.mxu0 %v5067
    %5529 = vmatpush2.bf16.msra.mxu0 %v5066
    %5530 = vmatprep.subr.bf16.mxu0 %v5051
    %5531 = vmatpush2.bf16.msra.mxu0 %v5050
    %5532 = vmatprep.subr.bf16.mxu0 %v5035
    %5533 = vmatpush2.bf16.msra.mxu0 %v5034
    %5534 = vmatprep.subr.bf16.mxu0 %v5019
    %5535 = vmatpush2.bf16.msra.mxu0 %v5018
    %5536 = vmatprep.subr.bf16.mxu0 %v5003
    %5537 = vmatpush2.bf16.msra.mxu0 %v5002
    %5538 = vmatprep.subr.bf16.mxu0 %v4987
    %5539 = vmatpush2.bf16.msra.mxu0 %v4986
    %5540 = vmatprep.subr.bf16.mxu0 %v4971
    %5541 = vmatpush2.bf16.msra.mxu0 %v4970
    %5542 = vmatprep.mubr.bf16.mxu0 %v3551
    %5543 = vmatmul.mubr.bf16.gmra.mxu0 %v3550
    %v5544 = vpop.f32.mrf.mxu0
    %v5545 = vadd.f32 0.0, %v5544
    %v5546 = vpop.f32.mrf.mxu0
    %v5547 = vadd.f32 0.0, %v5546
    %v5548 = vpop.f32.mrf.mxu0
    %v5549 = vpop.f32.mrf.mxu0
    %5550 = vdwg.mxu0
    %5551 = vmatprep.subr.bf16.mxu0 %v4957
    %5552 = vmatpush1.bf16.msra.mxu0 %v4956
    %5553 = vmatprep.subr.bf16.mxu0 %v4941
    %5554 = vmatpush1.bf16.msra.mxu0 %v4940
    %5555 = vmatprep.subr.bf16.mxu0 %v4925
    %5556 = vmatpush1.bf16.msra.mxu0 %v4924
    %5557 = vmatprep.subr.bf16.mxu0 %v4909
    %5558 = vmatpush1.bf16.msra.mxu0 %v4908
    %5559 = vmatprep.subr.bf16.mxu0 %v4893
    %5560 = vmatpush1.bf16.msra.mxu0 %v4892
    %5561 = vmatprep.subr.bf16.mxu0 %v4877
    %5562 = vmatpush1.bf16.msra.mxu0 %v4876
    %5563 = vmatprep.subr.bf16.mxu0 %v4861
    %5564 = vmatpush1.bf16.msra.mxu0 %v4860
    %5565 = vmatprep.subr.bf16.mxu0 %v4845
    %5566 = vmatpush1.bf16.msra.mxu0 %v4844
    %5567 = vmatprep.subr.bf16.mxu0 %v5085
    %5568 = vmatpush2.bf16.msra.mxu0 %v5084
    %5569 = vmatprep.subr.bf16.mxu0 %v5069
    %5570 = vmatpush2.bf16.msra.mxu0 %v5068
    %5571 = vmatprep.subr.bf16.mxu0 %v5053
    %5572 = vmatpush2.bf16.msra.mxu0 %v5052
    %5573 = vmatprep.subr.bf16.mxu0 %v5037
    %5574 = vmatpush2.bf16.msra.mxu0 %v5036
    %5575 = vmatprep.subr.bf16.mxu0 %v5021
    %5576 = vmatpush2.bf16.msra.mxu0 %v5020
    %5577 = vmatprep.subr.bf16.mxu0 %v5005
    %5578 = vmatpush2.bf16.msra.mxu0 %v5004
    %5579 = vmatprep.subr.bf16.mxu0 %v4989
    %5580 = vmatpush2.bf16.msra.mxu0 %v4988
    %5581 = vmatprep.subr.bf16.mxu0 %v4973
    %5582 = vmatpush2.bf16.msra.mxu0 %v4972
    %5583 = vmatprep.mubr.bf16.mxu0 %v3551
    %5584 = vmatmul.mubr.bf16.gmra.mxu0 %v3550
    %v5585 = vpop.f32.mrf.mxu0
    %v5586 = vadd.f32 0.0, %v5585
    %v5587 = vpop.f32.mrf.mxu0
    %v5588 = vadd.f32 0.0, %v5587
    %v5589 = vpop.f32.mrf.mxu0
    %v5590 = vpop.f32.mrf.mxu0
    %5591 = vdwg.mxu0
    %5592 = vmatprep.subr.bf16.mxu0 %v4959
    %5593 = vmatpush1.bf16.msra.mxu0 %v4958
    %5594 = vmatprep.subr.bf16.mxu0 %v4943
    %5595 = vmatpush1.bf16.msra.mxu0 %v4942
    %5596 = vmatprep.subr.bf16.mxu0 %v4927
    %5597 = vmatpush1.bf16.msra.mxu0 %v4926
    %5598 = vmatprep.subr.bf16.mxu0 %v4911
    %5599 = vmatpush1.bf16.msra.mxu0 %v4910
    %5600 = vmatprep.subr.bf16.mxu0 %v4895
    %5601 = vmatpush1.bf16.msra.mxu0 %v4894
    %5602 = vmatprep.subr.bf16.mxu0 %v4879
    %5603 = vmatpush1.bf16.msra.mxu0 %v4878
    %5604 = vmatprep.subr.bf16.mxu0 %v4863
    %5605 = vmatpush1.bf16.msra.mxu0 %v4862
    %5606 = vmatprep.subr.bf16.mxu0 %v4847
    %5607 = vmatpush1.bf16.msra.mxu0 %v4846
    %5608 = vmatprep.subr.bf16.mxu0 %v5087
    %5609 = vmatpush2.bf16.msra.mxu0 %v5086
    %5610 = vmatprep.subr.bf16.mxu0 %v5071
    %5611 = vmatpush2.bf16.msra.mxu0 %v5070
    %5612 = vmatprep.subr.bf16.mxu0 %v5055
    %5613 = vmatpush2.bf16.msra.mxu0 %v5054
    %5614 = vmatprep.subr.bf16.mxu0 %v5039
    %5615 = vmatpush2.bf16.msra.mxu0 %v5038
    %5616 = vmatprep.subr.bf16.mxu0 %v5023
    %5617 = vmatpush2.bf16.msra.mxu0 %v5022
    %5618 = vmatprep.subr.bf16.mxu0 %v5007
    %5619 = vmatpush2.bf16.msra.mxu0 %v5006
    %5620 = vmatprep.subr.bf16.mxu0 %v4991
    %5621 = vmatpush2.bf16.msra.mxu0 %v4990
    %5622 = vmatprep.subr.bf16.mxu0 %v4975
    %5623 = vmatpush2.bf16.msra.mxu0 %v4974
    %5624 = vmatprep.mubr.bf16.mxu0 %v3551
    %5625 = vmatmul.mubr.bf16.gmra.mxu0 %v3550
    %v5626 = vpop.f32.mrf.mxu0
    %v5627 = vadd.f32 0.0, %v5626
    %v5628 = vpop.f32.mrf.mxu0
    %v5629 = vadd.f32 0.0, %v5628
    %v5630 = vpop.f32.mrf.mxu0
    %v5631 = vpop.f32.mrf.mxu0
    %5632 = vdwg.mxu0
    %5633 = vmatprep.subr.bf16.mxu0 %v4961
    %5634 = vmatpush1.bf16.msra.mxu0 %v4960
    %5635 = vmatprep.subr.bf16.mxu0 %v4945
    %5636 = vmatpush1.bf16.msra.mxu0 %v4944
    %5637 = vmatprep.subr.bf16.mxu0 %v4929
    %5638 = vmatpush1.bf16.msra.mxu0 %v4928
    %5639 = vmatprep.subr.bf16.mxu0 %v4913
    %5640 = vmatpush1.bf16.msra.mxu0 %v4912
    %5641 = vmatprep.subr.bf16.mxu0 %v4897
    %5642 = vmatpush1.bf16.msra.mxu0 %v4896
    %5643 = vmatprep.subr.bf16.mxu0 %v4881
    %5644 = vmatpush1.bf16.msra.mxu0 %v4880
    %5645 = vmatprep.subr.bf16.mxu0 %v4865
    %5646 = vmatpush1.bf16.msra.mxu0 %v4864
    %5647 = vmatprep.subr.bf16.mxu0 %v4849
    %5648 = vmatpush1.bf16.msra.mxu0 %v4848
    %5649 = vmatprep.subr.bf16.mxu0 %v5089
    %5650 = vmatpush2.bf16.msra.mxu0 %v5088
    %5651 = vmatprep.subr.bf16.mxu0 %v5073
    %5652 = vmatpush2.bf16.msra.mxu0 %v5072
    %5653 = vmatprep.subr.bf16.mxu0 %v5057
    %5654 = vmatpush2.bf16.msra.mxu0 %v5056
    %5655 = vmatprep.subr.bf16.mxu0 %v5041
    %5656 = vmatpush2.bf16.msra.mxu0 %v5040
    %5657 = vmatprep.subr.bf16.mxu0 %v5025
    %5658 = vmatpush2.bf16.msra.mxu0 %v5024
    %5659 = vmatprep.subr.bf16.mxu0 %v5009
    %5660 = vmatpush2.bf16.msra.mxu0 %v5008
    %5661 = vmatprep.subr.bf16.mxu0 %v4993
    %5662 = vmatpush2.bf16.msra.mxu0 %v4992
    %5663 = vmatprep.subr.bf16.mxu0 %v4977
    %5664 = vmatpush2.bf16.msra.mxu0 %v4976
    %5665 = vmatprep.mubr.bf16.mxu0 %v3551
    %5666 = vmatmul.mubr.bf16.gmra.mxu0 %v3550
    %v5667 = vpop.f32.mrf.mxu0
    %v5668 = vadd.f32 0.0, %v5667
    %v5669 = vpop.f32.mrf.mxu0
    %v5670 = vadd.f32 0.0, %v5669
    %v5671 = vpop.f32.mrf.mxu0
    %v5672 = vpop.f32.mrf.mxu0
    %5673 = vdwg.mxu0
    %v5930 = vunpack.c.l.b16 %v3554
    %v5931 = vunpack.c.h.b16 %v3554
    %v5932 = vunpack.c.l.b16 %v3555
    %v5933 = vunpack.c.h.b16 %v3555
    %v5934 = vunpack.c.l.b16 %v3556
    %v5935 = vunpack.c.h.b16 %v3556
    %v5936 = vunpack.c.l.b16 %v3557
    %v5937 = vunpack.c.h.b16 %v3557
    %v5938 = vunpack.c.l.b16 %v3558
    %v5939 = vunpack.c.h.b16 %v3558
    %v5940 = vunpack.c.l.b16 %v3559
    %v5941 = vunpack.c.h.b16 %v3559
    %v5942 = vunpack.c.l.b16 %v3560
    %v5943 = vunpack.c.h.b16 %v3560
    %v5944 = vunpack.c.l.b16 %v3561
    %v5945 = vunpack.c.h.b16 %v3561
    %v5946 = vunpack.c.l.b16 %v3562
    %v5947 = vunpack.c.h.b16 %v3562
    %v5948 = vunpack.c.l.b16 %v3563
    %v5949 = vunpack.c.h.b16 %v3563
    %v5950 = vunpack.c.l.b16 %v3564
    %v5951 = vunpack.c.h.b16 %v3564
    %v5952 = vunpack.c.l.b16 %v3565
    %v5953 = vunpack.c.h.b16 %v3565
    %v5954 = vunpack.c.l.b16 %v3566
    %v5955 = vunpack.c.h.b16 %v3566
    %v5956 = vunpack.c.l.b16 %v3567
    %v5957 = vunpack.c.h.b16 %v3567
    %v5958 = vunpack.c.l.b16 %v3568
    %v5959 = vunpack.c.h.b16 %v3568
    %v5960 = vunpack.c.l.b16 %v3569
    %v5961 = vunpack.c.h.b16 %v3569
    %v5962 = vunpack.c.l.b16 %v3570
    %v5963 = vunpack.c.h.b16 %v3570
    %v5964 = vunpack.c.l.b16 %v3571
    %v5965 = vunpack.c.h.b16 %v3571
    %v5966 = vunpack.c.l.b16 %v3572
    %v5967 = vunpack.c.h.b16 %v3572
    %v5968 = vunpack.c.l.b16 %v3573
    %v5969 = vunpack.c.h.b16 %v3573
    %v5970 = vunpack.c.l.b16 %v3574
    %v5971 = vunpack.c.h.b16 %v3574
    %v5972 = vunpack.c.l.b16 %v3575
    %v5973 = vunpack.c.h.b16 %v3575
    %v5974 = vunpack.c.l.b16 %v3576
    %v5975 = vunpack.c.h.b16 %v3576
    %v5976 = vunpack.c.l.b16 %v3577
    %v5977 = vunpack.c.h.b16 %v3577
    %v5978 = vunpack.c.l.b16 %v3578
    %v5979 = vunpack.c.h.b16 %v3578
    %v5980 = vunpack.c.l.b16 %v3579
    %v5981 = vunpack.c.h.b16 %v3579
    %v5982 = vunpack.c.l.b16 %v3580
    %v5983 = vunpack.c.h.b16 %v3580
    %v5984 = vunpack.c.l.b16 %v3581
    %v5985 = vunpack.c.h.b16 %v3581
    %v5986 = vunpack.c.l.b16 %v3582
    %v5987 = vunpack.c.h.b16 %v3582
    %v5988 = vunpack.c.l.b16 %v3583
    %v5989 = vunpack.c.h.b16 %v3583
    %v5990 = vunpack.c.l.b16 %v3584
    %v5991 = vunpack.c.h.b16 %v3584
    %v5992 = vunpack.c.l.b16 %v3585
    %v5993 = vunpack.c.h.b16 %v3585
    %v5994 = vunpack.c.l.b16 %v3586
    %v5995 = vunpack.c.h.b16 %v3586
    %v5996 = vunpack.c.l.b16 %v3587
    %v5997 = vunpack.c.h.b16 %v3587
    %v5998 = vunpack.c.l.b16 %v3588
    %v5999 = vunpack.c.h.b16 %v3588
    %v6000 = vunpack.c.l.b16 %v3589
    %v6001 = vunpack.c.h.b16 %v3589
    %v6002 = vunpack.c.l.b16 %v3590
    %v6003 = vunpack.c.h.b16 %v3590
    %v6004 = vunpack.c.l.b16 %v3591
    %v6005 = vunpack.c.h.b16 %v3591
    %v6006 = vunpack.c.l.b16 %v3592
    %v6007 = vunpack.c.h.b16 %v3592
    %v6008 = vunpack.c.l.b16 %v3593
    %v6009 = vunpack.c.h.b16 %v3593
    %v6010 = vunpack.c.l.b16 %v3594
    %v6011 = vunpack.c.h.b16 %v3594
    %v6012 = vunpack.c.l.b16 %v3595
    %v6013 = vunpack.c.h.b16 %v3595
    %v6014 = vunpack.c.l.b16 %v3596
    %v6015 = vunpack.c.h.b16 %v3596
    %v6016 = vunpack.c.l.b16 %v3597
    %v6017 = vunpack.c.h.b16 %v3597
    %v6018 = vunpack.c.l.b16 %v3598
    %v6019 = vunpack.c.h.b16 %v3598
    %v6020 = vunpack.c.l.b16 %v3599
    %v6021 = vunpack.c.h.b16 %v3599
    %v6022 = vunpack.c.l.b16 %v3600
    %v6023 = vunpack.c.h.b16 %v3600
    %v6024 = vunpack.c.l.b16 %v3601
    %v6025 = vunpack.c.h.b16 %v3601
    %v6026 = vunpack.c.l.b16 %v3602
    %v6027 = vunpack.c.h.b16 %v3602
    %v6028 = vunpack.c.l.b16 %v3603
    %v6029 = vunpack.c.h.b16 %v3603
    %v6030 = vunpack.c.l.b16 %v3604
    %v6031 = vunpack.c.h.b16 %v3604
    %v6032 = vunpack.c.l.b16 %v3605
    %v6033 = vunpack.c.h.b16 %v3605
    %v6034 = vunpack.c.l.b16 %v3606
    %v6035 = vunpack.c.h.b16 %v3606
    %v6036 = vunpack.c.l.b16 %v3607
    %v6037 = vunpack.c.h.b16 %v3607
    %v6038 = vunpack.c.l.b16 %v3608
    %v6039 = vunpack.c.h.b16 %v3608
    %v6040 = vunpack.c.l.b16 %v3609
    %v6041 = vunpack.c.h.b16 %v3609
    %v6042 = vunpack.c.l.b16 %v3610
    %v6043 = vunpack.c.h.b16 %v3610
    %v6044 = vunpack.c.l.b16 %v3611
    %v6045 = vunpack.c.h.b16 %v3611
    %v6046 = vunpack.c.l.b16 %v3612
    %v6047 = vunpack.c.h.b16 %v3612
    %v6048 = vunpack.c.l.b16 %v3613
    %v6049 = vunpack.c.h.b16 %v3613
    %v6050 = vunpack.c.l.b16 %v3614
    %v6051 = vunpack.c.h.b16 %v3614
    %v6052 = vunpack.c.l.b16 %v3615
    %v6053 = vunpack.c.h.b16 %v3615
    %v6054 = vunpack.c.l.b16 %v3616
    %v6055 = vunpack.c.h.b16 %v3616
    %v6056 = vunpack.c.l.b16 %v3617
    %v6057 = vunpack.c.h.b16 %v3617
    %v6058 = vunpack.c.l.b16 %v3618
    %v6059 = vunpack.c.h.b16 %v3618
    %v6060 = vunpack.c.l.b16 %v3619
    %v6061 = vunpack.c.h.b16 %v3619
    %v6062 = vunpack.c.l.b16 %v3620
    %v6063 = vunpack.c.h.b16 %v3620
    %v6064 = vunpack.c.l.b16 %v3621
    %v6065 = vunpack.c.h.b16 %v3621
    %v6066 = vunpack.c.l.b16 %v3622
    %v6067 = vunpack.c.h.b16 %v3622
    %v6068 = vunpack.c.l.b16 %v3623
    %v6069 = vunpack.c.h.b16 %v3623
    %v6070 = vunpack.c.l.b16 %v3624
    %v6071 = vunpack.c.h.b16 %v3624
    %v6072 = vunpack.c.l.b16 %v3625
    %v6073 = vunpack.c.h.b16 %v3625
    %v6074 = vunpack.c.l.b16 %v3626
    %v6075 = vunpack.c.h.b16 %v3626
    %v6076 = vunpack.c.l.b16 %v3627
    %v6077 = vunpack.c.h.b16 %v3627
    %v6078 = vunpack.c.l.b16 %v3628
    %v6079 = vunpack.c.h.b16 %v3628
    %v6080 = vunpack.c.l.b16 %v3629
    %v6081 = vunpack.c.h.b16 %v3629
    %v6082 = vunpack.c.l.b16 %v3630
    %v6083 = vunpack.c.h.b16 %v3630
    %v6084 = vunpack.c.l.b16 %v3631
    %v6085 = vunpack.c.h.b16 %v3631
    %v6086 = vunpack.c.l.b16 %v3632
    %v6087 = vunpack.c.h.b16 %v3632
    %v6088 = vunpack.c.l.b16 %v3633
    %v6089 = vunpack.c.h.b16 %v3633
    %v6090 = vunpack.c.l.b16 %v3634
    %v6091 = vunpack.c.h.b16 %v3634
    %v6092 = vunpack.c.l.b16 %v3635
    %v6093 = vunpack.c.h.b16 %v3635
    %v6094 = vunpack.c.l.b16 %v3636
    %v6095 = vunpack.c.h.b16 %v3636
    %v6096 = vunpack.c.l.b16 %v3637
    %v6097 = vunpack.c.h.b16 %v3637
    %v6098 = vunpack.c.l.b16 %v3638
    %v6099 = vunpack.c.h.b16 %v3638
    %v6100 = vunpack.c.l.b16 %v3639
    %v6101 = vunpack.c.h.b16 %v3639
    %v6102 = vunpack.c.l.b16 %v3640
    %v6103 = vunpack.c.h.b16 %v3640
    %v6104 = vunpack.c.l.b16 %v3641
    %v6105 = vunpack.c.h.b16 %v3641
    %v6106 = vunpack.c.l.b16 %v3642
    %v6107 = vunpack.c.h.b16 %v3642
    %v6108 = vunpack.c.l.b16 %v3643
    %v6109 = vunpack.c.h.b16 %v3643
    %v6110 = vunpack.c.l.b16 %v3644
    %v6111 = vunpack.c.h.b16 %v3644
    %v6112 = vunpack.c.l.b16 %v3645
    %v6113 = vunpack.c.h.b16 %v3645
    %v6114 = vunpack.c.l.b16 %v3646
    %v6115 = vunpack.c.h.b16 %v3646
    %v6116 = vunpack.c.l.b16 %v3647
    %v6117 = vunpack.c.h.b16 %v3647
    %v6118 = vunpack.c.l.b16 %v3648
    %v6119 = vunpack.c.h.b16 %v3648
    %v6120 = vunpack.c.l.b16 %v3649
    %v6121 = vunpack.c.h.b16 %v3649
    %v6122 = vunpack.c.l.b16 %v3650
    %v6123 = vunpack.c.h.b16 %v3650
    %v6124 = vunpack.c.l.b16 %v3651
    %v6125 = vunpack.c.h.b16 %v3651
    %v6126 = vunpack.c.l.b16 %v3652
    %v6127 = vunpack.c.h.b16 %v3652
    %v6128 = vunpack.c.l.b16 %v3653
    %v6129 = vunpack.c.h.b16 %v3653
    %v6130 = vunpack.c.l.b16 %v3654
    %v6131 = vunpack.c.h.b16 %v3654
    %v6132 = vunpack.c.l.b16 %v3655
    %v6133 = vunpack.c.h.b16 %v3655
    %v6134 = vunpack.c.l.b16 %v3656
    %v6135 = vunpack.c.h.b16 %v3656
    %v6136 = vunpack.c.l.b16 %v3657
    %v6137 = vunpack.c.h.b16 %v3657
    %v6138 = vunpack.c.l.b16 %v3658
    %v6139 = vunpack.c.h.b16 %v3658
    %v6140 = vunpack.c.l.b16 %v3659
    %v6141 = vunpack.c.h.b16 %v3659
    %v6142 = vunpack.c.l.b16 %v3660
    %v6143 = vunpack.c.h.b16 %v3660
    %v6144 = vunpack.c.l.b16 %v3661
    %v6145 = vunpack.c.h.b16 %v3661
    %v6146 = vunpack.c.l.b16 %v3662
    %v6147 = vunpack.c.h.b16 %v3662
    %v6148 = vunpack.c.l.b16 %v3663
    %v6149 = vunpack.c.h.b16 %v3663
    %v6150 = vunpack.c.l.b16 %v3664
    %v6151 = vunpack.c.h.b16 %v3664
    %v6152 = vunpack.c.l.b16 %v3665
    %v6153 = vunpack.c.h.b16 %v3665
    %v6154 = vunpack.c.l.b16 %v3666
    %v6155 = vunpack.c.h.b16 %v3666
    %v6156 = vunpack.c.l.b16 %v3667
    %v6157 = vunpack.c.h.b16 %v3667
    %v6158 = vunpack.c.l.b16 %v3668
    %v6159 = vunpack.c.h.b16 %v3668
    %v6160 = vunpack.c.l.b16 %v3669
    %v6161 = vunpack.c.h.b16 %v3669
    %v6162 = vunpack.c.l.b16 %v3670
    %v6163 = vunpack.c.h.b16 %v3670
    %v6164 = vunpack.c.l.b16 %v3671
    %v6165 = vunpack.c.h.b16 %v3671
    %v6166 = vunpack.c.l.b16 %v3672
    %v6167 = vunpack.c.h.b16 %v3672
    %v6168 = vunpack.c.l.b16 %v3673
    %v6169 = vunpack.c.h.b16 %v3673
    %v6170 = vunpack.c.l.b16 %v3674
    %v6171 = vunpack.c.h.b16 %v3674
    %v6172 = vunpack.c.l.b16 %v3675
    %v6173 = vunpack.c.h.b16 %v3675
    %v6174 = vunpack.c.l.b16 %v3676
    %v6175 = vunpack.c.h.b16 %v3676
    %v6176 = vunpack.c.l.b16 %v3677
    %v6177 = vunpack.c.h.b16 %v3677
    %v6178 = vunpack.c.l.b16 %v3678
    %v6179 = vunpack.c.h.b16 %v3678
    %v6180 = vunpack.c.l.b16 %v3679
    %v6181 = vunpack.c.h.b16 %v3679
    %v6182 = vunpack.c.l.b16 %v3680
    %v6183 = vunpack.c.h.b16 %v3680
    %v6184 = vunpack.c.l.b16 %v3681
    %v6185 = vunpack.c.h.b16 %v3681
    %v6186 = vunpack.c.l.b16 %v3682
    %v6187 = vunpack.c.h.b16 %v3682
    %v6188 = vunpack.c.l.b16 %v3683
    %v6189 = vunpack.c.h.b16 %v3683
    %v6190 = vunpack.c.l.b16 %v3684
    %v6191 = vunpack.c.h.b16 %v3684
    %v6192 = vunpack.c.l.b16 %v3685
    %v6193 = vunpack.c.h.b16 %v3685
    %v6194 = vunpack.c.l.b16 %v3686
    %v6195 = vunpack.c.h.b16 %v3686
    %v6196 = vunpack.c.l.b16 %v3687
    %v6197 = vunpack.c.h.b16 %v3687
    %v6198 = vunpack.c.l.b16 %v3688
    %v6199 = vunpack.c.h.b16 %v3688
    %v6200 = vunpack.c.l.b16 %v3689
    %v6201 = vunpack.c.h.b16 %v3689
    %v6202 = vunpack.c.l.b16 %v3690
    %v6203 = vunpack.c.h.b16 %v3690
    %v6204 = vunpack.c.l.b16 %v3691
    %v6205 = vunpack.c.h.b16 %v3691
    %v6206 = vunpack.c.l.b16 %v3692
    %v6207 = vunpack.c.h.b16 %v3692
    %v6208 = vunpack.c.l.b16 %v3693
    %v6209 = vunpack.c.h.b16 %v3693
    %v6210 = vunpack.c.l.b16 %v3694
    %v6211 = vunpack.c.h.b16 %v3694
    %v6212 = vunpack.c.l.b16 %v3695
    %v6213 = vunpack.c.h.b16 %v3695
    %v6214 = vunpack.c.l.b16 %v3696
    %v6215 = vunpack.c.h.b16 %v3696
    %v6216 = vunpack.c.l.b16 %v3697
    %v6217 = vunpack.c.h.b16 %v3697
    %v6218 = vunpack.c.l.b16 %v3698
    %v6219 = vunpack.c.h.b16 %v3698
    %v6220 = vunpack.c.l.b16 %v3699
    %v6221 = vunpack.c.h.b16 %v3699
    %v6222 = vunpack.c.l.b16 %v3700
    %v6223 = vunpack.c.h.b16 %v3700
    %v6224 = vunpack.c.l.b16 %v3701
    %v6225 = vunpack.c.h.b16 %v3701
    %v6226 = vunpack.c.l.b16 %v3702
    %v6227 = vunpack.c.h.b16 %v3702
    %v6228 = vunpack.c.l.b16 %v3703
    %v6229 = vunpack.c.h.b16 %v3703
    %v6230 = vunpack.c.l.b16 %v3704
    %v6231 = vunpack.c.h.b16 %v3704
    %v6232 = vunpack.c.l.b16 %v3705
    %v6233 = vunpack.c.h.b16 %v3705
    %v6234 = vunpack.c.l.b16 %v3706
    %v6235 = vunpack.c.h.b16 %v3706
    %v6236 = vunpack.c.l.b16 %v3707
    %v6237 = vunpack.c.h.b16 %v3707
    %v6238 = vunpack.c.l.b16 %v3708
    %v6239 = vunpack.c.h.b16 %v3708
    %v6240 = vunpack.c.l.b16 %v3709
    %v6241 = vunpack.c.h.b16 %v3709
    %v6242 = vunpack.c.l.b16 %v3710
    %v6243 = vunpack.c.h.b16 %v3710
    %v6244 = vunpack.c.l.b16 %v3711
    %v6245 = vunpack.c.h.b16 %v3711
    %v6246 = vunpack.c.l.b16 %v3712
    %v6247 = vunpack.c.h.b16 %v3712
    %v6248 = vunpack.c.l.b16 %v3713
    %v6249 = vunpack.c.h.b16 %v3713
    %v6250 = vunpack.c.l.b16 %v3714
    %v6251 = vunpack.c.h.b16 %v3714
    %v6252 = vunpack.c.l.b16 %v3715
    %v6253 = vunpack.c.h.b16 %v3715
    %v6254 = vunpack.c.l.b16 %v3716
    %v6255 = vunpack.c.h.b16 %v3716
    %v6256 = vunpack.c.l.b16 %v3717
    %v6257 = vunpack.c.h.b16 %v3717
    %v6258 = vunpack.c.l.b16 %v3718
    %v6259 = vunpack.c.h.b16 %v3718
    %v6260 = vunpack.c.l.b16 %v3719
    %v6261 = vunpack.c.h.b16 %v3719
    %v6262 = vunpack.c.l.b16 %v3720
    %v6263 = vunpack.c.h.b16 %v3720
    %v6264 = vunpack.c.l.b16 %v3721
    %v6265 = vunpack.c.h.b16 %v3721
    %v6266 = vunpack.c.l.b16 %v3722
    %v6267 = vunpack.c.h.b16 %v3722
    %v6268 = vunpack.c.l.b16 %v3723
    %v6269 = vunpack.c.h.b16 %v3723
    %v6270 = vunpack.c.l.b16 %v3724
    %v6271 = vunpack.c.h.b16 %v3724
    %v6272 = vunpack.c.l.b16 %v3725
    %v6273 = vunpack.c.h.b16 %v3725
    %v6274 = vunpack.c.l.b16 %v3726
    %v6275 = vunpack.c.h.b16 %v3726
    %v6276 = vunpack.c.l.b16 %v3727
    %v6277 = vunpack.c.h.b16 %v3727
    %v6278 = vunpack.c.l.b16 %v3728
    %v6279 = vunpack.c.h.b16 %v3728
    %v6280 = vunpack.c.l.b16 %v3729
    %v6281 = vunpack.c.h.b16 %v3729
    %v6282 = vunpack.c.l.b16 %v3730
    %v6283 = vunpack.c.h.b16 %v3730
    %v6284 = vunpack.c.l.b16 %v3731
    %v6285 = vunpack.c.h.b16 %v3731
    %v6286 = vunpack.c.l.b16 %v3732
    %v6287 = vunpack.c.h.b16 %v3732
    %v6288 = vunpack.c.l.b16 %v3733
    %v6289 = vunpack.c.h.b16 %v3733
    %v6290 = vunpack.c.l.b16 %v3734
    %v6291 = vunpack.c.h.b16 %v3734
    %v6292 = vunpack.c.l.b16 %v3735
    %v6293 = vunpack.c.h.b16 %v3735
    %v6294 = vunpack.c.l.b16 %v3736
    %v6295 = vunpack.c.h.b16 %v3736
    %v6296 = vunpack.c.l.b16 %v3737
    %v6297 = vunpack.c.h.b16 %v3737
    %v6298 = vunpack.c.l.b16 %v3738
    %v6299 = vunpack.c.h.b16 %v3738
    %v6300 = vunpack.c.l.b16 %v3739
    %v6301 = vunpack.c.h.b16 %v3739
    %v6302 = vunpack.c.l.b16 %v3740
    %v6303 = vunpack.c.h.b16 %v3740
    %v6304 = vunpack.c.l.b16 %v3741
    %v6305 = vunpack.c.h.b16 %v3741
    %v6306 = vunpack.c.l.b16 %v3742
    %v6307 = vunpack.c.h.b16 %v3742
    %v6308 = vunpack.c.l.b16 %v3743
    %v6309 = vunpack.c.h.b16 %v3743
    %v6310 = vunpack.c.l.b16 %v3744
    %v6311 = vunpack.c.h.b16 %v3744
    %v6312 = vunpack.c.l.b16 %v3745
    %v6313 = vunpack.c.h.b16 %v3745
    %v6314 = vunpack.c.l.b16 %v3746
    %v6315 = vunpack.c.h.b16 %v3746
    %v6316 = vunpack.c.l.b16 %v3747
    %v6317 = vunpack.c.h.b16 %v3747
    %v6318 = vunpack.c.l.b16 %v3748
    %v6319 = vunpack.c.h.b16 %v3748
    %v6320 = vunpack.c.l.b16 %v3749
    %v6321 = vunpack.c.h.b16 %v3749
    %v6322 = vunpack.c.l.b16 %v3750
    %v6323 = vunpack.c.h.b16 %v3750
    %v6324 = vunpack.c.l.b16 %v3751
    %v6325 = vunpack.c.h.b16 %v3751
    %v6326 = vunpack.c.l.b16 %v3752
    %v6327 = vunpack.c.h.b16 %v3752
    %v6328 = vunpack.c.l.b16 %v3753
    %v6329 = vunpack.c.h.b16 %v3753
    %v6330 = vunpack.c.l.b16 %v3754
    %v6331 = vunpack.c.h.b16 %v3754
    %v6332 = vunpack.c.l.b16 %v3755
    %v6333 = vunpack.c.h.b16 %v3755
    %v6334 = vunpack.c.l.b16 %v3756
    %v6335 = vunpack.c.h.b16 %v3756
    %v6336 = vunpack.c.l.b16 %v3757
    %v6337 = vunpack.c.h.b16 %v3757
    %v6338 = vunpack.c.l.b16 %v3758
    %v6339 = vunpack.c.h.b16 %v3758
    %v6340 = vunpack.c.l.b16 %v3759
    %v6341 = vunpack.c.h.b16 %v3759
    %v6342 = vunpack.c.l.b16 %v3760
    %v6343 = vunpack.c.h.b16 %v3760
    %v6344 = vunpack.c.l.b16 %v3761
    %v6345 = vunpack.c.h.b16 %v3761
    %v6346 = vunpack.c.l.b16 %v3762
    %v6347 = vunpack.c.h.b16 %v3762
    %v6348 = vunpack.c.l.b16 %v3763
    %v6349 = vunpack.c.h.b16 %v3763
    %v6350 = vunpack.c.l.b16 %v3764
    %v6351 = vunpack.c.h.b16 %v3764
    %v6352 = vunpack.c.l.b16 %v3765
    %v6353 = vunpack.c.h.b16 %v3765
    %v6354 = vunpack.c.l.b16 %v3766
    %v6355 = vunpack.c.h.b16 %v3766
    %v6356 = vunpack.c.l.b16 %v3767
    %v6357 = vunpack.c.h.b16 %v3767
    %v6358 = vunpack.c.l.b16 %v3768
    %v6359 = vunpack.c.h.b16 %v3768
    %v6360 = vunpack.c.l.b16 %v3769
    %v6361 = vunpack.c.h.b16 %v3769
    %v6362 = vunpack.c.l.b16 %v3770
    %v6363 = vunpack.c.h.b16 %v3770
    %v6364 = vunpack.c.l.b16 %v3771
    %v6365 = vunpack.c.h.b16 %v3771
    %v6366 = vunpack.c.l.b16 %v3772
    %v6367 = vunpack.c.h.b16 %v3772
    %v6368 = vunpack.c.l.b16 %v3773
    %v6369 = vunpack.c.h.b16 %v3773
    %v6370 = vunpack.c.l.b16 %v3774
    %v6371 = vunpack.c.h.b16 %v3774
    %v6372 = vunpack.c.l.b16 %v3775
    %v6373 = vunpack.c.h.b16 %v3775
    %v6374 = vunpack.c.l.b16 %v3776
    %v6375 = vunpack.c.h.b16 %v3776
    %v6376 = vunpack.c.l.b16 %v3777
    %v6377 = vunpack.c.h.b16 %v3777
    %v6378 = vunpack.c.l.b16 %v3778
    %v6379 = vunpack.c.h.b16 %v3778
    %v6380 = vunpack.c.l.b16 %v3779
    %v6381 = vunpack.c.h.b16 %v3779
    %v6382 = vunpack.c.l.b16 %v3780
    %v6383 = vunpack.c.h.b16 %v3780
    %v6384 = vunpack.c.l.b16 %v3781
    %v6385 = vunpack.c.h.b16 %v3781
    %v6386 = vunpack.c.l.b16 %v3782
    %v6387 = vunpack.c.h.b16 %v3782
    %v6388 = vunpack.c.l.b16 %v3783
    %v6389 = vunpack.c.h.b16 %v3783
    %v6390 = vunpack.c.l.b16 %v3784
    %v6391 = vunpack.c.h.b16 %v3784
    %v6392 = vunpack.c.l.b16 %v3785
    %v6393 = vunpack.c.h.b16 %v3785
    %v6394 = vunpack.c.l.b16 %v3786
    %v6395 = vunpack.c.h.b16 %v3786
    %v6396 = vunpack.c.l.b16 %v3787
    %v6397 = vunpack.c.h.b16 %v3787
    %v6398 = vunpack.c.l.b16 %v3788
    %v6399 = vunpack.c.h.b16 %v3788
    %v6400 = vunpack.c.l.b16 %v3789
    %v6401 = vunpack.c.h.b16 %v3789
    %v6402 = vunpack.c.l.b16 %v3790
    %v6403 = vunpack.c.h.b16 %v3790
    %v6404 = vunpack.c.l.b16 %v3791
    %v6405 = vunpack.c.h.b16 %v3791
    %v6406 = vunpack.c.l.b16 %v3792
    %v6407 = vunpack.c.h.b16 %v3792
    %v6408 = vunpack.c.l.b16 %v3793
    %v6409 = vunpack.c.h.b16 %v3793
    %v6410 = vunpack.c.l.b16 %v3794
    %v6411 = vunpack.c.h.b16 %v3794
    %v6412 = vunpack.c.l.b16 %v3795
    %v6413 = vunpack.c.h.b16 %v3795
    %v6414 = vunpack.c.l.b16 %v3796
    %v6415 = vunpack.c.h.b16 %v3796
    %v6416 = vunpack.c.l.b16 %v3797
    %v6417 = vunpack.c.h.b16 %v3797
    %v6418 = vunpack.c.l.b16 %v3798
    %v6419 = vunpack.c.h.b16 %v3798
    %v6420 = vunpack.c.l.b16 %v3799
    %v6421 = vunpack.c.h.b16 %v3799
    %v6422 = vunpack.c.l.b16 %v3800
    %v6423 = vunpack.c.h.b16 %v3800
    %v6424 = vunpack.c.l.b16 %v3801
    %v6425 = vunpack.c.h.b16 %v3801
    %v6426 = vunpack.c.l.b16 %v3802
    %v6427 = vunpack.c.h.b16 %v3802
    %v6428 = vunpack.c.l.b16 %v3803
    %v6429 = vunpack.c.h.b16 %v3803
    %v6430 = vunpack.c.l.b16 %v3804
    %v6431 = vunpack.c.h.b16 %v3804
    %v6432 = vunpack.c.l.b16 %v3805
    %v6433 = vunpack.c.h.b16 %v3805
    %v6434 = vunpack.c.l.b16 %v3806
    %v6435 = vunpack.c.h.b16 %v3806
    %v6436 = vunpack.c.l.b16 %v3807
    %v6437 = vunpack.c.h.b16 %v3807
    %v6438 = vunpack.c.l.b16 %v3808
    %v6439 = vunpack.c.h.b16 %v3808
    %v6440 = vunpack.c.l.b16 %v3809
    %v6441 = vunpack.c.h.b16 %v3809
    %v6442 = vpack.c.b16 %v5946, %v5930
    %v6443 = vpack.c.b16 %v5947, %v5931
    %v6444 = vpack.c.b16 %v5948, %v5932
    %v6445 = vpack.c.b16 %v5949, %v5933
    %v6446 = vpack.c.b16 %v5950, %v5934
    %v6447 = vpack.c.b16 %v5951, %v5935
    %v6448 = vpack.c.b16 %v5952, %v5936
    %v6449 = vpack.c.b16 %v5953, %v5937
    %v6450 = vpack.c.b16 %v5954, %v5938
    %v6451 = vpack.c.b16 %v5955, %v5939
    %v6452 = vpack.c.b16 %v5956, %v5940
    %v6453 = vpack.c.b16 %v5957, %v5941
    %v6454 = vpack.c.b16 %v5958, %v5942
    %v6455 = vpack.c.b16 %v5959, %v5943
    %v6456 = vpack.c.b16 %v5960, %v5944
    %v6457 = vpack.c.b16 %v5961, %v5945
    %v6458 = vpack.c.b16 %v5978, %v5962
    %v6459 = vpack.c.b16 %v5979, %v5963
    %v6460 = vpack.c.b16 %v5980, %v5964
    %v6461 = vpack.c.b16 %v5981, %v5965
    %v6462 = vpack.c.b16 %v5982, %v5966
    %v6463 = vpack.c.b16 %v5983, %v5967
    %v6464 = vpack.c.b16 %v5984, %v5968
    %v6465 = vpack.c.b16 %v5985, %v5969
    %v6466 = vpack.c.b16 %v5986, %v5970
    %v6467 = vpack.c.b16 %v5987, %v5971
    %v6468 = vpack.c.b16 %v5988, %v5972
    %v6469 = vpack.c.b16 %v5989, %v5973
    %v6470 = vpack.c.b16 %v5990, %v5974
    %v6471 = vpack.c.b16 %v5991, %v5975
    %v6472 = vpack.c.b16 %v5992, %v5976
    %v6473 = vpack.c.b16 %v5993, %v5977
    %v6474 = vpack.c.b16 %v6010, %v5994
    %v6475 = vpack.c.b16 %v6011, %v5995
    %v6476 = vpack.c.b16 %v6012, %v5996
    %v6477 = vpack.c.b16 %v6013, %v5997
    %v6478 = vpack.c.b16 %v6014, %v5998
    %v6479 = vpack.c.b16 %v6015, %v5999
    %v6480 = vpack.c.b16 %v6016, %v6000
    %v6481 = vpack.c.b16 %v6017, %v6001
    %v6482 = vpack.c.b16 %v6018, %v6002
    %v6483 = vpack.c.b16 %v6019, %v6003
    %v6484 = vpack.c.b16 %v6020, %v6004
    %v6485 = vpack.c.b16 %v6021, %v6005
    %v6486 = vpack.c.b16 %v6022, %v6006
    %v6487 = vpack.c.b16 %v6023, %v6007
    %v6488 = vpack.c.b16 %v6024, %v6008
    %v6489 = vpack.c.b16 %v6025, %v6009
    %v6490 = vpack.c.b16 %v6042, %v6026
    %v6491 = vpack.c.b16 %v6043, %v6027
    %v6492 = vpack.c.b16 %v6044, %v6028
    %v6493 = vpack.c.b16 %v6045, %v6029
    %v6494 = vpack.c.b16 %v6046, %v6030
    %v6495 = vpack.c.b16 %v6047, %v6031
    %v6496 = vpack.c.b16 %v6048, %v6032
    %v6497 = vpack.c.b16 %v6049, %v6033
    %v6498 = vpack.c.b16 %v6050, %v6034
    %v6499 = vpack.c.b16 %v6051, %v6035
    %v6500 = vpack.c.b16 %v6052, %v6036
    %v6501 = vpack.c.b16 %v6053, %v6037
    %v6502 = vpack.c.b16 %v6054, %v6038
    %v6503 = vpack.c.b16 %v6055, %v6039
    %v6504 = vpack.c.b16 %v6056, %v6040
    %v6505 = vpack.c.b16 %v6057, %v6041
    %v6506 = vpack.c.b16 %v6074, %v6058
    %v6507 = vpack.c.b16 %v6075, %v6059
    %v6508 = vpack.c.b16 %v6076, %v6060
    %v6509 = vpack.c.b16 %v6077, %v6061
    %v6510 = vpack.c.b16 %v6078, %v6062
    %v6511 = vpack.c.b16 %v6079, %v6063
    %v6512 = vpack.c.b16 %v6080, %v6064
    %v6513 = vpack.c.b16 %v6081, %v6065
    %v6514 = vpack.c.b16 %v6082, %v6066
    %v6515 = vpack.c.b16 %v6083, %v6067
    %v6516 = vpack.c.b16 %v6084, %v6068
    %v6517 = vpack.c.b16 %v6085, %v6069
    %v6518 = vpack.c.b16 %v6086, %v6070
    %v6519 = vpack.c.b16 %v6087, %v6071
    %v6520 = vpack.c.b16 %v6088, %v6072
    %v6521 = vpack.c.b16 %v6089, %v6073
    %v6522 = vpack.c.b16 %v6106, %v6090
    %v6523 = vpack.c.b16 %v6107, %v6091
    %v6524 = vpack.c.b16 %v6108, %v6092
    %v6525 = vpack.c.b16 %v6109, %v6093
    %v6526 = vpack.c.b16 %v6110, %v6094
    %v6527 = vpack.c.b16 %v6111, %v6095
    %v6528 = vpack.c.b16 %v6112, %v6096
    %v6529 = vpack.c.b16 %v6113, %v6097
    %v6530 = vpack.c.b16 %v6114, %v6098
    %v6531 = vpack.c.b16 %v6115, %v6099
    %v6532 = vpack.c.b16 %v6116, %v6100
    %v6533 = vpack.c.b16 %v6117, %v6101
    %v6534 = vpack.c.b16 %v6118, %v6102
    %v6535 = vpack.c.b16 %v6119, %v6103
    %v6536 = vpack.c.b16 %v6120, %v6104
    %v6537 = vpack.c.b16 %v6121, %v6105
    %v6538 = vpack.c.b16 %v6138, %v6122
    %v6539 = vpack.c.b16 %v6139, %v6123
    %v6540 = vpack.c.b16 %v6140, %v6124
    %v6541 = vpack.c.b16 %v6141, %v6125
    %v6542 = vpack.c.b16 %v6142, %v6126
    %v6543 = vpack.c.b16 %v6143, %v6127
    %v6544 = vpack.c.b16 %v6144, %v6128
    %v6545 = vpack.c.b16 %v6145, %v6129
    %v6546 = vpack.c.b16 %v6146, %v6130
    %v6547 = vpack.c.b16 %v6147, %v6131
    %v6548 = vpack.c.b16 %v6148, %v6132
    %v6549 = vpack.c.b16 %v6149, %v6133
    %v6550 = vpack.c.b16 %v6150, %v6134
    %v6551 = vpack.c.b16 %v6151, %v6135
    %v6552 = vpack.c.b16 %v6152, %v6136
    %v6553 = vpack.c.b16 %v6153, %v6137
    %v6554 = vpack.c.b16 %v6170, %v6154
    %v6555 = vpack.c.b16 %v6171, %v6155
    %v6556 = vpack.c.b16 %v6172, %v6156
    %v6557 = vpack.c.b16 %v6173, %v6157
    %v6558 = vpack.c.b16 %v6174, %v6158
    %v6559 = vpack.c.b16 %v6175, %v6159
    %v6560 = vpack.c.b16 %v6176, %v6160
    %v6561 = vpack.c.b16 %v6177, %v6161
    %v6562 = vpack.c.b16 %v6178, %v6162
    %v6563 = vpack.c.b16 %v6179, %v6163
    %v6564 = vpack.c.b16 %v6180, %v6164
    %v6565 = vpack.c.b16 %v6181, %v6165
    %v6566 = vpack.c.b16 %v6182, %v6166
    %v6567 = vpack.c.b16 %v6183, %v6167
    %v6568 = vpack.c.b16 %v6184, %v6168
    %v6569 = vpack.c.b16 %v6185, %v6169
    %v6570 = vpack.c.b16 %v6202, %v6186
    %v6571 = vpack.c.b16 %v6203, %v6187
    %v6572 = vpack.c.b16 %v6204, %v6188
    %v6573 = vpack.c.b16 %v6205, %v6189
    %v6574 = vpack.c.b16 %v6206, %v6190
    %v6575 = vpack.c.b16 %v6207, %v6191
    %v6576 = vpack.c.b16 %v6208, %v6192
    %v6577 = vpack.c.b16 %v6209, %v6193
    %v6578 = vpack.c.b16 %v6210, %v6194
    %v6579 = vpack.c.b16 %v6211, %v6195
    %v6580 = vpack.c.b16 %v6212, %v6196
    %v6581 = vpack.c.b16 %v6213, %v6197
    %v6582 = vpack.c.b16 %v6214, %v6198
    %v6583 = vpack.c.b16 %v6215, %v6199
    %v6584 = vpack.c.b16 %v6216, %v6200
    %v6585 = vpack.c.b16 %v6217, %v6201
    %v6586 = vpack.c.b16 %v6234, %v6218
    %v6587 = vpack.c.b16 %v6235, %v6219
    %v6588 = vpack.c.b16 %v6236, %v6220
    %v6589 = vpack.c.b16 %v6237, %v6221
    %v6590 = vpack.c.b16 %v6238, %v6222
    %v6591 = vpack.c.b16 %v6239, %v6223
    %v6592 = vpack.c.b16 %v6240, %v6224
    %v6593 = vpack.c.b16 %v6241, %v6225
    %v6594 = vpack.c.b16 %v6242, %v6226
    %v6595 = vpack.c.b16 %v6243, %v6227
    %v6596 = vpack.c.b16 %v6244, %v6228
    %v6597 = vpack.c.b16 %v6245, %v6229
    %v6598 = vpack.c.b16 %v6246, %v6230
    %v6599 = vpack.c.b16 %v6247, %v6231
    %v6600 = vpack.c.b16 %v6248, %v6232
    %v6601 = vpack.c.b16 %v6249, %v6233
    %v6602 = vpack.c.b16 %v6266, %v6250
    %v6603 = vpack.c.b16 %v6267, %v6251
    %v6604 = vpack.c.b16 %v6268, %v6252
    %v6605 = vpack.c.b16 %v6269, %v6253
    %v6606 = vpack.c.b16 %v6270, %v6254
    %v6607 = vpack.c.b16 %v6271, %v6255
    %v6608 = vpack.c.b16 %v6272, %v6256
    %v6609 = vpack.c.b16 %v6273, %v6257
    %v6610 = vpack.c.b16 %v6274, %v6258
    %v6611 = vpack.c.b16 %v6275, %v6259
    %v6612 = vpack.c.b16 %v6276, %v6260
    %v6613 = vpack.c.b16 %v6277, %v6261
    %v6614 = vpack.c.b16 %v6278, %v6262
    %v6615 = vpack.c.b16 %v6279, %v6263
    %v6616 = vpack.c.b16 %v6280, %v6264
    %v6617 = vpack.c.b16 %v6281, %v6265
    %v6618 = vpack.c.b16 %v6298, %v6282
    %v6619 = vpack.c.b16 %v6299, %v6283
    %v6620 = vpack.c.b16 %v6300, %v6284
    %v6621 = vpack.c.b16 %v6301, %v6285
    %v6622 = vpack.c.b16 %v6302, %v6286
    %v6623 = vpack.c.b16 %v6303, %v6287
    %v6624 = vpack.c.b16 %v6304, %v6288
    %v6625 = vpack.c.b16 %v6305, %v6289
    %v6626 = vpack.c.b16 %v6306, %v6290
    %v6627 = vpack.c.b16 %v6307, %v6291
    %v6628 = vpack.c.b16 %v6308, %v6292
    %v6629 = vpack.c.b16 %v6309, %v6293
    %v6630 = vpack.c.b16 %v6310, %v6294
    %v6631 = vpack.c.b16 %v6311, %v6295
    %v6632 = vpack.c.b16 %v6312, %v6296
    %v6633 = vpack.c.b16 %v6313, %v6297
    %v6634 = vpack.c.b16 %v6330, %v6314
    %v6635 = vpack.c.b16 %v6331, %v6315
    %v6636 = vpack.c.b16 %v6332, %v6316
    %v6637 = vpack.c.b16 %v6333, %v6317
    %v6638 = vpack.c.b16 %v6334, %v6318
    %v6639 = vpack.c.b16 %v6335, %v6319
    %v6640 = vpack.c.b16 %v6336, %v6320
    %v6641 = vpack.c.b16 %v6337, %v6321
    %v6642 = vpack.c.b16 %v6338, %v6322
    %v6643 = vpack.c.b16 %v6339, %v6323
    %v6644 = vpack.c.b16 %v6340, %v6324
    %v6645 = vpack.c.b16 %v6341, %v6325
    %v6646 = vpack.c.b16 %v6342, %v6326
    %v6647 = vpack.c.b16 %v6343, %v6327
    %v6648 = vpack.c.b16 %v6344, %v6328
    %v6649 = vpack.c.b16 %v6345, %v6329
    %v6650 = vpack.c.b16 %v6362, %v6346
    %v6651 = vpack.c.b16 %v6363, %v6347
    %v6652 = vpack.c.b16 %v6364, %v6348
    %v6653 = vpack.c.b16 %v6365, %v6349
    %v6654 = vpack.c.b16 %v6366, %v6350
    %v6655 = vpack.c.b16 %v6367, %v6351
    %v6656 = vpack.c.b16 %v6368, %v6352
    %v6657 = vpack.c.b16 %v6369, %v6353
    %v6658 = vpack.c.b16 %v6370, %v6354
    %v6659 = vpack.c.b16 %v6371, %v6355
    %v6660 = vpack.c.b16 %v6372, %v6356
    %v6661 = vpack.c.b16 %v6373, %v6357
    %v6662 = vpack.c.b16 %v6374, %v6358
    %v6663 = vpack.c.b16 %v6375, %v6359
    %v6664 = vpack.c.b16 %v6376, %v6360
    %v6665 = vpack.c.b16 %v6377, %v6361
    %v6666 = vpack.c.b16 %v6394, %v6378
    %v6667 = vpack.c.b16 %v6395, %v6379
    %v6668 = vpack.c.b16 %v6396, %v6380
    %v6669 = vpack.c.b16 %v6397, %v6381
    %v6670 = vpack.c.b16 %v6398, %v6382
    %v6671 = vpack.c.b16 %v6399, %v6383
    %v6672 = vpack.c.b16 %v6400, %v6384
    %v6673 = vpack.c.b16 %v6401, %v6385
    %v6674 = vpack.c.b16 %v6402, %v6386
    %v6675 = vpack.c.b16 %v6403, %v6387
    %v6676 = vpack.c.b16 %v6404, %v6388
    %v6677 = vpack.c.b16 %v6405, %v6389
    %v6678 = vpack.c.b16 %v6406, %v6390
    %v6679 = vpack.c.b16 %v6407, %v6391
    %v6680 = vpack.c.b16 %v6408, %v6392
    %v6681 = vpack.c.b16 %v6409, %v6393
    %v6682 = vpack.c.b16 %v6426, %v6410
    %v6683 = vpack.c.b16 %v6427, %v6411
    %v6684 = vpack.c.b16 %v6428, %v6412
    %v6685 = vpack.c.b16 %v6429, %v6413
    %v6686 = vpack.c.b16 %v6430, %v6414
    %v6687 = vpack.c.b16 %v6431, %v6415
    %v6688 = vpack.c.b16 %v6432, %v6416
    %v6689 = vpack.c.b16 %v6433, %v6417
    %v6690 = vpack.c.b16 %v6434, %v6418
    %v6691 = vpack.c.b16 %v6435, %v6419
    %v6692 = vpack.c.b16 %v6436, %v6420
    %v6693 = vpack.c.b16 %v6437, %v6421
    %v6694 = vpack.c.b16 %v6438, %v6422
    %v6695 = vpack.c.b16 %v6439, %v6423
    %v6696 = vpack.c.b16 %v6440, %v6424
    %v6697 = vpack.c.b16 %v6441, %v6425
    %6954 = vmatprep.subr.bf16.mxu0 %v6555
    %6955 = vmatpush1.bf16.msra.mxu0 %v6554
    %6956 = vmatprep.subr.bf16.mxu0 %v6539
    %6957 = vmatpush1.bf16.msra.mxu0 %v6538
    %6958 = vmatprep.subr.bf16.mxu0 %v6523
    %6959 = vmatpush1.bf16.msra.mxu0 %v6522
    %6960 = vmatprep.subr.bf16.mxu0 %v6507
    %6961 = vmatpush1.bf16.msra.mxu0 %v6506
    %6962 = vmatprep.subr.bf16.mxu0 %v6491
    %6963 = vmatpush1.bf16.msra.mxu0 %v6490
    %6964 = vmatprep.subr.bf16.mxu0 %v6475
    %6965 = vmatpush1.bf16.msra.mxu0 %v6474
    %6966 = vmatprep.subr.bf16.mxu0 %v6459
    %6967 = vmatpush1.bf16.msra.mxu0 %v6458
    %6968 = vmatprep.subr.bf16.mxu0 %v6443
    %6969 = vmatpush1.bf16.msra.mxu0 %v6442
    %6970 = vmatprep.subr.bf16.mxu0 %v6683
    %6971 = vmatpush2.bf16.msra.mxu0 %v6682
    %6972 = vmatprep.subr.bf16.mxu0 %v6667
    %6973 = vmatpush2.bf16.msra.mxu0 %v6666
    %6974 = vmatprep.subr.bf16.mxu0 %v6651
    %6975 = vmatpush2.bf16.msra.mxu0 %v6650
    %6976 = vmatprep.subr.bf16.mxu0 %v6635
    %6977 = vmatpush2.bf16.msra.mxu0 %v6634
    %6978 = vmatprep.subr.bf16.mxu0 %v6619
    %6979 = vmatpush2.bf16.msra.mxu0 %v6618
    %6980 = vmatprep.subr.bf16.mxu0 %v6603
    %6981 = vmatpush2.bf16.msra.mxu0 %v6602
    %6982 = vmatprep.subr.bf16.mxu0 %v6587
    %6983 = vmatpush2.bf16.msra.mxu0 %v6586
    %6984 = vmatprep.subr.bf16.mxu0 %v6571
    %6985 = vmatpush2.bf16.msra.mxu0 %v6570
    %6986 = vmatprep.mubr.bf16.mxu0 %v3549
    %6987 = vmatmul.mubr.bf16.gmra.mxu0 %v3548
    %v6988 = vpop.f32.mrf.mxu0
    %v6989 = vadd.f32 %v5381, %v6988
    %v6990 = vpop.f32.mrf.mxu0
    %v6991 = vadd.f32 %v5383, %v6990
    %v6992 = vpop.f32.mrf.mxu0
    %v6993 = vpop.f32.mrf.mxu0
    %6994 = vdwg.mxu0
    %6995 = vmatprep.subr.bf16.mxu0 %v6557
    %6996 = vmatpush1.bf16.msra.mxu0 %v6556
    %6997 = vmatprep.subr.bf16.mxu0 %v6541
    %6998 = vmatpush1.bf16.msra.mxu0 %v6540
    %6999 = vmatprep.subr.bf16.mxu0 %v6525
    %7000 = vmatpush1.bf16.msra.mxu0 %v6524
    %7001 = vmatprep.subr.bf16.mxu0 %v6509
    %7002 = vmatpush1.bf16.msra.mxu0 %v6508
    %7003 = vmatprep.subr.bf16.mxu0 %v6493
    %7004 = vmatpush1.bf16.msra.mxu0 %v6492
    %7005 = vmatprep.subr.bf16.mxu0 %v6477
    %7006 = vmatpush1.bf16.msra.mxu0 %v6476
    %7007 = vmatprep.subr.bf16.mxu0 %v6461
    %7008 = vmatpush1.bf16.msra.mxu0 %v6460
    %7009 = vmatprep.subr.bf16.mxu0 %v6445
    %7010 = vmatpush1.bf16.msra.mxu0 %v6444
    %7011 = vmatprep.subr.bf16.mxu0 %v6685
    %7012 = vmatpush2.bf16.msra.mxu0 %v6684
    %7013 = vmatprep.subr.bf16.mxu0 %v6669
    %7014 = vmatpush2.bf16.msra.mxu0 %v6668
    %7015 = vmatprep.subr.bf16.mxu0 %v6653
    %7016 = vmatpush2.bf16.msra.mxu0 %v6652
    %7017 = vmatprep.subr.bf16.mxu0 %v6637
    %7018 = vmatpush2.bf16.msra.mxu0 %v6636
    %7019 = vmatprep.subr.bf16.mxu0 %v6621
    %7020 = vmatpush2.bf16.msra.mxu0 %v6620
    %7021 = vmatprep.subr.bf16.mxu0 %v6605
    %7022 = vmatpush2.bf16.msra.mxu0 %v6604
    %7023 = vmatprep.subr.bf16.mxu0 %v6589
    %7024 = vmatpush2.bf16.msra.mxu0 %v6588
    %7025 = vmatprep.subr.bf16.mxu0 %v6573
    %7026 = vmatpush2.bf16.msra.mxu0 %v6572
    %7027 = vmatprep.mubr.bf16.mxu0 %v3549
    %7028 = vmatmul.mubr.bf16.gmra.mxu0 %v3548
    %v7029 = vpop.f32.mrf.mxu0
    %v7030 = vadd.f32 %v5422, %v7029
    %v7031 = vpop.f32.mrf.mxu0
    %v7032 = vadd.f32 %v5424, %v7031
    %v7033 = vpop.f32.mrf.mxu0
    %v7034 = vpop.f32.mrf.mxu0
    %7035 = vdwg.mxu0
    %7036 = vmatprep.subr.bf16.mxu0 %v6559
    %7037 = vmatpush1.bf16.msra.mxu0 %v6558
    %7038 = vmatprep.subr.bf16.mxu0 %v6543
    %7039 = vmatpush1.bf16.msra.mxu0 %v6542
    %7040 = vmatprep.subr.bf16.mxu0 %v6527
    %7041 = vmatpush1.bf16.msra.mxu0 %v6526
    %7042 = vmatprep.subr.bf16.mxu0 %v6511
    %7043 = vmatpush1.bf16.msra.mxu0 %v6510
    %7044 = vmatprep.subr.bf16.mxu0 %v6495
    %7045 = vmatpush1.bf16.msra.mxu0 %v6494
    %7046 = vmatprep.subr.bf16.mxu0 %v6479
    %7047 = vmatpush1.bf16.msra.mxu0 %v6478
    %7048 = vmatprep.subr.bf16.mxu0 %v6463
    %7049 = vmatpush1.bf16.msra.mxu0 %v6462
    %7050 = vmatprep.subr.bf16.mxu0 %v6447
    %7051 = vmatpush1.bf16.msra.mxu0 %v6446
    %7052 = vmatprep.subr.bf16.mxu0 %v6687
    %7053 = vmatpush2.bf16.msra.mxu0 %v6686
    %7054 = vmatprep.subr.bf16.mxu0 %v6671
    %7055 = vmatpush2.bf16.msra.mxu0 %v6670
    %7056 = vmatprep.subr.bf16.mxu0 %v6655
    %7057 = vmatpush2.bf16.msra.mxu0 %v6654
    %7058 = vmatprep.subr.bf16.mxu0 %v6639
    %7059 = vmatpush2.bf16.msra.mxu0 %v6638
    %7060 = vmatprep.subr.bf16.mxu0 %v6623
    %7061 = vmatpush2.bf16.msra.mxu0 %v6622
    %7062 = vmatprep.subr.bf16.mxu0 %v6607
    %7063 = vmatpush2.bf16.msra.mxu0 %v6606
    %7064 = vmatprep.subr.bf16.mxu0 %v6591
    %7065 = vmatpush2.bf16.msra.mxu0 %v6590
    %7066 = vmatprep.subr.bf16.mxu0 %v6575
    %7067 = vmatpush2.bf16.msra.mxu0 %v6574
    %7068 = vmatprep.mubr.bf16.mxu0 %v3549
    %7069 = vmatmul.mubr.bf16.gmra.mxu0 %v3548
    %v7070 = vpop.f32.mrf.mxu0
    %v7071 = vadd.f32 %v5463, %v7070
    %v7072 = vpop.f32.mrf.mxu0
    %v7073 = vadd.f32 %v5465, %v7072
    %v7074 = vpop.f32.mrf.mxu0
    %v7075 = vpop.f32.mrf.mxu0
    %7076 = vdwg.mxu0
    %7077 = vmatprep.subr.bf16.mxu0 %v6561
    %7078 = vmatpush1.bf16.msra.mxu0 %v6560
    %7079 = vmatprep.subr.bf16.mxu0 %v6545
    %7080 = vmatpush1.bf16.msra.mxu0 %v6544
    %7081 = vmatprep.subr.bf16.mxu0 %v6529
    %7082 = vmatpush1.bf16.msra.mxu0 %v6528
    %7083 = vmatprep.subr.bf16.mxu0 %v6513
    %7084 = vmatpush1.bf16.msra.mxu0 %v6512
    %7085 = vmatprep.subr.bf16.mxu0 %v6497
    %7086 = vmatpush1.bf16.msra.mxu0 %v6496
    %7087 = vmatprep.subr.bf16.mxu0 %v6481
    %7088 = vmatpush1.bf16.msra.mxu0 %v6480
    %7089 = vmatprep.subr.bf16.mxu0 %v6465
    %7090 = vmatpush1.bf16.msra.mxu0 %v6464
    %7091 = vmatprep.subr.bf16.mxu0 %v6449
    %7092 = vmatpush1.bf16.msra.mxu0 %v6448
    %7093 = vmatprep.subr.bf16.mxu0 %v6689
    %7094 = vmatpush2.bf16.msra.mxu0 %v6688
    %7095 = vmatprep.subr.bf16.mxu0 %v6673
    %7096 = vmatpush2.bf16.msra.mxu0 %v6672
    %7097 = vmatprep.subr.bf16.mxu0 %v6657
    %7098 = vmatpush2.bf16.msra.mxu0 %v6656
    %7099 = vmatprep.subr.bf16.mxu0 %v6641
    %7100 = vmatpush2.bf16.msra.mxu0 %v6640
    %7101 = vmatprep.subr.bf16.mxu0 %v6625
    %7102 = vmatpush2.bf16.msra.mxu0 %v6624
    %7103 = vmatprep.subr.bf16.mxu0 %v6609
    %7104 = vmatpush2.bf16.msra.mxu0 %v6608
    %7105 = vmatprep.subr.bf16.mxu0 %v6593
    %7106 = vmatpush2.bf16.msra.mxu0 %v6592
    %7107 = vmatprep.subr.bf16.mxu0 %v6577
    %7108 = vmatpush2.bf16.msra.mxu0 %v6576
    %7109 = vmatprep.mubr.bf16.mxu0 %v3549
    %7110 = vmatmul.mubr.bf16.gmra.mxu0 %v3548
    %v7111 = vpop.f32.mrf.mxu0
    %v7112 = vadd.f32 %v5504, %v7111
    %v7113 = vpop.f32.mrf.mxu0
    %v7114 = vadd.f32 %v5506, %v7113
    %v7115 = vpop.f32.mrf.mxu0
    %v7116 = vpop.f32.mrf.mxu0
    %7117 = vdwg.mxu0
    %7118 = vmatprep.subr.bf16.mxu0 %v6563
    %7119 = vmatpush1.bf16.msra.mxu0 %v6562
    %7120 = vmatprep.subr.bf16.mxu0 %v6547
    %7121 = vmatpush1.bf16.msra.mxu0 %v6546
    %7122 = vmatprep.subr.bf16.mxu0 %v6531
    %7123 = vmatpush1.bf16.msra.mxu0 %v6530
    %7124 = vmatprep.subr.bf16.mxu0 %v6515
    %7125 = vmatpush1.bf16.msra.mxu0 %v6514
    %7126 = vmatprep.subr.bf16.mxu0 %v6499
    %7127 = vmatpush1.bf16.msra.mxu0 %v6498
    %7128 = vmatprep.subr.bf16.mxu0 %v6483
    %7129 = vmatpush1.bf16.msra.mxu0 %v6482
    %7130 = vmatprep.subr.bf16.mxu0 %v6467
    %7131 = vmatpush1.bf16.msra.mxu0 %v6466
    %7132 = vmatprep.subr.bf16.mxu0 %v6451
    %7133 = vmatpush1.bf16.msra.mxu0 %v6450
    %7134 = vmatprep.subr.bf16.mxu0 %v6691
    %7135 = vmatpush2.bf16.msra.mxu0 %v6690
    %7136 = vmatprep.subr.bf16.mxu0 %v6675
    %7137 = vmatpush2.bf16.msra.mxu0 %v6674
    %7138 = vmatprep.subr.bf16.mxu0 %v6659
    %7139 = vmatpush2.bf16.msra.mxu0 %v6658
    %7140 = vmatprep.subr.bf16.mxu0 %v6643
    %7141 = vmatpush2.bf16.msra.mxu0 %v6642
    %7142 = vmatprep.subr.bf16.mxu0 %v6627
    %7143 = vmatpush2.bf16.msra.mxu0 %v6626
    %7144 = vmatprep.subr.bf16.mxu0 %v6611
    %7145 = vmatpush2.bf16.msra.mxu0 %v6610
    %7146 = vmatprep.subr.bf16.mxu0 %v6595
    %7147 = vmatpush2.bf16.msra.mxu0 %v6594
    %7148 = vmatprep.subr.bf16.mxu0 %v6579
    %7149 = vmatpush2.bf16.msra.mxu0 %v6578
    %7150 = vmatprep.mubr.bf16.mxu0 %v3549
    %7151 = vmatmul.mubr.bf16.gmra.mxu0 %v3548
    %v7152 = vpop.f32.mrf.mxu0
    %v7153 = vadd.f32 %v5545, %v7152
    %v7154 = vpop.f32.mrf.mxu0
    %v7155 = vadd.f32 %v5547, %v7154
    %v7156 = vpop.f32.mrf.mxu0
    %v7157 = vpop.f32.mrf.mxu0
    %7158 = vdwg.mxu0
    %7159 = vmatprep.subr.bf16.mxu0 %v6565
    %7160 = vmatpush1.bf16.msra.mxu0 %v6564
    %7161 = vmatprep.subr.bf16.mxu0 %v6549
    %7162 = vmatpush1.bf16.msra.mxu0 %v6548
    %7163 = vmatprep.subr.bf16.mxu0 %v6533
    %7164 = vmatpush1.bf16.msra.mxu0 %v6532
    %7165 = vmatprep.subr.bf16.mxu0 %v6517
    %7166 = vmatpush1.bf16.msra.mxu0 %v6516
    %7167 = vmatprep.subr.bf16.mxu0 %v6501
    %7168 = vmatpush1.bf16.msra.mxu0 %v6500
    %7169 = vmatprep.subr.bf16.mxu0 %v6485
    %7170 = vmatpush1.bf16.msra.mxu0 %v6484
    %7171 = vmatprep.subr.bf16.mxu0 %v6469
    %7172 = vmatpush1.bf16.msra.mxu0 %v6468
    %7173 = vmatprep.subr.bf16.mxu0 %v6453
    %7174 = vmatpush1.bf16.msra.mxu0 %v6452
    %7175 = vmatprep.subr.bf16.mxu0 %v6693
    %7176 = vmatpush2.bf16.msra.mxu0 %v6692
    %7177 = vmatprep.subr.bf16.mxu0 %v6677
    %7178 = vmatpush2.bf16.msra.mxu0 %v6676
    %7179 = vmatprep.subr.bf16.mxu0 %v6661
    %7180 = vmatpush2.bf16.msra.mxu0 %v6660
    %7181 = vmatprep.subr.bf16.mxu0 %v6645
    %7182 = vmatpush2.bf16.msra.mxu0 %v6644
    %7183 = vmatprep.subr.bf16.mxu0 %v6629
    %7184 = vmatpush2.bf16.msra.mxu0 %v6628
    %7185 = vmatprep.subr.bf16.mxu0 %v6613
    %7186 = vmatpush2.bf16.msra.mxu0 %v6612
    %7187 = vmatprep.subr.bf16.mxu0 %v6597
    %7188 = vmatpush2.bf16.msra.mxu0 %v6596
    %7189 = vmatprep.subr.bf16.mxu0 %v6581
    %7190 = vmatpush2.bf16.msra.mxu0 %v6580
    %7191 = vmatprep.mubr.bf16.mxu0 %v3549
    %7192 = vmatmul.mubr.bf16.gmra.mxu0 %v3548
    %v7193 = vpop.f32.mrf.mxu0
    %v7194 = vadd.f32 %v5586, %v7193
    %v7195 = vpop.f32.mrf.mxu0
    %v7196 = vadd.f32 %v5588, %v7195
    %v7197 = vpop.f32.mrf.mxu0
    %v7198 = vpop.f32.mrf.mxu0
    %7199 = vdwg.mxu0
    %7200 = vmatprep.subr.bf16.mxu0 %v6567
    %7201 = vmatpush1.bf16.msra.mxu0 %v6566
    %7202 = vmatprep.subr.bf16.mxu0 %v6551
    %7203 = vmatpush1.bf16.msra.mxu0 %v6550
    %7204 = vmatprep.subr.bf16.mxu0 %v6535
    %7205 = vmatpush1.bf16.msra.mxu0 %v6534
    %7206 = vmatprep.subr.bf16.mxu0 %v6519
    %7207 = vmatpush1.bf16.msra.mxu0 %v6518
    %7208 = vmatprep.subr.bf16.mxu0 %v6503
    %7209 = vmatpush1.bf16.msra.mxu0 %v6502
    %7210 = vmatprep.subr.bf16.mxu0 %v6487
    %7211 = vmatpush1.bf16.msra.mxu0 %v6486
    %7212 = vmatprep.subr.bf16.mxu0 %v6471
    %7213 = vmatpush1.bf16.msra.mxu0 %v6470
    %7214 = vmatprep.subr.bf16.mxu0 %v6455
    %7215 = vmatpush1.bf16.msra.mxu0 %v6454
    %7216 = vmatprep.subr.bf16.mxu0 %v6695
    %7217 = vmatpush2.bf16.msra.mxu0 %v6694
    %7218 = vmatprep.subr.bf16.mxu0 %v6679
    %7219 = vmatpush2.bf16.msra.mxu0 %v6678
    %7220 = vmatprep.subr.bf16.mxu0 %v6663
    %7221 = vmatpush2.bf16.msra.mxu0 %v6662
    %7222 = vmatprep.subr.bf16.mxu0 %v6647
    %7223 = vmatpush2.bf16.msra.mxu0 %v6646
    %7224 = vmatprep.subr.bf16.mxu0 %v6631
    %7225 = vmatpush2.bf16.msra.mxu0 %v6630
    %7226 = vmatprep.subr.bf16.mxu0 %v6615
    %7227 = vmatpush2.bf16.msra.mxu0 %v6614
    %7228 = vmatprep.subr.bf16.mxu0 %v6599
    %7229 = vmatpush2.bf16.msra.mxu0 %v6598
    %7230 = vmatprep.subr.bf16.mxu0 %v6583
    %7231 = vmatpush2.bf16.msra.mxu0 %v6582
    %7232 = vmatprep.mubr.bf16.mxu0 %v3549
    %7233 = vmatmul.mubr.bf16.gmra.mxu0 %v3548
    %v7234 = vpop.f32.mrf.mxu0
    %v7235 = vadd.f32 %v5627, %v7234
    %v7236 = vpop.f32.mrf.mxu0
    %v7237 = vadd.f32 %v5629, %v7236
    %v7238 = vpop.f32.mrf.mxu0
    %v7239 = vpop.f32.mrf.mxu0
    %7240 = vdwg.mxu0
    %7241 = vmatprep.subr.bf16.mxu0 %v6569
    %7242 = vmatpush1.bf16.msra.mxu0 %v6568
    %7243 = vmatprep.subr.bf16.mxu0 %v6553
    %7244 = vmatpush1.bf16.msra.mxu0 %v6552
    %7245 = vmatprep.subr.bf16.mxu0 %v6537
    %7246 = vmatpush1.bf16.msra.mxu0 %v6536
    %7247 = vmatprep.subr.bf16.mxu0 %v6521
    %7248 = vmatpush1.bf16.msra.mxu0 %v6520
    %7249 = vmatprep.subr.bf16.mxu0 %v6505
    %7250 = vmatpush1.bf16.msra.mxu0 %v6504
    %7251 = vmatprep.subr.bf16.mxu0 %v6489
    %7252 = vmatpush1.bf16.msra.mxu0 %v6488
    %7253 = vmatprep.subr.bf16.mxu0 %v6473
    %7254 = vmatpush1.bf16.msra.mxu0 %v6472
    %7255 = vmatprep.subr.bf16.mxu0 %v6457
    %7256 = vmatpush1.bf16.msra.mxu0 %v6456
    %7257 = vmatprep.subr.bf16.mxu0 %v6697
    %7258 = vmatpush2.bf16.msra.mxu0 %v6696
    %7259 = vmatprep.subr.bf16.mxu0 %v6681
    %7260 = vmatpush2.bf16.msra.mxu0 %v6680
    %7261 = vmatprep.subr.bf16.mxu0 %v6665
    %7262 = vmatpush2.bf16.msra.mxu0 %v6664
    %7263 = vmatprep.subr.bf16.mxu0 %v6649
    %7264 = vmatpush2.bf16.msra.mxu0 %v6648
    %7265 = vmatprep.subr.bf16.mxu0 %v6633
    %7266 = vmatpush2.bf16.msra.mxu0 %v6632
    %7267 = vmatprep.subr.bf16.mxu0 %v6617
    %7268 = vmatpush2.bf16.msra.mxu0 %v6616
    %7269 = vmatprep.subr.bf16.mxu0 %v6601
    %7270 = vmatpush2.bf16.msra.mxu0 %v6600
    %7271 = vmatprep.subr.bf16.mxu0 %v6585
    %7272 = vmatpush2.bf16.msra.mxu0 %v6584
    %7273 = vmatprep.mubr.bf16.mxu0 %v3549
    %7274 = vmatmul.mubr.bf16.gmra.mxu0 %v3548
    %v7275 = vpop.f32.mrf.mxu0
    %v7276 = vadd.f32 %v5668, %v7275
    %v7277 = vpop.f32.mrf.mxu0
    %v7278 = vadd.f32 %v5670, %v7277
    %v7279 = vpop.f32.mrf.mxu0
    %v7280 = vpop.f32.mrf.mxu0
    %7281 = vdwg.mxu0
    %v7282 = vld [vmem:[#allocation22] sm:$0xff]
    %v7283 = vld [vmem:[#allocation22 + $0x8] sm:$0xff]
    %v7284 = vld [vmem:[#allocation22 + $0x10] sm:$0xff]
    %v7285 = vld [vmem:[#allocation22 + $0x18] sm:$0xff]
    %v7286 = vld [vmem:[#allocation22 + $0x20] sm:$0xff]
    %v7287 = vld [vmem:[#allocation22 + $0x28] sm:$0xff]
    %v7288 = vld [vmem:[#allocation22 + $0x30] sm:$0xff]
    %v7289 = vld [vmem:[#allocation22 + $0x38] sm:$0xff]
    %v7290 = vld [vmem:[#allocation22 + $0x40] sm:$0xff]
    %v7291 = vld [vmem:[#allocation22 + $0x48] sm:$0xff]
    %v7292 = vld [vmem:[#allocation22 + $0x50] sm:$0xff]
    %v7293 = vld [vmem:[#allocation22 + $0x58] sm:$0xff]
    %v7294 = vld [vmem:[#allocation22 + $0x60] sm:$0xff]
    %v7295 = vld [vmem:[#allocation22 + $0x68] sm:$0xff]
    %v7296 = vld [vmem:[#allocation22 + $0x70] sm:$0xff]
    %v7297 = vld [vmem:[#allocation22 + $0x78] sm:$0xff]
    %v7298 = vld [vmem:[#allocation22 + $0x80] sm:$0xff]
    %v7299 = vld [vmem:[#allocation22 + $0x88] sm:$0xff]
    %v7300 = vld [vmem:[#allocation22 + $0x90] sm:$0xff]
    %v7301 = vld [vmem:[#allocation22 + $0x98] sm:$0xff]
    %v7302 = vld [vmem:[#allocation22 + $0xa0] sm:$0xff]
    %v7303 = vld [vmem:[#allocation22 + $0xa8] sm:$0xff]
    %v7304 = vld [vmem:[#allocation22 + $0xb0] sm:$0xff]
    %v7305 = vld [vmem:[#allocation22 + $0xb8] sm:$0xff]
    %v7306 = vld [vmem:[#allocation22 + $0xc0] sm:$0xff]
    %v7307 = vld [vmem:[#allocation22 + $0xc8] sm:$0xff]
    %v7308 = vld [vmem:[#allocation22 + $0xd0] sm:$0xff]
    %v7309 = vld [vmem:[#allocation22 + $0xd8] sm:$0xff]
    %v7310 = vld [vmem:[#allocation22 + $0xe0] sm:$0xff]
    %v7311 = vld [vmem:[#allocation22 + $0xe8] sm:$0xff]
    %v7312 = vld [vmem:[#allocation22 + $0xf0] sm:$0xff]
    %v7313 = vld [vmem:[#allocation22 + $0xf8] sm:$0xff]
    %v7314 = vld [vmem:[#allocation22 + $0x100] sm:$0xff]
    %v7315 = vld [vmem:[#allocation22 + $0x108] sm:$0xff]
    %v7316 = vld [vmem:[#allocation22 + $0x110] sm:$0xff]
    %v7317 = vld [vmem:[#allocation22 + $0x118] sm:$0xff]
    %v7318 = vld [vmem:[#allocation22 + $0x120] sm:$0xff]
    %v7319 = vld [vmem:[#allocation22 + $0x128] sm:$0xff]
    %v7320 = vld [vmem:[#allocation22 + $0x130] sm:$0xff]
    %v7321 = vld [vmem:[#allocation22 + $0x138] sm:$0xff]
    %v7322 = vld [vmem:[#allocation22 + $0x140] sm:$0xff]
    %v7323 = vld [vmem:[#allocation22 + $0x148] sm:$0xff]
    %v7324 = vld [vmem:[#allocation22 + $0x150] sm:$0xff]
    %v7325 = vld [vmem:[#allocation22 + $0x158] sm:$0xff]
    %v7326 = vld [vmem:[#allocation22 + $0x160] sm:$0xff]
    %v7327 = vld [vmem:[#allocation22 + $0x168] sm:$0xff]
    %v7328 = vld [vmem:[#allocation22 + $0x170] sm:$0xff]
    %v7329 = vld [vmem:[#allocation22 + $0x178] sm:$0xff]
    %v7330 = vld [vmem:[#allocation22 + $0x180] sm:$0xff]
    %v7331 = vld [vmem:[#allocation22 + $0x188] sm:$0xff]
    %v7332 = vld [vmem:[#allocation22 + $0x190] sm:$0xff]
    %v7333 = vld [vmem:[#allocation22 + $0x198] sm:$0xff]
    %v7334 = vld [vmem:[#allocation22 + $0x1a0] sm:$0xff]
    %v7335 = vld [vmem:[#allocation22 + $0x1a8] sm:$0xff]
    %v7336 = vld [vmem:[#allocation22 + $0x1b0] sm:$0xff]
    %v7337 = vld [vmem:[#allocation22 + $0x1b8] sm:$0xff]
    %v7338 = vld [vmem:[#allocation22 + $0x1c0] sm:$0xff]
    %v7339 = vld [vmem:[#allocation22 + $0x1c8] sm:$0xff]
    %v7340 = vld [vmem:[#allocation22 + $0x1d0] sm:$0xff]
    %v7341 = vld [vmem:[#allocation22 + $0x1d8] sm:$0xff]
    %v7342 = vld [vmem:[#allocation22 + $0x1e0] sm:$0xff]
    %v7343 = vld [vmem:[#allocation22 + $0x1e8] sm:$0xff]
    %v7344 = vld [vmem:[#allocation22 + $0x1f0] sm:$0xff]
    %v7345 = vld [vmem:[#allocation22 + $0x1f8] sm:$0xff]
    %v7346 = vld [vmem:[#allocation22 + $0x200] sm:$0xff]
    %v7347 = vld [vmem:[#allocation22 + $0x208] sm:$0xff]
    %v7348 = vld [vmem:[#allocation22 + $0x210] sm:$0xff]
    %v7349 = vld [vmem:[#allocation22 + $0x218] sm:$0xff]
    %v7350 = vld [vmem:[#allocation22 + $0x220] sm:$0xff]
    %v7351 = vld [vmem:[#allocation22 + $0x228] sm:$0xff]
    %v7352 = vld [vmem:[#allocation22 + $0x230] sm:$0xff]
    %v7353 = vld [vmem:[#allocation22 + $0x238] sm:$0xff]
    %v7354 = vld [vmem:[#allocation22 + $0x240] sm:$0xff]
    %v7355 = vld [vmem:[#allocation22 + $0x248] sm:$0xff]
    %v7356 = vld [vmem:[#allocation22 + $0x250] sm:$0xff]
    %v7357 = vld [vmem:[#allocation22 + $0x258] sm:$0xff]
    %v7358 = vld [vmem:[#allocation22 + $0x260] sm:$0xff]
    %v7359 = vld [vmem:[#allocation22 + $0x268] sm:$0xff]
    %v7360 = vld [vmem:[#allocation22 + $0x270] sm:$0xff]
    %v7361 = vld [vmem:[#allocation22 + $0x278] sm:$0xff]
    %v7362 = vld [vmem:[#allocation22 + $0x280] sm:$0xff]
    %v7363 = vld [vmem:[#allocation22 + $0x288] sm:$0xff]
    %v7364 = vld [vmem:[#allocation22 + $0x290] sm:$0xff]
    %v7365 = vld [vmem:[#allocation22 + $0x298] sm:$0xff]
    %v7366 = vld [vmem:[#allocation22 + $0x2a0] sm:$0xff]
    %v7367 = vld [vmem:[#allocation22 + $0x2a8] sm:$0xff]
    %v7368 = vld [vmem:[#allocation22 + $0x2b0] sm:$0xff]
    %v7369 = vld [vmem:[#allocation22 + $0x2b8] sm:$0xff]
    %v7370 = vld [vmem:[#allocation22 + $0x2c0] sm:$0xff]
    %v7371 = vld [vmem:[#allocation22 + $0x2c8] sm:$0xff]
    %v7372 = vld [vmem:[#allocation22 + $0x2d0] sm:$0xff]
    %v7373 = vld [vmem:[#allocation22 + $0x2d8] sm:$0xff]
    %v7374 = vld [vmem:[#allocation22 + $0x2e0] sm:$0xff]
    %v7375 = vld [vmem:[#allocation22 + $0x2e8] sm:$0xff]
    %v7376 = vld [vmem:[#allocation22 + $0x2f0] sm:$0xff]
    %v7377 = vld [vmem:[#allocation22 + $0x2f8] sm:$0xff]
    %v7378 = vld [vmem:[#allocation22 + $0x300] sm:$0xff]
    %v7379 = vld [vmem:[#allocation22 + $0x308] sm:$0xff]
    %v7380 = vld [vmem:[#allocation22 + $0x310] sm:$0xff]
    %v7381 = vld [vmem:[#allocation22 + $0x318] sm:$0xff]
    %v7382 = vld [vmem:[#allocation22 + $0x320] sm:$0xff]
    %v7383 = vld [vmem:[#allocation22 + $0x328] sm:$0xff]
    %v7384 = vld [vmem:[#allocation22 + $0x330] sm:$0xff]
    %v7385 = vld [vmem:[#allocation22 + $0x338] sm:$0xff]
    %v7386 = vld [vmem:[#allocation22 + $0x340] sm:$0xff]
    %v7387 = vld [vmem:[#allocation22 + $0x348] sm:$0xff]
    %v7388 = vld [vmem:[#allocation22 + $0x350] sm:$0xff]
    %v7389 = vld [vmem:[#allocation22 + $0x358] sm:$0xff]
    %v7390 = vld [vmem:[#allocation22 + $0x360] sm:$0xff]
    %v7391 = vld [vmem:[#allocation22 + $0x368] sm:$0xff]
    %v7392 = vld [vmem:[#allocation22 + $0x370] sm:$0xff]
    %v7393 = vld [vmem:[#allocation22 + $0x378] sm:$0xff]
    %v7394 = vld [vmem:[#allocation22 + $0x380] sm:$0xff]
    %v7395 = vld [vmem:[#allocation22 + $0x388] sm:$0xff]
    %v7396 = vld [vmem:[#allocation22 + $0x390] sm:$0xff]
    %v7397 = vld [vmem:[#allocation22 + $0x398] sm:$0xff]
    %v7398 = vld [vmem:[#allocation22 + $0x3a0] sm:$0xff]
    %v7399 = vld [vmem:[#allocation22 + $0x3a8] sm:$0xff]
    %v7400 = vld [vmem:[#allocation22 + $0x3b0] sm:$0xff]
    %v7401 = vld [vmem:[#allocation22 + $0x3b8] sm:$0xff]
    %v7402 = vld [vmem:[#allocation22 + $0x3c0] sm:$0xff]
    %v7403 = vld [vmem:[#allocation22 + $0x3c8] sm:$0xff]
    %v7404 = vld [vmem:[#allocation22 + $0x3d0] sm:$0xff]
    %v7405 = vld [vmem:[#allocation22 + $0x3d8] sm:$0xff]
    %v7406 = vld [vmem:[#allocation22 + $0x3e0] sm:$0xff]
    %v7407 = vld [vmem:[#allocation22 + $0x3e8] sm:$0xff]
    %v7408 = vld [vmem:[#allocation22 + $0x3f0] sm:$0xff]
    %v7409 = vld [vmem:[#allocation22 + $0x3f8] sm:$0xff]
    %v7410 = vld [vmem:[#allocation22 + $0x400] sm:$0xff]
    %v7411 = vld [vmem:[#allocation22 + $0x408] sm:$0xff]
    %v7412 = vld [vmem:[#allocation22 + $0x410] sm:$0xff]
    %v7413 = vld [vmem:[#allocation22 + $0x418] sm:$0xff]
    %v7414 = vld [vmem:[#allocation22 + $0x420] sm:$0xff]
    %v7415 = vld [vmem:[#allocation22 + $0x428] sm:$0xff]
    %v7416 = vld [vmem:[#allocation22 + $0x430] sm:$0xff]
    %v7417 = vld [vmem:[#allocation22 + $0x438] sm:$0xff]
    %v7418 = vld [vmem:[#allocation22 + $0x440] sm:$0xff]
    %v7419 = vld [vmem:[#allocation22 + $0x448] sm:$0xff]
    %v7420 = vld [vmem:[#allocation22 + $0x450] sm:$0xff]
    %v7421 = vld [vmem:[#allocation22 + $0x458] sm:$0xff]
    %v7422 = vld [vmem:[#allocation22 + $0x460] sm:$0xff]
    %v7423 = vld [vmem:[#allocation22 + $0x468] sm:$0xff]
    %v7424 = vld [vmem:[#allocation22 + $0x470] sm:$0xff]
    %v7425 = vld [vmem:[#allocation22 + $0x478] sm:$0xff]
    %v7426 = vld [vmem:[#allocation22 + $0x480] sm:$0xff]
    %v7427 = vld [vmem:[#allocation22 + $0x488] sm:$0xff]
    %v7428 = vld [vmem:[#allocation22 + $0x490] sm:$0xff]
    %v7429 = vld [vmem:[#allocation22 + $0x498] sm:$0xff]
    %v7430 = vld [vmem:[#allocation22 + $0x4a0] sm:$0xff]
    %v7431 = vld [vmem:[#allocation22 + $0x4a8] sm:$0xff]
    %v7432 = vld [vmem:[#allocation22 + $0x4b0] sm:$0xff]
    %v7433 = vld [vmem:[#allocation22 + $0x4b8] sm:$0xff]
    %v7434 = vld [vmem:[#allocation22 + $0x4c0] sm:$0xff]
    %v7435 = vld [vmem:[#allocation22 + $0x4c8] sm:$0xff]
    %v7436 = vld [vmem:[#allocation22 + $0x4d0] sm:$0xff]
    %v7437 = vld [vmem:[#allocation22 + $0x4d8] sm:$0xff]
    %v7438 = vld [vmem:[#allocation22 + $0x4e0] sm:$0xff]
    %v7439 = vld [vmem:[#allocation22 + $0x4e8] sm:$0xff]
    %v7440 = vld [vmem:[#allocation22 + $0x4f0] sm:$0xff]
    %v7441 = vld [vmem:[#allocation22 + $0x4f8] sm:$0xff]
    %v7442 = vld [vmem:[#allocation22 + $0x500] sm:$0xff]
    %v7443 = vld [vmem:[#allocation22 + $0x508] sm:$0xff]
    %v7444 = vld [vmem:[#allocation22 + $0x510] sm:$0xff]
    %v7445 = vld [vmem:[#allocation22 + $0x518] sm:$0xff]
    %v7446 = vld [vmem:[#allocation22 + $0x520] sm:$0xff]
    %v7447 = vld [vmem:[#allocation22 + $0x528] sm:$0xff]
    %v7448 = vld [vmem:[#allocation22 + $0x530] sm:$0xff]
    %v7449 = vld [vmem:[#allocation22 + $0x538] sm:$0xff]
    %v7450 = vld [vmem:[#allocation22 + $0x540] sm:$0xff]
    %v7451 = vld [vmem:[#allocation22 + $0x548] sm:$0xff]
    %v7452 = vld [vmem:[#allocation22 + $0x550] sm:$0xff]
    %v7453 = vld [vmem:[#allocation22 + $0x558] sm:$0xff]
    %v7454 = vld [vmem:[#allocation22 + $0x560] sm:$0xff]
    %v7455 = vld [vmem:[#allocation22 + $0x568] sm:$0xff]
    %v7456 = vld [vmem:[#allocation22 + $0x570] sm:$0xff]
    %v7457 = vld [vmem:[#allocation22 + $0x578] sm:$0xff]
    %v7458 = vld [vmem:[#allocation22 + $0x580] sm:$0xff]
    %v7459 = vld [vmem:[#allocation22 + $0x588] sm:$0xff]
    %v7460 = vld [vmem:[#allocation22 + $0x590] sm:$0xff]
    %v7461 = vld [vmem:[#allocation22 + $0x598] sm:$0xff]
    %v7462 = vld [vmem:[#allocation22 + $0x5a0] sm:$0xff]
    %v7463 = vld [vmem:[#allocation22 + $0x5a8] sm:$0xff]
    %v7464 = vld [vmem:[#allocation22 + $0x5b0] sm:$0xff]
    %v7465 = vld [vmem:[#allocation22 + $0x5b8] sm:$0xff]
    %v7466 = vld [vmem:[#allocation22 + $0x5c0] sm:$0xff]
    %v7467 = vld [vmem:[#allocation22 + $0x5c8] sm:$0xff]
    %v7468 = vld [vmem:[#allocation22 + $0x5d0] sm:$0xff]
    %v7469 = vld [vmem:[#allocation22 + $0x5d8] sm:$0xff]
    %v7470 = vld [vmem:[#allocation22 + $0x5e0] sm:$0xff]
    %v7471 = vld [vmem:[#allocation22 + $0x5e8] sm:$0xff]
    %v7472 = vld [vmem:[#allocation22 + $0x5f0] sm:$0xff]
    %v7473 = vld [vmem:[#allocation22 + $0x5f8] sm:$0xff]
    %v7474 = vld [vmem:[#allocation22 + $0x600] sm:$0xff]
    %v7475 = vld [vmem:[#allocation22 + $0x608] sm:$0xff]
    %v7476 = vld [vmem:[#allocation22 + $0x610] sm:$0xff]
    %v7477 = vld [vmem:[#allocation22 + $0x618] sm:$0xff]
    %v7478 = vld [vmem:[#allocation22 + $0x620] sm:$0xff]
    %v7479 = vld [vmem:[#allocation22 + $0x628] sm:$0xff]
    %v7480 = vld [vmem:[#allocation22 + $0x630] sm:$0xff]
    %v7481 = vld [vmem:[#allocation22 + $0x638] sm:$0xff]
    %v7482 = vld [vmem:[#allocation22 + $0x640] sm:$0xff]
    %v7483 = vld [vmem:[#allocation22 + $0x648] sm:$0xff]
    %v7484 = vld [vmem:[#allocation22 + $0x650] sm:$0xff]
    %v7485 = vld [vmem:[#allocation22 + $0x658] sm:$0xff]
    %v7486 = vld [vmem:[#allocation22 + $0x660] sm:$0xff]
    %v7487 = vld [vmem:[#allocation22 + $0x668] sm:$0xff]
    %v7488 = vld [vmem:[#allocation22 + $0x670] sm:$0xff]
    %v7489 = vld [vmem:[#allocation22 + $0x678] sm:$0xff]
    %v7490 = vld [vmem:[#allocation22 + $0x680] sm:$0xff]
    %v7491 = vld [vmem:[#allocation22 + $0x688] sm:$0xff]
    %v7492 = vld [vmem:[#allocation22 + $0x690] sm:$0xff]
    %v7493 = vld [vmem:[#allocation22 + $0x698] sm:$0xff]
    %v7494 = vld [vmem:[#allocation22 + $0x6a0] sm:$0xff]
    %v7495 = vld [vmem:[#allocation22 + $0x6a8] sm:$0xff]
    %v7496 = vld [vmem:[#allocation22 + $0x6b0] sm:$0xff]
    %v7497 = vld [vmem:[#allocation22 + $0x6b8] sm:$0xff]
    %v7498 = vld [vmem:[#allocation22 + $0x6c0] sm:$0xff]
    %v7499 = vld [vmem:[#allocation22 + $0x6c8] sm:$0xff]
    %v7500 = vld [vmem:[#allocation22 + $0x6d0] sm:$0xff]
    %v7501 = vld [vmem:[#allocation22 + $0x6d8] sm:$0xff]
    %v7502 = vld [vmem:[#allocation22 + $0x6e0] sm:$0xff]
    %v7503 = vld [vmem:[#allocation22 + $0x6e8] sm:$0xff]
    %v7504 = vld [vmem:[#allocation22 + $0x6f0] sm:$0xff]
    %v7505 = vld [vmem:[#allocation22 + $0x6f8] sm:$0xff]
    %v7506 = vld [vmem:[#allocation22 + $0x700] sm:$0xff]
    %v7507 = vld [vmem:[#allocation22 + $0x708] sm:$0xff]
    %v7508 = vld [vmem:[#allocation22 + $0x710] sm:$0xff]
    %v7509 = vld [vmem:[#allocation22 + $0x718] sm:$0xff]
    %v7510 = vld [vmem:[#allocation22 + $0x720] sm:$0xff]
    %v7511 = vld [vmem:[#allocation22 + $0x728] sm:$0xff]
    %v7512 = vld [vmem:[#allocation22 + $0x730] sm:$0xff]
    %v7513 = vld [vmem:[#allocation22 + $0x738] sm:$0xff]
    %v7514 = vld [vmem:[#allocation22 + $0x740] sm:$0xff]
    %v7515 = vld [vmem:[#allocation22 + $0x748] sm:$0xff]
    %v7516 = vld [vmem:[#allocation22 + $0x750] sm:$0xff]
    %v7517 = vld [vmem:[#allocation22 + $0x758] sm:$0xff]
    %v7518 = vld [vmem:[#allocation22 + $0x760] sm:$0xff]
    %v7519 = vld [vmem:[#allocation22 + $0x768] sm:$0xff]
    %v7520 = vld [vmem:[#allocation22 + $0x770] sm:$0xff]
    %v7521 = vld [vmem:[#allocation22 + $0x778] sm:$0xff]
    %v7522 = vld [vmem:[#allocation22 + $0x780] sm:$0xff]
    %v7523 = vld [vmem:[#allocation22 + $0x788] sm:$0xff]
    %v7524 = vld [vmem:[#allocation22 + $0x790] sm:$0xff]
    %v7525 = vld [vmem:[#allocation22 + $0x798] sm:$0xff]
    %v7526 = vld [vmem:[#allocation22 + $0x7a0] sm:$0xff]
    %v7527 = vld [vmem:[#allocation22 + $0x7a8] sm:$0xff]
    %v7528 = vld [vmem:[#allocation22 + $0x7b0] sm:$0xff]
    %v7529 = vld [vmem:[#allocation22 + $0x7b8] sm:$0xff]
    %v7530 = vld [vmem:[#allocation22 + $0x7c0] sm:$0xff]
    %v7531 = vld [vmem:[#allocation22 + $0x7c8] sm:$0xff]
    %v7532 = vld [vmem:[#allocation22 + $0x7d0] sm:$0xff]
    %v7533 = vld [vmem:[#allocation22 + $0x7d8] sm:$0xff]
    %v7534 = vld [vmem:[#allocation22 + $0x7e0] sm:$0xff]
    %v7535 = vld [vmem:[#allocation22 + $0x7e8] sm:$0xff]
    %v7536 = vld [vmem:[#allocation22 + $0x7f0] sm:$0xff]
    %v7537 = vld [vmem:[#allocation22 + $0x7f8] sm:$0xff]
    %v7794 = vunpack.c.l.b16 %v7282
    %v7795 = vunpack.c.h.b16 %v7282
    %v7796 = vunpack.c.l.b16 %v7283
    %v7797 = vunpack.c.h.b16 %v7283
    %v7798 = vunpack.c.l.b16 %v7284
    %v7799 = vunpack.c.h.b16 %v7284
    %v7800 = vunpack.c.l.b16 %v7285
    %v7801 = vunpack.c.h.b16 %v7285
    %v7802 = vunpack.c.l.b16 %v7286
    %v7803 = vunpack.c.h.b16 %v7286
    %v7804 = vunpack.c.l.b16 %v7287
    %v7805 = vunpack.c.h.b16 %v7287
    %v7806 = vunpack.c.l.b16 %v7288
    %v7807 = vunpack.c.h.b16 %v7288
    %v7808 = vunpack.c.l.b16 %v7289
    %v7809 = vunpack.c.h.b16 %v7289
    %v7810 = vunpack.c.l.b16 %v7290
    %v7811 = vunpack.c.h.b16 %v7290
    %v7812 = vunpack.c.l.b16 %v7291
    %v7813 = vunpack.c.h.b16 %v7291
    %v7814 = vunpack.c.l.b16 %v7292
    %v7815 = vunpack.c.h.b16 %v7292
    %v7816 = vunpack.c.l.b16 %v7293
    %v7817 = vunpack.c.h.b16 %v7293
    %v7818 = vunpack.c.l.b16 %v7294
    %v7819 = vunpack.c.h.b16 %v7294
    %v7820 = vunpack.c.l.b16 %v7295
    %v7821 = vunpack.c.h.b16 %v7295
    %v7822 = vunpack.c.l.b16 %v7296
    %v7823 = vunpack.c.h.b16 %v7296
    %v7824 = vunpack.c.l.b16 %v7297
    %v7825 = vunpack.c.h.b16 %v7297
    %v7826 = vunpack.c.l.b16 %v7298
    %v7827 = vunpack.c.h.b16 %v7298
    %v7828 = vunpack.c.l.b16 %v7299
    %v7829 = vunpack.c.h.b16 %v7299
    %v7830 = vunpack.c.l.b16 %v7300
    %v7831 = vunpack.c.h.b16 %v7300
    %v7832 = vunpack.c.l.b16 %v7301
    %v7833 = vunpack.c.h.b16 %v7301
    %v7834 = vunpack.c.l.b16 %v7302
    %v7835 = vunpack.c.h.b16 %v7302
    %v7836 = vunpack.c.l.b16 %v7303
    %v7837 = vunpack.c.h.b16 %v7303
    %v7838 = vunpack.c.l.b16 %v7304
    %v7839 = vunpack.c.h.b16 %v7304
    %v7840 = vunpack.c.l.b16 %v7305
    %v7841 = vunpack.c.h.b16 %v7305
    %v7842 = vunpack.c.l.b16 %v7306
    %v7843 = vunpack.c.h.b16 %v7306
    %v7844 = vunpack.c.l.b16 %v7307
    %v7845 = vunpack.c.h.b16 %v7307
    %v7846 = vunpack.c.l.b16 %v7308
    %v7847 = vunpack.c.h.b16 %v7308
    %v7848 = vunpack.c.l.b16 %v7309
    %v7849 = vunpack.c.h.b16 %v7309
    %v7850 = vunpack.c.l.b16 %v7310
    %v7851 = vunpack.c.h.b16 %v7310
    %v7852 = vunpack.c.l.b16 %v7311
    %v7853 = vunpack.c.h.b16 %v7311
    %v7854 = vunpack.c.l.b16 %v7312
    %v7855 = vunpack.c.h.b16 %v7312
    %v7856 = vunpack.c.l.b16 %v7313
    %v7857 = vunpack.c.h.b16 %v7313
    %v7858 = vunpack.c.l.b16 %v7314
    %v7859 = vunpack.c.h.b16 %v7314
    %v7860 = vunpack.c.l.b16 %v7315
    %v7861 = vunpack.c.h.b16 %v7315
    %v7862 = vunpack.c.l.b16 %v7316
    %v7863 = vunpack.c.h.b16 %v7316
    %v7864 = vunpack.c.l.b16 %v7317
    %v7865 = vunpack.c.h.b16 %v7317
    %v7866 = vunpack.c.l.b16 %v7318
    %v7867 = vunpack.c.h.b16 %v7318
    %v7868 = vunpack.c.l.b16 %v7319
    %v7869 = vunpack.c.h.b16 %v7319
    %v7870 = vunpack.c.l.b16 %v7320
    %v7871 = vunpack.c.h.b16 %v7320
    %v7872 = vunpack.c.l.b16 %v7321
    %v7873 = vunpack.c.h.b16 %v7321
    %v7874 = vunpack.c.l.b16 %v7322
    %v7875 = vunpack.c.h.b16 %v7322
    %v7876 = vunpack.c.l.b16 %v7323
    %v7877 = vunpack.c.h.b16 %v7323
    %v7878 = vunpack.c.l.b16 %v7324
    %v7879 = vunpack.c.h.b16 %v7324
    %v7880 = vunpack.c.l.b16 %v7325
    %v7881 = vunpack.c.h.b16 %v7325
    %v7882 = vunpack.c.l.b16 %v7326
    %v7883 = vunpack.c.h.b16 %v7326
    %v7884 = vunpack.c.l.b16 %v7327
    %v7885 = vunpack.c.h.b16 %v7327
    %v7886 = vunpack.c.l.b16 %v7328
    %v7887 = vunpack.c.h.b16 %v7328
    %v7888 = vunpack.c.l.b16 %v7329
    %v7889 = vunpack.c.h.b16 %v7329
    %v7890 = vunpack.c.l.b16 %v7330
    %v7891 = vunpack.c.h.b16 %v7330
    %v7892 = vunpack.c.l.b16 %v7331
    %v7893 = vunpack.c.h.b16 %v7331
    %v7894 = vunpack.c.l.b16 %v7332
    %v7895 = vunpack.c.h.b16 %v7332
    %v7896 = vunpack.c.l.b16 %v7333
    %v7897 = vunpack.c.h.b16 %v7333
    %v7898 = vunpack.c.l.b16 %v7334
    %v7899 = vunpack.c.h.b16 %v7334
    %v7900 = vunpack.c.l.b16 %v7335
    %v7901 = vunpack.c.h.b16 %v7335
    %v7902 = vunpack.c.l.b16 %v7336
    %v7903 = vunpack.c.h.b16 %v7336
    %v7904 = vunpack.c.l.b16 %v7337
    %v7905 = vunpack.c.h.b16 %v7337
    %v7906 = vunpack.c.l.b16 %v7338
    %v7907 = vunpack.c.h.b16 %v7338
    %v7908 = vunpack.c.l.b16 %v7339
    %v7909 = vunpack.c.h.b16 %v7339
    %v7910 = vunpack.c.l.b16 %v7340
    %v7911 = vunpack.c.h.b16 %v7340
    %v7912 = vunpack.c.l.b16 %v7341
    %v7913 = vunpack.c.h.b16 %v7341
    %v7914 = vunpack.c.l.b16 %v7342
    %v7915 = vunpack.c.h.b16 %v7342
    %v7916 = vunpack.c.l.b16 %v7343
    %v7917 = vunpack.c.h.b16 %v7343
    %v7918 = vunpack.c.l.b16 %v7344
    %v7919 = vunpack.c.h.b16 %v7344
    %v7920 = vunpack.c.l.b16 %v7345
    %v7921 = vunpack.c.h.b16 %v7345
    %v7922 = vunpack.c.l.b16 %v7346
    %v7923 = vunpack.c.h.b16 %v7346
    %v7924 = vunpack.c.l.b16 %v7347
    %v7925 = vunpack.c.h.b16 %v7347
    %v7926 = vunpack.c.l.b16 %v7348
    %v7927 = vunpack.c.h.b16 %v7348
    %v7928 = vunpack.c.l.b16 %v7349
    %v7929 = vunpack.c.h.b16 %v7349
    %v7930 = vunpack.c.l.b16 %v7350
    %v7931 = vunpack.c.h.b16 %v7350
    %v7932 = vunpack.c.l.b16 %v7351
    %v7933 = vunpack.c.h.b16 %v7351
    %v7934 = vunpack.c.l.b16 %v7352
    %v7935 = vunpack.c.h.b16 %v7352
    %v7936 = vunpack.c.l.b16 %v7353
    %v7937 = vunpack.c.h.b16 %v7353
    %v7938 = vunpack.c.l.b16 %v7354
    %v7939 = vunpack.c.h.b16 %v7354
    %v7940 = vunpack.c.l.b16 %v7355
    %v7941 = vunpack.c.h.b16 %v7355
    %v7942 = vunpack.c.l.b16 %v7356
    %v7943 = vunpack.c.h.b16 %v7356
    %v7944 = vunpack.c.l.b16 %v7357
    %v7945 = vunpack.c.h.b16 %v7357
    %v7946 = vunpack.c.l.b16 %v7358
    %v7947 = vunpack.c.h.b16 %v7358
    %v7948 = vunpack.c.l.b16 %v7359
    %v7949 = vunpack.c.h.b16 %v7359
    %v7950 = vunpack.c.l.b16 %v7360
    %v7951 = vunpack.c.h.b16 %v7360
    %v7952 = vunpack.c.l.b16 %v7361
    %v7953 = vunpack.c.h.b16 %v7361
    %v7954 = vunpack.c.l.b16 %v7362
    %v7955 = vunpack.c.h.b16 %v7362
    %v7956 = vunpack.c.l.b16 %v7363
    %v7957 = vunpack.c.h.b16 %v7363
    %v7958 = vunpack.c.l.b16 %v7364
    %v7959 = vunpack.c.h.b16 %v7364
    %v7960 = vunpack.c.l.b16 %v7365
    %v7961 = vunpack.c.h.b16 %v7365
    %v7962 = vunpack.c.l.b16 %v7366
    %v7963 = vunpack.c.h.b16 %v7366
    %v7964 = vunpack.c.l.b16 %v7367
    %v7965 = vunpack.c.h.b16 %v7367
    %v7966 = vunpack.c.l.b16 %v7368
    %v7967 = vunpack.c.h.b16 %v7368
    %v7968 = vunpack.c.l.b16 %v7369
    %v7969 = vunpack.c.h.b16 %v7369
    %v7970 = vunpack.c.l.b16 %v7370
    %v7971 = vunpack.c.h.b16 %v7370
    %v7972 = vunpack.c.l.b16 %v7371
    %v7973 = vunpack.c.h.b16 %v7371
    %v7974 = vunpack.c.l.b16 %v7372
    %v7975 = vunpack.c.h.b16 %v7372
    %v7976 = vunpack.c.l.b16 %v7373
    %v7977 = vunpack.c.h.b16 %v7373
    %v7978 = vunpack.c.l.b16 %v7374
    %v7979 = vunpack.c.h.b16 %v7374
    %v7980 = vunpack.c.l.b16 %v7375
    %v7981 = vunpack.c.h.b16 %v7375
    %v7982 = vunpack.c.l.b16 %v7376
    %v7983 = vunpack.c.h.b16 %v7376
    %v7984 = vunpack.c.l.b16 %v7377
    %v7985 = vunpack.c.h.b16 %v7377
    %v7986 = vunpack.c.l.b16 %v7378
    %v7987 = vunpack.c.h.b16 %v7378
    %v7988 = vunpack.c.l.b16 %v7379
    %v7989 = vunpack.c.h.b16 %v7379
    %v7990 = vunpack.c.l.b16 %v7380
    %v7991 = vunpack.c.h.b16 %v7380
    %v7992 = vunpack.c.l.b16 %v7381
    %v7993 = vunpack.c.h.b16 %v7381
    %v7994 = vunpack.c.l.b16 %v7382
    %v7995 = vunpack.c.h.b16 %v7382
    %v7996 = vunpack.c.l.b16 %v7383
    %v7997 = vunpack.c.h.b16 %v7383
    %v7998 = vunpack.c.l.b16 %v7384
    %v7999 = vunpack.c.h.b16 %v7384
    %v8000 = vunpack.c.l.b16 %v7385
    %v8001 = vunpack.c.h.b16 %v7385
    %v8002 = vunpack.c.l.b16 %v7386
    %v8003 = vunpack.c.h.b16 %v7386
    %v8004 = vunpack.c.l.b16 %v7387
    %v8005 = vunpack.c.h.b16 %v7387
    %v8006 = vunpack.c.l.b16 %v7388
    %v8007 = vunpack.c.h.b16 %v7388
    %v8008 = vunpack.c.l.b16 %v7389
    %v8009 = vunpack.c.h.b16 %v7389
    %v8010 = vunpack.c.l.b16 %v7390
    %v8011 = vunpack.c.h.b16 %v7390
    %v8012 = vunpack.c.l.b16 %v7391
    %v8013 = vunpack.c.h.b16 %v7391
    %v8014 = vunpack.c.l.b16 %v7392
    %v8015 = vunpack.c.h.b16 %v7392
    %v8016 = vunpack.c.l.b16 %v7393
    %v8017 = vunpack.c.h.b16 %v7393
    %v8018 = vunpack.c.l.b16 %v7394
    %v8019 = vunpack.c.h.b16 %v7394
    %v8020 = vunpack.c.l.b16 %v7395
    %v8021 = vunpack.c.h.b16 %v7395
    %v8022 = vunpack.c.l.b16 %v7396
    %v8023 = vunpack.c.h.b16 %v7396
    %v8024 = vunpack.c.l.b16 %v7397
    %v8025 = vunpack.c.h.b16 %v7397
    %v8026 = vunpack.c.l.b16 %v7398
    %v8027 = vunpack.c.h.b16 %v7398
    %v8028 = vunpack.c.l.b16 %v7399
    %v8029 = vunpack.c.h.b16 %v7399
    %v8030 = vunpack.c.l.b16 %v7400
    %v8031 = vunpack.c.h.b16 %v7400
    %v8032 = vunpack.c.l.b16 %v7401
    %v8033 = vunpack.c.h.b16 %v7401
    %v8034 = vunpack.c.l.b16 %v7402
    %v8035 = vunpack.c.h.b16 %v7402
    %v8036 = vunpack.c.l.b16 %v7403
    %v8037 = vunpack.c.h.b16 %v7403
    %v8038 = vunpack.c.l.b16 %v7404
    %v8039 = vunpack.c.h.b16 %v7404
    %v8040 = vunpack.c.l.b16 %v7405
    %v8041 = vunpack.c.h.b16 %v7405
    %v8042 = vunpack.c.l.b16 %v7406
    %v8043 = vunpack.c.h.b16 %v7406
    %v8044 = vunpack.c.l.b16 %v7407
    %v8045 = vunpack.c.h.b16 %v7407
    %v8046 = vunpack.c.l.b16 %v7408
    %v8047 = vunpack.c.h.b16 %v7408
    %v8048 = vunpack.c.l.b16 %v7409
    %v8049 = vunpack.c.h.b16 %v7409
    %v8050 = vunpack.c.l.b16 %v7410
    %v8051 = vunpack.c.h.b16 %v7410
    %v8052 = vunpack.c.l.b16 %v7411
    %v8053 = vunpack.c.h.b16 %v7411
    %v8054 = vunpack.c.l.b16 %v7412
    %v8055 = vunpack.c.h.b16 %v7412
    %v8056 = vunpack.c.l.b16 %v7413
    %v8057 = vunpack.c.h.b16 %v7413
    %v8058 = vunpack.c.l.b16 %v7414
    %v8059 = vunpack.c.h.b16 %v7414
    %v8060 = vunpack.c.l.b16 %v7415
    %v8061 = vunpack.c.h.b16 %v7415
    %v8062 = vunpack.c.l.b16 %v7416
    %v8063 = vunpack.c.h.b16 %v7416
    %v8064 = vunpack.c.l.b16 %v7417
    %v8065 = vunpack.c.h.b16 %v7417
    %v8066 = vunpack.c.l.b16 %v7418
    %v8067 = vunpack.c.h.b16 %v7418
    %v8068 = vunpack.c.l.b16 %v7419
    %v8069 = vunpack.c.h.b16 %v7419
    %v8070 = vunpack.c.l.b16 %v7420
    %v8071 = vunpack.c.h.b16 %v7420
    %v8072 = vunpack.c.l.b16 %v7421
    %v8073 = vunpack.c.h.b16 %v7421
    %v8074 = vunpack.c.l.b16 %v7422
    %v8075 = vunpack.c.h.b16 %v7422
    %v8076 = vunpack.c.l.b16 %v7423
    %v8077 = vunpack.c.h.b16 %v7423
    %v8078 = vunpack.c.l.b16 %v7424
    %v8079 = vunpack.c.h.b16 %v7424
    %v8080 = vunpack.c.l.b16 %v7425
    %v8081 = vunpack.c.h.b16 %v7425
    %v8082 = vunpack.c.l.b16 %v7426
    %v8083 = vunpack.c.h.b16 %v7426
    %v8084 = vunpack.c.l.b16 %v7427
    %v8085 = vunpack.c.h.b16 %v7427
    %v8086 = vunpack.c.l.b16 %v7428
    %v8087 = vunpack.c.h.b16 %v7428
    %v8088 = vunpack.c.l.b16 %v7429
    %v8089 = vunpack.c.h.b16 %v7429
    %v8090 = vunpack.c.l.b16 %v7430
    %v8091 = vunpack.c.h.b16 %v7430
    %v8092 = vunpack.c.l.b16 %v7431
    %v8093 = vunpack.c.h.b16 %v7431
    %v8094 = vunpack.c.l.b16 %v7432
    %v8095 = vunpack.c.h.b16 %v7432
    %v8096 = vunpack.c.l.b16 %v7433
    %v8097 = vunpack.c.h.b16 %v7433
    %v8098 = vunpack.c.l.b16 %v7434
    %v8099 = vunpack.c.h.b16 %v7434
    %v8100 = vunpack.c.l.b16 %v7435
    %v8101 = vunpack.c.h.b16 %v7435
    %v8102 = vunpack.c.l.b16 %v7436
    %v8103 = vunpack.c.h.b16 %v7436
    %v8104 = vunpack.c.l.b16 %v7437
    %v8105 = vunpack.c.h.b16 %v7437
    %v8106 = vunpack.c.l.b16 %v7438
    %v8107 = vunpack.c.h.b16 %v7438
    %v8108 = vunpack.c.l.b16 %v7439
    %v8109 = vunpack.c.h.b16 %v7439
    %v8110 = vunpack.c.l.b16 %v7440
    %v8111 = vunpack.c.h.b16 %v7440
    %v8112 = vunpack.c.l.b16 %v7441
    %v8113 = vunpack.c.h.b16 %v7441
    %v8114 = vunpack.c.l.b16 %v7442
    %v8115 = vunpack.c.h.b16 %v7442
    %v8116 = vunpack.c.l.b16 %v7443
    %v8117 = vunpack.c.h.b16 %v7443
    %v8118 = vunpack.c.l.b16 %v7444
    %v8119 = vunpack.c.h.b16 %v7444
    %v8120 = vunpack.c.l.b16 %v7445
    %v8121 = vunpack.c.h.b16 %v7445
    %v8122 = vunpack.c.l.b16 %v7446
    %v8123 = vunpack.c.h.b16 %v7446
    %v8124 = vunpack.c.l.b16 %v7447
    %v8125 = vunpack.c.h.b16 %v7447
    %v8126 = vunpack.c.l.b16 %v7448
    %v8127 = vunpack.c.h.b16 %v7448
    %v8128 = vunpack.c.l.b16 %v7449
    %v8129 = vunpack.c.h.b16 %v7449
    %v8130 = vunpack.c.l.b16 %v7450
    %v8131 = vunpack.c.h.b16 %v7450
    %v8132 = vunpack.c.l.b16 %v7451
    %v8133 = vunpack.c.h.b16 %v7451
    %v8134 = vunpack.c.l.b16 %v7452
    %v8135 = vunpack.c.h.b16 %v7452
    %v8136 = vunpack.c.l.b16 %v7453
    %v8137 = vunpack.c.h.b16 %v7453
    %v8138 = vunpack.c.l.b16 %v7454
    %v8139 = vunpack.c.h.b16 %v7454
    %v8140 = vunpack.c.l.b16 %v7455
    %v8141 = vunpack.c.h.b16 %v7455
    %v8142 = vunpack.c.l.b16 %v7456
    %v8143 = vunpack.c.h.b16 %v7456
    %v8144 = vunpack.c.l.b16 %v7457
    %v8145 = vunpack.c.h.b16 %v7457
    %v8146 = vunpack.c.l.b16 %v7458
    %v8147 = vunpack.c.h.b16 %v7458
    %v8148 = vunpack.c.l.b16 %v7459
    %v8149 = vunpack.c.h.b16 %v7459
    %v8150 = vunpack.c.l.b16 %v7460
    %v8151 = vunpack.c.h.b16 %v7460
    %v8152 = vunpack.c.l.b16 %v7461
    %v8153 = vunpack.c.h.b16 %v7461
    %v8154 = vunpack.c.l.b16 %v7462
    %v8155 = vunpack.c.h.b16 %v7462
    %v8156 = vunpack.c.l.b16 %v7463
    %v8157 = vunpack.c.h.b16 %v7463
    %v8158 = vunpack.c.l.b16 %v7464
    %v8159 = vunpack.c.h.b16 %v7464
    %v8160 = vunpack.c.l.b16 %v7465
    %v8161 = vunpack.c.h.b16 %v7465
    %v8162 = vunpack.c.l.b16 %v7466
    %v8163 = vunpack.c.h.b16 %v7466
    %v8164 = vunpack.c.l.b16 %v7467
    %v8165 = vunpack.c.h.b16 %v7467
    %v8166 = vunpack.c.l.b16 %v7468
    %v8167 = vunpack.c.h.b16 %v7468
    %v8168 = vunpack.c.l.b16 %v7469
    %v8169 = vunpack.c.h.b16 %v7469
    %v8170 = vunpack.c.l.b16 %v7470
    %v8171 = vunpack.c.h.b16 %v7470
    %v8172 = vunpack.c.l.b16 %v7471
    %v8173 = vunpack.c.h.b16 %v7471
    %v8174 = vunpack.c.l.b16 %v7472
    %v8175 = vunpack.c.h.b16 %v7472
    %v8176 = vunpack.c.l.b16 %v7473
    %v8177 = vunpack.c.h.b16 %v7473
    %v8178 = vunpack.c.l.b16 %v7474
    %v8179 = vunpack.c.h.b16 %v7474
    %v8180 = vunpack.c.l.b16 %v7475
    %v8181 = vunpack.c.h.b16 %v7475
    %v8182 = vunpack.c.l.b16 %v7476
    %v8183 = vunpack.c.h.b16 %v7476
    %v8184 = vunpack.c.l.b16 %v7477
    %v8185 = vunpack.c.h.b16 %v7477
    %v8186 = vunpack.c.l.b16 %v7478
    %v8187 = vunpack.c.h.b16 %v7478
    %v8188 = vunpack.c.l.b16 %v7479
    %v8189 = vunpack.c.h.b16 %v7479
    %v8190 = vunpack.c.l.b16 %v7480
    %v8191 = vunpack.c.h.b16 %v7480
    %v8192 = vunpack.c.l.b16 %v7481
    %v8193 = vunpack.c.h.b16 %v7481
    %v8194 = vunpack.c.l.b16 %v7482
    %v8195 = vunpack.c.h.b16 %v7482
    %v8196 = vunpack.c.l.b16 %v7483
    %v8197 = vunpack.c.h.b16 %v7483
    %v8198 = vunpack.c.l.b16 %v7484
    %v8199 = vunpack.c.h.b16 %v7484
    %v8200 = vunpack.c.l.b16 %v7485
    %v8201 = vunpack.c.h.b16 %v7485
    %v8202 = vunpack.c.l.b16 %v7486
    %v8203 = vunpack.c.h.b16 %v7486
    %v8204 = vunpack.c.l.b16 %v7487
    %v8205 = vunpack.c.h.b16 %v7487
    %v8206 = vunpack.c.l.b16 %v7488
    %v8207 = vunpack.c.h.b16 %v7488
    %v8208 = vunpack.c.l.b16 %v7489
    %v8209 = vunpack.c.h.b16 %v7489
    %v8210 = vunpack.c.l.b16 %v7490
    %v8211 = vunpack.c.h.b16 %v7490
    %v8212 = vunpack.c.l.b16 %v7491
    %v8213 = vunpack.c.h.b16 %v7491
    %v8214 = vunpack.c.l.b16 %v7492
    %v8215 = vunpack.c.h.b16 %v7492
    %v8216 = vunpack.c.l.b16 %v7493
    %v8217 = vunpack.c.h.b16 %v7493
    %v8218 = vunpack.c.l.b16 %v7494
    %v8219 = vunpack.c.h.b16 %v7494
    %v8220 = vunpack.c.l.b16 %v7495
    %v8221 = vunpack.c.h.b16 %v7495
    %v8222 = vunpack.c.l.b16 %v7496
    %v8223 = vunpack.c.h.b16 %v7496
    %v8224 = vunpack.c.l.b16 %v7497
    %v8225 = vunpack.c.h.b16 %v7497
    %v8226 = vunpack.c.l.b16 %v7498
    %v8227 = vunpack.c.h.b16 %v7498
    %v8228 = vunpack.c.l.b16 %v7499
    %v8229 = vunpack.c.h.b16 %v7499
    %v8230 = vunpack.c.l.b16 %v7500
    %v8231 = vunpack.c.h.b16 %v7500
    %v8232 = vunpack.c.l.b16 %v7501
    %v8233 = vunpack.c.h.b16 %v7501
    %v8234 = vunpack.c.l.b16 %v7502
    %v8235 = vunpack.c.h.b16 %v7502
    %v8236 = vunpack.c.l.b16 %v7503
    %v8237 = vunpack.c.h.b16 %v7503
    %v8238 = vunpack.c.l.b16 %v7504
    %v8239 = vunpack.c.h.b16 %v7504
    %v8240 = vunpack.c.l.b16 %v7505
    %v8241 = vunpack.c.h.b16 %v7505
    %v8242 = vunpack.c.l.b16 %v7506
    %v8243 = vunpack.c.h.b16 %v7506
    %v8244 = vunpack.c.l.b16 %v7507
    %v8245 = vunpack.c.h.b16 %v7507
    %v8246 = vunpack.c.l.b16 %v7508
    %v8247 = vunpack.c.h.b16 %v7508
    %v8248 = vunpack.c.l.b16 %v7509
    %v8249 = vunpack.c.h.b16 %v7509
    %v8250 = vunpack.c.l.b16 %v7510
    %v8251 = vunpack.c.h.b16 %v7510
    %v8252 = vunpack.c.l.b16 %v7511
    %v8253 = vunpack.c.h.b16 %v7511
    %v8254 = vunpack.c.l.b16 %v7512
    %v8255 = vunpack.c.h.b16 %v7512
    %v8256 = vunpack.c.l.b16 %v7513
    %v8257 = vunpack.c.h.b16 %v7513
    %v8258 = vunpack.c.l.b16 %v7514
    %v8259 = vunpack.c.h.b16 %v7514
    %v8260 = vunpack.c.l.b16 %v7515
    %v8261 = vunpack.c.h.b16 %v7515
    %v8262 = vunpack.c.l.b16 %v7516
    %v8263 = vunpack.c.h.b16 %v7516
    %v8264 = vunpack.c.l.b16 %v7517
    %v8265 = vunpack.c.h.b16 %v7517
    %v8266 = vunpack.c.l.b16 %v7518
    %v8267 = vunpack.c.h.b16 %v7518
    %v8268 = vunpack.c.l.b16 %v7519
    %v8269 = vunpack.c.h.b16 %v7519
    %v8270 = vunpack.c.l.b16 %v7520
    %v8271 = vunpack.c.h.b16 %v7520
    %v8272 = vunpack.c.l.b16 %v7521
    %v8273 = vunpack.c.h.b16 %v7521
    %v8274 = vunpack.c.l.b16 %v7522
    %v8275 = vunpack.c.h.b16 %v7522
    %v8276 = vunpack.c.l.b16 %v7523
    %v8277 = vunpack.c.h.b16 %v7523
    %v8278 = vunpack.c.l.b16 %v7524
    %v8279 = vunpack.c.h.b16 %v7524
    %v8280 = vunpack.c.l.b16 %v7525
    %v8281 = vunpack.c.h.b16 %v7525
    %v8282 = vunpack.c.l.b16 %v7526
    %v8283 = vunpack.c.h.b16 %v7526
    %v8284 = vunpack.c.l.b16 %v7527
    %v8285 = vunpack.c.h.b16 %v7527
    %v8286 = vunpack.c.l.b16 %v7528
    %v8287 = vunpack.c.h.b16 %v7528
    %v8288 = vunpack.c.l.b16 %v7529
    %v8289 = vunpack.c.h.b16 %v7529
    %v8290 = vunpack.c.l.b16 %v7530
    %v8291 = vunpack.c.h.b16 %v7530
    %v8292 = vunpack.c.l.b16 %v7531
    %v8293 = vunpack.c.h.b16 %v7531
    %v8294 = vunpack.c.l.b16 %v7532
    %v8295 = vunpack.c.h.b16 %v7532
    %v8296 = vunpack.c.l.b16 %v7533
    %v8297 = vunpack.c.h.b16 %v7533
    %v8298 = vunpack.c.l.b16 %v7534
    %v8299 = vunpack.c.h.b16 %v7534
    %v8300 = vunpack.c.l.b16 %v7535
    %v8301 = vunpack.c.h.b16 %v7535
    %v8302 = vunpack.c.l.b16 %v7536
    %v8303 = vunpack.c.h.b16 %v7536
    %v8304 = vunpack.c.l.b16 %v7537
    %v8305 = vunpack.c.h.b16 %v7537
    %v8306 = vpack.c.b16 %v7810, %v7794
    %v8307 = vpack.c.b16 %v7811, %v7795
    %v8308 = vpack.c.b16 %v7812, %v7796
    %v8309 = vpack.c.b16 %v7813, %v7797
    %v8310 = vpack.c.b16 %v7814, %v7798
    %v8311 = vpack.c.b16 %v7815, %v7799
    %v8312 = vpack.c.b16 %v7816, %v7800
    %v8313 = vpack.c.b16 %v7817, %v7801
    %v8314 = vpack.c.b16 %v7818, %v7802
    %v8315 = vpack.c.b16 %v7819, %v7803
    %v8316 = vpack.c.b16 %v7820, %v7804
    %v8317 = vpack.c.b16 %v7821, %v7805
    %v8318 = vpack.c.b16 %v7822, %v7806
    %v8319 = vpack.c.b16 %v7823, %v7807
    %v8320 = vpack.c.b16 %v7824, %v7808
    %v8321 = vpack.c.b16 %v7825, %v7809
    %v8322 = vpack.c.b16 %v7842, %v7826
    %v8323 = vpack.c.b16 %v7843, %v7827
    %v8324 = vpack.c.b16 %v7844, %v7828
    %v8325 = vpack.c.b16 %v7845, %v7829
    %v8326 = vpack.c.b16 %v7846, %v7830
    %v8327 = vpack.c.b16 %v7847, %v7831
    %v8328 = vpack.c.b16 %v7848, %v7832
    %v8329 = vpack.c.b16 %v7849, %v7833
    %v8330 = vpack.c.b16 %v7850, %v7834
    %v8331 = vpack.c.b16 %v7851, %v7835
    %v8332 = vpack.c.b16 %v7852, %v7836
    %v8333 = vpack.c.b16 %v7853, %v7837
    %v8334 = vpack.c.b16 %v7854, %v7838
    %v8335 = vpack.c.b16 %v7855, %v7839
    %v8336 = vpack.c.b16 %v7856, %v7840
    %v8337 = vpack.c.b16 %v7857, %v7841
    %v8338 = vpack.c.b16 %v7874, %v7858
    %v8339 = vpack.c.b16 %v7875, %v7859
    %v8340 = vpack.c.b16 %v7876, %v7860
    %v8341 = vpack.c.b16 %v7877, %v7861
    %v8342 = vpack.c.b16 %v7878, %v7862
    %v8343 = vpack.c.b16 %v7879, %v7863
    %v8344 = vpack.c.b16 %v7880, %v7864
    %v8345 = vpack.c.b16 %v7881, %v7865
    %v8346 = vpack.c.b16 %v7882, %v7866
    %v8347 = vpack.c.b16 %v7883, %v7867
    %v8348 = vpack.c.b16 %v7884, %v7868
    %v8349 = vpack.c.b16 %v7885, %v7869
    %v8350 = vpack.c.b16 %v7886, %v7870
    %v8351 = vpack.c.b16 %v7887, %v7871
    %v8352 = vpack.c.b16 %v7888, %v7872
    %v8353 = vpack.c.b16 %v7889, %v7873
    %v8354 = vpack.c.b16 %v7906, %v7890
    %v8355 = vpack.c.b16 %v7907, %v7891
    %v8356 = vpack.c.b16 %v7908, %v7892
    %v8357 = vpack.c.b16 %v7909, %v7893
    %v8358 = vpack.c.b16 %v7910, %v7894
    %v8359 = vpack.c.b16 %v7911, %v7895
    %v8360 = vpack.c.b16 %v7912, %v7896
    %v8361 = vpack.c.b16 %v7913, %v7897
    %v8362 = vpack.c.b16 %v7914, %v7898
    %v8363 = vpack.c.b16 %v7915, %v7899
    %v8364 = vpack.c.b16 %v7916, %v7900
    %v8365 = vpack.c.b16 %v7917, %v7901
    %v8366 = vpack.c.b16 %v7918, %v7902
    %v8367 = vpack.c.b16 %v7919, %v7903
    %v8368 = vpack.c.b16 %v7920, %v7904
    %v8369 = vpack.c.b16 %v7921, %v7905
    %v8370 = vpack.c.b16 %v7938, %v7922
    %v8371 = vpack.c.b16 %v7939, %v7923
    %v8372 = vpack.c.b16 %v7940, %v7924
    %v8373 = vpack.c.b16 %v7941, %v7925
    %v8374 = vpack.c.b16 %v7942, %v7926
    %v8375 = vpack.c.b16 %v7943, %v7927
    %v8376 = vpack.c.b16 %v7944, %v7928
    %v8377 = vpack.c.b16 %v7945, %v7929
    %v8378 = vpack.c.b16 %v7946, %v7930
    %v8379 = vpack.c.b16 %v7947, %v7931
    %v8380 = vpack.c.b16 %v7948, %v7932
    %v8381 = vpack.c.b16 %v7949, %v7933
    %v8382 = vpack.c.b16 %v7950, %v7934
    %v8383 = vpack.c.b16 %v7951, %v7935
    %v8384 = vpack.c.b16 %v7952, %v7936
    %v8385 = vpack.c.b16 %v7953, %v7937
    %v8386 = vpack.c.b16 %v7970, %v7954
    %v8387 = vpack.c.b16 %v7971, %v7955
    %v8388 = vpack.c.b16 %v7972, %v7956
    %v8389 = vpack.c.b16 %v7973, %v7957
    %v8390 = vpack.c.b16 %v7974, %v7958
    %v8391 = vpack.c.b16 %v7975, %v7959
    %v8392 = vpack.c.b16 %v7976, %v7960
    %v8393 = vpack.c.b16 %v7977, %v7961
    %v8394 = vpack.c.b16 %v7978, %v7962
    %v8395 = vpack.c.b16 %v7979, %v7963
    %v8396 = vpack.c.b16 %v7980, %v7964
    %v8397 = vpack.c.b16 %v7981, %v7965
    %v8398 = vpack.c.b16 %v7982, %v7966
    %v8399 = vpack.c.b16 %v7983, %v7967
    %v8400 = vpack.c.b16 %v7984, %v7968
    %v8401 = vpack.c.b16 %v7985, %v7969
    %v8402 = vpack.c.b16 %v8002, %v7986
    %v8403 = vpack.c.b16 %v8003, %v7987
    %v8404 = vpack.c.b16 %v8004, %v7988
    %v8405 = vpack.c.b16 %v8005, %v7989
    %v8406 = vpack.c.b16 %v8006, %v7990
    %v8407 = vpack.c.b16 %v8007, %v7991
    %v8408 = vpack.c.b16 %v8008, %v7992
    %v8409 = vpack.c.b16 %v8009, %v7993
    %v8410 = vpack.c.b16 %v8010, %v7994
    %v8411 = vpack.c.b16 %v8011, %v7995
    %v8412 = vpack.c.b16 %v8012, %v7996
    %v8413 = vpack.c.b16 %v8013, %v7997
    %v8414 = vpack.c.b16 %v8014, %v7998
    %v8415 = vpack.c.b16 %v8015, %v7999
    %v8416 = vpack.c.b16 %v8016, %v8000
    %v8417 = vpack.c.b16 %v8017, %v8001
    %v8418 = vpack.c.b16 %v8034, %v8018
    %v8419 = vpack.c.b16 %v8035, %v8019
    %v8420 = vpack.c.b16 %v8036, %v8020
    %v8421 = vpack.c.b16 %v8037, %v8021
    %v8422 = vpack.c.b16 %v8038, %v8022
    %v8423 = vpack.c.b16 %v8039, %v8023
    %v8424 = vpack.c.b16 %v8040, %v8024
    %v8425 = vpack.c.b16 %v8041, %v8025
    %v8426 = vpack.c.b16 %v8042, %v8026
    %v8427 = vpack.c.b16 %v8043, %v8027
    %v8428 = vpack.c.b16 %v8044, %v8028
    %v8429 = vpack.c.b16 %v8045, %v8029
    %v8430 = vpack.c.b16 %v8046, %v8030
    %v8431 = vpack.c.b16 %v8047, %v8031
    %v8432 = vpack.c.b16 %v8048, %v8032
    %v8433 = vpack.c.b16 %v8049, %v8033
    %v8434 = vpack.c.b16 %v8066, %v8050
    %v8435 = vpack.c.b16 %v8067, %v8051
    %v8436 = vpack.c.b16 %v8068, %v8052
    %v8437 = vpack.c.b16 %v8069, %v8053
    %v8438 = vpack.c.b16 %v8070, %v8054
    %v8439 = vpack.c.b16 %v8071, %v8055
    %v8440 = vpack.c.b16 %v8072, %v8056
    %v8441 = vpack.c.b16 %v8073, %v8057
    %v8442 = vpack.c.b16 %v8074, %v8058
    %v8443 = vpack.c.b16 %v8075, %v8059
    %v8444 = vpack.c.b16 %v8076, %v8060
    %v8445 = vpack.c.b16 %v8077, %v8061
    %v8446 = vpack.c.b16 %v8078, %v8062
    %v8447 = vpack.c.b16 %v8079, %v8063
    %v8448 = vpack.c.b16 %v8080, %v8064
    %v8449 = vpack.c.b16 %v8081, %v8065
    %v8450 = vpack.c.b16 %v8098, %v8082
    %v8451 = vpack.c.b16 %v8099, %v8083
    %v8452 = vpack.c.b16 %v8100, %v8084
    %v8453 = vpack.c.b16 %v8101, %v8085
    %v8454 = vpack.c.b16 %v8102, %v8086
    %v8455 = vpack.c.b16 %v8103, %v8087
    %v8456 = vpack.c.b16 %v8104, %v8088
    %v8457 = vpack.c.b16 %v8105, %v8089
    %v8458 = vpack.c.b16 %v8106, %v8090
    %v8459 = vpack.c.b16 %v8107, %v8091
    %v8460 = vpack.c.b16 %v8108, %v8092
    %v8461 = vpack.c.b16 %v8109, %v8093
    %v8462 = vpack.c.b16 %v8110, %v8094
    %v8463 = vpack.c.b16 %v8111, %v8095
    %v8464 = vpack.c.b16 %v8112, %v8096
    %v8465 = vpack.c.b16 %v8113, %v8097
    %v8466 = vpack.c.b16 %v8130, %v8114
    %v8467 = vpack.c.b16 %v8131, %v8115
    %v8468 = vpack.c.b16 %v8132, %v8116
    %v8469 = vpack.c.b16 %v8133, %v8117
    %v8470 = vpack.c.b16 %v8134, %v8118
    %v8471 = vpack.c.b16 %v8135, %v8119
    %v8472 = vpack.c.b16 %v8136, %v8120
    %v8473 = vpack.c.b16 %v8137, %v8121
    %v8474 = vpack.c.b16 %v8138, %v8122
    %v8475 = vpack.c.b16 %v8139, %v8123
    %v8476 = vpack.c.b16 %v8140, %v8124
    %v8477 = vpack.c.b16 %v8141, %v8125
    %v8478 = vpack.c.b16 %v8142, %v8126
    %v8479 = vpack.c.b16 %v8143, %v8127
    %v8480 = vpack.c.b16 %v8144, %v8128
    %v8481 = vpack.c.b16 %v8145, %v8129
    %v8482 = vpack.c.b16 %v8162, %v8146
    %v8483 = vpack.c.b16 %v8163, %v8147
    %v8484 = vpack.c.b16 %v8164, %v8148
    %v8485 = vpack.c.b16 %v8165, %v8149
    %v8486 = vpack.c.b16 %v8166, %v8150
    %v8487 = vpack.c.b16 %v8167, %v8151
    %v8488 = vpack.c.b16 %v8168, %v8152
    %v8489 = vpack.c.b16 %v8169, %v8153
    %v8490 = vpack.c.b16 %v8170, %v8154
    %v8491 = vpack.c.b16 %v8171, %v8155
    %v8492 = vpack.c.b16 %v8172, %v8156
    %v8493 = vpack.c.b16 %v8173, %v8157
    %v8494 = vpack.c.b16 %v8174, %v8158
    %v8495 = vpack.c.b16 %v8175, %v8159
    %v8496 = vpack.c.b16 %v8176, %v8160
    %v8497 = vpack.c.b16 %v8177, %v8161
    %v8498 = vpack.c.b16 %v8194, %v8178
    %v8499 = vpack.c.b16 %v8195, %v8179
    %v8500 = vpack.c.b16 %v8196, %v8180
    %v8501 = vpack.c.b16 %v8197, %v8181
    %v8502 = vpack.c.b16 %v8198, %v8182
    %v8503 = vpack.c.b16 %v8199, %v8183
    %v8504 = vpack.c.b16 %v8200, %v8184
    %v8505 = vpack.c.b16 %v8201, %v8185
    %v8506 = vpack.c.b16 %v8202, %v8186
    %v8507 = vpack.c.b16 %v8203, %v8187
    %v8508 = vpack.c.b16 %v8204, %v8188
    %v8509 = vpack.c.b16 %v8205, %v8189
    %v8510 = vpack.c.b16 %v8206, %v8190
    %v8511 = vpack.c.b16 %v8207, %v8191
    %v8512 = vpack.c.b16 %v8208, %v8192
    %v8513 = vpack.c.b16 %v8209, %v8193
    %v8514 = vpack.c.b16 %v8226, %v8210
    %v8515 = vpack.c.b16 %v8227, %v8211
    %v8516 = vpack.c.b16 %v8228, %v8212
    %v8517 = vpack.c.b16 %v8229, %v8213
    %v8518 = vpack.c.b16 %v8230, %v8214
    %v8519 = vpack.c.b16 %v8231, %v8215
    %v8520 = vpack.c.b16 %v8232, %v8216
    %v8521 = vpack.c.b16 %v8233, %v8217
    %v8522 = vpack.c.b16 %v8234, %v8218
    %v8523 = vpack.c.b16 %v8235, %v8219
    %v8524 = vpack.c.b16 %v8236, %v8220
    %v8525 = vpack.c.b16 %v8237, %v8221
    %v8526 = vpack.c.b16 %v8238, %v8222
    %v8527 = vpack.c.b16 %v8239, %v8223
    %v8528 = vpack.c.b16 %v8240, %v8224
    %v8529 = vpack.c.b16 %v8241, %v8225
    %v8530 = vpack.c.b16 %v8258, %v8242
    %v8531 = vpack.c.b16 %v8259, %v8243
    %v8532 = vpack.c.b16 %v8260, %v8244
    %v8533 = vpack.c.b16 %v8261, %v8245
    %v8534 = vpack.c.b16 %v8262, %v8246
    %v8535 = vpack.c.b16 %v8263, %v8247
    %v8536 = vpack.c.b16 %v8264, %v8248
    %v8537 = vpack.c.b16 %v8265, %v8249
    %v8538 = vpack.c.b16 %v8266, %v8250
    %v8539 = vpack.c.b16 %v8267, %v8251
    %v8540 = vpack.c.b16 %v8268, %v8252
    %v8541 = vpack.c.b16 %v8269, %v8253
    %v8542 = vpack.c.b16 %v8270, %v8254
    %v8543 = vpack.c.b16 %v8271, %v8255
    %v8544 = vpack.c.b16 %v8272, %v8256
    %v8545 = vpack.c.b16 %v8273, %v8257
    %v8546 = vpack.c.b16 %v8290, %v8274
    %v8547 = vpack.c.b16 %v8291, %v8275
    %v8548 = vpack.c.b16 %v8292, %v8276
    %v8549 = vpack.c.b16 %v8293, %v8277
    %v8550 = vpack.c.b16 %v8294, %v8278
    %v8551 = vpack.c.b16 %v8295, %v8279
    %v8552 = vpack.c.b16 %v8296, %v8280
    %v8553 = vpack.c.b16 %v8297, %v8281
    %v8554 = vpack.c.b16 %v8298, %v8282
    %v8555 = vpack.c.b16 %v8299, %v8283
    %v8556 = vpack.c.b16 %v8300, %v8284
    %v8557 = vpack.c.b16 %v8301, %v8285
    %v8558 = vpack.c.b16 %v8302, %v8286
    %v8559 = vpack.c.b16 %v8303, %v8287
    %v8560 = vpack.c.b16 %v8304, %v8288
    %v8561 = vpack.c.b16 %v8305, %v8289
    %8818 = vmatprep.subr.bf16.mxu0 %v8419
    %8819 = vmatpush1.bf16.msra.mxu0 %v8418
    %8820 = vmatprep.subr.bf16.mxu0 %v8403
    %8821 = vmatpush1.bf16.msra.mxu0 %v8402
    %8822 = vmatprep.subr.bf16.mxu0 %v8387
    %8823 = vmatpush1.bf16.msra.mxu0 %v8386
    %8824 = vmatprep.subr.bf16.mxu0 %v8371
    %8825 = vmatpush1.bf16.msra.mxu0 %v8370
    %8826 = vmatprep.subr.bf16.mxu0 %v8355
    %8827 = vmatpush1.bf16.msra.mxu0 %v8354
    %8828 = vmatprep.subr.bf16.mxu0 %v8339
    %8829 = vmatpush1.bf16.msra.mxu0 %v8338
    %8830 = vmatprep.subr.bf16.mxu0 %v8323
    %8831 = vmatpush1.bf16.msra.mxu0 %v8322
    %8832 = vmatprep.subr.bf16.mxu0 %v8307
    %8833 = vmatpush1.bf16.msra.mxu0 %v8306
    %8834 = vmatprep.subr.bf16.mxu0 %v8547
    %8835 = vmatpush2.bf16.msra.mxu0 %v8546
    %8836 = vmatprep.subr.bf16.mxu0 %v8531
    %8837 = vmatpush2.bf16.msra.mxu0 %v8530
    %8838 = vmatprep.subr.bf16.mxu0 %v8515
    %8839 = vmatpush2.bf16.msra.mxu0 %v8514
    %8840 = vmatprep.subr.bf16.mxu0 %v8499
    %8841 = vmatpush2.bf16.msra.mxu0 %v8498
    %8842 = vmatprep.subr.bf16.mxu0 %v8483
    %8843 = vmatpush2.bf16.msra.mxu0 %v8482
    %8844 = vmatprep.subr.bf16.mxu0 %v8467
    %8845 = vmatpush2.bf16.msra.mxu0 %v8466
    %8846 = vmatprep.subr.bf16.mxu0 %v8451
    %8847 = vmatpush2.bf16.msra.mxu0 %v8450
    %8848 = vmatprep.subr.bf16.mxu0 %v8435
    %8849 = vmatpush2.bf16.msra.mxu0 %v8434
    %8850 = vmatprep.mubr.bf16.mxu0 %v3553
    %8851 = vmatmul.mubr.bf16.gmra.mxu0 %v3552
    %v8852 = vpop.f32.mrf.mxu0
    %v8853 = vadd.f32 0.0, %v8852
    %v8854 = vpop.f32.mrf.mxu0
    %v8855 = vadd.f32 0.0, %v8854
    %v8856 = vpop.f32.mrf.mxu0
    %v8857 = vpop.f32.mrf.mxu0
    %8858 = vdwg.mxu0
    %8859 = vmatprep.subr.bf16.mxu0 %v8421
    %8860 = vmatpush1.bf16.msra.mxu0 %v8420
    %8861 = vmatprep.subr.bf16.mxu0 %v8405
    %8862 = vmatpush1.bf16.msra.mxu0 %v8404
    %8863 = vmatprep.subr.bf16.mxu0 %v8389
    %8864 = vmatpush1.bf16.msra.mxu0 %v8388
    %8865 = vmatprep.subr.bf16.mxu0 %v8373
    %8866 = vmatpush1.bf16.msra.mxu0 %v8372
    %8867 = vmatprep.subr.bf16.mxu0 %v8357
    %8868 = vmatpush1.bf16.msra.mxu0 %v8356
    %8869 = vmatprep.subr.bf16.mxu0 %v8341
    %8870 = vmatpush1.bf16.msra.mxu0 %v8340
    %8871 = vmatprep.subr.bf16.mxu0 %v8325
    %8872 = vmatpush1.bf16.msra.mxu0 %v8324
    %8873 = vmatprep.subr.bf16.mxu0 %v8309
    %8874 = vmatpush1.bf16.msra.mxu0 %v8308
    %8875 = vmatprep.subr.bf16.mxu0 %v8549
    %8876 = vmatpush2.bf16.msra.mxu0 %v8548
    %8877 = vmatprep.subr.bf16.mxu0 %v8533
    %8878 = vmatpush2.bf16.msra.mxu0 %v8532
    %8879 = vmatprep.subr.bf16.mxu0 %v8517
    %8880 = vmatpush2.bf16.msra.mxu0 %v8516
    %8881 = vmatprep.subr.bf16.mxu0 %v8501
    %8882 = vmatpush2.bf16.msra.mxu0 %v8500
    %8883 = vmatprep.subr.bf16.mxu0 %v8485
    %8884 = vmatpush2.bf16.msra.mxu0 %v8484
    %8885 = vmatprep.subr.bf16.mxu0 %v8469
    %8886 = vmatpush2.bf16.msra.mxu0 %v8468
    %8887 = vmatprep.subr.bf16.mxu0 %v8453
    %8888 = vmatpush2.bf16.msra.mxu0 %v8452
    %8889 = vmatprep.subr.bf16.mxu0 %v8437
    %8890 = vmatpush2.bf16.msra.mxu0 %v8436
    %8891 = vmatprep.mubr.bf16.mxu0 %v3553
    %8892 = vmatmul.mubr.bf16.gmra.mxu0 %v3552
    %v8893 = vpop.f32.mrf.mxu0
    %v8894 = vadd.f32 0.0, %v8893
    %v8895 = vpop.f32.mrf.mxu0
    %v8896 = vadd.f32 0.0, %v8895
    %v8897 = vpop.f32.mrf.mxu0
    %v8898 = vpop.f32.mrf.mxu0
    %8899 = vdwg.mxu0
    %8900 = vmatprep.subr.bf16.mxu0 %v8423
    %8901 = vmatpush1.bf16.msra.mxu0 %v8422
    %8902 = vmatprep.subr.bf16.mxu0 %v8407
    %8903 = vmatpush1.bf16.msra.mxu0 %v8406
    %8904 = vmatprep.subr.bf16.mxu0 %v8391
    %8905 = vmatpush1.bf16.msra.mxu0 %v8390
    %8906 = vmatprep.subr.bf16.mxu0 %v8375
    %8907 = vmatpush1.bf16.msra.mxu0 %v8374
    %8908 = vmatprep.subr.bf16.mxu0 %v8359
    %8909 = vmatpush1.bf16.msra.mxu0 %v8358
    %8910 = vmatprep.subr.bf16.mxu0 %v8343
    %8911 = vmatpush1.bf16.msra.mxu0 %v8342
    %8912 = vmatprep.subr.bf16.mxu0 %v8327
    %8913 = vmatpush1.bf16.msra.mxu0 %v8326
    %8914 = vmatprep.subr.bf16.mxu0 %v8311
    %8915 = vmatpush1.bf16.msra.mxu0 %v8310
    %8916 = vmatprep.subr.bf16.mxu0 %v8551
    %8917 = vmatpush2.bf16.msra.mxu0 %v8550
    %8918 = vmatprep.subr.bf16.mxu0 %v8535
    %8919 = vmatpush2.bf16.msra.mxu0 %v8534
    %8920 = vmatprep.subr.bf16.mxu0 %v8519
    %8921 = vmatpush2.bf16.msra.mxu0 %v8518
    %8922 = vmatprep.subr.bf16.mxu0 %v8503
    %8923 = vmatpush2.bf16.msra.mxu0 %v8502
    %8924 = vmatprep.subr.bf16.mxu0 %v8487
    %8925 = vmatpush2.bf16.msra.mxu0 %v8486
    %8926 = vmatprep.subr.bf16.mxu0 %v8471
    %8927 = vmatpush2.bf16.msra.mxu0 %v8470
    %8928 = vmatprep.subr.bf16.mxu0 %v8455
    %8929 = vmatpush2.bf16.msra.mxu0 %v8454
    %8930 = vmatprep.subr.bf16.mxu0 %v8439
    %8931 = vmatpush2.bf16.msra.mxu0 %v8438
    %8932 = vmatprep.mubr.bf16.mxu0 %v3553
    %8933 = vmatmul.mubr.bf16.gmra.mxu0 %v3552
    %v8934 = vpop.f32.mrf.mxu0
    %v8935 = vadd.f32 0.0, %v8934
    %v8936 = vpop.f32.mrf.mxu0
    %v8937 = vadd.f32 0.0, %v8936
    %v8938 = vpop.f32.mrf.mxu0
    %v8939 = vpop.f32.mrf.mxu0
    %8940 = vdwg.mxu0
    %8941 = vmatprep.subr.bf16.mxu0 %v8425
    %8942 = vmatpush1.bf16.msra.mxu0 %v8424
    %8943 = vmatprep.subr.bf16.mxu0 %v8409
    %8944 = vmatpush1.bf16.msra.mxu0 %v8408
    %8945 = vmatprep.subr.bf16.mxu0 %v8393
    %8946 = vmatpush1.bf16.msra.mxu0 %v8392
    %8947 = vmatprep.subr.bf16.mxu0 %v8377
    %8948 = vmatpush1.bf16.msra.mxu0 %v8376
    %8949 = vmatprep.subr.bf16.mxu0 %v8361
    %8950 = vmatpush1.bf16.msra.mxu0 %v8360
    %8951 = vmatprep.subr.bf16.mxu0 %v8345
    %8952 = vmatpush1.bf16.msra.mxu0 %v8344
    %8953 = vmatprep.subr.bf16.mxu0 %v8329
    %8954 = vmatpush1.bf16.msra.mxu0 %v8328
    %8955 = vmatprep.subr.bf16.mxu0 %v8313
    %8956 = vmatpush1.bf16.msra.mxu0 %v8312
    %8957 = vmatprep.subr.bf16.mxu0 %v8553
    %8958 = vmatpush2.bf16.msra.mxu0 %v8552
    %8959 = vmatprep.subr.bf16.mxu0 %v8537
    %8960 = vmatpush2.bf16.msra.mxu0 %v8536
    %8961 = vmatprep.subr.bf16.mxu0 %v8521
    %8962 = vmatpush2.bf16.msra.mxu0 %v8520
    %8963 = vmatprep.subr.bf16.mxu0 %v8505
    %8964 = vmatpush2.bf16.msra.mxu0 %v8504
    %8965 = vmatprep.subr.bf16.mxu0 %v8489
    %8966 = vmatpush2.bf16.msra.mxu0 %v8488
    %8967 = vmatprep.subr.bf16.mxu0 %v8473
    %8968 = vmatpush2.bf16.msra.mxu0 %v8472
    %8969 = vmatprep.subr.bf16.mxu0 %v8457
    %8970 = vmatpush2.bf16.msra.mxu0 %v8456
    %8971 = vmatprep.subr.bf16.mxu0 %v8441
    %8972 = vmatpush2.bf16.msra.mxu0 %v8440
    %8973 = vmatprep.mubr.bf16.mxu0 %v3553
    %8974 = vmatmul.mubr.bf16.gmra.mxu0 %v3552
    %v8975 = vpop.f32.mrf.mxu0
    %v8976 = vadd.f32 0.0, %v8975
    %v8977 = vpop.f32.mrf.mxu0
    %v8978 = vadd.f32 0.0, %v8977
    %v8979 = vpop.f32.mrf.mxu0
    %v8980 = vpop.f32.mrf.mxu0
    %8981 = vdwg.mxu0
    %8982 = vmatprep.subr.bf16.mxu0 %v8427
    %8983 = vmatpush1.bf16.msra.mxu0 %v8426
    %8984 = vmatprep.subr.bf16.mxu0 %v8411
    %8985 = vmatpush1.bf16.msra.mxu0 %v8410
    %8986 = vmatprep.subr.bf16.mxu0 %v8395
    %8987 = vmatpush1.bf16.msra.mxu0 %v8394
    %8988 = vmatprep.subr.bf16.mxu0 %v8379
    %8989 = vmatpush1.bf16.msra.mxu0 %v8378
    %8990 = vmatprep.subr.bf16.mxu0 %v8363
    %8991 = vmatpush1.bf16.msra.mxu0 %v8362
    %8992 = vmatprep.subr.bf16.mxu0 %v8347
    %8993 = vmatpush1.bf16.msra.mxu0 %v8346
    %8994 = vmatprep.subr.bf16.mxu0 %v8331
    %8995 = vmatpush1.bf16.msra.mxu0 %v8330
    %8996 = vmatprep.subr.bf16.mxu0 %v8315
    %8997 = vmatpush1.bf16.msra.mxu0 %v8314
    %8998 = vmatprep.subr.bf16.mxu0 %v8555
    %8999 = vmatpush2.bf16.msra.mxu0 %v8554
    %9000 = vmatprep.subr.bf16.mxu0 %v8539
    %9001 = vmatpush2.bf16.msra.mxu0 %v8538
    %9002 = vmatprep.subr.bf16.mxu0 %v8523
    %9003 = vmatpush2.bf16.msra.mxu0 %v8522
    %9004 = vmatprep.subr.bf16.mxu0 %v8507
    %9005 = vmatpush2.bf16.msra.mxu0 %v8506
    %9006 = vmatprep.subr.bf16.mxu0 %v8491
    %9007 = vmatpush2.bf16.msra.mxu0 %v8490
    %9008 = vmatprep.subr.bf16.mxu0 %v8475
    %9009 = vmatpush2.bf16.msra.mxu0 %v8474
    %9010 = vmatprep.subr.bf16.mxu0 %v8459
    %9011 = vmatpush2.bf16.msra.mxu0 %v8458
    %9012 = vmatprep.subr.bf16.mxu0 %v8443
    %9013 = vmatpush2.bf16.msra.mxu0 %v8442
    %9014 = vmatprep.mubr.bf16.mxu0 %v3553
    %9015 = vmatmul.mubr.bf16.gmra.mxu0 %v3552
    %v9016 = vpop.f32.mrf.mxu0
    %v9017 = vadd.f32 0.0, %v9016
    %v9018 = vpop.f32.mrf.mxu0
    %v9019 = vadd.f32 0.0, %v9018
    %v9020 = vpop.f32.mrf.mxu0
    %v9021 = vpop.f32.mrf.mxu0
    %9022 = vdwg.mxu0
    %9023 = vmatprep.subr.bf16.mxu0 %v8429
    %9024 = vmatpush1.bf16.msra.mxu0 %v8428
    %9025 = vmatprep.subr.bf16.mxu0 %v8413
    %9026 = vmatpush1.bf16.msra.mxu0 %v8412
    %9027 = vmatprep.subr.bf16.mxu0 %v8397
    %9028 = vmatpush1.bf16.msra.mxu0 %v8396
    %9029 = vmatprep.subr.bf16.mxu0 %v8381
    %9030 = vmatpush1.bf16.msra.mxu0 %v8380
    %9031 = vmatprep.subr.bf16.mxu0 %v8365
    %9032 = vmatpush1.bf16.msra.mxu0 %v8364
    %9033 = vmatprep.subr.bf16.mxu0 %v8349
    %9034 = vmatpush1.bf16.msra.mxu0 %v8348
    %9035 = vmatprep.subr.bf16.mxu0 %v8333
    %9036 = vmatpush1.bf16.msra.mxu0 %v8332
    %9037 = vmatprep.subr.bf16.mxu0 %v8317
    %9038 = vmatpush1.bf16.msra.mxu0 %v8316
    %9039 = vmatprep.subr.bf16.mxu0 %v8557
    %9040 = vmatpush2.bf16.msra.mxu0 %v8556
    %9041 = vmatprep.subr.bf16.mxu0 %v8541
    %9042 = vmatpush2.bf16.msra.mxu0 %v8540
    %9043 = vmatprep.subr.bf16.mxu0 %v8525
    %9044 = vmatpush2.bf16.msra.mxu0 %v8524
    %9045 = vmatprep.subr.bf16.mxu0 %v8509
    %9046 = vmatpush2.bf16.msra.mxu0 %v8508
    %9047 = vmatprep.subr.bf16.mxu0 %v8493
    %9048 = vmatpush2.bf16.msra.mxu0 %v8492
    %9049 = vmatprep.subr.bf16.mxu0 %v8477
    %9050 = vmatpush2.bf16.msra.mxu0 %v8476
    %9051 = vmatprep.subr.bf16.mxu0 %v8461
    %9052 = vmatpush2.bf16.msra.mxu0 %v8460
    %9053 = vmatprep.subr.bf16.mxu0 %v8445
    %9054 = vmatpush2.bf16.msra.mxu0 %v8444
    %9055 = vmatprep.mubr.bf16.mxu0 %v3553
    %9056 = vmatmul.mubr.bf16.gmra.mxu0 %v3552
    %v9057 = vpop.f32.mrf.mxu0
    %v9058 = vadd.f32 0.0, %v9057
    %v9059 = vpop.f32.mrf.mxu0
    %v9060 = vadd.f32 0.0, %v9059
    %v9061 = vpop.f32.mrf.mxu0
    %v9062 = vpop.f32.mrf.mxu0
    %9063 = vdwg.mxu0
    %9064 = vmatprep.subr.bf16.mxu0 %v8431
    %9065 = vmatpush1.bf16.msra.mxu0 %v8430
    %9066 = vmatprep.subr.bf16.mxu0 %v8415
    %9067 = vmatpush1.bf16.msra.mxu0 %v8414
    %9068 = vmatprep.subr.bf16.mxu0 %v8399
    %9069 = vmatpush1.bf16.msra.mxu0 %v8398
    %9070 = vmatprep.subr.bf16.mxu0 %v8383
    %9071 = vmatpush1.bf16.msra.mxu0 %v8382
    %9072 = vmatprep.subr.bf16.mxu0 %v8367
    %9073 = vmatpush1.bf16.msra.mxu0 %v8366
    %9074 = vmatprep.subr.bf16.mxu0 %v8351
    %9075 = vmatpush1.bf16.msra.mxu0 %v8350
    %9076 = vmatprep.subr.bf16.mxu0 %v8335
    %9077 = vmatpush1.bf16.msra.mxu0 %v8334
    %9078 = vmatprep.subr.bf16.mxu0 %v8319
    %9079 = vmatpush1.bf16.msra.mxu0 %v8318
    %9080 = vmatprep.subr.bf16.mxu0 %v8559
    %9081 = vmatpush2.bf16.msra.mxu0 %v8558
    %9082 = vmatprep.subr.bf16.mxu0 %v8543
    %9083 = vmatpush2.bf16.msra.mxu0 %v8542
    %9084 = vmatprep.subr.bf16.mxu0 %v8527
    %9085 = vmatpush2.bf16.msra.mxu0 %v8526
    %9086 = vmatprep.subr.bf16.mxu0 %v8511
    %9087 = vmatpush2.bf16.msra.mxu0 %v8510
    %9088 = vmatprep.subr.bf16.mxu0 %v8495
    %9089 = vmatpush2.bf16.msra.mxu0 %v8494
    %9090 = vmatprep.subr.bf16.mxu0 %v8479
    %9091 = vmatpush2.bf16.msra.mxu0 %v8478
    %9092 = vmatprep.subr.bf16.mxu0 %v8463
    %9093 = vmatpush2.bf16.msra.mxu0 %v8462
    %9094 = vmatprep.subr.bf16.mxu0 %v8447
    %9095 = vmatpush2.bf16.msra.mxu0 %v8446
    %9096 = vmatprep.mubr.bf16.mxu0 %v3553
    %9097 = vmatmul.mubr.bf16.gmra.mxu0 %v3552
    %v9098 = vpop.f32.mrf.mxu0
    %v9099 = vadd.f32 0.0, %v9098
    %v9100 = vpop.f32.mrf.mxu0
    %v9101 = vadd.f32 0.0, %v9100
    %v9102 = vpop.f32.mrf.mxu0
    %v9103 = vpop.f32.mrf.mxu0
    %9104 = vdwg.mxu0
    %9105 = vmatprep.subr.bf16.mxu0 %v8433
    %9106 = vmatpush1.bf16.msra.mxu0 %v8432
    %9107 = vmatprep.subr.bf16.mxu0 %v8417
    %9108 = vmatpush1.bf16.msra.mxu0 %v8416
    %9109 = vmatprep.subr.bf16.mxu0 %v8401
    %9110 = vmatpush1.bf16.msra.mxu0 %v8400
    %9111 = vmatprep.subr.bf16.mxu0 %v8385
    %9112 = vmatpush1.bf16.msra.mxu0 %v8384
    %9113 = vmatprep.subr.bf16.mxu0 %v8369
    %9114 = vmatpush1.bf16.msra.mxu0 %v8368
    %9115 = vmatprep.subr.bf16.mxu0 %v8353
    %9116 = vmatpush1.bf16.msra.mxu0 %v8352
    %9117 = vmatprep.subr.bf16.mxu0 %v8337
    %9118 = vmatpush1.bf16.msra.mxu0 %v8336
    %9119 = vmatprep.subr.bf16.mxu0 %v8321
    %9120 = vmatpush1.bf16.msra.mxu0 %v8320
    %9121 = vmatprep.subr.bf16.mxu0 %v8561
    %9122 = vmatpush2.bf16.msra.mxu0 %v8560
    %9123 = vmatprep.subr.bf16.mxu0 %v8545
    %9124 = vmatpush2.bf16.msra.mxu0 %v8544
    %9125 = vmatprep.subr.bf16.mxu0 %v8529
    %9126 = vmatpush2.bf16.msra.mxu0 %v8528
    %9127 = vmatprep.subr.bf16.mxu0 %v8513
    %9128 = vmatpush2.bf16.msra.mxu0 %v8512
    %9129 = vmatprep.subr.bf16.mxu0 %v8497
    %9130 = vmatpush2.bf16.msra.mxu0 %v8496
    %9131 = vmatprep.subr.bf16.mxu0 %v8481
    %9132 = vmatpush2.bf16.msra.mxu0 %v8480
    %9133 = vmatprep.subr.bf16.mxu0 %v8465
    %9134 = vmatpush2.bf16.msra.mxu0 %v8464
    %9135 = vmatprep.subr.bf16.mxu0 %v8449
    %9136 = vmatpush2.bf16.msra.mxu0 %v8448
    %9137 = vmatprep.mubr.bf16.mxu0 %v3553
    %9138 = vmatmul.mubr.bf16.gmra.mxu0 %v3552
    %v9139 = vpop.f32.mrf.mxu0
    %v9140 = vadd.f32 0.0, %v9139
    %v9141 = vpop.f32.mrf.mxu0
    %v9142 = vadd.f32 0.0, %v9141
    %v9143 = vpop.f32.mrf.mxu0
    %v9144 = vpop.f32.mrf.mxu0
    %9145 = vdwg.mxu0
    %v9146 = vadd.f32 %v6989, %v8853
    %v9147 = vadd.f32 %v6991, %v8855
    %v9148 = vadd.f32 %v7030, %v8894
    %v9149 = vadd.f32 %v7032, %v8896
    %v9150 = vadd.f32 %v7071, %v8935
    %v9151 = vadd.f32 %v7073, %v8937
    %v9152 = vadd.f32 %v7112, %v8976
    %v9153 = vadd.f32 %v7114, %v8978
    %v9154 = vadd.f32 %v7153, %v9017
    %v9155 = vadd.f32 %v7155, %v9019
    %v9156 = vadd.f32 %v7194, %v9058
    %v9157 = vadd.f32 %v7196, %v9060
    %v9158 = vadd.f32 %v7235, %v9099
    %v9159 = vadd.f32 %v7237, %v9101
    %v9160 = vadd.f32 %v7276, %v9140
    %v9161 = vadd.f32 %v7278, %v9142
    %v9162 = vld [vmem:[%s37] sm:$0xff]
    %v9163 = vld [vmem:[%s37 + $0x8] sm:$0xff]
    %v9166 = vlaneseq
    %v9167 = vshrl.u32 %v9166, 7
    %v9168 = vsub.s32 0, %v9167
    %v9169 = vrot.slane %v9162, %v9168
    %v9170 = vlaneseq
    %v9171 = vshrl.u32 %v9170, 7
    %v9172 = vsub.s32 1, %v9171
    %v9173 = vrot.slane %v9162, %v9172
    %v9174 = vlaneseq
    %v9175 = vshrl.u32 %v9174, 7
    %v9176 = vsub.s32 2, %v9175
    %v9177 = vrot.slane %v9162, %v9176
    %v9178 = vlaneseq
    %v9179 = vshrl.u32 %v9178, 7
    %v9180 = vsub.s32 3, %v9179
    %v9181 = vrot.slane %v9162, %v9180
    %v9182 = vlaneseq
    %v9183 = vshrl.u32 %v9182, 7
    %v9184 = vsub.s32 4, %v9183
    %v9185 = vrot.slane %v9162, %v9184
    %v9186 = vlaneseq
    %v9187 = vshrl.u32 %v9186, 7
    %v9188 = vsub.s32 5, %v9187
    %v9189 = vrot.slane %v9162, %v9188
    %v9190 = vlaneseq
    %v9191 = vshrl.u32 %v9190, 7
    %v9192 = vsub.s32 6, %v9191
    %v9193 = vrot.slane %v9162, %v9192
    %v9194 = vlaneseq
    %v9195 = vshrl.u32 %v9194, 7
    %v9196 = vsub.s32 7, %v9195
    %v9197 = vrot.slane %v9162, %v9196
    %v9198 = vlaneseq
    %v9199 = vshrl.u32 %v9198, 7
    %v9200 = vsub.s32 0, %v9199
    %v9201 = vrot.slane %v9163, %v9200
    %v9202 = vlaneseq
    %v9203 = vshrl.u32 %v9202, 7
    %v9204 = vsub.s32 1, %v9203
    %v9205 = vrot.slane %v9163, %v9204
    %v9206 = vlaneseq
    %v9207 = vshrl.u32 %v9206, 7
    %v9208 = vsub.s32 2, %v9207
    %v9209 = vrot.slane %v9163, %v9208
    %v9210 = vlaneseq
    %v9211 = vshrl.u32 %v9210, 7
    %v9212 = vsub.s32 3, %v9211
    %v9213 = vrot.slane %v9163, %v9212
    %v9214 = vlaneseq
    %v9215 = vshrl.u32 %v9214, 7
    %v9216 = vsub.s32 4, %v9215
    %v9217 = vrot.slane %v9163, %v9216
    %v9218 = vlaneseq
    %v9219 = vshrl.u32 %v9218, 7
    %v9220 = vsub.s32 5, %v9219
    %v9221 = vrot.slane %v9163, %v9220
    %v9222 = vlaneseq
    %v9223 = vshrl.u32 %v9222, 7
    %v9224 = vsub.s32 6, %v9223
    %v9225 = vrot.slane %v9163, %v9224
    %v9226 = vlaneseq
    %v9227 = vshrl.u32 %v9226, 7
    %v9228 = vsub.s32 7, %v9227
    %v9229 = vrot.slane %v9163, %v9228
    %v9246 = vadd.f32 %v9146, %v9169
    %v9247 = vadd.f32 %v9147, %v9173
    %v9248 = vadd.f32 %v9148, %v9177
    %v9249 = vadd.f32 %v9149, %v9181
    %v9250 = vadd.f32 %v9150, %v9185
    %v9251 = vadd.f32 %v9151, %v9189
    %v9252 = vadd.f32 %v9152, %v9193
    %v9253 = vadd.f32 %v9153, %v9197
    %v9254 = vadd.f32 %v9154, %v9201
    %v9255 = vadd.f32 %v9155, %v9205
    %v9256 = vadd.f32 %v9156, %v9209
    %v9257 = vadd.f32 %v9157, %v9213
    %v9258 = vadd.f32 %v9158, %v9217
    %v9259 = vadd.f32 %v9159, %v9221
    %v9260 = vadd.f32 %v9160, %v9225
    %v9261 = vadd.f32 %v9161, %v9229
    %v9262 = vmax.f32 %v9246, 0.0
    %v9263 = vmax.f32 %v9247, 0.0
    %v9264 = vmax.f32 %v9248, 0.0
    %v9265 = vmax.f32 %v9249, 0.0
    %v9266 = vmax.f32 %v9250, 0.0
    %v9267 = vmax.f32 %v9251, 0.0
    %v9268 = vmax.f32 %v9252, 0.0
    %v9269 = vmax.f32 %v9253, 0.0
    %v9270 = vmax.f32 %v9254, 0.0
    %v9271 = vmax.f32 %v9255, 0.0
    %v9272 = vmax.f32 %v9256, 0.0
    %v9273 = vmax.f32 %v9257, 0.0
    %v9274 = vmax.f32 %v9258, 0.0
    %v9275 = vmax.f32 %v9259, 0.0
    %v9276 = vmax.f32 %v9260, 0.0
    %v9277 = vmax.f32 %v9261, 0.0
    %v9278 = vpack.c.bf16 %v9262, %v9262
    %v9279 = vpack.c.bf16 %v9263, %v9263
    %v9280 = vpack.c.bf16 %v9264, %v9264
    %v9281 = vpack.c.bf16 %v9265, %v9265
    %v9282 = vpack.c.bf16 %v9266, %v9266
    %v9283 = vpack.c.bf16 %v9267, %v9267
    %v9284 = vpack.c.bf16 %v9268, %v9268
    %v9285 = vpack.c.bf16 %v9269, %v9269
    %v9286 = vpack.c.bf16 %v9270, %v9270
    %v9287 = vpack.c.bf16 %v9271, %v9271
    %v9288 = vpack.c.bf16 %v9272, %v9272
    %v9289 = vpack.c.bf16 %v9273, %v9273
    %v9290 = vpack.c.bf16 %v9274, %v9274
    %v9291 = vpack.c.bf16 %v9275, %v9275
    %v9292 = vpack.c.bf16 %v9276, %v9276
    %v9293 = vpack.c.bf16 %v9277, %v9277
    %v9294 = vld [vmem:[#allocation24] sm:$0xff]
    %v9295 = vld [vmem:[#allocation24 + $0x8] sm:$0xff]
    %v9296 = vld [vmem:[#allocation24 + $0x10] sm:$0xff]
    %v9297 = vld [vmem:[#allocation24 + $0x18] sm:$0xff]
    %v9298 = vld [vmem:[#allocation24 + $0x20] sm:$0xff]
    %v9299 = vld [vmem:[#allocation24 + $0x28] sm:$0xff]
    %v9300 = vld [vmem:[#allocation24 + $0x30] sm:$0xff]
    %v9301 = vld [vmem:[#allocation24 + $0x38] sm:$0xff]
    %v9302 = vld [vmem:[#allocation24 + $0x40] sm:$0xff]
    %v9303 = vld [vmem:[#allocation24 + $0x48] sm:$0xff]
    %v9304 = vld [vmem:[#allocation24 + $0x50] sm:$0xff]
    %v9305 = vld [vmem:[#allocation24 + $0x58] sm:$0xff]
    %v9306 = vld [vmem:[#allocation24 + $0x60] sm:$0xff]
    %v9307 = vld [vmem:[#allocation24 + $0x68] sm:$0xff]
    %v9308 = vld [vmem:[#allocation24 + $0x70] sm:$0xff]
    %v9309 = vld [vmem:[#allocation24 + $0x78] sm:$0xff]
    %v9310 = vld [vmem:[#allocation24 + $0x80] sm:$0xff]
    %v9311 = vld [vmem:[#allocation24 + $0x88] sm:$0xff]
    %v9312 = vld [vmem:[#allocation24 + $0x90] sm:$0xff]
    %v9313 = vld [vmem:[#allocation24 + $0x98] sm:$0xff]
    %v9314 = vld [vmem:[#allocation24 + $0xa0] sm:$0xff]
    %v9315 = vld [vmem:[#allocation24 + $0xa8] sm:$0xff]
    %v9316 = vld [vmem:[#allocation24 + $0xb0] sm:$0xff]
    %v9317 = vld [vmem:[#allocation24 + $0xb8] sm:$0xff]
    %v9318 = vld [vmem:[#allocation24 + $0xc0] sm:$0xff]
    %v9319 = vld [vmem:[#allocation24 + $0xc8] sm:$0xff]
    %v9320 = vld [vmem:[#allocation24 + $0xd0] sm:$0xff]
    %v9321 = vld [vmem:[#allocation24 + $0xd8] sm:$0xff]
    %v9322 = vld [vmem:[#allocation24 + $0xe0] sm:$0xff]
    %v9323 = vld [vmem:[#allocation24 + $0xe8] sm:$0xff]
    %v9324 = vld [vmem:[#allocation24 + $0xf0] sm:$0xff]
    %v9325 = vld [vmem:[#allocation24 + $0xf8] sm:$0xff]
    %v9326 = vld [vmem:[#allocation24 + $0x100] sm:$0xff]
    %v9327 = vld [vmem:[#allocation24 + $0x108] sm:$0xff]
    %v9328 = vld [vmem:[#allocation24 + $0x110] sm:$0xff]
    %v9329 = vld [vmem:[#allocation24 + $0x118] sm:$0xff]
    %v9330 = vld [vmem:[#allocation24 + $0x120] sm:$0xff]
    %v9331 = vld [vmem:[#allocation24 + $0x128] sm:$0xff]
    %v9332 = vld [vmem:[#allocation24 + $0x130] sm:$0xff]
    %v9333 = vld [vmem:[#allocation24 + $0x138] sm:$0xff]
    %v9334 = vld [vmem:[#allocation24 + $0x140] sm:$0xff]
    %v9335 = vld [vmem:[#allocation24 + $0x148] sm:$0xff]
    %v9336 = vld [vmem:[#allocation24 + $0x150] sm:$0xff]
    %v9337 = vld [vmem:[#allocation24 + $0x158] sm:$0xff]
    %v9338 = vld [vmem:[#allocation24 + $0x160] sm:$0xff]
    %v9339 = vld [vmem:[#allocation24 + $0x168] sm:$0xff]
    %v9340 = vld [vmem:[#allocation24 + $0x170] sm:$0xff]
    %v9341 = vld [vmem:[#allocation24 + $0x178] sm:$0xff]
    %v9342 = vld [vmem:[#allocation24 + $0x180] sm:$0xff]
    %v9343 = vld [vmem:[#allocation24 + $0x188] sm:$0xff]
    %v9344 = vld [vmem:[#allocation24 + $0x190] sm:$0xff]
    %v9345 = vld [vmem:[#allocation24 + $0x198] sm:$0xff]
    %v9346 = vld [vmem:[#allocation24 + $0x1a0] sm:$0xff]
    %v9347 = vld [vmem:[#allocation24 + $0x1a8] sm:$0xff]
    %v9348 = vld [vmem:[#allocation24 + $0x1b0] sm:$0xff]
    %v9349 = vld [vmem:[#allocation24 + $0x1b8] sm:$0xff]
    %v9350 = vld [vmem:[#allocation24 + $0x1c0] sm:$0xff]
    %v9351 = vld [vmem:[#allocation24 + $0x1c8] sm:$0xff]
    %v9352 = vld [vmem:[#allocation24 + $0x1d0] sm:$0xff]
    %v9353 = vld [vmem:[#allocation24 + $0x1d8] sm:$0xff]
    %v9354 = vld [vmem:[#allocation24 + $0x1e0] sm:$0xff]
    %v9355 = vld [vmem:[#allocation24 + $0x1e8] sm:$0xff]
    %v9356 = vld [vmem:[#allocation24 + $0x1f0] sm:$0xff]
    %v9357 = vld [vmem:[#allocation24 + $0x1f8] sm:$0xff]
    %v9358 = vld [vmem:[#allocation24 + $0x200] sm:$0xff]
    %v9359 = vld [vmem:[#allocation24 + $0x208] sm:$0xff]
    %v9360 = vld [vmem:[#allocation24 + $0x210] sm:$0xff]
    %v9361 = vld [vmem:[#allocation24 + $0x218] sm:$0xff]
    %v9362 = vld [vmem:[#allocation24 + $0x220] sm:$0xff]
    %v9363 = vld [vmem:[#allocation24 + $0x228] sm:$0xff]
    %v9364 = vld [vmem:[#allocation24 + $0x230] sm:$0xff]
    %v9365 = vld [vmem:[#allocation24 + $0x238] sm:$0xff]
    %v9366 = vld [vmem:[#allocation24 + $0x240] sm:$0xff]
    %v9367 = vld [vmem:[#allocation24 + $0x248] sm:$0xff]
    %v9368 = vld [vmem:[#allocation24 + $0x250] sm:$0xff]
    %v9369 = vld [vmem:[#allocation24 + $0x258] sm:$0xff]
    %v9370 = vld [vmem:[#allocation24 + $0x260] sm:$0xff]
    %v9371 = vld [vmem:[#allocation24 + $0x268] sm:$0xff]
    %v9372 = vld [vmem:[#allocation24 + $0x270] sm:$0xff]
    %v9373 = vld [vmem:[#allocation24 + $0x278] sm:$0xff]
    %v9374 = vld [vmem:[#allocation24 + $0x280] sm:$0xff]
    %v9375 = vld [vmem:[#allocation24 + $0x288] sm:$0xff]
    %v9376 = vld [vmem:[#allocation24 + $0x290] sm:$0xff]
    %v9377 = vld [vmem:[#allocation24 + $0x298] sm:$0xff]
    %v9378 = vld [vmem:[#allocation24 + $0x2a0] sm:$0xff]
    %v9379 = vld [vmem:[#allocation24 + $0x2a8] sm:$0xff]
    %v9380 = vld [vmem:[#allocation24 + $0x2b0] sm:$0xff]
    %v9381 = vld [vmem:[#allocation24 + $0x2b8] sm:$0xff]
    %v9382 = vld [vmem:[#allocation24 + $0x2c0] sm:$0xff]
    %v9383 = vld [vmem:[#allocation24 + $0x2c8] sm:$0xff]
    %v9384 = vld [vmem:[#allocation24 + $0x2d0] sm:$0xff]
    %v9385 = vld [vmem:[#allocation24 + $0x2d8] sm:$0xff]
    %v9386 = vld [vmem:[#allocation24 + $0x2e0] sm:$0xff]
    %v9387 = vld [vmem:[#allocation24 + $0x2e8] sm:$0xff]
    %v9388 = vld [vmem:[#allocation24 + $0x2f0] sm:$0xff]
    %v9389 = vld [vmem:[#allocation24 + $0x2f8] sm:$0xff]
    %v9390 = vld [vmem:[#allocation24 + $0x300] sm:$0xff]
    %v9391 = vld [vmem:[#allocation24 + $0x308] sm:$0xff]
    %v9392 = vld [vmem:[#allocation24 + $0x310] sm:$0xff]
    %v9393 = vld [vmem:[#allocation24 + $0x318] sm:$0xff]
    %v9394 = vld [vmem:[#allocation24 + $0x320] sm:$0xff]
    %v9395 = vld [vmem:[#allocation24 + $0x328] sm:$0xff]
    %v9396 = vld [vmem:[#allocation24 + $0x330] sm:$0xff]
    %v9397 = vld [vmem:[#allocation24 + $0x338] sm:$0xff]
    %v9398 = vld [vmem:[#allocation24 + $0x340] sm:$0xff]
    %v9399 = vld [vmem:[#allocation24 + $0x348] sm:$0xff]
    %v9400 = vld [vmem:[#allocation24 + $0x350] sm:$0xff]
    %v9401 = vld [vmem:[#allocation24 + $0x358] sm:$0xff]
    %v9402 = vld [vmem:[#allocation24 + $0x360] sm:$0xff]
    %v9403 = vld [vmem:[#allocation24 + $0x368] sm:$0xff]
    %v9404 = vld [vmem:[#allocation24 + $0x370] sm:$0xff]
    %v9405 = vld [vmem:[#allocation24 + $0x378] sm:$0xff]
    %v9406 = vld [vmem:[#allocation24 + $0x380] sm:$0xff]
    %v9407 = vld [vmem:[#allocation24 + $0x388] sm:$0xff]
    %v9408 = vld [vmem:[#allocation24 + $0x390] sm:$0xff]
    %v9409 = vld [vmem:[#allocation24 + $0x398] sm:$0xff]
    %v9410 = vld [vmem:[#allocation24 + $0x3a0] sm:$0xff]
    %v9411 = vld [vmem:[#allocation24 + $0x3a8] sm:$0xff]
    %v9412 = vld [vmem:[#allocation24 + $0x3b0] sm:$0xff]
    %v9413 = vld [vmem:[#allocation24 + $0x3b8] sm:$0xff]
    %v9414 = vld [vmem:[#allocation24 + $0x3c0] sm:$0xff]
    %v9415 = vld [vmem:[#allocation24 + $0x3c8] sm:$0xff]
    %v9416 = vld [vmem:[#allocation24 + $0x3d0] sm:$0xff]
    %v9417 = vld [vmem:[#allocation24 + $0x3d8] sm:$0xff]
    %v9418 = vld [vmem:[#allocation24 + $0x3e0] sm:$0xff]
    %v9419 = vld [vmem:[#allocation24 + $0x3e8] sm:$0xff]
    %v9420 = vld [vmem:[#allocation24 + $0x3f0] sm:$0xff]
    %v9421 = vld [vmem:[#allocation24 + $0x3f8] sm:$0xff]
    %v9422 = vld [vmem:[%s41] sm:$0x3]
    %v9424 = vlaneseq
    %v9425 = vshrl.u32 %v9424, 7
    %v9426 = vsub.s32 0, %v9425
    %v9427 = vrot.slane %v9422, %v9426
    %v9428 = vlaneseq
    %v9429 = vshrl.u32 %v9428, 7
    %v9430 = vsub.s32 1, %v9429
    %v9431 = vrot.slane %v9422, %v9430
    %v9562 = vunpack.c.l.b16 %v9294
    %v9563 = vunpack.c.h.b16 %v9294
    %v9564 = vunpack.c.l.b16 %v9295
    %v9565 = vunpack.c.h.b16 %v9295
    %v9566 = vunpack.c.l.b16 %v9296
    %v9567 = vunpack.c.h.b16 %v9296
    %v9568 = vunpack.c.l.b16 %v9297
    %v9569 = vunpack.c.h.b16 %v9297
    %v9570 = vunpack.c.l.b16 %v9298
    %v9571 = vunpack.c.h.b16 %v9298
    %v9572 = vunpack.c.l.b16 %v9299
    %v9573 = vunpack.c.h.b16 %v9299
    %v9574 = vunpack.c.l.b16 %v9300
    %v9575 = vunpack.c.h.b16 %v9300
    %v9576 = vunpack.c.l.b16 %v9301
    %v9577 = vunpack.c.h.b16 %v9301
    %v9578 = vunpack.c.l.b16 %v9302
    %v9579 = vunpack.c.h.b16 %v9302
    %v9580 = vunpack.c.l.b16 %v9303
    %v9581 = vunpack.c.h.b16 %v9303
    %v9582 = vunpack.c.l.b16 %v9304
    %v9583 = vunpack.c.h.b16 %v9304
    %v9584 = vunpack.c.l.b16 %v9305
    %v9585 = vunpack.c.h.b16 %v9305
    %v9586 = vunpack.c.l.b16 %v9306
    %v9587 = vunpack.c.h.b16 %v9306
    %v9588 = vunpack.c.l.b16 %v9307
    %v9589 = vunpack.c.h.b16 %v9307
    %v9590 = vunpack.c.l.b16 %v9308
    %v9591 = vunpack.c.h.b16 %v9308
    %v9592 = vunpack.c.l.b16 %v9309
    %v9593 = vunpack.c.h.b16 %v9309
    %v9594 = vunpack.c.l.b16 %v9310
    %v9595 = vunpack.c.h.b16 %v9310
    %v9596 = vunpack.c.l.b16 %v9311
    %v9597 = vunpack.c.h.b16 %v9311
    %v9598 = vunpack.c.l.b16 %v9312
    %v9599 = vunpack.c.h.b16 %v9312
    %v9600 = vunpack.c.l.b16 %v9313
    %v9601 = vunpack.c.h.b16 %v9313
    %v9602 = vunpack.c.l.b16 %v9314
    %v9603 = vunpack.c.h.b16 %v9314
    %v9604 = vunpack.c.l.b16 %v9315
    %v9605 = vunpack.c.h.b16 %v9315
    %v9606 = vunpack.c.l.b16 %v9316
    %v9607 = vunpack.c.h.b16 %v9316
    %v9608 = vunpack.c.l.b16 %v9317
    %v9609 = vunpack.c.h.b16 %v9317
    %v9610 = vunpack.c.l.b16 %v9318
    %v9611 = vunpack.c.h.b16 %v9318
    %v9612 = vunpack.c.l.b16 %v9319
    %v9613 = vunpack.c.h.b16 %v9319
    %v9614 = vunpack.c.l.b16 %v9320
    %v9615 = vunpack.c.h.b16 %v9320
    %v9616 = vunpack.c.l.b16 %v9321
    %v9617 = vunpack.c.h.b16 %v9321
    %v9618 = vunpack.c.l.b16 %v9322
    %v9619 = vunpack.c.h.b16 %v9322
    %v9620 = vunpack.c.l.b16 %v9323
    %v9621 = vunpack.c.h.b16 %v9323
    %v9622 = vunpack.c.l.b16 %v9324
    %v9623 = vunpack.c.h.b16 %v9324
    %v9624 = vunpack.c.l.b16 %v9325
    %v9625 = vunpack.c.h.b16 %v9325
    %v9626 = vunpack.c.l.b16 %v9326
    %v9627 = vunpack.c.h.b16 %v9326
    %v9628 = vunpack.c.l.b16 %v9327
    %v9629 = vunpack.c.h.b16 %v9327
    %v9630 = vunpack.c.l.b16 %v9328
    %v9631 = vunpack.c.h.b16 %v9328
    %v9632 = vunpack.c.l.b16 %v9329
    %v9633 = vunpack.c.h.b16 %v9329
    %v9634 = vunpack.c.l.b16 %v9330
    %v9635 = vunpack.c.h.b16 %v9330
    %v9636 = vunpack.c.l.b16 %v9331
    %v9637 = vunpack.c.h.b16 %v9331
    %v9638 = vunpack.c.l.b16 %v9332
    %v9639 = vunpack.c.h.b16 %v9332
    %v9640 = vunpack.c.l.b16 %v9333
    %v9641 = vunpack.c.h.b16 %v9333
    %v9642 = vunpack.c.l.b16 %v9334
    %v9643 = vunpack.c.h.b16 %v9334
    %v9644 = vunpack.c.l.b16 %v9335
    %v9645 = vunpack.c.h.b16 %v9335
    %v9646 = vunpack.c.l.b16 %v9336
    %v9647 = vunpack.c.h.b16 %v9336
    %v9648 = vunpack.c.l.b16 %v9337
    %v9649 = vunpack.c.h.b16 %v9337
    %v9650 = vunpack.c.l.b16 %v9338
    %v9651 = vunpack.c.h.b16 %v9338
    %v9652 = vunpack.c.l.b16 %v9339
    %v9653 = vunpack.c.h.b16 %v9339
    %v9654 = vunpack.c.l.b16 %v9340
    %v9655 = vunpack.c.h.b16 %v9340
    %v9656 = vunpack.c.l.b16 %v9341
    %v9657 = vunpack.c.h.b16 %v9341
    %v9658 = vunpack.c.l.b16 %v9342
    %v9659 = vunpack.c.h.b16 %v9342
    %v9660 = vunpack.c.l.b16 %v9343
    %v9661 = vunpack.c.h.b16 %v9343
    %v9662 = vunpack.c.l.b16 %v9344
    %v9663 = vunpack.c.h.b16 %v9344
    %v9664 = vunpack.c.l.b16 %v9345
    %v9665 = vunpack.c.h.b16 %v9345
    %v9666 = vunpack.c.l.b16 %v9346
    %v9667 = vunpack.c.h.b16 %v9346
    %v9668 = vunpack.c.l.b16 %v9347
    %v9669 = vunpack.c.h.b16 %v9347
    %v9670 = vunpack.c.l.b16 %v9348
    %v9671 = vunpack.c.h.b16 %v9348
    %v9672 = vunpack.c.l.b16 %v9349
    %v9673 = vunpack.c.h.b16 %v9349
    %v9674 = vunpack.c.l.b16 %v9350
    %v9675 = vunpack.c.h.b16 %v9350
    %v9676 = vunpack.c.l.b16 %v9351
    %v9677 = vunpack.c.h.b16 %v9351
    %v9678 = vunpack.c.l.b16 %v9352
    %v9679 = vunpack.c.h.b16 %v9352
    %v9680 = vunpack.c.l.b16 %v9353
    %v9681 = vunpack.c.h.b16 %v9353
    %v9682 = vunpack.c.l.b16 %v9354
    %v9683 = vunpack.c.h.b16 %v9354
    %v9684 = vunpack.c.l.b16 %v9355
    %v9685 = vunpack.c.h.b16 %v9355
    %v9686 = vunpack.c.l.b16 %v9356
    %v9687 = vunpack.c.h.b16 %v9356
    %v9688 = vunpack.c.l.b16 %v9357
    %v9689 = vunpack.c.h.b16 %v9357
    %v9690 = vunpack.c.l.b16 %v9358
    %v9691 = vunpack.c.h.b16 %v9358
    %v9692 = vunpack.c.l.b16 %v9359
    %v9693 = vunpack.c.h.b16 %v9359
    %v9694 = vunpack.c.l.b16 %v9360
    %v9695 = vunpack.c.h.b16 %v9360
    %v9696 = vunpack.c.l.b16 %v9361
    %v9697 = vunpack.c.h.b16 %v9361
    %v9698 = vunpack.c.l.b16 %v9362
    %v9699 = vunpack.c.h.b16 %v9362
    %v9700 = vunpack.c.l.b16 %v9363
    %v9701 = vunpack.c.h.b16 %v9363
    %v9702 = vunpack.c.l.b16 %v9364
    %v9703 = vunpack.c.h.b16 %v9364
    %v9704 = vunpack.c.l.b16 %v9365
    %v9705 = vunpack.c.h.b16 %v9365
    %v9706 = vunpack.c.l.b16 %v9366
    %v9707 = vunpack.c.h.b16 %v9366
    %v9708 = vunpack.c.l.b16 %v9367
    %v9709 = vunpack.c.h.b16 %v9367
    %v9710 = vunpack.c.l.b16 %v9368
    %v9711 = vunpack.c.h.b16 %v9368
    %v9712 = vunpack.c.l.b16 %v9369
    %v9713 = vunpack.c.h.b16 %v9369
    %v9714 = vunpack.c.l.b16 %v9370
    %v9715 = vunpack.c.h.b16 %v9370
    %v9716 = vunpack.c.l.b16 %v9371
    %v9717 = vunpack.c.h.b16 %v9371
    %v9718 = vunpack.c.l.b16 %v9372
    %v9719 = vunpack.c.h.b16 %v9372
    %v9720 = vunpack.c.l.b16 %v9373
    %v9721 = vunpack.c.h.b16 %v9373
    %v9722 = vunpack.c.l.b16 %v9374
    %v9723 = vunpack.c.h.b16 %v9374
    %v9724 = vunpack.c.l.b16 %v9375
    %v9725 = vunpack.c.h.b16 %v9375
    %v9726 = vunpack.c.l.b16 %v9376
    %v9727 = vunpack.c.h.b16 %v9376
    %v9728 = vunpack.c.l.b16 %v9377
    %v9729 = vunpack.c.h.b16 %v9377
    %v9730 = vunpack.c.l.b16 %v9378
    %v9731 = vunpack.c.h.b16 %v9378
    %v9732 = vunpack.c.l.b16 %v9379
    %v9733 = vunpack.c.h.b16 %v9379
    %v9734 = vunpack.c.l.b16 %v9380
    %v9735 = vunpack.c.h.b16 %v9380
    %v9736 = vunpack.c.l.b16 %v9381
    %v9737 = vunpack.c.h.b16 %v9381
    %v9738 = vunpack.c.l.b16 %v9382
    %v9739 = vunpack.c.h.b16 %v9382
    %v9740 = vunpack.c.l.b16 %v9383
    %v9741 = vunpack.c.h.b16 %v9383
    %v9742 = vunpack.c.l.b16 %v9384
    %v9743 = vunpack.c.h.b16 %v9384
    %v9744 = vunpack.c.l.b16 %v9385
    %v9745 = vunpack.c.h.b16 %v9385
    %v9746 = vunpack.c.l.b16 %v9386
    %v9747 = vunpack.c.h.b16 %v9386
    %v9748 = vunpack.c.l.b16 %v9387
    %v9749 = vunpack.c.h.b16 %v9387
    %v9750 = vunpack.c.l.b16 %v9388
    %v9751 = vunpack.c.h.b16 %v9388
    %v9752 = vunpack.c.l.b16 %v9389
    %v9753 = vunpack.c.h.b16 %v9389
    %v9754 = vunpack.c.l.b16 %v9390
    %v9755 = vunpack.c.h.b16 %v9390
    %v9756 = vunpack.c.l.b16 %v9391
    %v9757 = vunpack.c.h.b16 %v9391
    %v9758 = vunpack.c.l.b16 %v9392
    %v9759 = vunpack.c.h.b16 %v9392
    %v9760 = vunpack.c.l.b16 %v9393
    %v9761 = vunpack.c.h.b16 %v9393
    %v9762 = vunpack.c.l.b16 %v9394
    %v9763 = vunpack.c.h.b16 %v9394
    %v9764 = vunpack.c.l.b16 %v9395
    %v9765 = vunpack.c.h.b16 %v9395
    %v9766 = vunpack.c.l.b16 %v9396
    %v9767 = vunpack.c.h.b16 %v9396
    %v9768 = vunpack.c.l.b16 %v9397
    %v9769 = vunpack.c.h.b16 %v9397
    %v9770 = vunpack.c.l.b16 %v9398
    %v9771 = vunpack.c.h.b16 %v9398
    %v9772 = vunpack.c.l.b16 %v9399
    %v9773 = vunpack.c.h.b16 %v9399
    %v9774 = vunpack.c.l.b16 %v9400
    %v9775 = vunpack.c.h.b16 %v9400
    %v9776 = vunpack.c.l.b16 %v9401
    %v9777 = vunpack.c.h.b16 %v9401
    %v9778 = vunpack.c.l.b16 %v9402
    %v9779 = vunpack.c.h.b16 %v9402
    %v9780 = vunpack.c.l.b16 %v9403
    %v9781 = vunpack.c.h.b16 %v9403
    %v9782 = vunpack.c.l.b16 %v9404
    %v9783 = vunpack.c.h.b16 %v9404
    %v9784 = vunpack.c.l.b16 %v9405
    %v9785 = vunpack.c.h.b16 %v9405
    %v9786 = vunpack.c.l.b16 %v9406
    %v9787 = vunpack.c.h.b16 %v9406
    %v9788 = vunpack.c.l.b16 %v9407
    %v9789 = vunpack.c.h.b16 %v9407
    %v9790 = vunpack.c.l.b16 %v9408
    %v9791 = vunpack.c.h.b16 %v9408
    %v9792 = vunpack.c.l.b16 %v9409
    %v9793 = vunpack.c.h.b16 %v9409
    %v9794 = vunpack.c.l.b16 %v9410
    %v9795 = vunpack.c.h.b16 %v9410
    %v9796 = vunpack.c.l.b16 %v9411
    %v9797 = vunpack.c.h.b16 %v9411
    %v9798 = vunpack.c.l.b16 %v9412
    %v9799 = vunpack.c.h.b16 %v9412
    %v9800 = vunpack.c.l.b16 %v9413
    %v9801 = vunpack.c.h.b16 %v9413
    %v9802 = vunpack.c.l.b16 %v9414
    %v9803 = vunpack.c.h.b16 %v9414
    %v9804 = vunpack.c.l.b16 %v9415
    %v9805 = vunpack.c.h.b16 %v9415
    %v9806 = vunpack.c.l.b16 %v9416
    %v9807 = vunpack.c.h.b16 %v9416
    %v9808 = vunpack.c.l.b16 %v9417
    %v9809 = vunpack.c.h.b16 %v9417
    %v9810 = vunpack.c.l.b16 %v9418
    %v9811 = vunpack.c.h.b16 %v9418
    %v9812 = vunpack.c.l.b16 %v9419
    %v9813 = vunpack.c.h.b16 %v9419
    %v9814 = vunpack.c.l.b16 %v9420
    %v9815 = vunpack.c.h.b16 %v9420
    %v9816 = vunpack.c.l.b16 %v9421
    %v9817 = vunpack.c.h.b16 %v9421
    %v9818 = vpack.c.b16 %v9564, %v9562
    %v9819 = vpack.c.b16 %v9565, %v9563
    %v9820 = vpack.c.b16 %v9568, %v9566
    %v9821 = vpack.c.b16 %v9569, %v9567
    %v9822 = vpack.c.b16 %v9572, %v9570
    %v9823 = vpack.c.b16 %v9573, %v9571
    %v9824 = vpack.c.b16 %v9576, %v9574
    %v9825 = vpack.c.b16 %v9577, %v9575
    %v9826 = vpack.c.b16 %v9580, %v9578
    %v9827 = vpack.c.b16 %v9581, %v9579
    %v9828 = vpack.c.b16 %v9584, %v9582
    %v9829 = vpack.c.b16 %v9585, %v9583
    %v9830 = vpack.c.b16 %v9588, %v9586
    %v9831 = vpack.c.b16 %v9589, %v9587
    %v9832 = vpack.c.b16 %v9592, %v9590
    %v9833 = vpack.c.b16 %v9593, %v9591
    %v9834 = vpack.c.b16 %v9596, %v9594
    %v9835 = vpack.c.b16 %v9597, %v9595
    %v9836 = vpack.c.b16 %v9600, %v9598
    %v9837 = vpack.c.b16 %v9601, %v9599
    %v9838 = vpack.c.b16 %v9604, %v9602
    %v9839 = vpack.c.b16 %v9605, %v9603
    %v9840 = vpack.c.b16 %v9608, %v9606
    %v9841 = vpack.c.b16 %v9609, %v9607
    %v9842 = vpack.c.b16 %v9612, %v9610
    %v9843 = vpack.c.b16 %v9613, %v9611
    %v9844 = vpack.c.b16 %v9616, %v9614
    %v9845 = vpack.c.b16 %v9617, %v9615
    %v9846 = vpack.c.b16 %v9620, %v9618
    %v9847 = vpack.c.b16 %v9621, %v9619
    %v9848 = vpack.c.b16 %v9624, %v9622
    %v9849 = vpack.c.b16 %v9625, %v9623
    %v9850 = vpack.c.b16 %v9628, %v9626
    %v9851 = vpack.c.b16 %v9629, %v9627
    %v9852 = vpack.c.b16 %v9632, %v9630
    %v9853 = vpack.c.b16 %v9633, %v9631
    %v9854 = vpack.c.b16 %v9636, %v9634
    %v9855 = vpack.c.b16 %v9637, %v9635
    %v9856 = vpack.c.b16 %v9640, %v9638
    %v9857 = vpack.c.b16 %v9641, %v9639
    %v9858 = vpack.c.b16 %v9644, %v9642
    %v9859 = vpack.c.b16 %v9645, %v9643
    %v9860 = vpack.c.b16 %v9648, %v9646
    %v9861 = vpack.c.b16 %v9649, %v9647
    %v9862 = vpack.c.b16 %v9652, %v9650
    %v9863 = vpack.c.b16 %v9653, %v9651
    %v9864 = vpack.c.b16 %v9656, %v9654
    %v9865 = vpack.c.b16 %v9657, %v9655
    %v9866 = vpack.c.b16 %v9660, %v9658
    %v9867 = vpack.c.b16 %v9661, %v9659
    %v9868 = vpack.c.b16 %v9664, %v9662
    %v9869 = vpack.c.b16 %v9665, %v9663
    %v9870 = vpack.c.b16 %v9668, %v9666
    %v9871 = vpack.c.b16 %v9669, %v9667
    %v9872 = vpack.c.b16 %v9672, %v9670
    %v9873 = vpack.c.b16 %v9673, %v9671
    %v9874 = vpack.c.b16 %v9676, %v9674
    %v9875 = vpack.c.b16 %v9677, %v9675
    %v9876 = vpack.c.b16 %v9680, %v9678
    %v9877 = vpack.c.b16 %v9681, %v9679
    %v9878 = vpack.c.b16 %v9684, %v9682
    %v9879 = vpack.c.b16 %v9685, %v9683
    %v9880 = vpack.c.b16 %v9688, %v9686
    %v9881 = vpack.c.b16 %v9689, %v9687
    %v9882 = vpack.c.b16 %v9692, %v9690
    %v9883 = vpack.c.b16 %v9693, %v9691
    %v9884 = vpack.c.b16 %v9696, %v9694
    %v9885 = vpack.c.b16 %v9697, %v9695
    %v9886 = vpack.c.b16 %v9700, %v9698
    %v9887 = vpack.c.b16 %v9701, %v9699
    %v9888 = vpack.c.b16 %v9704, %v9702
    %v9889 = vpack.c.b16 %v9705, %v9703
    %v9890 = vpack.c.b16 %v9708, %v9706
    %v9891 = vpack.c.b16 %v9709, %v9707
    %v9892 = vpack.c.b16 %v9712, %v9710
    %v9893 = vpack.c.b16 %v9713, %v9711
    %v9894 = vpack.c.b16 %v9716, %v9714
    %v9895 = vpack.c.b16 %v9717, %v9715
    %v9896 = vpack.c.b16 %v9720, %v9718
    %v9897 = vpack.c.b16 %v9721, %v9719
    %v9898 = vpack.c.b16 %v9724, %v9722
    %v9899 = vpack.c.b16 %v9725, %v9723
    %v9900 = vpack.c.b16 %v9728, %v9726
    %v9901 = vpack.c.b16 %v9729, %v9727
    %v9902 = vpack.c.b16 %v9732, %v9730
    %v9903 = vpack.c.b16 %v9733, %v9731
    %v9904 = vpack.c.b16 %v9736, %v9734
    %v9905 = vpack.c.b16 %v9737, %v9735
    %v9906 = vpack.c.b16 %v9740, %v9738
    %v9907 = vpack.c.b16 %v9741, %v9739
    %v9908 = vpack.c.b16 %v9744, %v9742
    %v9909 = vpack.c.b16 %v9745, %v9743
    %v9910 = vpack.c.b16 %v9748, %v9746
    %v9911 = vpack.c.b16 %v9749, %v9747
    %v9912 = vpack.c.b16 %v9752, %v9750
    %v9913 = vpack.c.b16 %v9753, %v9751
    %v9914 = vpack.c.b16 %v9756, %v9754
    %v9915 = vpack.c.b16 %v9757, %v9755
    %v9916 = vpack.c.b16 %v9760, %v9758
    %v9917 = vpack.c.b16 %v9761, %v9759
    %v9918 = vpack.c.b16 %v9764, %v9762
    %v9919 = vpack.c.b16 %v9765, %v9763
    %v9920 = vpack.c.b16 %v9768, %v9766
    %v9921 = vpack.c.b16 %v9769, %v9767
    %v9922 = vpack.c.b16 %v9772, %v9770
    %v9923 = vpack.c.b16 %v9773, %v9771
    %v9924 = vpack.c.b16 %v9776, %v9774
    %v9925 = vpack.c.b16 %v9777, %v9775
    %v9926 = vpack.c.b16 %v9780, %v9778
    %v9927 = vpack.c.b16 %v9781, %v9779
    %v9928 = vpack.c.b16 %v9784, %v9782
    %v9929 = vpack.c.b16 %v9785, %v9783
    %v9930 = vpack.c.b16 %v9788, %v9786
    %v9931 = vpack.c.b16 %v9789, %v9787
    %v9932 = vpack.c.b16 %v9792, %v9790
    %v9933 = vpack.c.b16 %v9793, %v9791
    %v9934 = vpack.c.b16 %v9796, %v9794
    %v9935 = vpack.c.b16 %v9797, %v9795
    %v9936 = vpack.c.b16 %v9800, %v9798
    %v9937 = vpack.c.b16 %v9801, %v9799
    %v9938 = vpack.c.b16 %v9804, %v9802
    %v9939 = vpack.c.b16 %v9805, %v9803
    %v9940 = vpack.c.b16 %v9808, %v9806
    %v9941 = vpack.c.b16 %v9809, %v9807
    %v9942 = vpack.c.b16 %v9812, %v9810
    %v9943 = vpack.c.b16 %v9813, %v9811
    %v9944 = vpack.c.b16 %v9816, %v9814
    %v9945 = vpack.c.b16 %v9817, %v9815
    %10074 = vmatprep.subr.bf16.mxu0 %v9833
    %10075 = vmatpush1.bf16.msra.mxu0 %v9832
    %10076 = vmatprep.subr.bf16.mxu0 %v9831
    %10077 = vmatpush1.bf16.msra.mxu0 %v9830
    %10078 = vmatprep.subr.bf16.mxu0 %v9829
    %10079 = vmatpush1.bf16.msra.mxu0 %v9828
    %10080 = vmatprep.subr.bf16.mxu0 %v9827
    %10081 = vmatpush1.bf16.msra.mxu0 %v9826
    %10082 = vmatprep.subr.bf16.mxu0 %v9825
    %10083 = vmatpush1.bf16.msra.mxu0 %v9824
    %10084 = vmatprep.subr.bf16.mxu0 %v9823
    %10085 = vmatpush1.bf16.msra.mxu0 %v9822
    %10086 = vmatprep.subr.bf16.mxu0 %v9821
    %10087 = vmatpush1.bf16.msra.mxu0 %v9820
    %10088 = vmatprep.subr.bf16.mxu0 %v9819
    %10089 = vmatpush1.bf16.msra.mxu0 %v9818
    %10090 = vmatprep.subr.bf16.mxu0 %v9849
    %10091 = vmatpush2.bf16.msra.mxu0 %v9848
    %10092 = vmatprep.subr.bf16.mxu0 %v9847
    %10093 = vmatpush2.bf16.msra.mxu0 %v9846
    %10094 = vmatprep.subr.bf16.mxu0 %v9845
    %10095 = vmatpush2.bf16.msra.mxu0 %v9844
    %10096 = vmatprep.subr.bf16.mxu0 %v9843
    %10097 = vmatpush2.bf16.msra.mxu0 %v9842
    %10098 = vmatprep.subr.bf16.mxu0 %v9841
    %10099 = vmatpush2.bf16.msra.mxu0 %v9840
    %10100 = vmatprep.subr.bf16.mxu0 %v9839
    %10101 = vmatpush2.bf16.msra.mxu0 %v9838
    %10102 = vmatprep.subr.bf16.mxu0 %v9837
    %10103 = vmatpush2.bf16.msra.mxu0 %v9836
    %10104 = vmatprep.subr.bf16.mxu0 %v9835
    %10105 = vmatpush2.bf16.msra.mxu0 %v9834
    %10106 = vmatprep.mubr.bf16.mxu0 %v9279
    %10107 = vmatmul.mubr.bf16.gmra.mxu0 %v9278
    %v10108 = vpop.f32.mrf.mxu0
    %v10109 = vadd.f32 %v9427, %v10108
    %v10110 = vpop.f32.mrf.mxu0
    %v10111 = vadd.f32 %v9431, %v10110
    %v10112 = vpop.f32.mrf.mxu0
    %v10113 = vpop.f32.mrf.mxu0
    %10114 = vdwg.mxu0
    %10115 = vmatprep.subr.bf16.mxu0 %v9865
    %10116 = vmatpush1.bf16.msra.mxu0 %v9864
    %10117 = vmatprep.subr.bf16.mxu0 %v9863
    %10118 = vmatpush1.bf16.msra.mxu0 %v9862
    %10119 = vmatprep.subr.bf16.mxu0 %v9861
    %10120 = vmatpush1.bf16.msra.mxu0 %v9860
    %10121 = vmatprep.subr.bf16.mxu0 %v9859
    %10122 = vmatpush1.bf16.msra.mxu0 %v9858
    %10123 = vmatprep.subr.bf16.mxu0 %v9857
    %10124 = vmatpush1.bf16.msra.mxu0 %v9856
    %10125 = vmatprep.subr.bf16.mxu0 %v9855
    %10126 = vmatpush1.bf16.msra.mxu0 %v9854
    %10127 = vmatprep.subr.bf16.mxu0 %v9853
    %10128 = vmatpush1.bf16.msra.mxu0 %v9852
    %10129 = vmatprep.subr.bf16.mxu0 %v9851
    %10130 = vmatpush1.bf16.msra.mxu0 %v9850
    %10131 = vmatprep.subr.bf16.mxu0 %v9881
    %10132 = vmatpush2.bf16.msra.mxu0 %v9880
    %10133 = vmatprep.subr.bf16.mxu0 %v9879
    %10134 = vmatpush2.bf16.msra.mxu0 %v9878
    %10135 = vmatprep.subr.bf16.mxu0 %v9877
    %10136 = vmatpush2.bf16.msra.mxu0 %v9876
    %10137 = vmatprep.subr.bf16.mxu0 %v9875
    %10138 = vmatpush2.bf16.msra.mxu0 %v9874
    %10139 = vmatprep.subr.bf16.mxu0 %v9873
    %10140 = vmatpush2.bf16.msra.mxu0 %v9872
    %10141 = vmatprep.subr.bf16.mxu0 %v9871
    %10142 = vmatpush2.bf16.msra.mxu0 %v9870
    %10143 = vmatprep.subr.bf16.mxu0 %v9869
    %10144 = vmatpush2.bf16.msra.mxu0 %v9868
    %10145 = vmatprep.subr.bf16.mxu0 %v9867
    %10146 = vmatpush2.bf16.msra.mxu0 %v9866
    %10147 = vmatprep.mubr.bf16.mxu0 %v9281
    %10148 = vmatmul.mubr.bf16.gmra.mxu0 %v9280
    %v10149 = vpop.f32.mrf.mxu0
    %v10150 = vadd.f32 %v10109, %v10149
    %v10151 = vpop.f32.mrf.mxu0
    %v10152 = vadd.f32 %v10111, %v10151
    %v10153 = vpop.f32.mrf.mxu0
    %v10154 = vpop.f32.mrf.mxu0
    %10155 = vdwg.mxu0
    %10156 = vmatprep.subr.bf16.mxu0 %v9897
    %10157 = vmatpush1.bf16.msra.mxu0 %v9896
    %10158 = vmatprep.subr.bf16.mxu0 %v9895
    %10159 = vmatpush1.bf16.msra.mxu0 %v9894
    %10160 = vmatprep.subr.bf16.mxu0 %v9893
    %10161 = vmatpush1.bf16.msra.mxu0 %v9892
    %10162 = vmatprep.subr.bf16.mxu0 %v9891
    %10163 = vmatpush1.bf16.msra.mxu0 %v9890
    %10164 = vmatprep.subr.bf16.mxu0 %v9889
    %10165 = vmatpush1.bf16.msra.mxu0 %v9888
    %10166 = vmatprep.subr.bf16.mxu0 %v9887
    %10167 = vmatpush1.bf16.msra.mxu0 %v9886
    %10168 = vmatprep.subr.bf16.mxu0 %v9885
    %10169 = vmatpush1.bf16.msra.mxu0 %v9884
    %10170 = vmatprep.subr.bf16.mxu0 %v9883
    %10171 = vmatpush1.bf16.msra.mxu0 %v9882
    %10172 = vmatprep.subr.bf16.mxu0 %v9913
    %10173 = vmatpush2.bf16.msra.mxu0 %v9912
    %10174 = vmatprep.subr.bf16.mxu0 %v9911
    %10175 = vmatpush2.bf16.msra.mxu0 %v9910
    %10176 = vmatprep.subr.bf16.mxu0 %v9909
    %10177 = vmatpush2.bf16.msra.mxu0 %v9908
    %10178 = vmatprep.subr.bf16.mxu0 %v9907
    %10179 = vmatpush2.bf16.msra.mxu0 %v9906
    %10180 = vmatprep.subr.bf16.mxu0 %v9905
    %10181 = vmatpush2.bf16.msra.mxu0 %v9904
    %10182 = vmatprep.subr.bf16.mxu0 %v9903
    %10183 = vmatpush2.bf16.msra.mxu0 %v9902
    %10184 = vmatprep.subr.bf16.mxu0 %v9901
    %10185 = vmatpush2.bf16.msra.mxu0 %v9900
    %10186 = vmatprep.subr.bf16.mxu0 %v9899
    %10187 = vmatpush2.bf16.msra.mxu0 %v9898
    %10188 = vmatprep.mubr.bf16.mxu0 %v9283
    %10189 = vmatmul.mubr.bf16.gmra.mxu0 %v9282
    %v10190 = vpop.f32.mrf.mxu0
    %v10191 = vadd.f32 %v10150, %v10190
    %v10192 = vpop.f32.mrf.mxu0
    %v10193 = vadd.f32 %v10152, %v10192
    %v10194 = vpop.f32.mrf.mxu0
    %v10195 = vpop.f32.mrf.mxu0
    %10196 = vdwg.mxu0
    %10197 = vmatprep.subr.bf16.mxu0 %v9929
    %10198 = vmatpush1.bf16.msra.mxu0 %v9928
    %10199 = vmatprep.subr.bf16.mxu0 %v9927
    %10200 = vmatpush1.bf16.msra.mxu0 %v9926
    %10201 = vmatprep.subr.bf16.mxu0 %v9925
    %10202 = vmatpush1.bf16.msra.mxu0 %v9924
    %10203 = vmatprep.subr.bf16.mxu0 %v9923
    %10204 = vmatpush1.bf16.msra.mxu0 %v9922
    %10205 = vmatprep.subr.bf16.mxu0 %v9921
    %10206 = vmatpush1.bf16.msra.mxu0 %v9920
    %10207 = vmatprep.subr.bf16.mxu0 %v9919
    %10208 = vmatpush1.bf16.msra.mxu0 %v9918
    %10209 = vmatprep.subr.bf16.mxu0 %v9917
    %10210 = vmatpush1.bf16.msra.mxu0 %v9916
    %10211 = vmatprep.subr.bf16.mxu0 %v9915
    %10212 = vmatpush1.bf16.msra.mxu0 %v9914
    %10213 = vmatprep.subr.bf16.mxu0 %v9945
    %10214 = vmatpush2.bf16.msra.mxu0 %v9944
    %10215 = vmatprep.subr.bf16.mxu0 %v9943
    %10216 = vmatpush2.bf16.msra.mxu0 %v9942
    %10217 = vmatprep.subr.bf16.mxu0 %v9941
    %10218 = vmatpush2.bf16.msra.mxu0 %v9940
    %10219 = vmatprep.subr.bf16.mxu0 %v9939
    %10220 = vmatpush2.bf16.msra.mxu0 %v9938
    %10221 = vmatprep.subr.bf16.mxu0 %v9937
    %10222 = vmatpush2.bf16.msra.mxu0 %v9936
    %10223 = vmatprep.subr.bf16.mxu0 %v9935
    %10224 = vmatpush2.bf16.msra.mxu0 %v9934
    %10225 = vmatprep.subr.bf16.mxu0 %v9933
    %10226 = vmatpush2.bf16.msra.mxu0 %v9932
    %10227 = vmatprep.subr.bf16.mxu0 %v9931
    %10228 = vmatpush2.bf16.msra.mxu0 %v9930
    %10229 = vmatprep.mubr.bf16.mxu0 %v9285
    %10230 = vmatmul.mubr.bf16.gmra.mxu0 %v9284
    %v10231 = vpop.f32.mrf.mxu0
    %v10232 = vadd.f32 %v10191, %v10231
    %v10233 = vpop.f32.mrf.mxu0
    %v10234 = vadd.f32 %v10193, %v10233
    %v10235 = vpop.f32.mrf.mxu0
    %v10236 = vpop.f32.mrf.mxu0
    %10237 = vdwg.mxu0
    %v10238 = vmax.f32 %v10232, 0.0
    %v10239 = vmax.f32 %v10234, 0.0
    %v10240 = vld [vmem:[#allocation25] sm:$0xff]
    %v10241 = vld [vmem:[#allocation25 + $0x8] sm:$0xff]
    %v10242 = vld [vmem:[#allocation25 + $0x10] sm:$0xff]
    %v10243 = vld [vmem:[#allocation25 + $0x18] sm:$0xff]
    %v10244 = vld [vmem:[#allocation25 + $0x20] sm:$0xff]
    %v10245 = vld [vmem:[#allocation25 + $0x28] sm:$0xff]
    %v10246 = vld [vmem:[#allocation25 + $0x30] sm:$0xff]
    %v10247 = vld [vmem:[#allocation25 + $0x38] sm:$0xff]
    %v10248 = vld [vmem:[#allocation25 + $0x40] sm:$0xff]
    %v10249 = vld [vmem:[#allocation25 + $0x48] sm:$0xff]
    %v10250 = vld [vmem:[#allocation25 + $0x50] sm:$0xff]
    %v10251 = vld [vmem:[#allocation25 + $0x58] sm:$0xff]
    %v10252 = vld [vmem:[#allocation25 + $0x60] sm:$0xff]
    %v10253 = vld [vmem:[#allocation25 + $0x68] sm:$0xff]
    %v10254 = vld [vmem:[#allocation25 + $0x70] sm:$0xff]
    %v10255 = vld [vmem:[#allocation25 + $0x78] sm:$0xff]
    %v10256 = vld [vmem:[#allocation25 + $0x80] sm:$0xff]
    %v10257 = vld [vmem:[#allocation25 + $0x88] sm:$0xff]
    %v10258 = vld [vmem:[#allocation25 + $0x90] sm:$0xff]
    %v10259 = vld [vmem:[#allocation25 + $0x98] sm:$0xff]
    %v10260 = vld [vmem:[#allocation25 + $0xa0] sm:$0xff]
    %v10261 = vld [vmem:[#allocation25 + $0xa8] sm:$0xff]
    %v10262 = vld [vmem:[#allocation25 + $0xb0] sm:$0xff]
    %v10263 = vld [vmem:[#allocation25 + $0xb8] sm:$0xff]
    %v10264 = vld [vmem:[#allocation25 + $0xc0] sm:$0xff]
    %v10265 = vld [vmem:[#allocation25 + $0xc8] sm:$0xff]
    %v10266 = vld [vmem:[#allocation25 + $0xd0] sm:$0xff]
    %v10267 = vld [vmem:[#allocation25 + $0xd8] sm:$0xff]
    %v10268 = vld [vmem:[#allocation25 + $0xe0] sm:$0xff]
    %v10269 = vld [vmem:[#allocation25 + $0xe8] sm:$0xff]
    %v10270 = vld [vmem:[#allocation25 + $0xf0] sm:$0xff]
    %v10271 = vld [vmem:[#allocation25 + $0xf8] sm:$0xff]
    %v10272 = vld [vmem:[#allocation25 + $0x100] sm:$0xff]
    %v10273 = vld [vmem:[#allocation25 + $0x108] sm:$0xff]
    %v10274 = vld [vmem:[#allocation25 + $0x110] sm:$0xff]
    %v10275 = vld [vmem:[#allocation25 + $0x118] sm:$0xff]
    %v10276 = vld [vmem:[#allocation25 + $0x120] sm:$0xff]
    %v10277 = vld [vmem:[#allocation25 + $0x128] sm:$0xff]
    %v10278 = vld [vmem:[#allocation25 + $0x130] sm:$0xff]
    %v10279 = vld [vmem:[#allocation25 + $0x138] sm:$0xff]
    %v10280 = vld [vmem:[#allocation25 + $0x140] sm:$0xff]
    %v10281 = vld [vmem:[#allocation25 + $0x148] sm:$0xff]
    %v10282 = vld [vmem:[#allocation25 + $0x150] sm:$0xff]
    %v10283 = vld [vmem:[#allocation25 + $0x158] sm:$0xff]
    %v10284 = vld [vmem:[#allocation25 + $0x160] sm:$0xff]
    %v10285 = vld [vmem:[#allocation25 + $0x168] sm:$0xff]
    %v10286 = vld [vmem:[#allocation25 + $0x170] sm:$0xff]
    %v10287 = vld [vmem:[#allocation25 + $0x178] sm:$0xff]
    %v10288 = vld [vmem:[#allocation25 + $0x180] sm:$0xff]
    %v10289 = vld [vmem:[#allocation25 + $0x188] sm:$0xff]
    %v10290 = vld [vmem:[#allocation25 + $0x190] sm:$0xff]
    %v10291 = vld [vmem:[#allocation25 + $0x198] sm:$0xff]
    %v10292 = vld [vmem:[#allocation25 + $0x1a0] sm:$0xff]
    %v10293 = vld [vmem:[#allocation25 + $0x1a8] sm:$0xff]
    %v10294 = vld [vmem:[#allocation25 + $0x1b0] sm:$0xff]
    %v10295 = vld [vmem:[#allocation25 + $0x1b8] sm:$0xff]
    %v10296 = vld [vmem:[#allocation25 + $0x1c0] sm:$0xff]
    %v10297 = vld [vmem:[#allocation25 + $0x1c8] sm:$0xff]
    %v10298 = vld [vmem:[#allocation25 + $0x1d0] sm:$0xff]
    %v10299 = vld [vmem:[#allocation25 + $0x1d8] sm:$0xff]
    %v10300 = vld [vmem:[#allocation25 + $0x1e0] sm:$0xff]
    %v10301 = vld [vmem:[#allocation25 + $0x1e8] sm:$0xff]
    %v10302 = vld [vmem:[#allocation25 + $0x1f0] sm:$0xff]
    %v10303 = vld [vmem:[#allocation25 + $0x1f8] sm:$0xff]
    %v10304 = vld [vmem:[#allocation25 + $0x200] sm:$0xff]
    %v10305 = vld [vmem:[#allocation25 + $0x208] sm:$0xff]
    %v10306 = vld [vmem:[#allocation25 + $0x210] sm:$0xff]
    %v10307 = vld [vmem:[#allocation25 + $0x218] sm:$0xff]
    %v10308 = vld [vmem:[#allocation25 + $0x220] sm:$0xff]
    %v10309 = vld [vmem:[#allocation25 + $0x228] sm:$0xff]
    %v10310 = vld [vmem:[#allocation25 + $0x230] sm:$0xff]
    %v10311 = vld [vmem:[#allocation25 + $0x238] sm:$0xff]
    %v10312 = vld [vmem:[#allocation25 + $0x240] sm:$0xff]
    %v10313 = vld [vmem:[#allocation25 + $0x248] sm:$0xff]
    %v10314 = vld [vmem:[#allocation25 + $0x250] sm:$0xff]
    %v10315 = vld [vmem:[#allocation25 + $0x258] sm:$0xff]
    %v10316 = vld [vmem:[#allocation25 + $0x260] sm:$0xff]
    %v10317 = vld [vmem:[#allocation25 + $0x268] sm:$0xff]
    %v10318 = vld [vmem:[#allocation25 + $0x270] sm:$0xff]
    %v10319 = vld [vmem:[#allocation25 + $0x278] sm:$0xff]
    %v10320 = vld [vmem:[#allocation25 + $0x280] sm:$0xff]
    %v10321 = vld [vmem:[#allocation25 + $0x288] sm:$0xff]
    %v10322 = vld [vmem:[#allocation25 + $0x290] sm:$0xff]
    %v10323 = vld [vmem:[#allocation25 + $0x298] sm:$0xff]
    %v10324 = vld [vmem:[#allocation25 + $0x2a0] sm:$0xff]
    %v10325 = vld [vmem:[#allocation25 + $0x2a8] sm:$0xff]
    %v10326 = vld [vmem:[#allocation25 + $0x2b0] sm:$0xff]
    %v10327 = vld [vmem:[#allocation25 + $0x2b8] sm:$0xff]
    %v10328 = vld [vmem:[#allocation25 + $0x2c0] sm:$0xff]
    %v10329 = vld [vmem:[#allocation25 + $0x2c8] sm:$0xff]
    %v10330 = vld [vmem:[#allocation25 + $0x2d0] sm:$0xff]
    %v10331 = vld [vmem:[#allocation25 + $0x2d8] sm:$0xff]
    %v10332 = vld [vmem:[#allocation25 + $0x2e0] sm:$0xff]
    %v10333 = vld [vmem:[#allocation25 + $0x2e8] sm:$0xff]
    %v10334 = vld [vmem:[#allocation25 + $0x2f0] sm:$0xff]
    %v10335 = vld [vmem:[#allocation25 + $0x2f8] sm:$0xff]
    %v10336 = vld [vmem:[#allocation25 + $0x300] sm:$0xff]
    %v10337 = vld [vmem:[#allocation25 + $0x308] sm:$0xff]
    %v10338 = vld [vmem:[#allocation25 + $0x310] sm:$0xff]
    %v10339 = vld [vmem:[#allocation25 + $0x318] sm:$0xff]
    %v10340 = vld [vmem:[#allocation25 + $0x320] sm:$0xff]
    %v10341 = vld [vmem:[#allocation25 + $0x328] sm:$0xff]
    %v10342 = vld [vmem:[#allocation25 + $0x330] sm:$0xff]
    %v10343 = vld [vmem:[#allocation25 + $0x338] sm:$0xff]
    %v10344 = vld [vmem:[#allocation25 + $0x340] sm:$0xff]
    %v10345 = vld [vmem:[#allocation25 + $0x348] sm:$0xff]
    %v10346 = vld [vmem:[#allocation25 + $0x350] sm:$0xff]
    %v10347 = vld [vmem:[#allocation25 + $0x358] sm:$0xff]
    %v10348 = vld [vmem:[#allocation25 + $0x360] sm:$0xff]
    %v10349 = vld [vmem:[#allocation25 + $0x368] sm:$0xff]
    %v10350 = vld [vmem:[#allocation25 + $0x370] sm:$0xff]
    %v10351 = vld [vmem:[#allocation25 + $0x378] sm:$0xff]
    %v10352 = vld [vmem:[#allocation25 + $0x380] sm:$0xff]
    %v10353 = vld [vmem:[#allocation25 + $0x388] sm:$0xff]
    %v10354 = vld [vmem:[#allocation25 + $0x390] sm:$0xff]
    %v10355 = vld [vmem:[#allocation25 + $0x398] sm:$0xff]
    %v10356 = vld [vmem:[#allocation25 + $0x3a0] sm:$0xff]
    %v10357 = vld [vmem:[#allocation25 + $0x3a8] sm:$0xff]
    %v10358 = vld [vmem:[#allocation25 + $0x3b0] sm:$0xff]
    %v10359 = vld [vmem:[#allocation25 + $0x3b8] sm:$0xff]
    %v10360 = vld [vmem:[#allocation25 + $0x3c0] sm:$0xff]
    %v10361 = vld [vmem:[#allocation25 + $0x3c8] sm:$0xff]
    %v10362 = vld [vmem:[#allocation25 + $0x3d0] sm:$0xff]
    %v10363 = vld [vmem:[#allocation25 + $0x3d8] sm:$0xff]
    %v10364 = vld [vmem:[#allocation25 + $0x3e0] sm:$0xff]
    %v10365 = vld [vmem:[#allocation25 + $0x3e8] sm:$0xff]
    %v10366 = vld [vmem:[#allocation25 + $0x3f0] sm:$0xff]
    %v10367 = vld [vmem:[#allocation25 + $0x3f8] sm:$0xff]
    %v10368 = vld [vmem:[%s45] sm:$0x3]
    %v10370 = vlaneseq
    %v10371 = vshrl.u32 %v10370, 7
    %v10372 = vsub.s32 0, %v10371
    %v10373 = vrot.slane %v10368, %v10372
    %v10374 = vlaneseq
    %v10375 = vshrl.u32 %v10374, 7
    %v10376 = vsub.s32 1, %v10375
    %v10377 = vrot.slane %v10368, %v10376
    %v10508 = vunpack.c.l.b16 %v10240
    %v10509 = vunpack.c.h.b16 %v10240
    %v10510 = vunpack.c.l.b16 %v10241
    %v10511 = vunpack.c.h.b16 %v10241
    %v10512 = vunpack.c.l.b16 %v10242
    %v10513 = vunpack.c.h.b16 %v10242
    %v10514 = vunpack.c.l.b16 %v10243
    %v10515 = vunpack.c.h.b16 %v10243
    %v10516 = vunpack.c.l.b16 %v10244
    %v10517 = vunpack.c.h.b16 %v10244
    %v10518 = vunpack.c.l.b16 %v10245
    %v10519 = vunpack.c.h.b16 %v10245
    %v10520 = vunpack.c.l.b16 %v10246
    %v10521 = vunpack.c.h.b16 %v10246
    %v10522 = vunpack.c.l.b16 %v10247
    %v10523 = vunpack.c.h.b16 %v10247
    %v10524 = vunpack.c.l.b16 %v10248
    %v10525 = vunpack.c.h.b16 %v10248
    %v10526 = vunpack.c.l.b16 %v10249
    %v10527 = vunpack.c.h.b16 %v10249
    %v10528 = vunpack.c.l.b16 %v10250
    %v10529 = vunpack.c.h.b16 %v10250
    %v10530 = vunpack.c.l.b16 %v10251
    %v10531 = vunpack.c.h.b16 %v10251
    %v10532 = vunpack.c.l.b16 %v10252
    %v10533 = vunpack.c.h.b16 %v10252
    %v10534 = vunpack.c.l.b16 %v10253
    %v10535 = vunpack.c.h.b16 %v10253
    %v10536 = vunpack.c.l.b16 %v10254
    %v10537 = vunpack.c.h.b16 %v10254
    %v10538 = vunpack.c.l.b16 %v10255
    %v10539 = vunpack.c.h.b16 %v10255
    %v10540 = vunpack.c.l.b16 %v10256
    %v10541 = vunpack.c.h.b16 %v10256
    %v10542 = vunpack.c.l.b16 %v10257
    %v10543 = vunpack.c.h.b16 %v10257
    %v10544 = vunpack.c.l.b16 %v10258
    %v10545 = vunpack.c.h.b16 %v10258
    %v10546 = vunpack.c.l.b16 %v10259
    %v10547 = vunpack.c.h.b16 %v10259
    %v10548 = vunpack.c.l.b16 %v10260
    %v10549 = vunpack.c.h.b16 %v10260
    %v10550 = vunpack.c.l.b16 %v10261
    %v10551 = vunpack.c.h.b16 %v10261
    %v10552 = vunpack.c.l.b16 %v10262
    %v10553 = vunpack.c.h.b16 %v10262
    %v10554 = vunpack.c.l.b16 %v10263
    %v10555 = vunpack.c.h.b16 %v10263
    %v10556 = vunpack.c.l.b16 %v10264
    %v10557 = vunpack.c.h.b16 %v10264
    %v10558 = vunpack.c.l.b16 %v10265
    %v10559 = vunpack.c.h.b16 %v10265
    %v10560 = vunpack.c.l.b16 %v10266
    %v10561 = vunpack.c.h.b16 %v10266
    %v10562 = vunpack.c.l.b16 %v10267
    %v10563 = vunpack.c.h.b16 %v10267
    %v10564 = vunpack.c.l.b16 %v10268
    %v10565 = vunpack.c.h.b16 %v10268
    %v10566 = vunpack.c.l.b16 %v10269
    %v10567 = vunpack.c.h.b16 %v10269
    %v10568 = vunpack.c.l.b16 %v10270
    %v10569 = vunpack.c.h.b16 %v10270
    %v10570 = vunpack.c.l.b16 %v10271
    %v10571 = vunpack.c.h.b16 %v10271
    %v10572 = vunpack.c.l.b16 %v10272
    %v10573 = vunpack.c.h.b16 %v10272
    %v10574 = vunpack.c.l.b16 %v10273
    %v10575 = vunpack.c.h.b16 %v10273
    %v10576 = vunpack.c.l.b16 %v10274
    %v10577 = vunpack.c.h.b16 %v10274
    %v10578 = vunpack.c.l.b16 %v10275
    %v10579 = vunpack.c.h.b16 %v10275
    %v10580 = vunpack.c.l.b16 %v10276
    %v10581 = vunpack.c.h.b16 %v10276
    %v10582 = vunpack.c.l.b16 %v10277
    %v10583 = vunpack.c.h.b16 %v10277
    %v10584 = vunpack.c.l.b16 %v10278
    %v10585 = vunpack.c.h.b16 %v10278
    %v10586 = vunpack.c.l.b16 %v10279
    %v10587 = vunpack.c.h.b16 %v10279
    %v10588 = vunpack.c.l.b16 %v10280
    %v10589 = vunpack.c.h.b16 %v10280
    %v10590 = vunpack.c.l.b16 %v10281
    %v10591 = vunpack.c.h.b16 %v10281
    %v10592 = vunpack.c.l.b16 %v10282
    %v10593 = vunpack.c.h.b16 %v10282
    %v10594 = vunpack.c.l.b16 %v10283
    %v10595 = vunpack.c.h.b16 %v10283
    %v10596 = vunpack.c.l.b16 %v10284
    %v10597 = vunpack.c.h.b16 %v10284
    %v10598 = vunpack.c.l.b16 %v10285
    %v10599 = vunpack.c.h.b16 %v10285
    %v10600 = vunpack.c.l.b16 %v10286
    %v10601 = vunpack.c.h.b16 %v10286
    %v10602 = vunpack.c.l.b16 %v10287
    %v10603 = vunpack.c.h.b16 %v10287
    %v10604 = vunpack.c.l.b16 %v10288
    %v10605 = vunpack.c.h.b16 %v10288
    %v10606 = vunpack.c.l.b16 %v10289
    %v10607 = vunpack.c.h.b16 %v10289
    %v10608 = vunpack.c.l.b16 %v10290
    %v10609 = vunpack.c.h.b16 %v10290
    %v10610 = vunpack.c.l.b16 %v10291
    %v10611 = vunpack.c.h.b16 %v10291
    %v10612 = vunpack.c.l.b16 %v10292
    %v10613 = vunpack.c.h.b16 %v10292
    %v10614 = vunpack.c.l.b16 %v10293
    %v10615 = vunpack.c.h.b16 %v10293
    %v10616 = vunpack.c.l.b16 %v10294
    %v10617 = vunpack.c.h.b16 %v10294
    %v10618 = vunpack.c.l.b16 %v10295
    %v10619 = vunpack.c.h.b16 %v10295
    %v10620 = vunpack.c.l.b16 %v10296
    %v10621 = vunpack.c.h.b16 %v10296
    %v10622 = vunpack.c.l.b16 %v10297
    %v10623 = vunpack.c.h.b16 %v10297
    %v10624 = vunpack.c.l.b16 %v10298
    %v10625 = vunpack.c.h.b16 %v10298
    %v10626 = vunpack.c.l.b16 %v10299
    %v10627 = vunpack.c.h.b16 %v10299
    %v10628 = vunpack.c.l.b16 %v10300
    %v10629 = vunpack.c.h.b16 %v10300
    %v10630 = vunpack.c.l.b16 %v10301
    %v10631 = vunpack.c.h.b16 %v10301
    %v10632 = vunpack.c.l.b16 %v10302
    %v10633 = vunpack.c.h.b16 %v10302
    %v10634 = vunpack.c.l.b16 %v10303
    %v10635 = vunpack.c.h.b16 %v10303
    %v10636 = vunpack.c.l.b16 %v10304
    %v10637 = vunpack.c.h.b16 %v10304
    %v10638 = vunpack.c.l.b16 %v10305
    %v10639 = vunpack.c.h.b16 %v10305
    %v10640 = vunpack.c.l.b16 %v10306
    %v10641 = vunpack.c.h.b16 %v10306
    %v10642 = vunpack.c.l.b16 %v10307
    %v10643 = vunpack.c.h.b16 %v10307
    %v10644 = vunpack.c.l.b16 %v10308
    %v10645 = vunpack.c.h.b16 %v10308
    %v10646 = vunpack.c.l.b16 %v10309
    %v10647 = vunpack.c.h.b16 %v10309
    %v10648 = vunpack.c.l.b16 %v10310
    %v10649 = vunpack.c.h.b16 %v10310
    %v10650 = vunpack.c.l.b16 %v10311
    %v10651 = vunpack.c.h.b16 %v10311
    %v10652 = vunpack.c.l.b16 %v10312
    %v10653 = vunpack.c.h.b16 %v10312
    %v10654 = vunpack.c.l.b16 %v10313
    %v10655 = vunpack.c.h.b16 %v10313
    %v10656 = vunpack.c.l.b16 %v10314
    %v10657 = vunpack.c.h.b16 %v10314
    %v10658 = vunpack.c.l.b16 %v10315
    %v10659 = vunpack.c.h.b16 %v10315
    %v10660 = vunpack.c.l.b16 %v10316
    %v10661 = vunpack.c.h.b16 %v10316
    %v10662 = vunpack.c.l.b16 %v10317
    %v10663 = vunpack.c.h.b16 %v10317
    %v10664 = vunpack.c.l.b16 %v10318
    %v10665 = vunpack.c.h.b16 %v10318
    %v10666 = vunpack.c.l.b16 %v10319
    %v10667 = vunpack.c.h.b16 %v10319
    %v10668 = vunpack.c.l.b16 %v10320
    %v10669 = vunpack.c.h.b16 %v10320
    %v10670 = vunpack.c.l.b16 %v10321
    %v10671 = vunpack.c.h.b16 %v10321
    %v10672 = vunpack.c.l.b16 %v10322
    %v10673 = vunpack.c.h.b16 %v10322
    %v10674 = vunpack.c.l.b16 %v10323
    %v10675 = vunpack.c.h.b16 %v10323
    %v10676 = vunpack.c.l.b16 %v10324
    %v10677 = vunpack.c.h.b16 %v10324
    %v10678 = vunpack.c.l.b16 %v10325
    %v10679 = vunpack.c.h.b16 %v10325
    %v10680 = vunpack.c.l.b16 %v10326
    %v10681 = vunpack.c.h.b16 %v10326
    %v10682 = vunpack.c.l.b16 %v10327
    %v10683 = vunpack.c.h.b16 %v10327
    %v10684 = vunpack.c.l.b16 %v10328
    %v10685 = vunpack.c.h.b16 %v10328
    %v10686 = vunpack.c.l.b16 %v10329
    %v10687 = vunpack.c.h.b16 %v10329
    %v10688 = vunpack.c.l.b16 %v10330
    %v10689 = vunpack.c.h.b16 %v10330
    %v10690 = vunpack.c.l.b16 %v10331
    %v10691 = vunpack.c.h.b16 %v10331
    %v10692 = vunpack.c.l.b16 %v10332
    %v10693 = vunpack.c.h.b16 %v10332
    %v10694 = vunpack.c.l.b16 %v10333
    %v10695 = vunpack.c.h.b16 %v10333
    %v10696 = vunpack.c.l.b16 %v10334
    %v10697 = vunpack.c.h.b16 %v10334
    %v10698 = vunpack.c.l.b16 %v10335
    %v10699 = vunpack.c.h.b16 %v10335
    %v10700 = vunpack.c.l.b16 %v10336
    %v10701 = vunpack.c.h.b16 %v10336
    %v10702 = vunpack.c.l.b16 %v10337
    %v10703 = vunpack.c.h.b16 %v10337
    %v10704 = vunpack.c.l.b16 %v10338
    %v10705 = vunpack.c.h.b16 %v10338
    %v10706 = vunpack.c.l.b16 %v10339
    %v10707 = vunpack.c.h.b16 %v10339
    %v10708 = vunpack.c.l.b16 %v10340
    %v10709 = vunpack.c.h.b16 %v10340
    %v10710 = vunpack.c.l.b16 %v10341
    %v10711 = vunpack.c.h.b16 %v10341
    %v10712 = vunpack.c.l.b16 %v10342
    %v10713 = vunpack.c.h.b16 %v10342
    %v10714 = vunpack.c.l.b16 %v10343
    %v10715 = vunpack.c.h.b16 %v10343
    %v10716 = vunpack.c.l.b16 %v10344
    %v10717 = vunpack.c.h.b16 %v10344
    %v10718 = vunpack.c.l.b16 %v10345
    %v10719 = vunpack.c.h.b16 %v10345
    %v10720 = vunpack.c.l.b16 %v10346
    %v10721 = vunpack.c.h.b16 %v10346
    %v10722 = vunpack.c.l.b16 %v10347
    %v10723 = vunpack.c.h.b16 %v10347
    %v10724 = vunpack.c.l.b16 %v10348
    %v10725 = vunpack.c.h.b16 %v10348
    %v10726 = vunpack.c.l.b16 %v10349
    %v10727 = vunpack.c.h.b16 %v10349
    %v10728 = vunpack.c.l.b16 %v10350
    %v10729 = vunpack.c.h.b16 %v10350
    %v10730 = vunpack.c.l.b16 %v10351
    %v10731 = vunpack.c.h.b16 %v10351
    %v10732 = vunpack.c.l.b16 %v10352
    %v10733 = vunpack.c.h.b16 %v10352
    %v10734 = vunpack.c.l.b16 %v10353
    %v10735 = vunpack.c.h.b16 %v10353
    %v10736 = vunpack.c.l.b16 %v10354
    %v10737 = vunpack.c.h.b16 %v10354
    %v10738 = vunpack.c.l.b16 %v10355
    %v10739 = vunpack.c.h.b16 %v10355
    %v10740 = vunpack.c.l.b16 %v10356
    %v10741 = vunpack.c.h.b16 %v10356
    %v10742 = vunpack.c.l.b16 %v10357
    %v10743 = vunpack.c.h.b16 %v10357
    %v10744 = vunpack.c.l.b16 %v10358
    %v10745 = vunpack.c.h.b16 %v10358
    %v10746 = vunpack.c.l.b16 %v10359
    %v10747 = vunpack.c.h.b16 %v10359
    %v10748 = vunpack.c.l.b16 %v10360
    %v10749 = vunpack.c.h.b16 %v10360
    %v10750 = vunpack.c.l.b16 %v10361
    %v10751 = vunpack.c.h.b16 %v10361
    %v10752 = vunpack.c.l.b16 %v10362
    %v10753 = vunpack.c.h.b16 %v10362
    %v10754 = vunpack.c.l.b16 %v10363
    %v10755 = vunpack.c.h.b16 %v10363
    %v10756 = vunpack.c.l.b16 %v10364
    %v10757 = vunpack.c.h.b16 %v10364
    %v10758 = vunpack.c.l.b16 %v10365
    %v10759 = vunpack.c.h.b16 %v10365
    %v10760 = vunpack.c.l.b16 %v10366
    %v10761 = vunpack.c.h.b16 %v10366
    %v10762 = vunpack.c.l.b16 %v10367
    %v10763 = vunpack.c.h.b16 %v10367
    %v10764 = vpack.c.b16 %v10510, %v10508
    %v10765 = vpack.c.b16 %v10511, %v10509
    %v10766 = vpack.c.b16 %v10514, %v10512
    %v10767 = vpack.c.b16 %v10515, %v10513
    %v10768 = vpack.c.b16 %v10518, %v10516
    %v10769 = vpack.c.b16 %v10519, %v10517
    %v10770 = vpack.c.b16 %v10522, %v10520
    %v10771 = vpack.c.b16 %v10523, %v10521
    %v10772 = vpack.c.b16 %v10526, %v10524
    %v10773 = vpack.c.b16 %v10527, %v10525
    %v10774 = vpack.c.b16 %v10530, %v10528
    %v10775 = vpack.c.b16 %v10531, %v10529
    %v10776 = vpack.c.b16 %v10534, %v10532
    %v10777 = vpack.c.b16 %v10535, %v10533
    %v10778 = vpack.c.b16 %v10538, %v10536
    %v10779 = vpack.c.b16 %v10539, %v10537
    %v10780 = vpack.c.b16 %v10542, %v10540
    %v10781 = vpack.c.b16 %v10543, %v10541
    %v10782 = vpack.c.b16 %v10546, %v10544
    %v10783 = vpack.c.b16 %v10547, %v10545
    %v10784 = vpack.c.b16 %v10550, %v10548
    %v10785 = vpack.c.b16 %v10551, %v10549
    %v10786 = vpack.c.b16 %v10554, %v10552
    %v10787 = vpack.c.b16 %v10555, %v10553
    %v10788 = vpack.c.b16 %v10558, %v10556
    %v10789 = vpack.c.b16 %v10559, %v10557
    %v10790 = vpack.c.b16 %v10562, %v10560
    %v10791 = vpack.c.b16 %v10563, %v10561
    %v10792 = vpack.c.b16 %v10566, %v10564
    %v10793 = vpack.c.b16 %v10567, %v10565
    %v10794 = vpack.c.b16 %v10570, %v10568
    %v10795 = vpack.c.b16 %v10571, %v10569
    %v10796 = vpack.c.b16 %v10574, %v10572
    %v10797 = vpack.c.b16 %v10575, %v10573
    %v10798 = vpack.c.b16 %v10578, %v10576
    %v10799 = vpack.c.b16 %v10579, %v10577
    %v10800 = vpack.c.b16 %v10582, %v10580
    %v10801 = vpack.c.b16 %v10583, %v10581
    %v10802 = vpack.c.b16 %v10586, %v10584
    %v10803 = vpack.c.b16 %v10587, %v10585
    %v10804 = vpack.c.b16 %v10590, %v10588
    %v10805 = vpack.c.b16 %v10591, %v10589
    %v10806 = vpack.c.b16 %v10594, %v10592
    %v10807 = vpack.c.b16 %v10595, %v10593
    %v10808 = vpack.c.b16 %v10598, %v10596
    %v10809 = vpack.c.b16 %v10599, %v10597
    %v10810 = vpack.c.b16 %v10602, %v10600
    %v10811 = vpack.c.b16 %v10603, %v10601
    %v10812 = vpack.c.b16 %v10606, %v10604
    %v10813 = vpack.c.b16 %v10607, %v10605
    %v10814 = vpack.c.b16 %v10610, %v10608
    %v10815 = vpack.c.b16 %v10611, %v10609
    %v10816 = vpack.c.b16 %v10614, %v10612
    %v10817 = vpack.c.b16 %v10615, %v10613
    %v10818 = vpack.c.b16 %v10618, %v10616
    %v10819 = vpack.c.b16 %v10619, %v10617
    %v10820 = vpack.c.b16 %v10622, %v10620
    %v10821 = vpack.c.b16 %v10623, %v10621
    %v10822 = vpack.c.b16 %v10626, %v10624
    %v10823 = vpack.c.b16 %v10627, %v10625
    %v10824 = vpack.c.b16 %v10630, %v10628
    %v10825 = vpack.c.b16 %v10631, %v10629
    %v10826 = vpack.c.b16 %v10634, %v10632
    %v10827 = vpack.c.b16 %v10635, %v10633
    %v10828 = vpack.c.b16 %v10638, %v10636
    %v10829 = vpack.c.b16 %v10639, %v10637
    %v10830 = vpack.c.b16 %v10642, %v10640
    %v10831 = vpack.c.b16 %v10643, %v10641
    %v10832 = vpack.c.b16 %v10646, %v10644
    %v10833 = vpack.c.b16 %v10647, %v10645
    %v10834 = vpack.c.b16 %v10650, %v10648
    %v10835 = vpack.c.b16 %v10651, %v10649
    %v10836 = vpack.c.b16 %v10654, %v10652
    %v10837 = vpack.c.b16 %v10655, %v10653
    %v10838 = vpack.c.b16 %v10658, %v10656
    %v10839 = vpack.c.b16 %v10659, %v10657
    %v10840 = vpack.c.b16 %v10662, %v10660
    %v10841 = vpack.c.b16 %v10663, %v10661
    %v10842 = vpack.c.b16 %v10666, %v10664
    %v10843 = vpack.c.b16 %v10667, %v10665
    %v10844 = vpack.c.b16 %v10670, %v10668
    %v10845 = vpack.c.b16 %v10671, %v10669
    %v10846 = vpack.c.b16 %v10674, %v10672
    %v10847 = vpack.c.b16 %v10675, %v10673
    %v10848 = vpack.c.b16 %v10678, %v10676
    %v10849 = vpack.c.b16 %v10679, %v10677
    %v10850 = vpack.c.b16 %v10682, %v10680
    %v10851 = vpack.c.b16 %v10683, %v10681
    %v10852 = vpack.c.b16 %v10686, %v10684
    %v10853 = vpack.c.b16 %v10687, %v10685
    %v10854 = vpack.c.b16 %v10690, %v10688
    %v10855 = vpack.c.b16 %v10691, %v10689
    %v10856 = vpack.c.b16 %v10694, %v10692
    %v10857 = vpack.c.b16 %v10695, %v10693
    %v10858 = vpack.c.b16 %v10698, %v10696
    %v10859 = vpack.c.b16 %v10699, %v10697
    %v10860 = vpack.c.b16 %v10702, %v10700
    %v10861 = vpack.c.b16 %v10703, %v10701
    %v10862 = vpack.c.b16 %v10706, %v10704
    %v10863 = vpack.c.b16 %v10707, %v10705
    %v10864 = vpack.c.b16 %v10710, %v10708
    %v10865 = vpack.c.b16 %v10711, %v10709
    %v10866 = vpack.c.b16 %v10714, %v10712
    %v10867 = vpack.c.b16 %v10715, %v10713
    %v10868 = vpack.c.b16 %v10718, %v10716
    %v10869 = vpack.c.b16 %v10719, %v10717
    %v10870 = vpack.c.b16 %v10722, %v10720
    %v10871 = vpack.c.b16 %v10723, %v10721
    %v10872 = vpack.c.b16 %v10726, %v10724
    %v10873 = vpack.c.b16 %v10727, %v10725
    %v10874 = vpack.c.b16 %v10730, %v10728
    %v10875 = vpack.c.b16 %v10731, %v10729
    %v10876 = vpack.c.b16 %v10734, %v10732
    %v10877 = vpack.c.b16 %v10735, %v10733
    %v10878 = vpack.c.b16 %v10738, %v10736
    %v10879 = vpack.c.b16 %v10739, %v10737
    %v10880 = vpack.c.b16 %v10742, %v10740
    %v10881 = vpack.c.b16 %v10743, %v10741
    %v10882 = vpack.c.b16 %v10746, %v10744
    %v10883 = vpack.c.b16 %v10747, %v10745
    %v10884 = vpack.c.b16 %v10750, %v10748
    %v10885 = vpack.c.b16 %v10751, %v10749
    %v10886 = vpack.c.b16 %v10754, %v10752
    %v10887 = vpack.c.b16 %v10755, %v10753
    %v10888 = vpack.c.b16 %v10758, %v10756
    %v10889 = vpack.c.b16 %v10759, %v10757
    %v10890 = vpack.c.b16 %v10762, %v10760
    %v10891 = vpack.c.b16 %v10763, %v10761
    %11020 = vmatprep.subr.bf16.mxu0 %v10779
    %11021 = vmatpush1.bf16.msra.mxu0 %v10778
    %11022 = vmatprep.subr.bf16.mxu0 %v10777
    %11023 = vmatpush1.bf16.msra.mxu0 %v10776
    %11024 = vmatprep.subr.bf16.mxu0 %v10775
    %11025 = vmatpush1.bf16.msra.mxu0 %v10774
    %11026 = vmatprep.subr.bf16.mxu0 %v10773
    %11027 = vmatpush1.bf16.msra.mxu0 %v10772
    %11028 = vmatprep.subr.bf16.mxu0 %v10771
    %11029 = vmatpush1.bf16.msra.mxu0 %v10770
    %11030 = vmatprep.subr.bf16.mxu0 %v10769
    %11031 = vmatpush1.bf16.msra.mxu0 %v10768
    %11032 = vmatprep.subr.bf16.mxu0 %v10767
    %11033 = vmatpush1.bf16.msra.mxu0 %v10766
    %11034 = vmatprep.subr.bf16.mxu0 %v10765
    %11035 = vmatpush1.bf16.msra.mxu0 %v10764
    %11036 = vmatprep.subr.bf16.mxu0 %v10795
    %11037 = vmatpush2.bf16.msra.mxu0 %v10794
    %11038 = vmatprep.subr.bf16.mxu0 %v10793
    %11039 = vmatpush2.bf16.msra.mxu0 %v10792
    %11040 = vmatprep.subr.bf16.mxu0 %v10791
    %11041 = vmatpush2.bf16.msra.mxu0 %v10790
    %11042 = vmatprep.subr.bf16.mxu0 %v10789
    %11043 = vmatpush2.bf16.msra.mxu0 %v10788
    %11044 = vmatprep.subr.bf16.mxu0 %v10787
    %11045 = vmatpush2.bf16.msra.mxu0 %v10786
    %11046 = vmatprep.subr.bf16.mxu0 %v10785
    %11047 = vmatpush2.bf16.msra.mxu0 %v10784
    %11048 = vmatprep.subr.bf16.mxu0 %v10783
    %11049 = vmatpush2.bf16.msra.mxu0 %v10782
    %11050 = vmatprep.subr.bf16.mxu0 %v10781
    %11051 = vmatpush2.bf16.msra.mxu0 %v10780
    %11052 = vmatprep.mubr.bf16.mxu0 %v9287
    %11053 = vmatmul.mubr.bf16.gmra.mxu0 %v9286
    %v11054 = vpop.f32.mrf.mxu0
    %v11055 = vadd.f32 %v10373, %v11054
    %v11056 = vpop.f32.mrf.mxu0
    %v11057 = vadd.f32 %v10377, %v11056
    %v11058 = vpop.f32.mrf.mxu0
    %v11059 = vpop.f32.mrf.mxu0
    %11060 = vdwg.mxu0
    %11061 = vmatprep.subr.bf16.mxu0 %v10811
    %11062 = vmatpush1.bf16.msra.mxu0 %v10810
    %11063 = vmatprep.subr.bf16.mxu0 %v10809
    %11064 = vmatpush1.bf16.msra.mxu0 %v10808
    %11065 = vmatprep.subr.bf16.mxu0 %v10807
    %11066 = vmatpush1.bf16.msra.mxu0 %v10806
    %11067 = vmatprep.subr.bf16.mxu0 %v10805
    %11068 = vmatpush1.bf16.msra.mxu0 %v10804
    %11069 = vmatprep.subr.bf16.mxu0 %v10803
    %11070 = vmatpush1.bf16.msra.mxu0 %v10802
    %11071 = vmatprep.subr.bf16.mxu0 %v10801
    %11072 = vmatpush1.bf16.msra.mxu0 %v10800
    %11073 = vmatprep.subr.bf16.mxu0 %v10799
    %11074 = vmatpush1.bf16.msra.mxu0 %v10798
    %11075 = vmatprep.subr.bf16.mxu0 %v10797
    %11076 = vmatpush1.bf16.msra.mxu0 %v10796
    %11077 = vmatprep.subr.bf16.mxu0 %v10827
    %11078 = vmatpush2.bf16.msra.mxu0 %v10826
    %11079 = vmatprep.subr.bf16.mxu0 %v10825
    %11080 = vmatpush2.bf16.msra.mxu0 %v10824
    %11081 = vmatprep.subr.bf16.mxu0 %v10823
    %11082 = vmatpush2.bf16.msra.mxu0 %v10822
    %11083 = vmatprep.subr.bf16.mxu0 %v10821
    %11084 = vmatpush2.bf16.msra.mxu0 %v10820
    %11085 = vmatprep.subr.bf16.mxu0 %v10819
    %11086 = vmatpush2.bf16.msra.mxu0 %v10818
    %11087 = vmatprep.subr.bf16.mxu0 %v10817
    %11088 = vmatpush2.bf16.msra.mxu0 %v10816
    %11089 = vmatprep.subr.bf16.mxu0 %v10815
    %11090 = vmatpush2.bf16.msra.mxu0 %v10814
    %11091 = vmatprep.subr.bf16.mxu0 %v10813
    %11092 = vmatpush2.bf16.msra.mxu0 %v10812
    %11093 = vmatprep.mubr.bf16.mxu0 %v9289
    %11094 = vmatmul.mubr.bf16.gmra.mxu0 %v9288
    %v11095 = vpop.f32.mrf.mxu0
    %v11096 = vadd.f32 %v11055, %v11095
    %v11097 = vpop.f32.mrf.mxu0
    %v11098 = vadd.f32 %v11057, %v11097
    %v11099 = vpop.f32.mrf.mxu0
    %v11100 = vpop.f32.mrf.mxu0
    %11101 = vdwg.mxu0
    %11102 = vmatprep.subr.bf16.mxu0 %v10843
    %11103 = vmatpush1.bf16.msra.mxu0 %v10842
    %11104 = vmatprep.subr.bf16.mxu0 %v10841
    %11105 = vmatpush1.bf16.msra.mxu0 %v10840
    %11106 = vmatprep.subr.bf16.mxu0 %v10839
    %11107 = vmatpush1.bf16.msra.mxu0 %v10838
    %11108 = vmatprep.subr.bf16.mxu0 %v10837
    %11109 = vmatpush1.bf16.msra.mxu0 %v10836
    %11110 = vmatprep.subr.bf16.mxu0 %v10835
    %11111 = vmatpush1.bf16.msra.mxu0 %v10834
    %11112 = vmatprep.subr.bf16.mxu0 %v10833
    %11113 = vmatpush1.bf16.msra.mxu0 %v10832
    %11114 = vmatprep.subr.bf16.mxu0 %v10831
    %11115 = vmatpush1.bf16.msra.mxu0 %v10830
    %11116 = vmatprep.subr.bf16.mxu0 %v10829
    %11117 = vmatpush1.bf16.msra.mxu0 %v10828
    %11118 = vmatprep.subr.bf16.mxu0 %v10859
    %11119 = vmatpush2.bf16.msra.mxu0 %v10858
    %11120 = vmatprep.subr.bf16.mxu0 %v10857
    %11121 = vmatpush2.bf16.msra.mxu0 %v10856
    %11122 = vmatprep.subr.bf16.mxu0 %v10855
    %11123 = vmatpush2.bf16.msra.mxu0 %v10854
    %11124 = vmatprep.subr.bf16.mxu0 %v10853
    %11125 = vmatpush2.bf16.msra.mxu0 %v10852
    %11126 = vmatprep.subr.bf16.mxu0 %v10851
    %11127 = vmatpush2.bf16.msra.mxu0 %v10850
    %11128 = vmatprep.subr.bf16.mxu0 %v10849
    %11129 = vmatpush2.bf16.msra.mxu0 %v10848
    %11130 = vmatprep.subr.bf16.mxu0 %v10847
    %11131 = vmatpush2.bf16.msra.mxu0 %v10846
    %11132 = vmatprep.subr.bf16.mxu0 %v10845
    %11133 = vmatpush2.bf16.msra.mxu0 %v10844
    %11134 = vmatprep.mubr.bf16.mxu0 %v9291
    %11135 = vmatmul.mubr.bf16.gmra.mxu0 %v9290
    %v11136 = vpop.f32.mrf.mxu0
    %v11137 = vadd.f32 %v11096, %v11136
    %v11138 = vpop.f32.mrf.mxu0
    %v11139 = vadd.f32 %v11098, %v11138
    %v11140 = vpop.f32.mrf.mxu0
    %v11141 = vpop.f32.mrf.mxu0
    %11142 = vdwg.mxu0
    %11143 = vmatprep.subr.bf16.mxu0 %v10875
    %11144 = vmatpush1.bf16.msra.mxu0 %v10874
    %11145 = vmatprep.subr.bf16.mxu0 %v10873
    %11146 = vmatpush1.bf16.msra.mxu0 %v10872
    %11147 = vmatprep.subr.bf16.mxu0 %v10871
    %11148 = vmatpush1.bf16.msra.mxu0 %v10870
    %11149 = vmatprep.subr.bf16.mxu0 %v10869
    %11150 = vmatpush1.bf16.msra.mxu0 %v10868
    %11151 = vmatprep.subr.bf16.mxu0 %v10867
    %11152 = vmatpush1.bf16.msra.mxu0 %v10866
    %11153 = vmatprep.subr.bf16.mxu0 %v10865
    %11154 = vmatpush1.bf16.msra.mxu0 %v10864
    %11155 = vmatprep.subr.bf16.mxu0 %v10863
    %11156 = vmatpush1.bf16.msra.mxu0 %v10862
    %11157 = vmatprep.subr.bf16.mxu0 %v10861
    %11158 = vmatpush1.bf16.msra.mxu0 %v10860
    %11159 = vmatprep.subr.bf16.mxu0 %v10891
    %11160 = vmatpush2.bf16.msra.mxu0 %v10890
    %11161 = vmatprep.subr.bf16.mxu0 %v10889
    %11162 = vmatpush2.bf16.msra.mxu0 %v10888
    %11163 = vmatprep.subr.bf16.mxu0 %v10887
    %11164 = vmatpush2.bf16.msra.mxu0 %v10886
    %11165 = vmatprep.subr.bf16.mxu0 %v10885
    %11166 = vmatpush2.bf16.msra.mxu0 %v10884
    %11167 = vmatprep.subr.bf16.mxu0 %v10883
    %11168 = vmatpush2.bf16.msra.mxu0 %v10882
    %11169 = vmatprep.subr.bf16.mxu0 %v10881
    %11170 = vmatpush2.bf16.msra.mxu0 %v10880
    %11171 = vmatprep.subr.bf16.mxu0 %v10879
    %11172 = vmatpush2.bf16.msra.mxu0 %v10878
    %11173 = vmatprep.subr.bf16.mxu0 %v10877
    %11174 = vmatpush2.bf16.msra.mxu0 %v10876
    %11175 = vmatprep.mubr.bf16.mxu0 %v9293
    %11176 = vmatmul.mubr.bf16.gmra.mxu0 %v9292
    %v11177 = vpop.f32.mrf.mxu0
    %v11178 = vadd.f32 %v11137, %v11177
    %v11179 = vpop.f32.mrf.mxu0
    %v11180 = vadd.f32 %v11139, %v11179
    %v11181 = vpop.f32.mrf.mxu0
    %v11182 = vpop.f32.mrf.mxu0
    %11183 = vdwg.mxu0
    %v11184 = vmax.f32 %v11178, 0.0
    %v11185 = vmax.f32 %v11180, 0.0
    %v11186 = vld [vmem:[%s47] sm:$0x3]
    %v11188 = vlaneseq
    %v11189 = vshrl.u32 %v11188, 7
    %v11190 = vsub.s32 0, %v11189
    %v11191 = vrot.slane %v11186, %v11190
    %v11192 = vlaneseq
    %v11193 = vshrl.u32 %v11192, 7
    %v11194 = vsub.s32 1, %v11193
    %v11195 = vrot.slane %v11186, %v11194
    %v11198 = vmul.f32 %v10238, %v11191
    %v11199 = vmul.f32 %v10239, %v11195
    %v11200 = vadd.f32 %v11198, %v11199
    %11201 = vadd.xlane.f32.xlu0 %v11200
    %v11202 = vpop.xlane.xlu0 %11201
    %v11203 = vld [vmem:[#allocation2] sm:$0x1]
    %v11205 = vlaneseq
    %v11206 = vshrl.u32 %v11205, 7
    %v11207 = vsub.s32 0, %v11206
    %v11208 = vrot.slane %v11203, %v11207
    %v11210 = vadd.f32 %v11202, %v11208
    %v11211 = vmax.f32 %v11210, -1.0
    %v11212 = vmin.f32 %v11211, 1.0
    %v11213 = vld [vmem:[%s51] sm:$0x3]
    %v11215 = vlaneseq
    %v11216 = vshrl.u32 %v11215, 7
    %v11217 = vsub.s32 0, %v11216
    %v11218 = vrot.slane %v11213, %v11217
    %v11219 = vlaneseq
    %v11220 = vshrl.u32 %v11219, 7
    %v11221 = vsub.s32 1, %v11220
    %v11222 = vrot.slane %v11213, %v11221
    %v11225 = vmul.f32 %v11184, %v11218
    %v11226 = vmul.f32 %v11185, %v11222
    %v11227 = vadd.f32 %v11225, %v11226
    %11228 = vadd.xlane.f32.xlu0 %v11227
    %v11229 = vpop.xlane.xlu0 %11228
    %v11230 = vld [vmem:[#allocation3] sm:$0x1]
    %v11232 = vlaneseq
    %v11233 = vshrl.u32 %v11232, 7
    %v11234 = vsub.s32 0, %v11233
    %v11235 = vrot.slane %v11230, %v11234
    %v11237 = vadd.f32 %v11229, %v11235
    %v11238 = vmax.f32 %v11237, -1.0
    %v11239 = vmin.f32 %v11238, 1.0
    %v11240 = vadd.f32 %v11212, %v11239
    %v11241 = vmul.f32 %v11240, 0.5
    %v11242 = vlaneseq
    %v11243 = vand.u32 %v11242, 127
    %vm11244 = vcmp.eq.s32.totalorder %v11243, 0
    %vm11245 = vcmp.eq.s32.totalorder %v11243, 1
    %11247 = vset.pattern.permute.xlu0 0
    %11248 = vperm.xlu0 %11247, %v11239
    %v11249 = vpop.permute.xlu0 %11248
    %11252 = vset.pattern.permute.xlu0 0
    %11253 = vperm.xlu0 %11252, %v11241
    %v11254 = vpop.permute.xlu0 %11253
    %v11256 = vsel %vm11245, %v11249, %v11254
    %11258 = vset.pattern.permute.xlu0 0
    %11259 = vperm.xlu0 %11258, %v11212
    %v11260 = vpop.permute.xlu0 %11259
    %v11262 = vsel %vm11244, %v11260, %v11256
    %vm11263 = vcmask 23552
    %11264 = vst.msk [vmem:[%s61] sm:$0xff] %vm11263, %v11262
    // Predicated region
    $region166: #{aug_ssp_pallas.1} parent=1 // pred_check
      _
    $region167: #{aug_ssp_pallas.1} parent=1 // pred_check_branch
      %11266 = sbr.rel (0) target = $region169
    $region168: #{aug_ssp_pallas.1} parent=1 // pred_region
      %s11268 = ssub.s32 256, 256
      %11269 = vsyncadd [#allocation6], %s11268
      %s11271 = sshll.u32 [#allocation27], 4
      %s11272 = int_to_ptr.vmem [resolvable:$true] %s11271
      %11274 = dma.vmem_to_hbm [thread:$0]  %s11272, 256, %s55, [#allocation6]
    $region169: #{aug_ssp_pallas.1} parent=1 // pred_fallthru
      _
    // Predicated region
    $region170: #{aug_ssp_pallas.1} parent=1 // pred_check
      _
    $region171: #{aug_ssp_pallas.1} parent=1 // pred_check_branch
      %11276 = sbr.rel (0) target = $region173
    $region172: #{aug_ssp_pallas.1} parent=1 // pred_region
      %s11278 = ssub.s32 256, 256
      %11279 = vsyncadd [#allocation29], %s11278
      %s11281 = sshll.u32 [#allocation28], 4
      %s11282 = int_to_ptr.vmem [resolvable:$true] %s11281
      %11284 = dma.vmem_to_hbm [thread:$0]  %s11282, 256, %s57, [#allocation29]
    $region173: #{aug_ssp_pallas.1} parent=1 // pred_fallthru
      _
    // Predicated region
    $region174: #{aug_ssp_pallas.1} parent=1 // pred_check
      _
    $region175: #{aug_ssp_pallas.1} parent=1 // pred_check_branch
      %11286 = sbr.rel (0) target = $region177
    $region176: #{aug_ssp_pallas.1} parent=1 // pred_region
      %s11288 = ssub.s32 256, 256
      %11289 = vsyncadd [#allocation29], %s11288
      %s11291 = sshll.u32 [#allocation30], 4
      %s11292 = int_to_ptr.vmem [resolvable:$true] %s11291
      %11294 = dma.vmem_to_hbm [thread:$0]  %s11292, 256, %s59, [#allocation29]
    $region177: #{aug_ssp_pallas.1} parent=1 // pred_fallthru
      _
    // Predicated region
    $region178: #{aug_ssp_pallas.1} parent=1 // pred_check
      _
    $region179: #{aug_ssp_pallas.1} parent=1 // pred_check_branch
      %11296 = sbr.rel (0) target = $region181
    $region180: #{aug_ssp_pallas.1} parent=1 // pred_region
      _
    $region181: #{aug_ssp_pallas.1} parent=1 // pred_fallthru
      _
    // Predicated region
    $region182: #{aug_ssp_pallas.1} parent=1 // pred_check
      _
    $region183: #{aug_ssp_pallas.1} parent=1 // pred_check_branch
      %11298 = sbr.rel (0) target = $region185
    $region184: #{aug_ssp_pallas.1} parent=1 // pred_region
      %11299 = dma.done [#allocation6], 256
    $region185: #{aug_ssp_pallas.1} parent=1 // pred_fallthru
      _
    // Predicated region
    $region186: #{aug_ssp_pallas.1} parent=1 // pred_check
      _
    $region187: #{aug_ssp_pallas.1} parent=1 // pred_check_branch
      %11301 = sbr.rel (0) target = $region189
    $region188: #{aug_ssp_pallas.1} parent=1 // pred_region
      %11302 = dma.done [#allocation29], 256
    $region189: #{aug_ssp_pallas.1} parent=1 // pred_fallthru
      _
    // Predicated region
    $region190: #{aug_ssp_pallas.1} parent=1 // pred_check
      _
    $region191: #{aug_ssp_pallas.1} parent=1 // pred_check_branch
      %11304 = sbr.rel (0) target = $region193
    $region192: #{aug_ssp_pallas.1} parent=1 // pred_region
      %11305 = dma.done [#allocation29], 256
    $region193: #{aug_ssp_pallas.1} parent=1 // pred_fallthru
      _
    // Predicated region
    $region194: #{aug_ssp_pallas.1} parent=1 // pred_check
      _
    $region195: #{aug_ssp_pallas.1} parent=1 // pred_check_branch
      %11307 = sbr.rel (0) target = $region197
    $region196: #{aug_ssp_pallas.1} parent=1 // pred_region
      _
    $region197: #{aug_ssp_pallas.1} parent=1 // pred_fallthru
      _
    %11308 = vsyncpa [#allocation5], 1
    %11309 = vsyncpa [#allocation8], 1
    %11310 = vsyncpa [#allocation11], 1
    %11311 = vsyncpa [#allocation14], 1
    %11312 = vsyncpa [#allocation17], 1
    %11313 = vsyncpa [#allocation20], 1
    %11314 = vsyncpa [#allocation23], 1
    %11315 = vsyncpa [#allocation26], 1
    %11316 = vsyncpa [#allocation6], 1
    %11317 = vsyncpa [#allocation29], 1

</llo_original>
